<compile_context>
chip_gen: v5e
topology: v5e:2x2
jax: 0.10.0
libtpu: 0.0.40
codegen_flags: <defaults>
</compile_context>

<pallas_src>
import jax
import jax.numpy as jnp
from jax import lax
from jax.experimental import pallas as pl
from jax.experimental.pallas import tpu as pltpu

G_FEAT = 64          # g_size_feature
NUM_CHANNELS = 3
SIZE_Z = 100
K = 4                # every ConvTranspose2d uses a 4x4 kernel
BN_EPS = 1e-5
VMEM_LIMIT = 32 * 1024 * 1024   # well under v7x's 64 MiB/TC, plenty everywhere


def _pick_tile(m, cap):
    """Largest row tile <= cap that divides m (multiple of 8), else m."""
    if m <= cap:
        return m
    for t in range(cap, 7, -1):
        if m % t == 0 and t % 8 == 0:
            return t
    return m


# ----------------------------------------------------------------------------
# Pallas kernels
# ----------------------------------------------------------------------------
def _mm_stats_kernel(p_ref, w_ref, y_ref, s_ref):
    # (tm, Kd) bf16 @ (Kd, C) bf16 -> f32 on the MXU, plus per-block BN partials.
    acc = jnp.dot(p_ref[...], w_ref[...], preferred_element_type=jnp.float32)
    y_ref[...] = acc
    s_ref[0:1, :] = jnp.sum(acc, axis=0, keepdims=True)         # sum
    s_ref[1:2, :] = jnp.sum(acc * acc, axis=0, keepdims=True)   # sum of squares


def _mm_tanh_kernel(p_ref, w_ref, y_ref):
    acc = jnp.dot(p_ref[...], w_ref[...], preferred_element_type=jnp.float32)
    y_ref[...] = jnp.tanh(acc)          # EUP epilogue fused with the matmul


def _bn_relu_apply_kernel(y_ref, sc_ref, sh_ref, o_ref):
    y = y_ref[...]                      # keep elementwise math in f32 (v5e)
    o_ref[...] = jnp.maximum(y * sc_ref[...] + sh_ref[...], 0.0).astype(o_ref.dtype)


# ----------------------------------------------------------------------------
# Pallas wrappers
# ----------------------------------------------------------------------------
def _grouped_matmul(patches, weights, *, fuse_tanh=False, tm_cap=1024):
    """y[g] = patches[g or 0] @ weights[g].

    patches: (Gp, M, Kd) bf16 with Gp in {1, G}; weights: (G, Kd, C) bf16.
    Returns (y f32 (G, M, C), stats f32 (G, MB, 2, C) or None).
    """
    gp, m, kd = patches.shape
    g_num, kw, c = weights.shape
    assert kw == kd and gp in (1, g_num)
    tm = _pick_tile(m, tm_cap)
    mb = m // tm
    shared = gp == 1

    p_spec = pl.BlockSpec((None, tm, kd),
                          lambda g, i: (0 if shared else g, i, 0))
    w_spec = pl.BlockSpec((None, kd, c), lambda g, i: (g, 0, 0))
    y_spec = pl.BlockSpec((None, tm, c), lambda g, i: (g, i, 0))
    cparams = pltpu.CompilerParams(
        dimension_semantics=("parallel", "parallel"),
        vmem_limit_bytes=VMEM_LIMIT)

    if fuse_tanh:
        y = pl.pallas_call(
            _mm_tanh_kernel,
            out_shape=jax.ShapeDtypeStruct((g_num, m, c), jnp.float32),
            grid=(g_num, mb),
            in_specs=[p_spec, w_spec],
            out_specs=y_spec,
            compiler_params=cparams,
        )(patches, weights)
        return y, None

    y, stats = pl.pallas_call(
        _mm_stats_kernel,
        out_shape=(jax.ShapeDtypeStruct((g_num, m, c), jnp.float32),
                   jax.ShapeDtypeStruct((g_num, mb, 2, c), jnp.float32)),
        grid=(g_num, mb),
        in_specs=[p_spec, w_spec],
        out_specs=(y_spec,
                   pl.BlockSpec((None, None, 2, c), lambda g, i: (g, i, 0, 0))),
        compiler_params=cparams,
    )(patches, weights)
    return y, stats


def _bn_relu(y, stats, gamma, beta, tb_cap=512):
    """Training-mode BatchNorm2d + ReLU on conv output y (G, M, C) -> bf16."""
    g_num, m, c = y.shape
    s = jnp.sum(stats, axis=(0, 1))                       # (2, C) f32
    count = jnp.float32(g_num * m)                        # == N * Hout * Wout
    mean = s[0] / count
    var = jnp.maximum(s[1] / count - mean * mean, 0.0)    # biased variance
    scale = gamma * lax.rsqrt(var + BN_EPS)
    shift = beta - mean * scale

    rows = g_num * m
    tb = _pick_tile(rows, tb_cap)
    out = pl.pallas_call(
        _bn_relu_apply_kernel,
        out_shape=jax.ShapeDtypeStruct((rows, c), jnp.bfloat16),
        grid=(rows // tb,),
        in_specs=[pl.BlockSpec((tb, c), lambda i: (i, 0)),
                  pl.BlockSpec((1, c), lambda i: (0, 0)),
                  pl.BlockSpec((1, c), lambda i: (0, 0))],
        out_specs=pl.BlockSpec((tb, c), lambda i: (i, 0)),
        compiler_params=pltpu.CompilerParams(
            dimension_semantics=("parallel",),
            vmem_limit_bytes=VMEM_LIMIT),
    )(y.reshape(rows, c), scale.reshape(1, c), shift.reshape(1, c))
    return out.reshape(g_num, m, c)


# ----------------------------------------------------------------------------
# Plain-JAX layout glue (sub-pixel decomposition of the transposed convs)
# ----------------------------------------------------------------------------
def _phase_patches(x):
    """Sub-pixel patches for a stride-2 / pad-1 / 4x4 transposed conv.

    x: (N, H, W, Cin) bf16 NHWC.  Returns (4, N*H*W, 4*Cin) bf16, group
    g = py*2 + px holds the patches producing output parity (py, px).
    """
    # TODO(synk): the 2x2 window gather (im2col) is still XLA-side; fully
    # fusing it into the matmul would need element-offset BlockSpecs.
    n, h, w, c = x.shape
    xp = jnp.pad(x, ((0, 0), (1, 1), (1, 1), (0, 0)))
    phases = []
    for py in (0, 1):
        for px in (0, 1):
            wins = [xp[:, py + dy:py + dy + h, px + dx:px + dx + w, :]
                    for dy in (0, 1) for dx in (0, 1)]
            p = jnp.stack(wins, axis=3)                  # (N, H, W, 4, Cin)
            phases.append(p.reshape(n * h * w, 4 * c))
    return jnp.stack(phases, axis=0)


def _interleave_phases(yph, n, h, w):
    """(4, n*h*w, C) phase-major -> (n, 2h, 2w, C) NHWC."""
    c = yph.shape[-1]
    y = yph.reshape(2, 2, n, h, w, c)                    # (py, px, n, h, w, c)
    y = jnp.transpose(y, (2, 3, 0, 4, 1, 5))             # (n, h, py, w, px, c)
    return y.reshape(n, 2 * h, 2 * w, c)


def _phase_weights(wt):
    """ConvTranspose2d weight (Cin, Cout, 4, 4) -> (4, 4*Cin, Cout).

    Group g = py*2+px is the 2x2 sub-kernel producing output parity (py, px);
    rows are ordered (dy, dx, ci) to match _phase_patches.
    """
    cin, cout = wt.shape[0], wt.shape[1]
    groups = []
    for py in (0, 1):
        for px in (0, 1):
            taps = [wt[:, :, (3 - py) - 2 * dy, (3 - px) - 2 * dx]
                    for dy in (0, 1) for dx in (0, 1)]
            groups.append(jnp.stack(taps, axis=0).reshape(4 * cin, cout))
    return jnp.stack(groups, axis=0)


def prepare_params(params):
    """One-time conversion of PyTorch-layout params to kernel layouts (bf16)."""
    prep = {
        # layer 1 (1x1 input): group g = ky*4+kx, weight (16, Cin, Cout).
        "w1": jnp.transpose(params["w1"], (2, 3, 0, 1))
                 .reshape(K * K, SIZE_Z, G_FEAT * 8).astype(jnp.bfloat16),
    }
    for name in ("w2", "w3", "w4", "w5"):
        prep[name] = _phase_weights(params[name]).astype(jnp.bfloat16)
    for i in range(1, 5):
        prep[f"g{i}"] = params[f"g{i}"].astype(jnp.float32)
        prep[f"b{i}"] = params[f"b{i}"].astype(jnp.float32)
    return prep


# ----------------------------------------------------------------------------
# Generator forward
# ----------------------------------------------------------------------------
def generator_forward(z_nchw, prep):
    n = z_nchw.shape[0]
    zb = z_nchw.reshape(n, SIZE_Z).astype(jnp.bfloat16)

    # Layer 1: ConvTranspose2d(100 -> 512, 4, 1, 0) on a 1x1 input == grouped matmul.
    y, st = _grouped_matmul(zb[None], prep["w1"])              # (16, n, 512)
    a = _bn_relu(y, st, prep["g1"], prep["b1"])                # bf16
    x = jnp.transpose(a, (1, 0, 2)).reshape(n, K, K, G_FEAT * 8)   # NHWC

    # Layers 2-4: stride-2 transposed convs (phase decomposition) + BN + ReLU.
    for li in (2, 3, 4):
        _, h, w, _ = x.shape
        patches = _phase_patches(x)                            # (4, n*h*w, 4*Cin)
        y, st = _grouped_matmul(patches, prep[f"w{li}"])       # (4, n*h*w, Cout)
        a = _bn_relu(y, st, prep[f"g{li}"], prep[f"b{li}"])
        x = _interleave_phases(a, n, h, w)                     # (n, 2h, 2w, Cout)

    # Layer 5: stride-2 transposed conv with the Tanh fused in the epilogue.
    _, h, w, _ = x.shape
    patches = _phase_patches(x)
    y, _ = _grouped_matmul(patches, prep["w5"], fuse_tanh=True)    # (4, n*h*w, 3)
    img = _interleave_phases(y, n, h, w)                           # (n, 64, 64, 3)
    return jnp.transpose(img, (0, 3, 1, 2))                        # NCHW f32


def init_params(key):
    ks = jax.random.split(key, 5)

    def w(k, cin, cout):  # DCGAN-style N(0, 0.02) init, deterministic
        return 0.02 * jax.random.normal(k, (cin, cout, K, K), jnp.float32)

    p = {
        "w1": w(ks[0], SIZE_Z,     G_FEAT * 8),
        "w2": w(ks[1], G_FEAT * 8, G_FEAT * 4),
        "w3": w(ks[2], G_FEAT * 4, G_FEAT * 2),
        "w4": w(ks[3], G_FEAT * 2, G_FEAT),
        "w5": w(ks[4], G_FEAT,     NUM_CHANNELS),
    }
    for i, c in enumerate([G_FEAT * 8, G_FEAT * 4, G_FEAT * 2, G_FEAT], 1):
        p[f"g{i}"] = jnp.ones((c,), jnp.float32)     # BN weight (gamma)
        p[f"b{i}"] = jnp.zeros((c,), jnp.float32)    # BN bias (beta)
    return p


if __name__ == "__main__":
    key = jax.random.PRNGKey(0)
    pkey, zkey = jax.random.split(key)
    params = init_params(pkey)
    prep = prepare_params(params)            # hoisted out of the forward path

    batch = 2
    z = jax.random.normal(zkey, (batch, SIZE_Z, 1, 1), jnp.float32)

    out = jax.jit(generator_forward)(z, prep)
    out = jax.block_until_ready(out)

    assert out.shape == (batch, NUM_CHANNELS, 64, 64), out.shape
    assert bool(jnp.all(jnp.isfinite(out)))
    assert bool(jnp.all(jnp.abs(out) <= 1.0))        # tanh range
    print("KERNEL_OK")
</pallas_src>

<mosaic_0001>
module attributes {stable_mosaic.version = 11 : i64} {
  func.func @_mm_stats_kernel(%arg0: i32, %arg1: i32, %arg2: memref<1x2x100xbf16, #tpu.memory_space<vmem>>, %arg3: memref<1x100x512xbf16, #tpu.memory_space<vmem>>, %arg4: memref<1x2x512xf32, #tpu.memory_space<vmem>>, %arg5: memref<1x1x2x512xf32, #tpu.memory_space<vmem>>) attributes {dimension_semantics = [#tpu.dimension_semantics<parallel>, #tpu.dimension_semantics<parallel>], iteration_bounds = array<i64: 16, 1>, scalar_prefetch = 0 : i64, scratch_operands = 0 : i64, tpu.core_type = #tpu.core_type<tc>, window_params = [{transform_indices = @transform_0, window_bounds = array<i64: 1, 2, 100>}, {transform_indices = @transform_1, window_bounds = array<i64: 1, 100, 512>}, {transform_indices = @transform_2, window_bounds = array<i64: 1, 2, 512>}, {transform_indices = @transform_3, window_bounds = array<i64: 1, 1, 2, 512>}]} {
    %c0 = arith.constant 0 : index
    %c0_0 = arith.constant 0 : index
    %c0_1 = arith.constant 0 : index
    %0 = vector.load %arg2[%c0, %c0_0, %c0_1] : memref<1x2x100xbf16, #tpu.memory_space<vmem>>, vector<1x2x100xbf16>
    %1 = vector.shape_cast %0 : vector<1x2x100xbf16> to vector<2x100xbf16>
    %c0_2 = arith.constant 0 : index
    %c0_3 = arith.constant 0 : index
    %c0_4 = arith.constant 0 : index
    %2 = vector.load %arg3[%c0_2, %c0_3, %c0_4] : memref<1x100x512xbf16, #tpu.memory_space<vmem>>, vector<1x100x512xbf16>
    %3 = vector.shape_cast %2 : vector<1x100x512xbf16> to vector<100x512xbf16>
    %cst = arith.constant dense<0.000000e+00> : vector<2x512xf32>
    %4 = tpu.matmul %1, %3, %cst {dimension_numbers = #tpu.dot_dimension_numbers<[1], [0], [0], [1], [0, 0, 1, 1], [], []>} : vector<2x100xbf16>, vector<100x512xbf16>, vector<2x512xf32> -> vector<2x512xf32>
    %c0_5 = arith.constant 0 : index
    %c0_6 = arith.constant 0 : index
    %c0_7 = arith.constant 0 : index
    %5 = vector.load %arg4[%c0_5, %c0_6, %c0_7] : memref<1x2x512xf32, #tpu.memory_space<vmem>>, vector<1x2x512xf32>
    %6 = vector.shape_cast %5 : vector<1x2x512xf32> to vector<2x512xf32>
    %7 = vector.shape_cast %4 : vector<2x512xf32> to vector<1x2x512xf32>
    tpu.vector_store %arg4[%c0_5, %c0_6, %c0_7], %7 {strides = array<i32>} : memref<1x2x512xf32, #tpu.memory_space<vmem>>, vector<1x2x512xf32>,
    %cst_8 = arith.constant dense<0.000000e+00> : vector<512xf32>
    %8 = vector.multi_reduction <add>, %4, %cst_8 [0] : vector<2x512xf32> to vector<512xf32>
    %9 = vector.shape_cast %8 : vector<512xf32> to vector<1x512xf32>
    %c0_9 = arith.constant 0 : index
    %c0_10 = arith.constant 0 : index
    %c0_11 = arith.constant 0 : index
    %c0_12 = arith.constant 0 : index
    %10 = vector.load %arg5[%c0_9, %c0_10, %c0_11, %c0_12] : memref<1x1x2x512xf32, #tpu.memory_space<vmem>>, vector<1x1x1x512xf32>
    %11 = vector.shape_cast %10 : vector<1x1x1x512xf32> to vector<1x512xf32>
    %12 = vector.shape_cast %9 : vector<1x512xf32> to vector<1x1x1x512xf32>
    tpu.vector_store %arg5[%c0_9, %c0_10, %c0_11, %c0_12], %12 {strides = array<i32>} : memref<1x1x2x512xf32, #tpu.memory_space<vmem>>, vector<1x1x1x512xf32>,
    %13 = arith.mulf %4, %4 : vector<2x512xf32>
    %cst_13 = arith.constant dense<0.000000e+00> : vector<512xf32>
    %14 = vector.multi_reduction <add>, %13, %cst_13 [0] : vector<2x512xf32> to vector<512xf32>
    %15 = vector.shape_cast %14 : vector<512xf32> to vector<1x512xf32>
    %c0_14 = arith.constant 0 : index
    %c0_15 = arith.constant 0 : index
    %c1 = arith.constant 1 : index
    %c0_16 = arith.constant 0 : index
    %16 = vector.load %arg5[%c0_14, %c0_15, %c1, %c0_16] : memref<1x1x2x512xf32, #tpu.memory_space<vmem>>, vector<1x1x1x512xf32>
    %17 = vector.shape_cast %16 : vector<1x1x1x512xf32> to vector<1x512xf32>
    %18 = vector.shape_cast %15 : vector<1x512xf32> to vector<1x1x1x512xf32>
    tpu.vector_store %arg5[%c0_14, %c0_15, %c1, %c0_16], %18 {strides = array<i32>} : memref<1x1x2x512xf32, #tpu.memory_space<vmem>>, vector<1x1x1x512xf32>,
    return
  }
  func.func @transform_0(%arg0: i32, %arg1: i32) -> (i32, i32, i32) {
    %c0_i32 = arith.constant 0 : i32
    %c0_i32_0 = arith.constant 0 : i32
    %c0_i32_1 = arith.constant 0 : i32
    return %c0_i32, %arg1, %c0_i32_0 : i32, i32, i32
  }
  func.func @transform_1(%arg0: i32, %arg1: i32) -> (i32, i32, i32) {
    %c0_i32 = arith.constant 0 : i32
    %c0_i32_0 = arith.constant 0 : i32
    %c0_i32_1 = arith.constant 0 : i32
    return %arg0, %c0_i32, %c0_i32_0 : i32, i32, i32
  }
  func.func @transform_2(%arg0: i32, %arg1: i32) -> (i32, i32, i32) {
    %c0_i32 = arith.constant 0 : i32
    %c0_i32_0 = arith.constant 0 : i32
    return %arg0, %arg1, %c0_i32 : i32, i32, i32
  }
  func.func @transform_3(%arg0: i32, %arg1: i32) -> (i32, i32, i32, i32) {
    %c0_i32 = arith.constant 0 : i32
    %c0_i32_0 = arith.constant 0 : i32
    %c0_i32_1 = arith.constant 0 : i32
    return %arg0, %arg1, %c0_i32, %c0_i32_0 : i32, i32, i32, i32
  }
}

module attributes {stable_mosaic.version = 11 : i64} {
  func.func @_bn_relu_apply_kernel(%arg0: i32, %arg1: memref<32x512xf32, #tpu.memory_space<vmem>>, %arg2: memref<1x512xf32, #tpu.memory_space<vmem>>, %arg3: memref<1x512xf32, #tpu.memory_space<vmem>>, %arg4: memref<32x512xbf16, #tpu.memory_space<vmem>>) attributes {dimension_semantics = [#tpu.dimension_semantics<parallel>], iteration_bounds = array<i64: 1>, scalar_prefetch = 0 : i64, scratch_operands = 0 : i64, tpu.core_type = #tpu.core_type<tc>, window_params = [{transform_indices = @transform_0, window_bounds = array<i64: 32, 512>}, {pipeline_mode = #tpu.pipeline_mode<synchronous>, transform_indices = @transform_1, window_bounds = array<i64: 1, 512>}, {pipeline_mode = #tpu.pipeline_mode<synchronous>, transform_indices = @transform_2, window_bounds = array<i64: 1, 512>}, {transform_indices = @transform_3, window_bounds = array<i64: 32, 512>}]} {
    %c0 = arith.constant 0 : index
    %c0_0 = arith.constant 0 : index
    %0 = vector.load %arg1[%c0, %c0_0] : memref<32x512xf32, #tpu.memory_space<vmem>>, vector<32x512xf32>
    %c0_1 = arith.constant 0 : index
    %c0_2 = arith.constant 0 : index
    %1 = vector.load %arg2[%c0_1, %c0_2] : memref<1x512xf32, #tpu.memory_space<vmem>>, vector<1x512xf32>
    %2 = vector.broadcast %1 : vector<1x512xf32> to vector<32x512xf32>
    %3 = arith.mulf %0, %2 : vector<32x512xf32>
    %c0_3 = arith.constant 0 : index
    %c0_4 = arith.constant 0 : index
    %4 = vector.load %arg3[%c0_3, %c0_4] : memref<1x512xf32, #tpu.memory_space<vmem>>, vector<1x512xf32>
    %5 = vector.broadcast %4 : vector<1x512xf32> to vector<32x512xf32>
    %6 = arith.addf %3, %5 : vector<32x512xf32>
    %cst = arith.constant 0.000000e+00 : f32
    %7 = vector.broadcast %cst : f32 to vector<32x512xf32>
    %8 = arith.maximumf %6, %7 : vector<32x512xf32>
    %9 = arith.truncf %8 : vector<32x512xf32> to vector<32x512xbf16>
    %c0_5 = arith.constant 0 : index
    %c0_6 = arith.constant 0 : index
    %10 = vector.load %arg4[%c0_5, %c0_6] : memref<32x512xbf16, #tpu.memory_space<vmem>>, vector<32x512xbf16>
    tpu.vector_store %arg4[%c0_5, %c0_6], %9 {strides = array<i32>} : memref<32x512xbf16, #tpu.memory_space<vmem>>, vector<32x512xbf16>,
    return
  }
  func.func @transform_0(%arg0: i32) -> (i32, i32) {
    %c0_i32 = arith.constant 0 : i32
    %c0_i32_0 = arith.constant 0 : i32
    return %arg0, %c0_i32 : i32, i32
  }
  func.func @transform_1(%arg0: i32) -> (i32, i32) {
    %c0_i32 = arith.constant 0 : i32
    %c0_i32_0 = arith.constant 0 : i32
    %c0_i32_1 = arith.constant 0 : i32
    return %c0_i32, %c0_i32_0 : i32, i32
  }
  func.func @transform_2(%arg0: i32) -> (i32, i32) {
    %c0_i32 = arith.constant 0 : i32
    %c0_i32_0 = arith.constant 0 : i32
    %c0_i32_1 = arith.constant 0 : i32
    return %c0_i32, %c0_i32_0 : i32, i32
  }
  func.func @transform_3(%arg0: i32) -> (i32, i32) {
    %c0_i32 = arith.constant 0 : i32
    %c0_i32_0 = arith.constant 0 : i32
    return %arg0, %c0_i32 : i32, i32
  }
}

module attributes {stable_mosaic.version = 11 : i64} {
  func.func @_mm_stats_kernel(%arg0: i32, %arg1: i32, %arg2: memref<1x32x2048xbf16, #tpu.memory_space<vmem>>, %arg3: memref<1x2048x256xbf16, #tpu.memory_space<vmem>>, %arg4: memref<1x32x256xf32, #tpu.memory_space<vmem>>, %arg5: memref<1x1x2x256xf32, #tpu.memory_space<vmem>>) attributes {dimension_semantics = [#tpu.dimension_semantics<parallel>, #tpu.dimension_semantics<parallel>], iteration_bounds = array<i64: 4, 1>, scalar_prefetch = 0 : i64, scratch_operands = 0 : i64, tpu.core_type = #tpu.core_type<tc>, window_params = [{transform_indices = @transform_0, window_bounds = array<i64: 1, 32, 2048>}, {transform_indices = @transform_1, window_bounds = array<i64: 1, 2048, 256>}, {transform_indices = @transform_2, window_bounds = array<i64: 1, 32, 256>}, {transform_indices = @transform_3, window_bounds = array<i64: 1, 1, 2, 256>}]} {
    %c0 = arith.constant 0 : index
    %c0_0 = arith.constant 0 : index
    %c0_1 = arith.constant 0 : index
    %0 = vector.load %arg2[%c0, %c0_0, %c0_1] : memref<1x32x2048xbf16, #tpu.memory_space<vmem>>, vector<1x32x2048xbf16>
    %1 = vector.shape_cast %0 : vector<1x32x2048xbf16> to vector<32x2048xbf16>
    %c0_2 = arith.constant 0 : index
    %c0_3 = arith.constant 0 : index
    %c0_4 = arith.constant 0 : index
    %2 = vector.load %arg3[%c0_2, %c0_3, %c0_4] : memref<1x2048x256xbf16, #tpu.memory_space<vmem>>, vector<1x2048x256xbf16>
    %3 = vector.shape_cast %2 : vector<1x2048x256xbf16> to vector<2048x256xbf16>
    %cst = arith.constant dense<0.000000e+00> : vector<32x256xf32>
    %4 = tpu.matmul %1, %3, %cst {dimension_numbers = #tpu.dot_dimension_numbers<[1], [0], [0], [1], [0, 0, 1, 1], [], []>} : vector<32x2048xbf16>, vector<2048x256xbf16>, vector<32x256xf32> -> vector<32x256xf32>
    %c0_5 = arith.constant 0 : index
    %c0_6 = arith.constant 0 : index
    %c0_7 = arith.constant 0 : index
    %5 = vector.load %arg4[%c0_5, %c0_6, %c0_7] : memref<1x32x256xf32, #tpu.memory_space<vmem>>, vector<1x32x256xf32>
    %6 = vector.shape_cast %5 : vector<1x32x256xf32> to vector<32x256xf32>
    %7 = vector.shape_cast %4 : vector<32x256xf32> to vector<1x32x256xf32>
    tpu.vector_store %arg4[%c0_5, %c0_6, %c0_7], %7 {strides = array<i32>} : memref<1x32x256xf32, #tpu.memory_space<vmem>>, vector<1x32x256xf32>,
    %cst_8 = arith.constant dense<0.000000e+00> : vector<256xf32>
    %8 = vector.multi_reduction <add>, %4, %cst_8 [0] : vector<32x256xf32> to vector<256xf32>
    %9 = vector.shape_cast %8 : vector<256xf32> to vector<1x256xf32>
    %c0_9 = arith.constant 0 : index
    %c0_10 = arith.constant 0 : index
    %c0_11 = arith.constant 0 : index
    %c0_12 = arith.constant 0 : index
    %10 = vector.load %arg5[%c0_9, %c0_10, %c0_11, %c0_12] : memref<1x1x2x256xf32, #tpu.memory_space<vmem>>, vector<1x1x1x256xf32>
    %11 = vector.shape_cast %10 : vector<1x1x1x256xf32> to vector<1x256xf32>
    %12 = vector.shape_cast %9 : vector<1x256xf32> to vector<1x1x1x256xf32>
    tpu.vector_store %arg5[%c0_9, %c0_10, %c0_11, %c0_12], %12 {strides = array<i32>} : memref<1x1x2x256xf32, #tpu.memory_space<vmem>>, vector<1x1x1x256xf32>,
    %13 = arith.mulf %4, %4 : vector<32x256xf32>
    %cst_13 = arith.constant dense<0.000000e+00> : vector<256xf32>
    %14 = vector.multi_reduction <add>, %13, %cst_13 [0] : vector<32x256xf32> to vector<256xf32>
    %15 = vector.shape_cast %14 : vector<256xf32> to vector<1x256xf32>
    %c0_14 = arith.constant 0 : index
    %c0_15 = arith.constant 0 : index
    %c1 = arith.constant 1 : index
    %c0_16 = arith.constant 0 : index
    %16 = vector.load %arg5[%c0_14, %c0_15, %c1, %c0_16] : memref<1x1x2x256xf32, #tpu.memory_space<vmem>>, vector<1x1x1x256xf32>
    %17 = vector.shape_cast %16 : vector<1x1x1x256xf32> to vector<1x256xf32>
    %18 = vector.shape_cast %15 : vector<1x256xf32> to vector<1x1x1x256xf32>
    tpu.vector_store %arg5[%c0_14, %c0_15, %c1, %c0_16], %18 {strides = array<i32>} : memref<1x1x2x256xf32, #tpu.memory_space<vmem>>, vector<1x1x1x256xf32>,
    return
  }
  func.func @transform_0(%arg0: i32, %arg1: i32) -> (i32, i32, i32) {
    %c0_i32 = arith.constant 0 : i32
    %c0_i32_0 = arith.constant 0 : i32
    return %arg0, %arg1, %c0_i32 : i32, i32, i32
  }
  func.func @transform_1(%arg0: i32, %arg1: i32) -> (i32, i32, i32) {
    %c0_i32 = arith.constant 0 : i32
    %c0_i32_0 = arith.constant 0 : i32
    %c0_i32_1 = arith.constant 0 : i32
    return %arg0, %c0_i32, %c0_i32_0 : i32, i32, i32
  }
  func.func @transform_2(%arg0: i32, %arg1: i32) -> (i32, i32, i32) {
    %c0_i32 = arith.constant 0 : i32
    %c0_i32_0 = arith.constant 0 : i32
    return %arg0, %arg1, %c0_i32 : i32, i32, i32
  }
  func.func @transform_3(%arg0: i32, %arg1: i32) -> (i32, i32, i32, i32) {
    %c0_i32 = arith.constant 0 : i32
    %c0_i32_0 = arith.constant 0 : i32
    %c0_i32_1 = arith.constant 0 : i32
    return %arg0, %arg1, %c0_i32, %c0_i32_0 : i32, i32, i32, i32
  }
}

module attributes {stable_mosaic.version = 11 : i64} {
  func.func @_bn_relu_apply_kernel(%arg0: i32, %arg1: memref<128x256xf32, #tpu.memory_space<vmem>>, %arg2: memref<1x256xf32, #tpu.memory_space<vmem>>, %arg3: memref<1x256xf32, #tpu.memory_space<vmem>>, %arg4: memref<128x256xbf16, #tpu.memory_space<vmem>>) attributes {dimension_semantics = [#tpu.dimension_semantics<parallel>], iteration_bounds = array<i64: 1>, scalar_prefetch = 0 : i64, scratch_operands = 0 : i64, tpu.core_type = #tpu.core_type<tc>, window_params = [{transform_indices = @transform_0, window_bounds = array<i64: 128, 256>}, {pipeline_mode = #tpu.pipeline_mode<synchronous>, transform_indices = @transform_1, window_bounds = array<i64: 1, 256>}, {pipeline_mode = #tpu.pipeline_mode<synchronous>, transform_indices = @transform_2, window_bounds = array<i64: 1, 256>}, {transform_indices = @transform_3, window_bounds = array<i64: 128, 256>}]} {
    %c0 = arith.constant 0 : index
    %c0_0 = arith.constant 0 : index
    %0 = vector.load %arg1[%c0, %c0_0] : memref<128x256xf32, #tpu.memory_space<vmem>>, vector<128x256xf32>
    %c0_1 = arith.constant 0 : index
    %c0_2 = arith.constant 0 : index
    %1 = vector.load %arg2[%c0_1, %c0_2] : memref<1x256xf32, #tpu.memory_space<vmem>>, vector<1x256xf32>
    %2 = vector.broadcast %1 : vector<1x256xf32> to vector<128x256xf32>
    %3 = arith.mulf %0, %2 : vector<128x256xf32>
    %c0_3 = arith.constant 0 : index
    %c0_4 = arith.constant 0 : index
    %4 = vector.load %arg3[%c0_3, %c0_4] : memref<1x256xf32, #tpu.memory_space<vmem>>, vector<1x256xf32>
    %5 = vector.broadcast %4 : vector<1x256xf32> to vector<128x256xf32>
    %6 = arith.addf %3, %5 : vector<128x256xf32>
    %cst = arith.constant 0.000000e+00 : f32
    %7 = vector.broadcast %cst : f32 to vector<128x256xf32>
    %8 = arith.maximumf %6, %7 : vector<128x256xf32>
    %9 = arith.truncf %8 : vector<128x256xf32> to vector<128x256xbf16>
    %c0_5 = arith.constant 0 : index
    %c0_6 = arith.constant 0 : index
    %10 = vector.load %arg4[%c0_5, %c0_6] : memref<128x256xbf16, #tpu.memory_space<vmem>>, vector<128x256xbf16>
    tpu.vector_store %arg4[%c0_5, %c0_6], %9 {strides = array<i32>} : memref<128x256xbf16, #tpu.memory_space<vmem>>, vector<128x256xbf16>,
    return
  }
  func.func @transform_0(%arg0: i32) -> (i32, i32) {
    %c0_i32 = arith.constant 0 : i32
    %c0_i32_0 = arith.constant 0 : i32
    return %arg0, %c0_i32 : i32, i32
  }
  func.func @transform_1(%arg0: i32) -> (i32, i32) {
    %c0_i32 = arith.constant 0 : i32
    %c0_i32_0 = arith.constant 0 : i32
    %c0_i32_1 = arith.constant 0 : i32
    return %c0_i32, %c0_i32_0 : i32, i32
  }
  func.func @transform_2(%arg0: i32) -> (i32, i32) {
    %c0_i32 = arith.constant 0 : i32
    %c0_i32_0 = arith.constant 0 : i32
    %c0_i32_1 = arith.constant 0 : i32
    return %c0_i32, %c0_i32_0 : i32, i32
  }
  func.func @transform_3(%arg0: i32) -> (i32, i32) {
    %c0_i32 = arith.constant 0 : i32
    %c0_i32_0 = arith.constant 0 : i32
    return %arg0, %c0_i32 : i32, i32
  }
}

module attributes {stable_mosaic.version = 11 : i64} {
  func.func @_mm_stats_kernel(%arg0: i32, %arg1: i32, %arg2: memref<1x128x1024xbf16, #tpu.memory_space<vmem>>, %arg3: memref<1x1024x128xbf16, #tpu.memory_space<vmem>>, %arg4: memref<1x128x128xf32, #tpu.memory_space<vmem>>, %arg5: memref<1x1x2x128xf32, #tpu.memory_space<vmem>>) attributes {dimension_semantics = [#tpu.dimension_semantics<parallel>, #tpu.dimension_semantics<parallel>], iteration_bounds = array<i64: 4, 1>, scalar_prefetch = 0 : i64, scratch_operands = 0 : i64, tpu.core_type = #tpu.core_type<tc>, window_params = [{transform_indices = @transform_0, window_bounds = array<i64: 1, 128, 1024>}, {transform_indices = @transform_1, window_bounds = array<i64: 1, 1024, 128>}, {transform_indices = @transform_2, window_bounds = array<i64: 1, 128, 128>}, {transform_indices = @transform_3, window_bounds = array<i64: 1, 1, 2, 128>}]} {
    %c0 = arith.constant 0 : index
    %c0_0 = arith.constant 0 : index
    %c0_1 = arith.constant 0 : index
    %0 = vector.load %arg2[%c0, %c0_0, %c0_1] : memref<1x128x1024xbf16, #tpu.memory_space<vmem>>, vector<1x128x1024xbf16>
    %1 = vector.shape_cast %0 : vector<1x128x1024xbf16> to vector<128x1024xbf16>
    %c0_2 = arith.constant 0 : index
    %c0_3 = arith.constant 0 : index
    %c0_4 = arith.constant 0 : index
    %2 = vector.load %arg3[%c0_2, %c0_3, %c0_4] : memref<1x1024x128xbf16, #tpu.memory_space<vmem>>, vector<1x1024x128xbf16>
    %3 = vector.shape_cast %2 : vector<1x1024x128xbf16> to vector<1024x128xbf16>
    %cst = arith.constant dense<0.000000e+00> : vector<128x128xf32>
    %4 = tpu.matmul %1, %3, %cst {dimension_numbers = #tpu.dot_dimension_numbers<[1], [0], [0], [1], [0, 0, 1, 1], [], []>} : vector<128x1024xbf16>, vector<1024x128xbf16>, vector<128x128xf32> -> vector<128x128xf32>
    %c0_5 = arith.constant 0 : index
    %c0_6 = arith.constant 0 : index
    %c0_7 = arith.constant 0 : index
    %5 = vector.load %arg4[%c0_5, %c0_6, %c0_7] : memref<1x128x128xf32, #tpu.memory_space<vmem>>, vector<1x128x128xf32>
    %6 = vector.shape_cast %5 : vector<1x128x128xf32> to vector<128x128xf32>
    %7 = vector.shape_cast %4 : vector<128x128xf32> to vector<1x128x128xf32>
    tpu.vector_store %arg4[%c0_5, %c0_6, %c0_7], %7 {strides = array<i32>} : memref<1x128x128xf32, #tpu.memory_space<vmem>>, vector<1x128x128xf32>,
    %cst_8 = arith.constant dense<0.000000e+00> : vector<128xf32>
    %8 = vector.multi_reduction <add>, %4, %cst_8 [0] : vector<128x128xf32> to vector<128xf32>
    %9 = vector.shape_cast %8 : vector<128xf32> to vector<1x128xf32>
    %c0_9 = arith.constant 0 : index
    %c0_10 = arith.constant 0 : index
    %c0_11 = arith.constant 0 : index
    %c0_12 = arith.constant 0 : index
    %10 = vector.load %arg5[%c0_9, %c0_10, %c0_11, %c0_12] : memref<1x1x2x128xf32, #tpu.memory_space<vmem>>, vector<1x1x1x128xf32>
    %11 = vector.shape_cast %10 : vector<1x1x1x128xf32> to vector<1x128xf32>
    %12 = vector.shape_cast %9 : vector<1x128xf32> to vector<1x1x1x128xf32>
    tpu.vector_store %arg5[%c0_9, %c0_10, %c0_11, %c0_12], %12 {strides = array<i32>} : memref<1x1x2x128xf32, #tpu.memory_space<vmem>>, vector<1x1x1x128xf32>,
    %13 = arith.mulf %4, %4 : vector<128x128xf32>
    %cst_13 = arith.constant dense<0.000000e+00> : vector<128xf32>
    %14 = vector.multi_reduction <add>, %13, %cst_13 [0] : vector<128x128xf32> to vector<128xf32>
    %15 = vector.shape_cast %14 : vector<128xf32> to vector<1x128xf32>
    %c0_14 = arith.constant 0 : index
    %c0_15 = arith.constant 0 : index
    %c1 = arith.constant 1 : index
    %c0_16 = arith.constant 0 : index
    %16 = vector.load %arg5[%c0_14, %c0_15, %c1, %c0_16] : memref<1x1x2x128xf32, #tpu.memory_space<vmem>>, vector<1x1x1x128xf32>
    %17 = vector.shape_cast %16 : vector<1x1x1x128xf32> to vector<1x128xf32>
    %18 = vector.shape_cast %15 : vector<1x128xf32> to vector<1x1x1x128xf32>
    tpu.vector_store %arg5[%c0_14, %c0_15, %c1, %c0_16], %18 {strides = array<i32>} : memref<1x1x2x128xf32, #tpu.memory_space<vmem>>, vector<1x1x1x128xf32>,
    return
  }
  func.func @transform_0(%arg0: i32, %arg1: i32) -> (i32, i32, i32) {
    %c0_i32 = arith.constant 0 : i32
    %c0_i32_0 = arith.constant 0 : i32
    return %arg0, %arg1, %c0_i32 : i32, i32, i32
  }
  func.func @transform_1(%arg0: i32, %arg1: i32) -> (i32, i32, i32) {
    %c0_i32 = arith.constant 0 : i32
    %c0_i32_0 = arith.constant 0 : i32
    %c0_i32_1 = arith.constant 0 : i32
    return %arg0, %c0_i32, %c0_i32_0 : i32, i32, i32
  }
  func.func @transform_2(%arg0: i32, %arg1: i32) -> (i32, i32, i32) {
    %c0_i32 = arith.constant 0 : i32
    %c0_i32_0 = arith.constant 0 : i32
    return %arg0, %arg1, %c0_i32 : i32, i32, i32
  }
  func.func @transform_3(%arg0: i32, %arg1: i32) -> (i32, i32, i32, i32) {
    %c0_i32 = arith.constant 0 : i32
    %c0_i32_0 = arith.constant 0 : i32
    %c0_i32_1 = arith.constant 0 : i32
    return %arg0, %arg1, %c0_i32, %c0_i32_0 : i32, i32, i32, i32
  }
}

module attributes {stable_mosaic.version = 11 : i64} {
  func.func @_bn_relu_apply_kernel(%arg0: i32, %arg1: memref<512x128xf32, #tpu.memory_space<vmem>>, %arg2: memref<1x128xf32, #tpu.memory_space<vmem>>, %arg3: memref<1x128xf32, #tpu.memory_space<vmem>>, %arg4: memref<512x128xbf16, #tpu.memory_space<vmem>>) attributes {dimension_semantics = [#tpu.dimension_semantics<parallel>], iteration_bounds = array<i64: 1>, scalar_prefetch = 0 : i64, scratch_operands = 0 : i64, tpu.core_type = #tpu.core_type<tc>, window_params = [{transform_indices = @transform_0, window_bounds = array<i64: 512, 128>}, {pipeline_mode = #tpu.pipeline_mode<synchronous>, transform_indices = @transform_1, window_bounds = array<i64: 1, 128>}, {pipeline_mode = #tpu.pipeline_mode<synchronous>, transform_indices = @transform_2, window_bounds = array<i64: 1, 128>}, {transform_indices = @transform_3, window_bounds = array<i64: 512, 128>}]} {
    %c0 = arith.constant 0 : index
    %c0_0 = arith.constant 0 : index
    %0 = vector.load %arg1[%c0, %c0_0] : memref<512x128xf32, #tpu.memory_space<vmem>>, vector<512x128xf32>
    %c0_1 = arith.constant 0 : index
    %c0_2 = arith.constant 0 : index
    %1 = vector.load %arg2[%c0_1, %c0_2] : memref<1x128xf32, #tpu.memory_space<vmem>>, vector<1x128xf32>
    %2 = vector.broadcast %1 : vector<1x128xf32> to vector<512x128xf32>
    %3 = arith.mulf %0, %2 : vector<512x128xf32>
    %c0_3 = arith.constant 0 : index
    %c0_4 = arith.constant 0 : index
    %4 = vector.load %arg3[%c0_3, %c0_4] : memref<1x128xf32, #tpu.memory_space<vmem>>, vector<1x128xf32>
    %5 = vector.broadcast %4 : vector<1x128xf32> to vector<512x128xf32>
    %6 = arith.addf %3, %5 : vector<512x128xf32>
    %cst = arith.constant 0.000000e+00 : f32
    %7 = vector.broadcast %cst : f32 to vector<512x128xf32>
    %8 = arith.maximumf %6, %7 : vector<512x128xf32>
    %9 = arith.truncf %8 : vector<512x128xf32> to vector<512x128xbf16>
    %c0_5 = arith.constant 0 : index
    %c0_6 = arith.constant 0 : index
    %10 = vector.load %arg4[%c0_5, %c0_6] : memref<512x128xbf16, #tpu.memory_space<vmem>>, vector<512x128xbf16>
    tpu.vector_store %arg4[%c0_5, %c0_6], %9 {strides = array<i32>} : memref<512x128xbf16, #tpu.memory_space<vmem>>, vector<512x128xbf16>,
    return
  }
  func.func @transform_0(%arg0: i32) -> (i32, i32) {
    %c0_i32 = arith.constant 0 : i32
    %c0_i32_0 = arith.constant 0 : i32
    return %arg0, %c0_i32 : i32, i32
  }
  func.func @transform_1(%arg0: i32) -> (i32, i32) {
    %c0_i32 = arith.constant 0 : i32
    %c0_i32_0 = arith.constant 0 : i32
    %c0_i32_1 = arith.constant 0 : i32
    return %c0_i32, %c0_i32_0 : i32, i32
  }
  func.func @transform_2(%arg0: i32) -> (i32, i32) {
    %c0_i32 = arith.constant 0 : i32
    %c0_i32_0 = arith.constant 0 : i32
    %c0_i32_1 = arith.constant 0 : i32
    return %c0_i32, %c0_i32_0 : i32, i32
  }
  func.func @transform_3(%arg0: i32) -> (i32, i32) {
    %c0_i32 = arith.constant 0 : i32
    %c0_i32_0 = arith.constant 0 : i32
    return %arg0, %c0_i32 : i32, i32
  }
}

module attributes {stable_mosaic.version = 11 : i64} {
  func.func @_mm_stats_kernel(%arg0: i32, %arg1: i32, %arg2: memref<1x512x512xbf16, #tpu.memory_space<vmem>>, %arg3: memref<1x512x64xbf16, #tpu.memory_space<vmem>>, %arg4: memref<1x512x64xf32, #tpu.memory_space<vmem>>, %arg5: memref<1x1x2x64xf32, #tpu.memory_space<vmem>>) attributes {dimension_semantics = [#tpu.dimension_semantics<parallel>, #tpu.dimension_semantics<parallel>], iteration_bounds = array<i64: 4, 1>, scalar_prefetch = 0 : i64, scratch_operands = 0 : i64, tpu.core_type = #tpu.core_type<tc>, window_params = [{transform_indices = @transform_0, window_bounds = array<i64: 1, 512, 512>}, {transform_indices = @transform_1, window_bounds = array<i64: 1, 512, 64>}, {transform_indices = @transform_2, window_bounds = array<i64: 1, 512, 64>}, {transform_indices = @transform_3, window_bounds = array<i64: 1, 1, 2, 64>}]} {
    %c0 = arith.constant 0 : index
    %c0_0 = arith.constant 0 : index
    %c0_1 = arith.constant 0 : index
    %0 = vector.load %arg2[%c0, %c0_0, %c0_1] : memref<1x512x512xbf16, #tpu.memory_space<vmem>>, vector<1x512x512xbf16>
    %1 = vector.shape_cast %0 : vector<1x512x512xbf16> to vector<512x512xbf16>
    %c0_2 = arith.constant 0 : index
    %c0_3 = arith.constant 0 : index
    %c0_4 = arith.constant 0 : index
    %2 = vector.load %arg3[%c0_2, %c0_3, %c0_4] : memref<1x512x64xbf16, #tpu.memory_space<vmem>>, vector<1x512x64xbf16>
    %3 = vector.shape_cast %2 : vector<1x512x64xbf16> to vector<512x64xbf16>
    %cst = arith.constant dense<0.000000e+00> : vector<512x64xf32>
    %4 = tpu.matmul %1, %3, %cst {dimension_numbers = #tpu.dot_dimension_numbers<[1], [0], [0], [1], [0, 0, 1, 1], [], []>} : vector<512x512xbf16>, vector<512x64xbf16>, vector<512x64xf32> -> vector<512x64xf32>
    %c0_5 = arith.constant 0 : index
    %c0_6 = arith.constant 0 : index
    %c0_7 = arith.constant 0 : index
    %5 = vector.load %arg4[%c0_5, %c0_6, %c0_7] : memref<1x512x64xf32, #tpu.memory_space<vmem>>, vector<1x512x64xf32>
    %6 = vector.shape_cast %5 : vector<1x512x64xf32> to vector<512x64xf32>
    %7 = vector.shape_cast %4 : vector<512x64xf32> to vector<1x512x64xf32>
    tpu.vector_store %arg4[%c0_5, %c0_6, %c0_7], %7 {strides = array<i32>} : memref<1x512x64xf32, #tpu.memory_space<vmem>>, vector<1x512x64xf32>,
    %cst_8 = arith.constant dense<0.000000e+00> : vector<64xf32>
    %8 = vector.multi_reduction <add>, %4, %cst_8 [0] : vector<512x64xf32> to vector<64xf32>
    %9 = vector.shape_cast %8 : vector<64xf32> to vector<1x64xf32>
    %c0_9 = arith.constant 0 : index
    %c0_10 = arith.constant 0 : index
    %c0_11 = arith.constant 0 : index
    %c0_12 = arith.constant 0 : index
    %10 = vector.load %arg5[%c0_9, %c0_10, %c0_11, %c0_12] : memref<1x1x2x64xf32, #tpu.memory_space<vmem>>, vector<1x1x1x64xf32>
    %11 = vector.shape_cast %10 : vector<1x1x1x64xf32> to vector<1x64xf32>
    %12 = vector.shape_cast %9 : vector<1x64xf32> to vector<1x1x1x64xf32>
    tpu.vector_store %arg5[%c0_9, %c0_10, %c0_11, %c0_12], %12 {strides = array<i32>} : memref<1x1x2x64xf32, #tpu.memory_space<vmem>>, vector<1x1x1x64xf32>,
    %13 = arith.mulf %4, %4 : vector<512x64xf32>
    %cst_13 = arith.constant dense<0.000000e+00> : vector<64xf32>
    %14 = vector.multi_reduction <add>, %13, %cst_13 [0] : vector<512x64xf32> to vector<64xf32>
    %15 = vector.shape_cast %14 : vector<64xf32> to vector<1x64xf32>
    %c0_14 = arith.constant 0 : index
    %c0_15 = arith.constant 0 : index
    %c1 = arith.constant 1 : index
    %c0_16 = arith.constant 0 : index
    %16 = vector.load %arg5[%c0_14, %c0_15, %c1, %c0_16] : memref<1x1x2x64xf32, #tpu.memory_space<vmem>>, vector<1x1x1x64xf32>
    %17 = vector.shape_cast %16 : vector<1x1x1x64xf32> to vector<1x64xf32>
    %18 = vector.shape_cast %15 : vector<1x64xf32> to vector<1x1x1x64xf32>
    tpu.vector_store %arg5[%c0_14, %c0_15, %c1, %c0_16], %18 {strides = array<i32>} : memref<1x1x2x64xf32, #tpu.memory_space<vmem>>, vector<1x1x1x64xf32>,
    return
  }
  func.func @transform_0(%arg0: i32, %arg1: i32) -> (i32, i32, i32) {
    %c0_i32 = arith.constant 0 : i32
    %c0_i32_0 = arith.constant 0 : i32
    return %arg0, %arg1, %c0_i32 : i32, i32, i32
  }
  func.func @transform_1(%arg0: i32, %arg1: i32) -> (i32, i32, i32) {
    %c0_i32 = arith.constant 0 : i32
    %c0_i32_0 = arith.constant 0 : i32
    %c0_i32_1 = arith.constant 0 : i32
    return %arg0, %c0_i32, %c0_i32_0 : i32, i32, i32
  }
  func.func @transform_2(%arg0: i32, %arg1: i32) -> (i32, i32, i32) {
    %c0_i32 = arith.constant 0 : i32
    %c0_i32_0 = arith.constant 0 : i32
    return %arg0, %arg1, %c0_i32 : i32, i32, i32
  }
  func.func @transform_3(%arg0: i32, %arg1: i32) -> (i32, i32, i32, i32) {
    %c0_i32 = arith.constant 0 : i32
    %c0_i32_0 = arith.constant 0 : i32
    %c0_i32_1 = arith.constant 0 : i32
    return %arg0, %arg1, %c0_i32, %c0_i32_0 : i32, i32, i32, i32
  }
}

module attributes {stable_mosaic.version = 11 : i64} {
  func.func @_bn_relu_apply_kernel(%arg0: i32, %arg1: memref<512x64xf32, #tpu.memory_space<vmem>>, %arg2: memref<1x64xf32, #tpu.memory_space<vmem>>, %arg3: memref<1x64xf32, #tpu.memory_space<vmem>>, %arg4: memref<512x64xbf16, #tpu.memory_space<vmem>>) attributes {dimension_semantics = [#tpu.dimension_semantics<parallel>], iteration_bounds = array<i64: 4>, scalar_prefetch = 0 : i64, scratch_operands = 0 : i64, tpu.core_type = #tpu.core_type<tc>, window_params = [{transform_indices = @transform_0, window_bounds = array<i64: 512, 64>}, {pipeline_mode = #tpu.pipeline_mode<synchronous>, transform_indices = @transform_1, window_bounds = array<i64: 1, 64>}, {pipeline_mode = #tpu.pipeline_mode<synchronous>, transform_indices = @transform_2, window_bounds = array<i64: 1, 64>}, {transform_indices = @transform_3, window_bounds = array<i64: 512, 64>}]} {
    %c0 = arith.constant 0 : index
    %c0_0 = arith.constant 0 : index
    %0 = vector.load %arg1[%c0, %c0_0] : memref<512x64xf32, #tpu.memory_space<vmem>>, vector<512x64xf32>
    %c0_1 = arith.constant 0 : index
    %c0_2 = arith.constant 0 : index
    %1 = vector.load %arg2[%c0_1, %c0_2] : memref<1x64xf32, #tpu.memory_space<vmem>>, vector<1x64xf32>
    %2 = vector.broadcast %1 : vector<1x64xf32> to vector<512x64xf32>
    %3 = arith.mulf %0, %2 : vector<512x64xf32>
    %c0_3 = arith.constant 0 : index
    %c0_4 = arith.constant 0 : index
    %4 = vector.load %arg3[%c0_3, %c0_4] : memref<1x64xf32, #tpu.memory_space<vmem>>, vector<1x64xf32>
    %5 = vector.broadcast %4 : vector<1x64xf32> to vector<512x64xf32>
    %6 = arith.addf %3, %5 : vector<512x64xf32>
    %cst = arith.constant 0.000000e+00 : f32
    %7 = vector.broadcast %cst : f32 to vector<512x64xf32>
    %8 = arith.maximumf %6, %7 : vector<512x64xf32>
    %9 = arith.truncf %8 : vector<512x64xf32> to vector<512x64xbf16>
    %c0_5 = arith.constant 0 : index
    %c0_6 = arith.constant 0 : index
    %10 = vector.load %arg4[%c0_5, %c0_6] : memref<512x64xbf16, #tpu.memory_space<vmem>>, vector<512x64xbf16>
    tpu.vector_store %arg4[%c0_5, %c0_6], %9 {strides = array<i32>} : memref<512x64xbf16, #tpu.memory_space<vmem>>, vector<512x64xbf16>,
    return
  }
  func.func @transform_0(%arg0: i32) -> (i32, i32) {
    %c0_i32 = arith.constant 0 : i32
    %c0_i32_0 = arith.constant 0 : i32
    return %arg0, %c0_i32 : i32, i32
  }
  func.func @transform_1(%arg0: i32) -> (i32, i32) {
    %c0_i32 = arith.constant 0 : i32
    %c0_i32_0 = arith.constant 0 : i32
    %c0_i32_1 = arith.constant 0 : i32
    return %c0_i32, %c0_i32_0 : i32, i32
  }
  func.func @transform_2(%arg0: i32) -> (i32, i32) {
    %c0_i32 = arith.constant 0 : i32
    %c0_i32_0 = arith.constant 0 : i32
    %c0_i32_1 = arith.constant 0 : i32
    return %c0_i32, %c0_i32_0 : i32, i32
  }
  func.func @transform_3(%arg0: i32) -> (i32, i32) {
    %c0_i32 = arith.constant 0 : i32
    %c0_i32_0 = arith.constant 0 : i32
    return %arg0, %c0_i32 : i32, i32
  }
}

module attributes {stable_mosaic.version = 11 : i64} {
  func.func @_mm_tanh_kernel(%arg0: i32, %arg1: i32, %arg2: memref<1x1024x256xbf16, #tpu.memory_space<vmem>>, %arg3: memref<1x256x3xbf16, #tpu.memory_space<vmem>>, %arg4: memref<1x1024x3xf32, #tpu.memory_space<vmem>>) attributes {dimension_semantics = [#tpu.dimension_semantics<parallel>, #tpu.dimension_semantics<parallel>], iteration_bounds = array<i64: 4, 2>, scalar_prefetch = 0 : i64, scratch_operands = 0 : i64, tpu.core_type = #tpu.core_type<tc>, window_params = [{transform_indices = @transform_0, window_bounds = array<i64: 1, 1024, 256>}, {transform_indices = @transform_1, window_bounds = array<i64: 1, 256, 3>}, {transform_indices = @transform_2, window_bounds = array<i64: 1, 1024, 3>}]} {
    %c0 = arith.constant 0 : index
    %c0_0 = arith.constant 0 : index
    %c0_1 = arith.constant 0 : index
    %0 = vector.load %arg2[%c0, %c0_0, %c0_1] : memref<1x1024x256xbf16, #tpu.memory_space<vmem>>, vector<1x1024x256xbf16>
    %1 = vector.shape_cast %0 : vector<1x1024x256xbf16> to vector<1024x256xbf16>
    %c0_2 = arith.constant 0 : index
    %c0_3 = arith.constant 0 : index
    %c0_4 = arith.constant 0 : index
    %2 = vector.load %arg3[%c0_2, %c0_3, %c0_4] : memref<1x256x3xbf16, #tpu.memory_space<vmem>>, vector<1x256x3xbf16>
    %3 = vector.shape_cast %2 : vector<1x256x3xbf16> to vector<256x3xbf16>
    %cst = arith.constant dense<0.000000e+00> : vector<1024x3xf32>
    %4 = tpu.matmul %1, %3, %cst {dimension_numbers = #tpu.dot_dimension_numbers<[1], [0], [0], [1], [0, 0, 1, 1], [], []>} : vector<1024x256xbf16>, vector<256x3xbf16>, vector<1024x3xf32> -> vector<1024x3xf32>
    %5 = math.tanh %4 : vector<1024x3xf32>
    %c0_5 = arith.constant 0 : index
    %c0_6 = arith.constant 0 : index
    %c0_7 = arith.constant 0 : index
    %6 = vector.load %arg4[%c0_5, %c0_6, %c0_7] : memref<1x1024x3xf32, #tpu.memory_space<vmem>>, vector<1x1024x3xf32>
    %7 = vector.shape_cast %6 : vector<1x1024x3xf32> to vector<1024x3xf32>
    %8 = vector.shape_cast %5 : vector<1024x3xf32> to vector<1x1024x3xf32>
    tpu.vector_store %arg4[%c0_5, %c0_6, %c0_7], %8 {strides = array<i32>} : memref<1x1024x3xf32, #tpu.memory_space<vmem>>, vector<1x1024x3xf32>,
    return
  }
  func.func @transform_0(%arg0: i32, %arg1: i32) -> (i32, i32, i32) {
    %c0_i32 = arith.constant 0 : i32
    %c0_i32_0 = arith.constant 0 : i32
    return %arg0, %arg1, %c0_i32 : i32, i32, i32
  }
  func.func @transform_1(%arg0: i32, %arg1: i32) -> (i32, i32, i32) {
    %c0_i32 = arith.constant 0 : i32
    %c0_i32_0 = arith.constant 0 : i32
    %c0_i32_1 = arith.constant 0 : i32
    return %arg0, %c0_i32, %c0_i32_0 : i32, i32, i32
  }
  func.func @transform_2(%arg0: i32, %arg1: i32) -> (i32, i32, i32) {
    %c0_i32 = arith.constant 0 : i32
    %c0_i32_0 = arith.constant 0 : i32
    return %arg0, %arg1, %c0_i32 : i32, i32, i32
  }
}

</mosaic_0001>

<llo_original>
// kernel: generator_forward.10
$region0: #{generator_forward.10}
  #allocation0 [shape = 'u32[]', space=smem, size = 0x4, offset = 0x4, fixed_abs, tag = 'smem constant byte address 0x4 - core index']
  #allocation1 [shape = 'u32[72,128]{1,0:T(1,128)}', space=vmem, size = 0x9000, scoped, tag = 'internal scratch']
  %s0 = inlined_call_operand.vmem [shape: f32[32,512], index: 0, kind: input, shape index: {}]
  %s1 = inlined_call_operand.vmem [shape: f32[1,512], index: 1, kind: input, shape index: {}]
  %s2 = inlined_call_operand.vmem [shape: f32[1,512], index: 2, kind: input, shape index: {}]
  %s3 = inlined_call_operand.vmem [shape: bf16[32,512], index: 3, kind: output, shape index: {}]
  %s4 = sld [smem:[#allocation0]]
  $region22: #{generator_forward.10} parent=0
    _
  %s6 = ssub.s32 1, %s4
  %s7 = scalar_select 0, %s6, %s4
  // Predicated region
  $region2: #{generator_forward.10} parent=0 // pred_check
    _
  $region3: #{generator_forward.10} parent=0 // pred_check_branch
    %9 = sbr.rel (0) target = $region5
  $region4: #{generator_forward.10} parent=0 // pred_region
    _
  $region5: #{generator_forward.10} parent=0 // pred_fallthru
    _
  // Predicated region
  $region6: #{generator_forward.10} parent=0 // pred_check
    _
  $region7: #{generator_forward.10} parent=0 // pred_check_branch
    %11 = sbr.rel (0) target = $region9
  $region8: #{generator_forward.10} parent=0 // pred_region
    _
  $region9: #{generator_forward.10} parent=0 // pred_fallthru
    _
  // Predicated region
  $region10: #{generator_forward.10} parent=0 // pred_check
    _
  $region11: #{generator_forward.10} parent=0 // pred_check_branch
    %13 = sbr.rel (0) target = $region13
  $region12: #{generator_forward.10} parent=0 // pred_region
    _
  $region13: #{generator_forward.10} parent=0 // pred_fallthru
    _
  %v14 = vld [vmem:[%s0] sm:$0xff]
  %v15 = vld [vmem:[%s0 + $0x8] sm:$0xff]
  %v16 = vld [vmem:[%s0 + $0x10] sm:$0xff]
  %v17 = vld [vmem:[%s0 + $0x18] sm:$0xff]
  %v18 = vld [vmem:[%s0 + $0x20] sm:$0xff]
  %v19 = vld [vmem:[%s0 + $0x28] sm:$0xff]
  %v20 = vld [vmem:[%s0 + $0x30] sm:$0xff]
  %v21 = vld [vmem:[%s0 + $0x38] sm:$0xff]
  %v22 = vld [vmem:[%s0 + $0x40] sm:$0xff]
  %v23 = vld [vmem:[%s0 + $0x48] sm:$0xff]
  %v24 = vld [vmem:[%s0 + $0x50] sm:$0xff]
  %v25 = vld [vmem:[%s0 + $0x58] sm:$0xff]
  %v26 = vld [vmem:[%s0 + $0x60] sm:$0xff]
  %v27 = vld [vmem:[%s0 + $0x68] sm:$0xff]
  %v28 = vld [vmem:[%s0 + $0x70] sm:$0xff]
  %v29 = vld [vmem:[%s0 + $0x78] sm:$0xff]
  %v30 = vld [vmem:[%s1] sm:$0xf]
  %v32 = vperm.slane %v30, 0
  %v33 = vperm.slane %v30, 1
  %v34 = vperm.slane %v30, 2
  %v35 = vperm.slane %v30, 3
  %v40 = vmul.f32 %v14, %v32
  %v41 = vmul.f32 %v15, %v33
  %v42 = vmul.f32 %v16, %v34
  %v43 = vmul.f32 %v17, %v35
  %v44 = vmul.f32 %v18, %v32
  %v45 = vmul.f32 %v19, %v33
  %v46 = vmul.f32 %v20, %v34
  %v47 = vmul.f32 %v21, %v35
  %v48 = vmul.f32 %v22, %v32
  %v49 = vmul.f32 %v23, %v33
  %v50 = vmul.f32 %v24, %v34
  %v51 = vmul.f32 %v25, %v35
  %v52 = vmul.f32 %v26, %v32
  %v53 = vmul.f32 %v27, %v33
  %v54 = vmul.f32 %v28, %v34
  %v55 = vmul.f32 %v29, %v35
  %v56 = vld [vmem:[%s2] sm:$0xf]
  %v58 = vperm.slane %v56, 0
  %v59 = vperm.slane %v56, 1
  %v60 = vperm.slane %v56, 2
  %v61 = vperm.slane %v56, 3
  %v66 = vadd.f32 %v40, %v58
  %v67 = vadd.f32 %v41, %v59
  %v68 = vadd.f32 %v42, %v60
  %v69 = vadd.f32 %v43, %v61
  %v70 = vadd.f32 %v44, %v58
  %v71 = vadd.f32 %v45, %v59
  %v72 = vadd.f32 %v46, %v60
  %v73 = vadd.f32 %v47, %v61
  %v74 = vadd.f32 %v48, %v58
  %v75 = vadd.f32 %v49, %v59
  %v76 = vadd.f32 %v50, %v60
  %v77 = vadd.f32 %v51, %v61
  %v78 = vadd.f32 %v52, %v58
  %v79 = vadd.f32 %v53, %v59
  %v80 = vadd.f32 %v54, %v60
  %v81 = vadd.f32 %v55, %v61
  %v82 = vmax.f32 %v66, 0.0
  %v83 = vmax.f32 %v67, 0.0
  %v84 = vmax.f32 %v68, 0.0
  %v85 = vmax.f32 %v69, 0.0
  %v86 = vmax.f32 %v70, 0.0
  %v87 = vmax.f32 %v71, 0.0
  %v88 = vmax.f32 %v72, 0.0
  %v89 = vmax.f32 %v73, 0.0
  %v90 = vmax.f32 %v74, 0.0
  %v91 = vmax.f32 %v75, 0.0
  %v92 = vmax.f32 %v76, 0.0
  %v93 = vmax.f32 %v77, 0.0
  %v94 = vmax.f32 %v78, 0.0
  %v95 = vmax.f32 %v79, 0.0
  %v96 = vmax.f32 %v80, 0.0
  %v97 = vmax.f32 %v81, 0.0
  %v98 = vpack.c.bf16 %v83, %v82
  %v99 = vpack.c.bf16 %v85, %v84
  %v100 = vpack.c.bf16 %v87, %v86
  %v101 = vpack.c.bf16 %v89, %v88
  %v102 = vpack.c.bf16 %v91, %v90
  %v103 = vpack.c.bf16 %v93, %v92
  %v104 = vpack.c.bf16 %v95, %v94
  %v105 = vpack.c.bf16 %v97, %v96
  %106 = vst [vmem:[%s3] sm:$0xff] %v98
  %107 = vst [vmem:[%s3 + $0x8] sm:$0xff] %v99
  %108 = vst [vmem:[%s3 + $0x10] sm:$0xff] %v100
  %109 = vst [vmem:[%s3 + $0x18] sm:$0xff] %v101
  %110 = vst [vmem:[%s3 + $0x20] sm:$0xff] %v102
  %111 = vst [vmem:[%s3 + $0x28] sm:$0xff] %v103
  %112 = vst [vmem:[%s3 + $0x30] sm:$0xff] %v104
  %113 = vst [vmem:[%s3 + $0x38] sm:$0xff] %v105
  // Predicated region
  $region14: #{generator_forward.10} parent=0 // pred_check
    _
  $region15: #{generator_forward.10} parent=0 // pred_check_branch
    %115 = sbr.rel (0) target = $region17
  $region16: #{generator_forward.10} parent=0 // pred_region
    _
  $region17: #{generator_forward.10} parent=0 // pred_fallthru
    _
  // Predicated region
  $region18: #{generator_forward.10} parent=0 // pred_check
    _
  $region19: #{generator_forward.10} parent=0 // pred_check_branch
    %117 = sbr.rel (0) target = $region21
  $region20: #{generator_forward.10} parent=0 // pred_region
    _
  $region21: #{generator_forward.10} parent=0 // pred_fallthru
    _

// kernel: generator_forward.9
$region0: #{generator_forward.9}
  #allocation0 [shape = 'u32[]', space=smem, size = 0x4, offset = 0x4, fixed_abs, tag = 'smem constant byte address 0x4 - core index']
  #allocation1 [shape = 'u32[72,128]{1,0:T(1,128)}', space=vmem, size = 0x9000, scoped, tag = 'internal scratch']
  %s0 = inlined_call_operand.vmem [shape: bf16[1,2,100], index: 0, kind: input, shape index: {}]
  %s1 = inlined_call_operand.vmem [shape: bf16[16,100,512], index: 1, kind: input, shape index: {}]
  %s2 = inlined_call_operand.vmem [shape: f32[16,2,512], index: 2, kind: output, shape index: {0}]
  %s3 = inlined_call_operand.vmem [shape: f32[16,1,2,512], index: 3, kind: output, shape index: {1}]
  %4 = xla_tuple %s2, %s3
  %s5 = sld [smem:[#allocation0]]
  $region49: #{generator_forward.9} parent=0
    _
  %s7 = ssub.s32 1, %s5
  %s8 = scalar_select 0, %s7, %s5
  loop: start=0, step=1, limit=18
  $region2: #{generator_forward.9} parent=0 // loop_pre_header
    _
  $region3: #{generator_forward.9} parent=0 // loop_header
    %s10 = sphi 0, %s14
    %p11 = scmp.ge.s32.totalorder %s10, 18
    %s17 = sphi 0, %s29
    %s18 = sphi 0, %s25
    %s19 = sphi 0, %s17
    %s20 = sphi 0, %s18
    %s21 = sphi 0, %s19
    %s22 = sphi 0, %s20
    %s32 = sphi 0, %s34
    %s35 = sphi 0, %s32
    %s36 = sphi 0, %s35
    %s52 = sphi 0, %s36
    %s58 = sphi 0, %s60
    %s61 = sphi 0, %s58
    %s62 = sphi 0, %s61
    %s78 = sphi 0, %s62
    %s86 = sphi 0, %s88
    %s89 = sphi 0, %s86
    %s90 = sphi 0, %s89
    %s106 = sphi 0, %s90
    %s114 = sphi 0, %s116
    %s117 = sphi 0, %s114
    %s118 = sphi 0, %s117
    %s134 = sphi 0, %s118
  $region4: #{generator_forward.9} parent=0 // loop_header_branch
    %13 = sbr.rel (%p11) target = $region8
  $region5: #{generator_forward.9} parent=0 // loop_body
    %s15 = ssub.s32 %s10, 1
    %s16 = ssub.s32 %s10, 2
    %s23 = sadd.s32 1, %s18
    %p24 = scmp.ge.s32.totalorder %s23, 1
    %s25 = scalar_select %p24, 0, %s23
    %s26 = sadd.s32 1, %s17
    %s27 = scalar_select %p24, %s26, %s17
    %p28 = scmp.ge.s32.totalorder %s27, 16
    %s29 = scalar_select %p28, 0, %s27
    %s30 = ssub.s32 %s18, %s25
    %p31 = scmp.eq.s32.totalorder %s30, 0
    %s33 = sadd.s32 %s32, 1
    %s34 = scalar_select %p31, %s32, %s33
    %p37 = pneg %p31
    %p38 = scmp.eq.s32.totalorder %s10, 15
    %p39 = por %p37, %p38
    %p40 = scmp.ne.s32.totalorder %s32, %s35
    %p41 = scmp.eq.s32.totalorder %s10, 0
    %p42 = por %p40, %p41
    %p43 = scmp.ne.s32.totalorder %s32, %s35
    %p44 = scmp.eq.s32.totalorder %s15, 15
    %p45 = por %p43, %p44
    %p46 = scmp.ne.s32.totalorder %s35, %s36
    %p47 = scmp.eq.s32.totalorder %s15, 0
    %p48 = por %p46, %p47
    %p49 = scmp.ne.s32.totalorder %s35, %s36
    %p50 = scmp.eq.s32.totalorder %s16, 15
    %p51 = por %p49, %p50
    %p53 = scmp.ne.s32.totalorder %s36, %s52
    %p54 = scmp.eq.s32.totalorder %s16, 0
    %p55 = por %p53, %p54
    %s56 = ssub.s32 %s17, %s29
    %p57 = scmp.eq.s32.totalorder %s56, 0
    %s59 = sadd.s32 %s58, 1
    %s60 = scalar_select %p57, %s58, %s59
    %p63 = pneg %p57
    %p64 = scmp.eq.s32.totalorder %s10, 15
    %p65 = por %p63, %p64
    %p66 = scmp.ne.s32.totalorder %s58, %s61
    %p67 = scmp.eq.s32.totalorder %s10, 0
    %p68 = por %p66, %p67
    %p69 = scmp.ne.s32.totalorder %s58, %s61
    %p70 = scmp.eq.s32.totalorder %s15, 15
    %p71 = por %p69, %p70
    %p72 = scmp.ne.s32.totalorder %s61, %s62
    %p73 = scmp.eq.s32.totalorder %s15, 0
    %p74 = por %p72, %p73
    %p75 = scmp.ne.s32.totalorder %s61, %s62
    %p76 = scmp.eq.s32.totalorder %s16, 15
    %p77 = por %p75, %p76
    %p79 = scmp.ne.s32.totalorder %s62, %s78
    %p80 = scmp.eq.s32.totalorder %s16, 0
    %p81 = por %p79, %p80
    %s82 = ssub.s32 %s17, %s29
    %s83 = ssub.s32 %s18, %s25
    %s84 = sor.u32 %s82, %s83
    %p85 = scmp.eq.s32.totalorder %s84, 0
    %s87 = sadd.s32 %s86, 1
    %s88 = scalar_select %p85, %s86, %s87
    %p91 = pneg %p85
    %p92 = scmp.eq.s32.totalorder %s10, 15
    %p93 = por %p91, %p92
    %p94 = scmp.ne.s32.totalorder %s86, %s89
    %p95 = scmp.eq.s32.totalorder %s10, 0
    %p96 = por %p94, %p95
    %p97 = scmp.ne.s32.totalorder %s86, %s89
    %p98 = scmp.eq.s32.totalorder %s15, 15
    %p99 = por %p97, %p98
    %p100 = scmp.ne.s32.totalorder %s89, %s90
    %p101 = scmp.eq.s32.totalorder %s15, 0
    %p102 = por %p100, %p101
    %p103 = scmp.ne.s32.totalorder %s89, %s90
    %p104 = scmp.eq.s32.totalorder %s16, 15
    %p105 = por %p103, %p104
    %p107 = scmp.ne.s32.totalorder %s90, %s106
    %p108 = scmp.eq.s32.totalorder %s16, 0
    %p109 = por %p107, %p108
    %s110 = ssub.s32 %s17, %s29
    %s111 = ssub.s32 %s18, %s25
    %s112 = sor.u32 %s110, %s111
    %p113 = scmp.eq.s32.totalorder %s112, 0
    %s115 = sadd.s32 %s114, 1
    %s116 = scalar_select %p113, %s114, %s115
    %p119 = pneg %p113
    %p120 = scmp.eq.s32.totalorder %s10, 15
    %p121 = por %p119, %p120
    %p122 = scmp.ne.s32.totalorder %s114, %s117
    %p123 = scmp.eq.s32.totalorder %s10, 0
    %p124 = por %p122, %p123
    %p125 = scmp.ne.s32.totalorder %s114, %s117
    %p126 = scmp.eq.s32.totalorder %s15, 15
    %p127 = por %p125, %p126
    %p128 = scmp.ne.s32.totalorder %s117, %s118
    %p129 = scmp.eq.s32.totalorder %s15, 0
    %p130 = por %p128, %p129
    %p131 = scmp.ne.s32.totalorder %s117, %s118
    %p132 = scmp.eq.s32.totalorder %s16, 15
    %p133 = por %p131, %p132
    %p135 = scmp.ne.s32.totalorder %s118, %s134
    %p136 = scmp.eq.s32.totalorder %s16, 0
    %p137 = por %p135, %p136
    %p138 = scmp.le.s32.totalorder 1, %s10
    %p139 = scmp.lt.s32.totalorder %s10, 17
    %p140 = pnand %p138, %p139
    %p141 = pneg %p140
    // Predicated region
    $region9: #{generator_forward.9} parent=5 // pred_check
      _
    $region10: #{generator_forward.9} parent=5 // pred_check_branch
      %143 = sbr.rel (%p140) target = $region12
    $region11: #{generator_forward.9} parent=5 // pred_region
      %s144 = ssub.s32 %s10, 1
      // Predicated region
      $region13: #{generator_forward.9} parent=11 // pred_check
        %p145 = pneg %p48
      $region14: #{generator_forward.9} parent=11 // pred_check_branch
        %147 = sbr.rel (%p145) target = $region16
      $region15: #{generator_forward.9} parent=11 // pred_region
        %p148 = scmp.lt.s32.totalorder %s20, 0
        %s149 = scalar_select %p148, %s20, 0
        %s150 = scalar_lea.vmem %s0, %s149
      $region16: #{generator_forward.9} parent=11 // pred_fallthru
        _
    $region12: #{generator_forward.9} parent=5 // pred_fallthru
      _
    %p151 = scmp.lt.s32.totalorder %s10, 16
    // Predicated region
    $region17: #{generator_forward.9} parent=5 // pred_check
      %p152 = pneg %p151
    $region18: #{generator_forward.9} parent=5 // pred_check_branch
      %154 = sbr.rel (%p152) target = $region20
    $region19: #{generator_forward.9} parent=5 // pred_region
      // Predicated region
      $region21: #{generator_forward.9} parent=19 // pred_check
        %p155 = pneg %p68
      $region22: #{generator_forward.9} parent=19 // pred_check_branch
        %157 = sbr.rel (%p155) target = $region24
      $region23: #{generator_forward.9} parent=19 // pred_region
        %p158 = scmp.lt.s32.totalorder %s17, 15
        %s159 = scalar_select %p158, %s17, 15
        %s160 = smul.addr %s159, 52
        %s161 = smul.addr %s160, 4
        %s162 = scalar_lea.vmem %s1, %s161
      $region24: #{generator_forward.9} parent=19 // pred_fallthru
        _
    $region20: #{generator_forward.9} parent=5 // pred_fallthru
      _
    %p163 = scmp.le.s32.totalorder 1, %s10
    %p164 = scmp.lt.s32.totalorder %s10, 17
    %p165 = pnand %p163, %p164
    %p166 = pneg %p165
    // Predicated region
    $region25: #{generator_forward.9} parent=5 // pred_check
      _
    $region26: #{generator_forward.9} parent=5 // pred_check_branch
      %168 = sbr.rel (%p165) target = $region28
    $region27: #{generator_forward.9} parent=5 // pred_region
      %s169 = ssub.s32 %s10, 1
      %p170 = scmp.lt.s32.totalorder %s20, 0
      %s171 = scalar_select %p170, %s20, 0
      %s172 = scalar_lea.vmem %s0, %s171
      %p173 = pneg %p48
      %p174 = pneg %p45
      %p175 = scmp.lt.s32.totalorder %s19, 15
      %s176 = scalar_select %p175, %s19, 15
      %s177 = smul.addr %s176, 52
      %s178 = smul.addr %s177, 4
      %s179 = scalar_lea.vmem %s1, %s178
      %p180 = pneg %p74
      %p181 = pneg %p71
      %p182 = pneg %p102
      %p183 = pneg %p99
      %p184 = scmp.lt.s32.totalorder %s19, 15
      %s185 = scalar_select %p184, %s19, 15
      %p186 = scmp.lt.s32.totalorder %s20, 0
      %s187 = scalar_select %p186, %s20, 0
      %s188 = smul.addr %s187, 4
      %s189 = smul.addr %s185, 4
      %s190 = sadd.s32 %s188, %s189
      %s191 = smul.addr %s190, 2
      %s192 = scalar_lea.vmem %s2, %s191
      %p193 = pneg %p130
      %p194 = pneg %p127
      %p195 = scmp.lt.s32.totalorder %s19, 15
      %s196 = scalar_select %p195, %s19, 15
      %p197 = scmp.lt.s32.totalorder %s20, 0
      %s198 = scalar_select %p197, %s20, 0
      %s199 = smul.addr %s198, 4
      %s200 = smul.addr %s196, 4
      %s201 = sadd.s32 %s199, %s200
      %s202 = smul.addr %s201, 2
      %s203 = scalar_lea.vmem %s3, %s202
      %p204 = scmp.lt.s32.totalorder %s20, 0
      %s205 = scalar_select %p204, %s20, 0
      %s206 = scalar_lea.vmem %s0, %s205
      %p207 = scmp.lt.s32.totalorder %s19, 15
      %s208 = scalar_select %p207, %s19, 15
      %s209 = smul.addr %s208, 52
      %s210 = smul.addr %s209, 4
      %s211 = scalar_lea.vmem %s1, %s210
      %p212 = scmp.lt.s32.totalorder %s19, 15
      %s213 = scalar_select %p212, %s19, 15
      %p214 = scmp.lt.s32.totalorder %s20, 0
      %s215 = scalar_select %p214, %s20, 0
      %s216 = smul.addr %s215, 4
      %s217 = smul.addr %s213, 4
      %s218 = sadd.s32 %s216, %s217
      %s219 = smul.addr %s218, 2
      %s220 = scalar_lea.vmem %s2, %s219
      %p221 = scmp.lt.s32.totalorder %s19, 15
      %s222 = scalar_select %p221, %s19, 15
      %p223 = scmp.lt.s32.totalorder %s20, 0
      %s224 = scalar_select %p223, %s20, 0
      %s225 = smul.addr %s224, 4
      %s226 = smul.addr %s222, 4
      %s227 = sadd.s32 %s225, %s226
      %s228 = smul.addr %s227, 2
      %s229 = scalar_lea.vmem %s3, %s228
      %v231 = vld [vmem:[%s206] sm:$0x1]
      %v232 = vld [vmem:[%s211] sm:$0xff]
      %v233 = vld [vmem:[%s211 + $0x8] sm:$0xff]
      %v234 = vld [vmem:[%s211 + $0x10] sm:$0xff]
      %v235 = vld [vmem:[%s211 + $0x18] sm:$0xff]
      %v236 = vld [vmem:[%s211 + $0x20] sm:$0xff]
      %v237 = vld [vmem:[%s211 + $0x28] sm:$0xff]
      %v238 = vld [vmem:[%s211 + $0x30] sm:$0xff]
      %v239 = vld [vmem:[%s211 + $0x38] sm:$0xff]
      %v240 = vld [vmem:[%s211 + $0x40] sm:$0xff]
      %v241 = vld [vmem:[%s211 + $0x48] sm:$0xff]
      %v242 = vld [vmem:[%s211 + $0x50] sm:$0xff]
      %v243 = vld [vmem:[%s211 + $0x58] sm:$0xff]
      %v244 = vld [vmem:[%s211 + $0x60] sm:$0xff]
      %v245 = vld [vmem:[%s211 + $0x68] sm:$0xff]
      %v246 = vld [vmem:[%s211 + $0x70] sm:$0xff]
      %v247 = vld [vmem:[%s211 + $0x78] sm:$0xff]
      %v248 = vld [vmem:[%s211 + $0x80] sm:$0xff]
      %v249 = vld [vmem:[%s211 + $0x88] sm:$0xff]
      %v250 = vld [vmem:[%s211 + $0x90] sm:$0xff]
      %v251 = vld [vmem:[%s211 + $0x98] sm:$0xff]
      %v252 = vld [vmem:[%s211 + $0xa0] sm:$0xff]
      %v253 = vld [vmem:[%s211 + $0xa8] sm:$0xff]
      %v254 = vld [vmem:[%s211 + $0xb0] sm:$0xff]
      %v255 = vld [vmem:[%s211 + $0xb8] sm:$0xff]
      %v256 = vld [vmem:[%s211 + $0xc0] sm:$0x33]
      %v257 = vld [vmem:[%s211 + $0xc8] sm:$0x33]
      %v284 = vunpack.c.l.b16 %v232
      %v285 = vunpack.c.h.b16 %v232
      %v286 = vunpack.c.l.b16 %v233
      %v287 = vunpack.c.h.b16 %v233
      %v288 = vunpack.c.l.b16 %v234
      %v289 = vunpack.c.h.b16 %v234
      %v290 = vunpack.c.l.b16 %v235
      %v291 = vunpack.c.h.b16 %v235
      %v292 = vunpack.c.l.b16 %v236
      %v293 = vunpack.c.h.b16 %v236
      %v294 = vunpack.c.l.b16 %v237
      %v295 = vunpack.c.h.b16 %v237
      %v296 = vunpack.c.l.b16 %v238
      %v297 = vunpack.c.h.b16 %v238
      %v298 = vunpack.c.l.b16 %v239
      %v299 = vunpack.c.h.b16 %v239
      %v300 = vunpack.c.l.b16 %v240
      %v301 = vunpack.c.h.b16 %v240
      %v302 = vunpack.c.l.b16 %v241
      %v303 = vunpack.c.h.b16 %v241
      %v304 = vunpack.c.l.b16 %v242
      %v305 = vunpack.c.h.b16 %v242
      %v306 = vunpack.c.l.b16 %v243
      %v307 = vunpack.c.h.b16 %v243
      %v308 = vunpack.c.l.b16 %v244
      %v309 = vunpack.c.h.b16 %v244
      %v310 = vunpack.c.l.b16 %v245
      %v311 = vunpack.c.h.b16 %v245
      %v312 = vunpack.c.l.b16 %v246
      %v313 = vunpack.c.h.b16 %v246
      %v314 = vunpack.c.l.b16 %v247
      %v315 = vunpack.c.h.b16 %v247
      %v316 = vunpack.c.l.b16 %v248
      %v317 = vunpack.c.h.b16 %v248
      %v318 = vunpack.c.l.b16 %v249
      %v319 = vunpack.c.h.b16 %v249
      %v320 = vunpack.c.l.b16 %v250
      %v321 = vunpack.c.h.b16 %v250
      %v322 = vunpack.c.l.b16 %v251
      %v323 = vunpack.c.h.b16 %v251
      %v324 = vunpack.c.l.b16 %v252
      %v325 = vunpack.c.h.b16 %v252
      %v326 = vunpack.c.l.b16 %v253
      %v327 = vunpack.c.h.b16 %v253
      %v328 = vunpack.c.l.b16 %v254
      %v329 = vunpack.c.h.b16 %v254
      %v330 = vunpack.c.l.b16 %v255
      %v331 = vunpack.c.h.b16 %v255
      %v332 = vunpack.c.l.b16 %v256
      %v333 = vunpack.c.h.b16 %v256
      %v334 = vunpack.c.l.b16 %v257
      %v335 = vunpack.c.h.b16 %v257
      %v336 = vpack.c.b16 %v288, %v284
      %v337 = vpack.c.b16 %v289, %v285
      %v338 = vpack.c.b16 %v290, %v286
      %v339 = vpack.c.b16 %v291, %v287
      %v340 = vpack.c.b16 %v296, %v292
      %v341 = vpack.c.b16 %v297, %v293
      %v342 = vpack.c.b16 %v298, %v294
      %v343 = vpack.c.b16 %v299, %v295
      %v344 = vpack.c.b16 %v304, %v300
      %v345 = vpack.c.b16 %v305, %v301
      %v346 = vpack.c.b16 %v306, %v302
      %v347 = vpack.c.b16 %v307, %v303
      %v348 = vpack.c.b16 %v312, %v308
      %v349 = vpack.c.b16 %v313, %v309
      %v350 = vpack.c.b16 %v314, %v310
      %v351 = vpack.c.b16 %v315, %v311
      %v352 = vpack.c.b16 %v320, %v316
      %v353 = vpack.c.b16 %v321, %v317
      %v354 = vpack.c.b16 %v322, %v318
      %v355 = vpack.c.b16 %v323, %v319
      %v356 = vpack.c.b16 %v328, %v324
      %v357 = vpack.c.b16 %v329, %v325
      %v358 = vpack.c.b16 %v330, %v326
      %v359 = vpack.c.b16 %v331, %v327
      %v360 = vpack.c.b16 %v332, %v332
      %v361 = vpack.c.b16 %v333, %v333
      %v362 = vpack.c.b16 %v334, %v334
      %v363 = vpack.c.b16 %v335, %v335
      %vm388 = vcmask 818176
      %v390 = vsel %vm388, %v231, 0
      %vm392 = vcmask 1041408
      %v394 = vsel %vm392, %v360, 0
      %v397 = vsel %vm392, %v361, 0
      %v400 = vsel %vm392, %v362, 0
      %v403 = vsel %vm392, %v363, 0
      %405 = vmatpush.bf16.msra.mxu0 0
      %406 = vmatpush.bf16.msra.mxu0 %v394
      %407 = vmatpush.bf16.msra.mxu0 %v356
      %408 = vmatpush.bf16.msra.mxu0 %v352
      %409 = vmatpush.bf16.msra.mxu0 %v348
      %410 = vmatpush.bf16.msra.mxu0 %v344
      %411 = vmatpush.bf16.msra.mxu0 %v340
      %412 = vmatpush.bf16.msra.mxu0 %v336
      %413 = vmatmul.bf16.gmra.mxu0 %v390
      %v414 = vpop.f32.mrf.mxu0
      %v415 = vadd.f32 0.0, %v414
      %v416 = vpop.f32.mrf.mxu0
      %417 = vdwg.mxu0
      %418 = vmatpush.bf16.msra.mxu0 0
      %419 = vmatpush.bf16.msra.mxu0 %v397
      %420 = vmatpush.bf16.msra.mxu0 %v357
      %421 = vmatpush.bf16.msra.mxu0 %v353
      %422 = vmatpush.bf16.msra.mxu0 %v349
      %423 = vmatpush.bf16.msra.mxu0 %v345
      %424 = vmatpush.bf16.msra.mxu0 %v341
      %425 = vmatpush.bf16.msra.mxu0 %v337
      %426 = vmatmul.bf16.gmra.mxu0 %v390
      %v427 = vpop.f32.mrf.mxu0
      %v428 = vadd.f32 0.0, %v427
      %v429 = vpop.f32.mrf.mxu0
      %430 = vdwg.mxu0
      %431 = vmatpush.bf16.msra.mxu0 0
      %432 = vmatpush.bf16.msra.mxu0 %v400
      %433 = vmatpush.bf16.msra.mxu0 %v358
      %434 = vmatpush.bf16.msra.mxu0 %v354
      %435 = vmatpush.bf16.msra.mxu0 %v350
      %436 = vmatpush.bf16.msra.mxu0 %v346
      %437 = vmatpush.bf16.msra.mxu0 %v342
      %438 = vmatpush.bf16.msra.mxu0 %v338
      %439 = vmatmul.bf16.gmra.mxu0 %v390
      %v440 = vpop.f32.mrf.mxu0
      %v441 = vadd.f32 0.0, %v440
      %v442 = vpop.f32.mrf.mxu0
      %443 = vdwg.mxu0
      %444 = vmatpush.bf16.msra.mxu0 0
      %445 = vmatpush.bf16.msra.mxu0 %v403
      %446 = vmatpush.bf16.msra.mxu0 %v359
      %447 = vmatpush.bf16.msra.mxu0 %v355
      %448 = vmatpush.bf16.msra.mxu0 %v351
      %449 = vmatpush.bf16.msra.mxu0 %v347
      %450 = vmatpush.bf16.msra.mxu0 %v343
      %451 = vmatpush.bf16.msra.mxu0 %v339
      %452 = vmatmul.bf16.gmra.mxu0 %v390
      %v453 = vpop.f32.mrf.mxu0
      %v454 = vadd.f32 0.0, %v453
      %v455 = vpop.f32.mrf.mxu0
      %456 = vdwg.mxu0
      %v461 = vrot.slane %v428, 6
      %v462 = vrot.slane %v441, 4
      %v463 = vrot.slane %v454, 2
      %v464 = vsel %vm392, %v415, %v461
      %vm465 = vcmask 1045508
      %v466 = vsel %vm465, %v462, %v463
      %vm467 = vcmask 1043456
      %v468 = vsel %vm467, %v464, %v466
      %470 = vst [vmem:[%s220] sm:$0xff] %v468
      %v471 = vsel %vm392, %v415, 0.0
      %v472 = vrot.slane %v471, 4
      %v473 = vadd.f32 %v471, %v472
      %v474 = vrot.slane %v473, 2
      %v475 = vadd.f32 %v473, %v474
      %v476 = vrot.slane %v475, 1
      %v477 = vadd.f32 %v475, %v476
      %v478 = vsel %vm392, %v428, 0.0
      %v479 = vrot.slane %v478, 4
      %v480 = vadd.f32 %v478, %v479
      %v481 = vrot.slane %v480, 2
      %v482 = vadd.f32 %v480, %v481
      %v483 = vrot.slane %v482, 1
      %v484 = vadd.f32 %v482, %v483
      %v485 = vsel %vm392, %v441, 0.0
      %v486 = vrot.slane %v485, 4
      %v487 = vadd.f32 %v485, %v486
      %v488 = vrot.slane %v487, 2
      %v489 = vadd.f32 %v487, %v488
      %v490 = vrot.slane %v489, 1
      %v491 = vadd.f32 %v489, %v490
      %v492 = vsel %vm392, %v454, 0.0
      %v493 = vrot.slane %v492, 4
      %v494 = vadd.f32 %v492, %v493
      %v495 = vrot.slane %v494, 2
      %v496 = vadd.f32 %v494, %v495
      %v497 = vrot.slane %v496, 1
      %v498 = vadd.f32 %v496, %v497
      %v503 = vrot.slane %v484, 7
      %v504 = vrot.slane %v491, 6
      %v505 = vrot.slane %v498, 5
      %vm506 = vcmask 1040384
      %v507 = vsel %vm506, %v477, %v503
      %vm508 = vcmask 1042434
      %v509 = vsel %vm508, %v504, %v505
      %v510 = vsel %vm392, %v507, %v509
      %v512 = vlaneseq
      %vm513 = vcmp.ge.s32.totalorder %v512, 0
      %vm514 = vcmp.lt.s32.totalorder %v512, 512
      %vm515 = vmand %vm513, %vm514
      %516 = vst.msk [vmem:[%s229] ss:$2 sm:$0xf] %vm515, %v510
      %v517 = vmul.f32 %v415, %v415
      %v518 = vmul.f32 %v428, %v428
      %v519 = vmul.f32 %v441, %v441
      %v520 = vmul.f32 %v454, %v454
      %v521 = vsel %vm392, %v517, 0.0
      %v522 = vrot.slane %v521, 4
      %v523 = vadd.f32 %v521, %v522
      %v524 = vrot.slane %v523, 2
      %v525 = vadd.f32 %v523, %v524
      %v526 = vrot.slane %v525, 1
      %v527 = vadd.f32 %v525, %v526
      %v528 = vsel %vm392, %v518, 0.0
      %v529 = vrot.slane %v528, 4
      %v530 = vadd.f32 %v528, %v529
      %v531 = vrot.slane %v530, 2
      %v532 = vadd.f32 %v530, %v531
      %v533 = vrot.slane %v532, 1
      %v534 = vadd.f32 %v532, %v533
      %v535 = vsel %vm392, %v519, 0.0
      %v536 = vrot.slane %v535, 4
      %v537 = vadd.f32 %v535, %v536
      %v538 = vrot.slane %v537, 2
      %v539 = vadd.f32 %v537, %v538
      %v540 = vrot.slane %v539, 1
      %v541 = vadd.f32 %v539, %v540
      %v542 = vsel %vm392, %v520, 0.0
      %v543 = vrot.slane %v542, 4
      %v544 = vadd.f32 %v542, %v543
      %v545 = vrot.slane %v544, 2
      %v546 = vadd.f32 %v544, %v545
      %v547 = vrot.slane %v546, 1
      %v548 = vadd.f32 %v546, %v547
      %v553 = vrot.slane %v534, 7
      %v554 = vrot.slane %v541, 6
      %v555 = vrot.slane %v548, 5
      %v556 = vsel %vm506, %v527, %v553
      %v557 = vsel %vm508, %v554, %v555
      %v558 = vsel %vm392, %v556, %v557
      %s560 = scalar_lea.vmem %s229, 1
      %561 = vst.msk [vmem:[%s560] ss:$2 sm:$0xf] %vm515, %v558
      %p562 = scmp.lt.s32.totalorder %s19, 15
      %s563 = scalar_select %p562, %s19, 15
      %p564 = scmp.lt.s32.totalorder %s20, 0
      %s565 = scalar_select %p564, %s20, 0
      %s566 = smul.addr %s565, 4
      %s567 = smul.addr %s563, 4
      %s568 = sadd.s32 %s566, %s567
      %s569 = smul.addr %s568, 2
      %s570 = scalar_lea.vmem %s2, %s569
      %p571 = scmp.lt.s32.totalorder %s19, 15
      %s572 = scalar_select %p571, %s19, 15
      %p573 = scmp.lt.s32.totalorder %s20, 0
      %s574 = scalar_select %p573, %s20, 0
      %s575 = smul.addr %s574, 4
      %s576 = smul.addr %s572, 4
      %s577 = sadd.s32 %s575, %s576
      %s578 = smul.addr %s577, 2
      %s579 = scalar_lea.vmem %s3, %s578
      // Predicated region
      $region29: #{generator_forward.9} parent=27 // pred_check
        %p580 = pneg %p99
      $region30: #{generator_forward.9} parent=27 // pred_check_branch
        %582 = sbr.rel (%p580) target = $region32
      $region31: #{generator_forward.9} parent=27 // pred_region
        _
      $region32: #{generator_forward.9} parent=27 // pred_fallthru
        _
      // Predicated region
      $region33: #{generator_forward.9} parent=27 // pred_check
        %p583 = pneg %p127
      $region34: #{generator_forward.9} parent=27 // pred_check_branch
        %585 = sbr.rel (%p583) target = $region36
      $region35: #{generator_forward.9} parent=27 // pred_region
        _
      $region36: #{generator_forward.9} parent=27 // pred_fallthru
        _
    $region28: #{generator_forward.9} parent=5 // pred_fallthru
      _
    %p586 = scmp.le.s32.totalorder 2, %s10
    // Predicated region
    $region37: #{generator_forward.9} parent=5 // pred_check
      %p587 = pneg %p586
    $region38: #{generator_forward.9} parent=5 // pred_check_branch
      %589 = sbr.rel (%p587) target = $region40
    $region39: #{generator_forward.9} parent=5 // pred_region
      %s590 = ssub.s32 %s10, 2
      // Predicated region
      $region41: #{generator_forward.9} parent=39 // pred_check
        %p591 = pneg %p105
      $region42: #{generator_forward.9} parent=39 // pred_check_branch
        %593 = sbr.rel (%p591) target = $region44
      $region43: #{generator_forward.9} parent=39 // pred_region
        %p594 = scmp.lt.s32.totalorder %s21, 15
        %s595 = scalar_select %p594, %s21, 15
        %p596 = scmp.lt.s32.totalorder %s22, 0
        %s597 = scalar_select %p596, %s22, 0
        %s598 = smul.addr %s597, 4
        %s599 = smul.addr %s595, 4
        %s600 = sadd.s32 %s598, %s599
        %s601 = smul.addr %s600, 2
        %s602 = scalar_lea.vmem %s2, %s601
      $region44: #{generator_forward.9} parent=39 // pred_fallthru
        _
      // Predicated region
      $region45: #{generator_forward.9} parent=39 // pred_check
        %p603 = pneg %p133
      $region46: #{generator_forward.9} parent=39 // pred_check_branch
        %605 = sbr.rel (%p603) target = $region48
      $region47: #{generator_forward.9} parent=39 // pred_region
        %p606 = scmp.lt.s32.totalorder %s21, 15
        %s607 = scalar_select %p606, %s21, 15
        %p608 = scmp.lt.s32.totalorder %s22, 0
        %s609 = scalar_select %p608, %s22, 0
        %s610 = smul.addr %s609, 4
        %s611 = smul.addr %s607, 4
        %s612 = sadd.s32 %s610, %s611
        %s613 = smul.addr %s612, 2
        %s614 = scalar_lea.vmem %s3, %s613
      $region48: #{generator_forward.9} parent=39 // pred_fallthru
        _
    $region40: #{generator_forward.9} parent=5 // pred_fallthru
      _
  $region6: #{generator_forward.9} parent=0 // loop_footer
    %s14 = sadd.s32 1, %s10
  $region7: #{generator_forward.9} parent=0 // loop_footer_branch
    %9 = sbr.rel target = $region3
  $region8: #{generator_forward.9} parent=0 // loop_exit
    _

// kernel: generator_forward.12
$region0: #{generator_forward.12}
  #allocation0 [shape = 'u32[]', space=smem, size = 0x4, offset = 0x4, fixed_abs, tag = 'smem constant byte address 0x4 - core index']
  #allocation1 [shape = 'u32[72,128]{1,0:T(1,128)}', space=vmem, size = 0x9000, scoped, tag = 'internal scratch']
  %s0 = inlined_call_operand.vmem [shape: f32[128,256], index: 0, kind: input, shape index: {}]
  %s1 = inlined_call_operand.vmem [shape: f32[1,256], index: 1, kind: input, shape index: {}]
  %s2 = inlined_call_operand.vmem [shape: f32[1,256], index: 2, kind: input, shape index: {}]
  %s3 = inlined_call_operand.vmem [shape: bf16[128,256], index: 3, kind: output, shape index: {}]
  %s4 = sld [smem:[#allocation0]]
  $region22: #{generator_forward.12} parent=0
    _
  %s6 = ssub.s32 1, %s4
  %s7 = scalar_select 0, %s6, %s4
  // Predicated region
  $region2: #{generator_forward.12} parent=0 // pred_check
    _
  $region3: #{generator_forward.12} parent=0 // pred_check_branch
    %9 = sbr.rel (0) target = $region5
  $region4: #{generator_forward.12} parent=0 // pred_region
    _
  $region5: #{generator_forward.12} parent=0 // pred_fallthru
    _
  // Predicated region
  $region6: #{generator_forward.12} parent=0 // pred_check
    _
  $region7: #{generator_forward.12} parent=0 // pred_check_branch
    %11 = sbr.rel (0) target = $region9
  $region8: #{generator_forward.12} parent=0 // pred_region
    _
  $region9: #{generator_forward.12} parent=0 // pred_fallthru
    _
  // Predicated region
  $region10: #{generator_forward.12} parent=0 // pred_check
    _
  $region11: #{generator_forward.12} parent=0 // pred_check_branch
    %13 = sbr.rel (0) target = $region13
  $region12: #{generator_forward.12} parent=0 // pred_region
    _
  $region13: #{generator_forward.12} parent=0 // pred_fallthru
    _
  %v14 = vld [vmem:[%s0] sm:$0xff]
  %v15 = vld [vmem:[%s0 + $0x8] sm:$0xff]
  %v16 = vld [vmem:[%s0 + $0x10] sm:$0xff]
  %v17 = vld [vmem:[%s0 + $0x18] sm:$0xff]
  %v18 = vld [vmem:[%s0 + $0x20] sm:$0xff]
  %v19 = vld [vmem:[%s0 + $0x28] sm:$0xff]
  %v20 = vld [vmem:[%s0 + $0x30] sm:$0xff]
  %v21 = vld [vmem:[%s0 + $0x38] sm:$0xff]
  %v22 = vld [vmem:[%s0 + $0x40] sm:$0xff]
  %v23 = vld [vmem:[%s0 + $0x48] sm:$0xff]
  %v24 = vld [vmem:[%s0 + $0x50] sm:$0xff]
  %v25 = vld [vmem:[%s0 + $0x58] sm:$0xff]
  %v26 = vld [vmem:[%s0 + $0x60] sm:$0xff]
  %v27 = vld [vmem:[%s0 + $0x68] sm:$0xff]
  %v28 = vld [vmem:[%s0 + $0x70] sm:$0xff]
  %v29 = vld [vmem:[%s0 + $0x78] sm:$0xff]
  %v30 = vld [vmem:[%s0 + $0x80] sm:$0xff]
  %v31 = vld [vmem:[%s0 + $0x88] sm:$0xff]
  %v32 = vld [vmem:[%s0 + $0x90] sm:$0xff]
  %v33 = vld [vmem:[%s0 + $0x98] sm:$0xff]
  %v34 = vld [vmem:[%s0 + $0xa0] sm:$0xff]
  %v35 = vld [vmem:[%s0 + $0xa8] sm:$0xff]
  %v36 = vld [vmem:[%s0 + $0xb0] sm:$0xff]
  %v37 = vld [vmem:[%s0 + $0xb8] sm:$0xff]
  %v38 = vld [vmem:[%s0 + $0xc0] sm:$0xff]
  %v39 = vld [vmem:[%s0 + $0xc8] sm:$0xff]
  %v40 = vld [vmem:[%s0 + $0xd0] sm:$0xff]
  %v41 = vld [vmem:[%s0 + $0xd8] sm:$0xff]
  %v42 = vld [vmem:[%s0 + $0xe0] sm:$0xff]
  %v43 = vld [vmem:[%s0 + $0xe8] sm:$0xff]
  %v44 = vld [vmem:[%s0 + $0xf0] sm:$0xff]
  %v45 = vld [vmem:[%s0 + $0xf8] sm:$0xff]
  %v46 = vld [vmem:[%s1] sm:$0x3]
  %v48 = vperm.slane %v46, 0
  %v49 = vperm.slane %v46, 1
  %v52 = vmul.f32 %v14, %v48
  %v53 = vmul.f32 %v15, %v49
  %v54 = vmul.f32 %v16, %v48
  %v55 = vmul.f32 %v17, %v49
  %v56 = vmul.f32 %v18, %v48
  %v57 = vmul.f32 %v19, %v49
  %v58 = vmul.f32 %v20, %v48
  %v59 = vmul.f32 %v21, %v49
  %v60 = vmul.f32 %v22, %v48
  %v61 = vmul.f32 %v23, %v49
  %v62 = vmul.f32 %v24, %v48
  %v63 = vmul.f32 %v25, %v49
  %v64 = vmul.f32 %v26, %v48
  %v65 = vmul.f32 %v27, %v49
  %v66 = vmul.f32 %v28, %v48
  %v67 = vmul.f32 %v29, %v49
  %v68 = vmul.f32 %v30, %v48
  %v69 = vmul.f32 %v31, %v49
  %v70 = vmul.f32 %v32, %v48
  %v71 = vmul.f32 %v33, %v49
  %v72 = vmul.f32 %v34, %v48
  %v73 = vmul.f32 %v35, %v49
  %v74 = vmul.f32 %v36, %v48
  %v75 = vmul.f32 %v37, %v49
  %v76 = vmul.f32 %v38, %v48
  %v77 = vmul.f32 %v39, %v49
  %v78 = vmul.f32 %v40, %v48
  %v79 = vmul.f32 %v41, %v49
  %v80 = vmul.f32 %v42, %v48
  %v81 = vmul.f32 %v43, %v49
  %v82 = vmul.f32 %v44, %v48
  %v83 = vmul.f32 %v45, %v49
  %v84 = vld [vmem:[%s2] sm:$0x3]
  %v86 = vperm.slane %v84, 0
  %v87 = vperm.slane %v84, 1
  %v90 = vadd.f32 %v52, %v86
  %v91 = vadd.f32 %v53, %v87
  %v92 = vadd.f32 %v54, %v86
  %v93 = vadd.f32 %v55, %v87
  %v94 = vadd.f32 %v56, %v86
  %v95 = vadd.f32 %v57, %v87
  %v96 = vadd.f32 %v58, %v86
  %v97 = vadd.f32 %v59, %v87
  %v98 = vadd.f32 %v60, %v86
  %v99 = vadd.f32 %v61, %v87
  %v100 = vadd.f32 %v62, %v86
  %v101 = vadd.f32 %v63, %v87
  %v102 = vadd.f32 %v64, %v86
  %v103 = vadd.f32 %v65, %v87
  %v104 = vadd.f32 %v66, %v86
  %v105 = vadd.f32 %v67, %v87
  %v106 = vadd.f32 %v68, %v86
  %v107 = vadd.f32 %v69, %v87
  %v108 = vadd.f32 %v70, %v86
  %v109 = vadd.f32 %v71, %v87
  %v110 = vadd.f32 %v72, %v86
  %v111 = vadd.f32 %v73, %v87
  %v112 = vadd.f32 %v74, %v86
  %v113 = vadd.f32 %v75, %v87
  %v114 = vadd.f32 %v76, %v86
  %v115 = vadd.f32 %v77, %v87
  %v116 = vadd.f32 %v78, %v86
  %v117 = vadd.f32 %v79, %v87
  %v118 = vadd.f32 %v80, %v86
  %v119 = vadd.f32 %v81, %v87
  %v120 = vadd.f32 %v82, %v86
  %v121 = vadd.f32 %v83, %v87
  %v122 = vmax.f32 %v90, 0.0
  %v123 = vmax.f32 %v91, 0.0
  %v124 = vmax.f32 %v92, 0.0
  %v125 = vmax.f32 %v93, 0.0
  %v126 = vmax.f32 %v94, 0.0
  %v127 = vmax.f32 %v95, 0.0
  %v128 = vmax.f32 %v96, 0.0
  %v129 = vmax.f32 %v97, 0.0
  %v130 = vmax.f32 %v98, 0.0
  %v131 = vmax.f32 %v99, 0.0
  %v132 = vmax.f32 %v100, 0.0
  %v133 = vmax.f32 %v101, 0.0
  %v134 = vmax.f32 %v102, 0.0
  %v135 = vmax.f32 %v103, 0.0
  %v136 = vmax.f32 %v104, 0.0
  %v137 = vmax.f32 %v105, 0.0
  %v138 = vmax.f32 %v106, 0.0
  %v139 = vmax.f32 %v107, 0.0
  %v140 = vmax.f32 %v108, 0.0
  %v141 = vmax.f32 %v109, 0.0
  %v142 = vmax.f32 %v110, 0.0
  %v143 = vmax.f32 %v111, 0.0
  %v144 = vmax.f32 %v112, 0.0
  %v145 = vmax.f32 %v113, 0.0
  %v146 = vmax.f32 %v114, 0.0
  %v147 = vmax.f32 %v115, 0.0
  %v148 = vmax.f32 %v116, 0.0
  %v149 = vmax.f32 %v117, 0.0
  %v150 = vmax.f32 %v118, 0.0
  %v151 = vmax.f32 %v119, 0.0
  %v152 = vmax.f32 %v120, 0.0
  %v153 = vmax.f32 %v121, 0.0
  %v154 = vpack.c.bf16 %v123, %v122
  %v155 = vpack.c.bf16 %v125, %v124
  %v156 = vpack.c.bf16 %v127, %v126
  %v157 = vpack.c.bf16 %v129, %v128
  %v158 = vpack.c.bf16 %v131, %v130
  %v159 = vpack.c.bf16 %v133, %v132
  %v160 = vpack.c.bf16 %v135, %v134
  %v161 = vpack.c.bf16 %v137, %v136
  %v162 = vpack.c.bf16 %v139, %v138
  %v163 = vpack.c.bf16 %v141, %v140
  %v164 = vpack.c.bf16 %v143, %v142
  %v165 = vpack.c.bf16 %v145, %v144
  %v166 = vpack.c.bf16 %v147, %v146
  %v167 = vpack.c.bf16 %v149, %v148
  %v168 = vpack.c.bf16 %v151, %v150
  %v169 = vpack.c.bf16 %v153, %v152
  %170 = vst [vmem:[%s3] sm:$0xff] %v154
  %171 = vst [vmem:[%s3 + $0x8] sm:$0xff] %v155
  %172 = vst [vmem:[%s3 + $0x10] sm:$0xff] %v156
  %173 = vst [vmem:[%s3 + $0x18] sm:$0xff] %v157
  %174 = vst [vmem:[%s3 + $0x20] sm:$0xff] %v158
  %175 = vst [vmem:[%s3 + $0x28] sm:$0xff] %v159
  %176 = vst [vmem:[%s3 + $0x30] sm:$0xff] %v160
  %177 = vst [vmem:[%s3 + $0x38] sm:$0xff] %v161
  %178 = vst [vmem:[%s3 + $0x40] sm:$0xff] %v162
  %179 = vst [vmem:[%s3 + $0x48] sm:$0xff] %v163
  %180 = vst [vmem:[%s3 + $0x50] sm:$0xff] %v164
  %181 = vst [vmem:[%s3 + $0x58] sm:$0xff] %v165
  %182 = vst [vmem:[%s3 + $0x60] sm:$0xff] %v166
  %183 = vst [vmem:[%s3 + $0x68] sm:$0xff] %v167
  %184 = vst [vmem:[%s3 + $0x70] sm:$0xff] %v168
  %185 = vst [vmem:[%s3 + $0x78] sm:$0xff] %v169
  // Predicated region
  $region14: #{generator_forward.12} parent=0 // pred_check
    _
  $region15: #{generator_forward.12} parent=0 // pred_check_branch
    %187 = sbr.rel (0) target = $region17
  $region16: #{generator_forward.12} parent=0 // pred_region
    _
  $region17: #{generator_forward.12} parent=0 // pred_fallthru
    _
  // Predicated region
  $region18: #{generator_forward.12} parent=0 // pred_check
    _
  $region19: #{generator_forward.12} parent=0 // pred_check_branch
    %189 = sbr.rel (0) target = $region21
  $region20: #{generator_forward.12} parent=0 // pred_region
    _
  $region21: #{generator_forward.12} parent=0 // pred_fallthru
    _

// kernel: generator_forward.11
$region0: #{generator_forward.11}
  #allocation0 [shape = 'u32[]', space=smem, size = 0x4, offset = 0x4, fixed_abs, tag = 'smem constant byte address 0x4 - core index']
  #allocation1 [shape = 'u32[72,128]{1,0:T(1,128)}', space=vmem, size = 0x9000, scoped, tag = 'internal scratch']
  %s0 = inlined_call_operand.vmem [shape: bf16[4,32,2048], index: 0, kind: input, shape index: {}]
  %s1 = inlined_call_operand.vmem [shape: bf16[4,2048,256], index: 1, kind: input, shape index: {}]
  %s2 = inlined_call_operand.vmem [shape: f32[4,32,256], index: 2, kind: output, shape index: {0}]
  %s3 = inlined_call_operand.vmem [shape: f32[4,1,2,256], index: 3, kind: output, shape index: {1}]
  %4 = xla_tuple %s2, %s3
  %s5 = sld [smem:[#allocation0]]
  $region49: #{generator_forward.11} parent=0
    _
  %s7 = ssub.s32 1, %s5
  %s8 = scalar_select 0, %s7, %s5
  loop: start=0, step=1, limit=6
  $region2: #{generator_forward.11} parent=0 // loop_pre_header
    _
  $region3: #{generator_forward.11} parent=0 // loop_header
    %s10 = sphi 0, %s14
    %p11 = scmp.ge.s32.totalorder %s10, 6
    %s17 = sphi 0, %s29
    %s18 = sphi 0, %s25
    %s19 = sphi 0, %s17
    %s20 = sphi 0, %s18
    %s21 = sphi 0, %s19
    %s22 = sphi 0, %s20
    %s34 = sphi 0, %s36
    %s37 = sphi 0, %s34
    %s38 = sphi 0, %s37
    %s54 = sphi 0, %s38
    %s60 = sphi 0, %s62
    %s63 = sphi 0, %s60
    %s64 = sphi 0, %s63
    %s80 = sphi 0, %s64
    %s88 = sphi 0, %s90
    %s91 = sphi 0, %s88
    %s92 = sphi 0, %s91
    %s108 = sphi 0, %s92
    %s116 = sphi 0, %s118
    %s119 = sphi 0, %s116
    %s120 = sphi 0, %s119
    %s136 = sphi 0, %s120
  $region4: #{generator_forward.11} parent=0 // loop_header_branch
    %13 = sbr.rel (%p11) target = $region8
  $region5: #{generator_forward.11} parent=0 // loop_body
    %s15 = ssub.s32 %s10, 1
    %s16 = ssub.s32 %s10, 2
    %s23 = sadd.s32 1, %s18
    %p24 = scmp.ge.s32.totalorder %s23, 1
    %s25 = scalar_select %p24, 0, %s23
    %s26 = sadd.s32 1, %s17
    %s27 = scalar_select %p24, %s26, %s17
    %p28 = scmp.ge.s32.totalorder %s27, 4
    %s29 = scalar_select %p28, 0, %s27
    %s30 = ssub.s32 %s17, %s29
    %s31 = ssub.s32 %s18, %s25
    %s32 = sor.u32 %s30, %s31
    %p33 = scmp.eq.s32.totalorder %s32, 0
    %s35 = sadd.s32 %s34, 1
    %s36 = scalar_select %p33, %s34, %s35
    %p39 = pneg %p33
    %p40 = scmp.eq.s32.totalorder %s10, 3
    %p41 = por %p39, %p40
    %p42 = scmp.ne.s32.totalorder %s34, %s37
    %p43 = scmp.eq.s32.totalorder %s10, 0
    %p44 = por %p42, %p43
    %p45 = scmp.ne.s32.totalorder %s34, %s37
    %p46 = scmp.eq.s32.totalorder %s15, 3
    %p47 = por %p45, %p46
    %p48 = scmp.ne.s32.totalorder %s37, %s38
    %p49 = scmp.eq.s32.totalorder %s15, 0
    %p50 = por %p48, %p49
    %p51 = scmp.ne.s32.totalorder %s37, %s38
    %p52 = scmp.eq.s32.totalorder %s16, 3
    %p53 = por %p51, %p52
    %p55 = scmp.ne.s32.totalorder %s38, %s54
    %p56 = scmp.eq.s32.totalorder %s16, 0
    %p57 = por %p55, %p56
    %s58 = ssub.s32 %s17, %s29
    %p59 = scmp.eq.s32.totalorder %s58, 0
    %s61 = sadd.s32 %s60, 1
    %s62 = scalar_select %p59, %s60, %s61
    %p65 = pneg %p59
    %p66 = scmp.eq.s32.totalorder %s10, 3
    %p67 = por %p65, %p66
    %p68 = scmp.ne.s32.totalorder %s60, %s63
    %p69 = scmp.eq.s32.totalorder %s10, 0
    %p70 = por %p68, %p69
    %p71 = scmp.ne.s32.totalorder %s60, %s63
    %p72 = scmp.eq.s32.totalorder %s15, 3
    %p73 = por %p71, %p72
    %p74 = scmp.ne.s32.totalorder %s63, %s64
    %p75 = scmp.eq.s32.totalorder %s15, 0
    %p76 = por %p74, %p75
    %p77 = scmp.ne.s32.totalorder %s63, %s64
    %p78 = scmp.eq.s32.totalorder %s16, 3
    %p79 = por %p77, %p78
    %p81 = scmp.ne.s32.totalorder %s64, %s80
    %p82 = scmp.eq.s32.totalorder %s16, 0
    %p83 = por %p81, %p82
    %s84 = ssub.s32 %s17, %s29
    %s85 = ssub.s32 %s18, %s25
    %s86 = sor.u32 %s84, %s85
    %p87 = scmp.eq.s32.totalorder %s86, 0
    %s89 = sadd.s32 %s88, 1
    %s90 = scalar_select %p87, %s88, %s89
    %p93 = pneg %p87
    %p94 = scmp.eq.s32.totalorder %s10, 3
    %p95 = por %p93, %p94
    %p96 = scmp.ne.s32.totalorder %s88, %s91
    %p97 = scmp.eq.s32.totalorder %s10, 0
    %p98 = por %p96, %p97
    %p99 = scmp.ne.s32.totalorder %s88, %s91
    %p100 = scmp.eq.s32.totalorder %s15, 3
    %p101 = por %p99, %p100
    %p102 = scmp.ne.s32.totalorder %s91, %s92
    %p103 = scmp.eq.s32.totalorder %s15, 0
    %p104 = por %p102, %p103
    %p105 = scmp.ne.s32.totalorder %s91, %s92
    %p106 = scmp.eq.s32.totalorder %s16, 3
    %p107 = por %p105, %p106
    %p109 = scmp.ne.s32.totalorder %s92, %s108
    %p110 = scmp.eq.s32.totalorder %s16, 0
    %p111 = por %p109, %p110
    %s112 = ssub.s32 %s17, %s29
    %s113 = ssub.s32 %s18, %s25
    %s114 = sor.u32 %s112, %s113
    %p115 = scmp.eq.s32.totalorder %s114, 0
    %s117 = sadd.s32 %s116, 1
    %s118 = scalar_select %p115, %s116, %s117
    %p121 = pneg %p115
    %p122 = scmp.eq.s32.totalorder %s10, 3
    %p123 = por %p121, %p122
    %p124 = scmp.ne.s32.totalorder %s116, %s119
    %p125 = scmp.eq.s32.totalorder %s10, 0
    %p126 = por %p124, %p125
    %p127 = scmp.ne.s32.totalorder %s116, %s119
    %p128 = scmp.eq.s32.totalorder %s15, 3
    %p129 = por %p127, %p128
    %p130 = scmp.ne.s32.totalorder %s119, %s120
    %p131 = scmp.eq.s32.totalorder %s15, 0
    %p132 = por %p130, %p131
    %p133 = scmp.ne.s32.totalorder %s119, %s120
    %p134 = scmp.eq.s32.totalorder %s16, 3
    %p135 = por %p133, %p134
    %p137 = scmp.ne.s32.totalorder %s120, %s136
    %p138 = scmp.eq.s32.totalorder %s16, 0
    %p139 = por %p137, %p138
    %p140 = scmp.le.s32.totalorder 1, %s10
    %p141 = scmp.lt.s32.totalorder %s10, 5
    %p142 = pnand %p140, %p141
    %p143 = pneg %p142
    // Predicated region
    $region9: #{generator_forward.11} parent=5 // pred_check
      _
    $region10: #{generator_forward.11} parent=5 // pred_check_branch
      %145 = sbr.rel (%p142) target = $region12
    $region11: #{generator_forward.11} parent=5 // pred_region
      %s146 = ssub.s32 %s10, 1
    $region12: #{generator_forward.11} parent=5 // pred_fallthru
      _
    %p147 = scmp.lt.s32.totalorder %s10, 4
    // Predicated region
    $region13: #{generator_forward.11} parent=5 // pred_check
      %p148 = pneg %p147
    $region14: #{generator_forward.11} parent=5 // pred_check_branch
      %150 = sbr.rel (%p148) target = $region16
    $region15: #{generator_forward.11} parent=5 // pred_region
      // Predicated region
      $region17: #{generator_forward.11} parent=15 // pred_check
        %p151 = pneg %p44
      $region18: #{generator_forward.11} parent=15 // pred_check_branch
        %153 = sbr.rel (%p151) target = $region20
      $region19: #{generator_forward.11} parent=15 // pred_region
        %s154 = smul.u32 4, %s18
        %p155 = scmp.lt.s32.totalorder %s17, 3
        %s156 = scalar_select %p155, %s17, 3
        %p157 = scmp.lt.s32.totalorder %s154, 3
        %s158 = scalar_select %p157, %s154, 3
        %s159 = smul.addr %s158, 16
        %s160 = smul.addr %s156, 64
        %s161 = sadd.s32 %s159, %s160
        %s162 = smul.addr %s161, 4
        %s163 = scalar_lea.vmem %s0, %s162
        %s164 = smul.u32 4, %s18
      $region20: #{generator_forward.11} parent=15 // pred_fallthru
        _
      // Predicated region
      $region21: #{generator_forward.11} parent=15 // pred_check
        %p165 = pneg %p70
      $region22: #{generator_forward.11} parent=15 // pred_check_branch
        %167 = sbr.rel (%p165) target = $region24
      $region23: #{generator_forward.11} parent=15 // pred_region
        %p168 = scmp.lt.s32.totalorder %s17, 3
        %s169 = scalar_select %p168, %s17, 3
        %s170 = smul.addr %s169, 512
        %s171 = smul.addr %s170, 4
        %s172 = scalar_lea.vmem %s1, %s171
      $region24: #{generator_forward.11} parent=15 // pred_fallthru
        _
    $region16: #{generator_forward.11} parent=5 // pred_fallthru
      _
    %p173 = scmp.le.s32.totalorder 1, %s10
    %p174 = scmp.lt.s32.totalorder %s10, 5
    %p175 = pnand %p173, %p174
    %p176 = pneg %p175
    // Predicated region
    $region25: #{generator_forward.11} parent=5 // pred_check
      _
    $region26: #{generator_forward.11} parent=5 // pred_check_branch
      %178 = sbr.rel (%p175) target = $region28
    $region27: #{generator_forward.11} parent=5 // pred_region
      %s179 = ssub.s32 %s10, 1
      %s180 = smul.u32 4, %s20
      %p181 = scmp.lt.s32.totalorder %s19, 3
      %s182 = scalar_select %p181, %s19, 3
      %p183 = scmp.lt.s32.totalorder %s180, 3
      %s184 = scalar_select %p183, %s180, 3
      %s185 = smul.addr %s184, 16
      %s186 = smul.addr %s182, 64
      %s187 = sadd.s32 %s185, %s186
      %s188 = smul.addr %s187, 4
      %s189 = scalar_lea.vmem %s0, %s188
      %p190 = pneg %p50
      %p191 = pneg %p47
      %p192 = scmp.lt.s32.totalorder %s19, 3
      %s193 = scalar_select %p192, %s19, 3
      %s194 = smul.addr %s193, 512
      %s195 = smul.addr %s194, 4
      %s196 = scalar_lea.vmem %s1, %s195
      %p197 = pneg %p76
      %p198 = pneg %p73
      %p199 = pneg %p104
      %p200 = pneg %p101
      %s201 = smul.u32 4, %s20
      %p202 = scmp.lt.s32.totalorder %s19, 3
      %s203 = scalar_select %p202, %s19, 3
      %p204 = scmp.lt.s32.totalorder %s201, 3
      %s205 = scalar_select %p204, %s201, 3
      %s206 = smul.addr %s205, 2
      %s207 = smul.addr %s203, 8
      %s208 = sadd.s32 %s206, %s207
      %s209 = smul.addr %s208, 8
      %s210 = scalar_lea.vmem %s2, %s209
      %p211 = pneg %p132
      %p212 = pneg %p129
      %p213 = scmp.lt.s32.totalorder %s19, 3
      %s214 = scalar_select %p213, %s19, 3
      %p215 = scmp.lt.s32.totalorder %s20, 0
      %s216 = scalar_select %p215, %s20, 0
      %s217 = smul.addr %s216, 2
      %s218 = smul.addr %s214, 2
      %s219 = sadd.s32 %s217, %s218
      %s220 = smul.addr %s219, 2
      %s221 = scalar_lea.vmem %s3, %s220
      %s222 = smul.u32 4, %s20
      %p223 = scmp.lt.s32.totalorder %s19, 3
      %s224 = scalar_select %p223, %s19, 3
      %p225 = scmp.lt.s32.totalorder %s222, 3
      %s226 = scalar_select %p225, %s222, 3
      %s227 = smul.addr %s226, 16
      %s228 = smul.addr %s224, 64
      %s229 = sadd.s32 %s227, %s228
      %s230 = smul.addr %s229, 4
      %s231 = scalar_lea.vmem %s0, %s230
      %s232 = smul.u32 4, %s20
      %p233 = scmp.lt.s32.totalorder %s19, 3
      %s234 = scalar_select %p233, %s19, 3
      %s235 = smul.addr %s234, 512
      %s236 = smul.addr %s235, 4
      %s237 = scalar_lea.vmem %s1, %s236
      %s238 = smul.u32 4, %s20
      %p239 = scmp.lt.s32.totalorder %s19, 3
      %s240 = scalar_select %p239, %s19, 3
      %p241 = scmp.lt.s32.totalorder %s238, 3
      %s242 = scalar_select %p241, %s238, 3
      %s243 = smul.addr %s242, 2
      %s244 = smul.addr %s240, 8
      %s245 = sadd.s32 %s243, %s244
      %s246 = smul.addr %s245, 8
      %s247 = scalar_lea.vmem %s2, %s246
      %s248 = smul.u32 4, %s20
      %p249 = scmp.lt.s32.totalorder %s19, 3
      %s250 = scalar_select %p249, %s19, 3
      %p251 = scmp.lt.s32.totalorder %s20, 0
      %s252 = scalar_select %p251, %s20, 0
      %s253 = smul.addr %s252, 2
      %s254 = smul.addr %s250, 2
      %s255 = sadd.s32 %s253, %s254
      %s256 = smul.addr %s255, 2
      %s257 = scalar_lea.vmem %s3, %s256
      %v258 = vld [vmem:[%s231] sm:$0xff]
      %v259 = vld [vmem:[%s231 + $0x8] sm:$0xff]
      %v260 = vld [vmem:[%s231 + $0x10] sm:$0xff]
      %v261 = vld [vmem:[%s231 + $0x18] sm:$0xff]
      %v262 = vld [vmem:[%s231 + $0x20] sm:$0xff]
      %v263 = vld [vmem:[%s231 + $0x28] sm:$0xff]
      %v264 = vld [vmem:[%s231 + $0x30] sm:$0xff]
      %v265 = vld [vmem:[%s231 + $0x38] sm:$0xff]
      %v266 = vld [vmem:[%s231 + $0x40] sm:$0xff]
      %v267 = vld [vmem:[%s231 + $0x48] sm:$0xff]
      %v268 = vld [vmem:[%s231 + $0x50] sm:$0xff]
      %v269 = vld [vmem:[%s231 + $0x58] sm:$0xff]
      %v270 = vld [vmem:[%s231 + $0x60] sm:$0xff]
      %v271 = vld [vmem:[%s231 + $0x68] sm:$0xff]
      %v272 = vld [vmem:[%s231 + $0x70] sm:$0xff]
      %v273 = vld [vmem:[%s231 + $0x78] sm:$0xff]
      %v274 = vld [vmem:[%s231 + $0x80] sm:$0xff]
      %v275 = vld [vmem:[%s231 + $0x88] sm:$0xff]
      %v276 = vld [vmem:[%s231 + $0x90] sm:$0xff]
      %v277 = vld [vmem:[%s231 + $0x98] sm:$0xff]
      %v278 = vld [vmem:[%s231 + $0xa0] sm:$0xff]
      %v279 = vld [vmem:[%s231 + $0xa8] sm:$0xff]
      %v280 = vld [vmem:[%s231 + $0xb0] sm:$0xff]
      %v281 = vld [vmem:[%s231 + $0xb8] sm:$0xff]
      %v282 = vld [vmem:[%s231 + $0xc0] sm:$0xff]
      %v283 = vld [vmem:[%s231 + $0xc8] sm:$0xff]
      %v284 = vld [vmem:[%s231 + $0xd0] sm:$0xff]
      %v285 = vld [vmem:[%s231 + $0xd8] sm:$0xff]
      %v286 = vld [vmem:[%s231 + $0xe0] sm:$0xff]
      %v287 = vld [vmem:[%s231 + $0xe8] sm:$0xff]
      %v288 = vld [vmem:[%s231 + $0xf0] sm:$0xff]
      %v289 = vld [vmem:[%s231 + $0xf8] sm:$0xff]
      %v290 = vld [vmem:[%s237] sm:$0xff]
      %v291 = vld [vmem:[%s237 + $0x8] sm:$0xff]
      %v292 = vld [vmem:[%s237 + $0x10] sm:$0xff]
      %v293 = vld [vmem:[%s237 + $0x18] sm:$0xff]
      %v294 = vld [vmem:[%s237 + $0x20] sm:$0xff]
      %v295 = vld [vmem:[%s237 + $0x28] sm:$0xff]
      %v296 = vld [vmem:[%s237 + $0x30] sm:$0xff]
      %v297 = vld [vmem:[%s237 + $0x38] sm:$0xff]
      %v298 = vld [vmem:[%s237 + $0x40] sm:$0xff]
      %v299 = vld [vmem:[%s237 + $0x48] sm:$0xff]
      %v300 = vld [vmem:[%s237 + $0x50] sm:$0xff]
      %v301 = vld [vmem:[%s237 + $0x58] sm:$0xff]
      %v302 = vld [vmem:[%s237 + $0x60] sm:$0xff]
      %v303 = vld [vmem:[%s237 + $0x68] sm:$0xff]
      %v304 = vld [vmem:[%s237 + $0x70] sm:$0xff]
      %v305 = vld [vmem:[%s237 + $0x78] sm:$0xff]
      %v306 = vld [vmem:[%s237 + $0x80] sm:$0xff]
      %v307 = vld [vmem:[%s237 + $0x88] sm:$0xff]
      %v308 = vld [vmem:[%s237 + $0x90] sm:$0xff]
      %v309 = vld [vmem:[%s237 + $0x98] sm:$0xff]
      %v310 = vld [vmem:[%s237 + $0xa0] sm:$0xff]
      %v311 = vld [vmem:[%s237 + $0xa8] sm:$0xff]
      %v312 = vld [vmem:[%s237 + $0xb0] sm:$0xff]
      %v313 = vld [vmem:[%s237 + $0xb8] sm:$0xff]
      %v314 = vld [vmem:[%s237 + $0xc0] sm:$0xff]
      %v315 = vld [vmem:[%s237 + $0xc8] sm:$0xff]
      %v316 = vld [vmem:[%s237 + $0xd0] sm:$0xff]
      %v317 = vld [vmem:[%s237 + $0xd8] sm:$0xff]
      %v318 = vld [vmem:[%s237 + $0xe0] sm:$0xff]
      %v319 = vld [vmem:[%s237 + $0xe8] sm:$0xff]
      %v320 = vld [vmem:[%s237 + $0xf0] sm:$0xff]
      %v321 = vld [vmem:[%s237 + $0xf8] sm:$0xff]
      %v322 = vld [vmem:[%s237 + $0x100] sm:$0xff]
      %v323 = vld [vmem:[%s237 + $0x108] sm:$0xff]
      %v324 = vld [vmem:[%s237 + $0x110] sm:$0xff]
      %v325 = vld [vmem:[%s237 + $0x118] sm:$0xff]
      %v326 = vld [vmem:[%s237 + $0x120] sm:$0xff]
      %v327 = vld [vmem:[%s237 + $0x128] sm:$0xff]
      %v328 = vld [vmem:[%s237 + $0x130] sm:$0xff]
      %v329 = vld [vmem:[%s237 + $0x138] sm:$0xff]
      %v330 = vld [vmem:[%s237 + $0x140] sm:$0xff]
      %v331 = vld [vmem:[%s237 + $0x148] sm:$0xff]
      %v332 = vld [vmem:[%s237 + $0x150] sm:$0xff]
      %v333 = vld [vmem:[%s237 + $0x158] sm:$0xff]
      %v334 = vld [vmem:[%s237 + $0x160] sm:$0xff]
      %v335 = vld [vmem:[%s237 + $0x168] sm:$0xff]
      %v336 = vld [vmem:[%s237 + $0x170] sm:$0xff]
      %v337 = vld [vmem:[%s237 + $0x178] sm:$0xff]
      %v338 = vld [vmem:[%s237 + $0x180] sm:$0xff]
      %v339 = vld [vmem:[%s237 + $0x188] sm:$0xff]
      %v340 = vld [vmem:[%s237 + $0x190] sm:$0xff]
      %v341 = vld [vmem:[%s237 + $0x198] sm:$0xff]
      %v342 = vld [vmem:[%s237 + $0x1a0] sm:$0xff]
      %v343 = vld [vmem:[%s237 + $0x1a8] sm:$0xff]
      %v344 = vld [vmem:[%s237 + $0x1b0] sm:$0xff]
      %v345 = vld [vmem:[%s237 + $0x1b8] sm:$0xff]
      %v346 = vld [vmem:[%s237 + $0x1c0] sm:$0xff]
      %v347 = vld [vmem:[%s237 + $0x1c8] sm:$0xff]
      %v348 = vld [vmem:[%s237 + $0x1d0] sm:$0xff]
      %v349 = vld [vmem:[%s237 + $0x1d8] sm:$0xff]
      %v350 = vld [vmem:[%s237 + $0x1e0] sm:$0xff]
      %v351 = vld [vmem:[%s237 + $0x1e8] sm:$0xff]
      %v352 = vld [vmem:[%s237 + $0x1f0] sm:$0xff]
      %v353 = vld [vmem:[%s237 + $0x1f8] sm:$0xff]
      %v354 = vld [vmem:[%s237 + $0x200] sm:$0xff]
      %v355 = vld [vmem:[%s237 + $0x208] sm:$0xff]
      %v356 = vld [vmem:[%s237 + $0x210] sm:$0xff]
      %v357 = vld [vmem:[%s237 + $0x218] sm:$0xff]
      %v358 = vld [vmem:[%s237 + $0x220] sm:$0xff]
      %v359 = vld [vmem:[%s237 + $0x228] sm:$0xff]
      %v360 = vld [vmem:[%s237 + $0x230] sm:$0xff]
      %v361 = vld [vmem:[%s237 + $0x238] sm:$0xff]
      %v362 = vld [vmem:[%s237 + $0x240] sm:$0xff]
      %v363 = vld [vmem:[%s237 + $0x248] sm:$0xff]
      %v364 = vld [vmem:[%s237 + $0x250] sm:$0xff]
      %v365 = vld [vmem:[%s237 + $0x258] sm:$0xff]
      %v366 = vld [vmem:[%s237 + $0x260] sm:$0xff]
      %v367 = vld [vmem:[%s237 + $0x268] sm:$0xff]
      %v368 = vld [vmem:[%s237 + $0x270] sm:$0xff]
      %v369 = vld [vmem:[%s237 + $0x278] sm:$0xff]
      %v370 = vld [vmem:[%s237 + $0x280] sm:$0xff]
      %v371 = vld [vmem:[%s237 + $0x288] sm:$0xff]
      %v372 = vld [vmem:[%s237 + $0x290] sm:$0xff]
      %v373 = vld [vmem:[%s237 + $0x298] sm:$0xff]
      %v374 = vld [vmem:[%s237 + $0x2a0] sm:$0xff]
      %v375 = vld [vmem:[%s237 + $0x2a8] sm:$0xff]
      %v376 = vld [vmem:[%s237 + $0x2b0] sm:$0xff]
      %v377 = vld [vmem:[%s237 + $0x2b8] sm:$0xff]
      %v378 = vld [vmem:[%s237 + $0x2c0] sm:$0xff]
      %v379 = vld [vmem:[%s237 + $0x2c8] sm:$0xff]
      %v380 = vld [vmem:[%s237 + $0x2d0] sm:$0xff]
      %v381 = vld [vmem:[%s237 + $0x2d8] sm:$0xff]
      %v382 = vld [vmem:[%s237 + $0x2e0] sm:$0xff]
      %v383 = vld [vmem:[%s237 + $0x2e8] sm:$0xff]
      %v384 = vld [vmem:[%s237 + $0x2f0] sm:$0xff]
      %v385 = vld [vmem:[%s237 + $0x2f8] sm:$0xff]
      %v386 = vld [vmem:[%s237 + $0x300] sm:$0xff]
      %v387 = vld [vmem:[%s237 + $0x308] sm:$0xff]
      %v388 = vld [vmem:[%s237 + $0x310] sm:$0xff]
      %v389 = vld [vmem:[%s237 + $0x318] sm:$0xff]
      %v390 = vld [vmem:[%s237 + $0x320] sm:$0xff]
      %v391 = vld [vmem:[%s237 + $0x328] sm:$0xff]
      %v392 = vld [vmem:[%s237 + $0x330] sm:$0xff]
      %v393 = vld [vmem:[%s237 + $0x338] sm:$0xff]
      %v394 = vld [vmem:[%s237 + $0x340] sm:$0xff]
      %v395 = vld [vmem:[%s237 + $0x348] sm:$0xff]
      %v396 = vld [vmem:[%s237 + $0x350] sm:$0xff]
      %v397 = vld [vmem:[%s237 + $0x358] sm:$0xff]
      %v398 = vld [vmem:[%s237 + $0x360] sm:$0xff]
      %v399 = vld [vmem:[%s237 + $0x368] sm:$0xff]
      %v400 = vld [vmem:[%s237 + $0x370] sm:$0xff]
      %v401 = vld [vmem:[%s237 + $0x378] sm:$0xff]
      %v402 = vld [vmem:[%s237 + $0x380] sm:$0xff]
      %v403 = vld [vmem:[%s237 + $0x388] sm:$0xff]
      %v404 = vld [vmem:[%s237 + $0x390] sm:$0xff]
      %v405 = vld [vmem:[%s237 + $0x398] sm:$0xff]
      %v406 = vld [vmem:[%s237 + $0x3a0] sm:$0xff]
      %v407 = vld [vmem:[%s237 + $0x3a8] sm:$0xff]
      %v408 = vld [vmem:[%s237 + $0x3b0] sm:$0xff]
      %v409 = vld [vmem:[%s237 + $0x3b8] sm:$0xff]
      %v410 = vld [vmem:[%s237 + $0x3c0] sm:$0xff]
      %v411 = vld [vmem:[%s237 + $0x3c8] sm:$0xff]
      %v412 = vld [vmem:[%s237 + $0x3d0] sm:$0xff]
      %v413 = vld [vmem:[%s237 + $0x3d8] sm:$0xff]
      %v414 = vld [vmem:[%s237 + $0x3e0] sm:$0xff]
      %v415 = vld [vmem:[%s237 + $0x3e8] sm:$0xff]
      %v416 = vld [vmem:[%s237 + $0x3f0] sm:$0xff]
      %v417 = vld [vmem:[%s237 + $0x3f8] sm:$0xff]
      %v418 = vld [vmem:[%s237 + $0x400] sm:$0xff]
      %v419 = vld [vmem:[%s237 + $0x408] sm:$0xff]
      %v420 = vld [vmem:[%s237 + $0x410] sm:$0xff]
      %v421 = vld [vmem:[%s237 + $0x418] sm:$0xff]
      %v422 = vld [vmem:[%s237 + $0x420] sm:$0xff]
      %v423 = vld [vmem:[%s237 + $0x428] sm:$0xff]
      %v424 = vld [vmem:[%s237 + $0x430] sm:$0xff]
      %v425 = vld [vmem:[%s237 + $0x438] sm:$0xff]
      %v426 = vld [vmem:[%s237 + $0x440] sm:$0xff]
      %v427 = vld [vmem:[%s237 + $0x448] sm:$0xff]
      %v428 = vld [vmem:[%s237 + $0x450] sm:$0xff]
      %v429 = vld [vmem:[%s237 + $0x458] sm:$0xff]
      %v430 = vld [vmem:[%s237 + $0x460] sm:$0xff]
      %v431 = vld [vmem:[%s237 + $0x468] sm:$0xff]
      %v432 = vld [vmem:[%s237 + $0x470] sm:$0xff]
      %v433 = vld [vmem:[%s237 + $0x478] sm:$0xff]
      %v434 = vld [vmem:[%s237 + $0x480] sm:$0xff]
      %v435 = vld [vmem:[%s237 + $0x488] sm:$0xff]
      %v436 = vld [vmem:[%s237 + $0x490] sm:$0xff]
      %v437 = vld [vmem:[%s237 + $0x498] sm:$0xff]
      %v438 = vld [vmem:[%s237 + $0x4a0] sm:$0xff]
      %v439 = vld [vmem:[%s237 + $0x4a8] sm:$0xff]
      %v440 = vld [vmem:[%s237 + $0x4b0] sm:$0xff]
      %v441 = vld [vmem:[%s237 + $0x4b8] sm:$0xff]
      %v442 = vld [vmem:[%s237 + $0x4c0] sm:$0xff]
      %v443 = vld [vmem:[%s237 + $0x4c8] sm:$0xff]
      %v444 = vld [vmem:[%s237 + $0x4d0] sm:$0xff]
      %v445 = vld [vmem:[%s237 + $0x4d8] sm:$0xff]
      %v446 = vld [vmem:[%s237 + $0x4e0] sm:$0xff]
      %v447 = vld [vmem:[%s237 + $0x4e8] sm:$0xff]
      %v448 = vld [vmem:[%s237 + $0x4f0] sm:$0xff]
      %v449 = vld [vmem:[%s237 + $0x4f8] sm:$0xff]
      %v450 = vld [vmem:[%s237 + $0x500] sm:$0xff]
      %v451 = vld [vmem:[%s237 + $0x508] sm:$0xff]
      %v452 = vld [vmem:[%s237 + $0x510] sm:$0xff]
      %v453 = vld [vmem:[%s237 + $0x518] sm:$0xff]
      %v454 = vld [vmem:[%s237 + $0x520] sm:$0xff]
      %v455 = vld [vmem:[%s237 + $0x528] sm:$0xff]
      %v456 = vld [vmem:[%s237 + $0x530] sm:$0xff]
      %v457 = vld [vmem:[%s237 + $0x538] sm:$0xff]
      %v458 = vld [vmem:[%s237 + $0x540] sm:$0xff]
      %v459 = vld [vmem:[%s237 + $0x548] sm:$0xff]
      %v460 = vld [vmem:[%s237 + $0x550] sm:$0xff]
      %v461 = vld [vmem:[%s237 + $0x558] sm:$0xff]
      %v462 = vld [vmem:[%s237 + $0x560] sm:$0xff]
      %v463 = vld [vmem:[%s237 + $0x568] sm:$0xff]
      %v464 = vld [vmem:[%s237 + $0x570] sm:$0xff]
      %v465 = vld [vmem:[%s237 + $0x578] sm:$0xff]
      %v466 = vld [vmem:[%s237 + $0x580] sm:$0xff]
      %v467 = vld [vmem:[%s237 + $0x588] sm:$0xff]
      %v468 = vld [vmem:[%s237 + $0x590] sm:$0xff]
      %v469 = vld [vmem:[%s237 + $0x598] sm:$0xff]
      %v470 = vld [vmem:[%s237 + $0x5a0] sm:$0xff]
      %v471 = vld [vmem:[%s237 + $0x5a8] sm:$0xff]
      %v472 = vld [vmem:[%s237 + $0x5b0] sm:$0xff]
      %v473 = vld [vmem:[%s237 + $0x5b8] sm:$0xff]
      %v474 = vld [vmem:[%s237 + $0x5c0] sm:$0xff]
      %v475 = vld [vmem:[%s237 + $0x5c8] sm:$0xff]
      %v476 = vld [vmem:[%s237 + $0x5d0] sm:$0xff]
      %v477 = vld [vmem:[%s237 + $0x5d8] sm:$0xff]
      %v478 = vld [vmem:[%s237 + $0x5e0] sm:$0xff]
      %v479 = vld [vmem:[%s237 + $0x5e8] sm:$0xff]
      %v480 = vld [vmem:[%s237 + $0x5f0] sm:$0xff]
      %v481 = vld [vmem:[%s237 + $0x5f8] sm:$0xff]
      %v482 = vld [vmem:[%s237 + $0x600] sm:$0xff]
      %v483 = vld [vmem:[%s237 + $0x608] sm:$0xff]
      %v484 = vld [vmem:[%s237 + $0x610] sm:$0xff]
      %v485 = vld [vmem:[%s237 + $0x618] sm:$0xff]
      %v486 = vld [vmem:[%s237 + $0x620] sm:$0xff]
      %v487 = vld [vmem:[%s237 + $0x628] sm:$0xff]
      %v488 = vld [vmem:[%s237 + $0x630] sm:$0xff]
      %v489 = vld [vmem:[%s237 + $0x638] sm:$0xff]
      %v490 = vld [vmem:[%s237 + $0x640] sm:$0xff]
      %v491 = vld [vmem:[%s237 + $0x648] sm:$0xff]
      %v492 = vld [vmem:[%s237 + $0x650] sm:$0xff]
      %v493 = vld [vmem:[%s237 + $0x658] sm:$0xff]
      %v494 = vld [vmem:[%s237 + $0x660] sm:$0xff]
      %v495 = vld [vmem:[%s237 + $0x668] sm:$0xff]
      %v496 = vld [vmem:[%s237 + $0x670] sm:$0xff]
      %v497 = vld [vmem:[%s237 + $0x678] sm:$0xff]
      %v498 = vld [vmem:[%s237 + $0x680] sm:$0xff]
      %v499 = vld [vmem:[%s237 + $0x688] sm:$0xff]
      %v500 = vld [vmem:[%s237 + $0x690] sm:$0xff]
      %v501 = vld [vmem:[%s237 + $0x698] sm:$0xff]
      %v502 = vld [vmem:[%s237 + $0x6a0] sm:$0xff]
      %v503 = vld [vmem:[%s237 + $0x6a8] sm:$0xff]
      %v504 = vld [vmem:[%s237 + $0x6b0] sm:$0xff]
      %v505 = vld [vmem:[%s237 + $0x6b8] sm:$0xff]
      %v506 = vld [vmem:[%s237 + $0x6c0] sm:$0xff]
      %v507 = vld [vmem:[%s237 + $0x6c8] sm:$0xff]
      %v508 = vld [vmem:[%s237 + $0x6d0] sm:$0xff]
      %v509 = vld [vmem:[%s237 + $0x6d8] sm:$0xff]
      %v510 = vld [vmem:[%s237 + $0x6e0] sm:$0xff]
      %v511 = vld [vmem:[%s237 + $0x6e8] sm:$0xff]
      %v512 = vld [vmem:[%s237 + $0x6f0] sm:$0xff]
      %v513 = vld [vmem:[%s237 + $0x6f8] sm:$0xff]
      %v514 = vld [vmem:[%s237 + $0x700] sm:$0xff]
      %v515 = vld [vmem:[%s237 + $0x708] sm:$0xff]
      %v516 = vld [vmem:[%s237 + $0x710] sm:$0xff]
      %v517 = vld [vmem:[%s237 + $0x718] sm:$0xff]
      %v518 = vld [vmem:[%s237 + $0x720] sm:$0xff]
      %v519 = vld [vmem:[%s237 + $0x728] sm:$0xff]
      %v520 = vld [vmem:[%s237 + $0x730] sm:$0xff]
      %v521 = vld [vmem:[%s237 + $0x738] sm:$0xff]
      %v522 = vld [vmem:[%s237 + $0x740] sm:$0xff]
      %v523 = vld [vmem:[%s237 + $0x748] sm:$0xff]
      %v524 = vld [vmem:[%s237 + $0x750] sm:$0xff]
      %v525 = vld [vmem:[%s237 + $0x758] sm:$0xff]
      %v526 = vld [vmem:[%s237 + $0x760] sm:$0xff]
      %v527 = vld [vmem:[%s237 + $0x768] sm:$0xff]
      %v528 = vld [vmem:[%s237 + $0x770] sm:$0xff]
      %v529 = vld [vmem:[%s237 + $0x778] sm:$0xff]
      %v530 = vld [vmem:[%s237 + $0x780] sm:$0xff]
      %v531 = vld [vmem:[%s237 + $0x788] sm:$0xff]
      %v532 = vld [vmem:[%s237 + $0x790] sm:$0xff]
      %v533 = vld [vmem:[%s237 + $0x798] sm:$0xff]
      %v534 = vld [vmem:[%s237 + $0x7a0] sm:$0xff]
      %v535 = vld [vmem:[%s237 + $0x7a8] sm:$0xff]
      %v536 = vld [vmem:[%s237 + $0x7b0] sm:$0xff]
      %v537 = vld [vmem:[%s237 + $0x7b8] sm:$0xff]
      %v538 = vld [vmem:[%s237 + $0x7c0] sm:$0xff]
      %v539 = vld [vmem:[%s237 + $0x7c8] sm:$0xff]
      %v540 = vld [vmem:[%s237 + $0x7d0] sm:$0xff]
      %v541 = vld [vmem:[%s237 + $0x7d8] sm:$0xff]
      %v542 = vld [vmem:[%s237 + $0x7e0] sm:$0xff]
      %v543 = vld [vmem:[%s237 + $0x7e8] sm:$0xff]
      %v544 = vld [vmem:[%s237 + $0x7f0] sm:$0xff]
      %v545 = vld [vmem:[%s237 + $0x7f8] sm:$0xff]
      %v578 = vunpack.c.l.b16 %v258
      %v579 = vunpack.c.h.b16 %v258
      %v580 = vunpack.c.l.b16 %v259
      %v581 = vunpack.c.h.b16 %v259
      %v582 = vunpack.c.l.b16 %v260
      %v583 = vunpack.c.h.b16 %v260
      %v584 = vunpack.c.l.b16 %v261
      %v585 = vunpack.c.h.b16 %v261
      %v586 = vunpack.c.l.b16 %v262
      %v587 = vunpack.c.h.b16 %v262
      %v588 = vunpack.c.l.b16 %v263
      %v589 = vunpack.c.h.b16 %v263
      %v590 = vunpack.c.l.b16 %v264
      %v591 = vunpack.c.h.b16 %v264
      %v592 = vunpack.c.l.b16 %v265
      %v593 = vunpack.c.h.b16 %v265
      %v594 = vunpack.c.l.b16 %v266
      %v595 = vunpack.c.h.b16 %v266
      %v596 = vunpack.c.l.b16 %v267
      %v597 = vunpack.c.h.b16 %v267
      %v598 = vunpack.c.l.b16 %v268
      %v599 = vunpack.c.h.b16 %v268
      %v600 = vunpack.c.l.b16 %v269
      %v601 = vunpack.c.h.b16 %v269
      %v602 = vunpack.c.l.b16 %v270
      %v603 = vunpack.c.h.b16 %v270
      %v604 = vunpack.c.l.b16 %v271
      %v605 = vunpack.c.h.b16 %v271
      %v606 = vunpack.c.l.b16 %v272
      %v607 = vunpack.c.h.b16 %v272
      %v608 = vunpack.c.l.b16 %v273
      %v609 = vunpack.c.h.b16 %v273
      %v610 = vunpack.c.l.b16 %v274
      %v611 = vunpack.c.h.b16 %v274
      %v612 = vunpack.c.l.b16 %v275
      %v613 = vunpack.c.h.b16 %v275
      %v614 = vunpack.c.l.b16 %v276
      %v615 = vunpack.c.h.b16 %v276
      %v616 = vunpack.c.l.b16 %v277
      %v617 = vunpack.c.h.b16 %v277
      %v618 = vunpack.c.l.b16 %v278
      %v619 = vunpack.c.h.b16 %v278
      %v620 = vunpack.c.l.b16 %v279
      %v621 = vunpack.c.h.b16 %v279
      %v622 = vunpack.c.l.b16 %v280
      %v623 = vunpack.c.h.b16 %v280
      %v624 = vunpack.c.l.b16 %v281
      %v625 = vunpack.c.h.b16 %v281
      %v626 = vunpack.c.l.b16 %v282
      %v627 = vunpack.c.h.b16 %v282
      %v628 = vunpack.c.l.b16 %v283
      %v629 = vunpack.c.h.b16 %v283
      %v630 = vunpack.c.l.b16 %v284
      %v631 = vunpack.c.h.b16 %v284
      %v632 = vunpack.c.l.b16 %v285
      %v633 = vunpack.c.h.b16 %v285
      %v634 = vunpack.c.l.b16 %v286
      %v635 = vunpack.c.h.b16 %v286
      %v636 = vunpack.c.l.b16 %v287
      %v637 = vunpack.c.h.b16 %v287
      %v638 = vunpack.c.l.b16 %v288
      %v639 = vunpack.c.h.b16 %v288
      %v640 = vunpack.c.l.b16 %v289
      %v641 = vunpack.c.h.b16 %v289
      %v642 = vpack.c.b16 %v594, %v578
      %v643 = vpack.c.b16 %v595, %v579
      %v644 = vpack.c.b16 %v596, %v580
      %v645 = vpack.c.b16 %v597, %v581
      %v646 = vpack.c.b16 %v598, %v582
      %v647 = vpack.c.b16 %v599, %v583
      %v648 = vpack.c.b16 %v600, %v584
      %v649 = vpack.c.b16 %v601, %v585
      %v650 = vpack.c.b16 %v602, %v586
      %v651 = vpack.c.b16 %v603, %v587
      %v652 = vpack.c.b16 %v604, %v588
      %v653 = vpack.c.b16 %v605, %v589
      %v654 = vpack.c.b16 %v606, %v590
      %v655 = vpack.c.b16 %v607, %v591
      %v656 = vpack.c.b16 %v608, %v592
      %v657 = vpack.c.b16 %v609, %v593
      %v658 = vpack.c.b16 %v626, %v610
      %v659 = vpack.c.b16 %v627, %v611
      %v660 = vpack.c.b16 %v628, %v612
      %v661 = vpack.c.b16 %v629, %v613
      %v662 = vpack.c.b16 %v630, %v614
      %v663 = vpack.c.b16 %v631, %v615
      %v664 = vpack.c.b16 %v632, %v616
      %v665 = vpack.c.b16 %v633, %v617
      %v666 = vpack.c.b16 %v634, %v618
      %v667 = vpack.c.b16 %v635, %v619
      %v668 = vpack.c.b16 %v636, %v620
      %v669 = vpack.c.b16 %v637, %v621
      %v670 = vpack.c.b16 %v638, %v622
      %v671 = vpack.c.b16 %v639, %v623
      %v672 = vpack.c.b16 %v640, %v624
      %v673 = vpack.c.b16 %v641, %v625
      %v962 = vunpack.c.l.b16 %v290
      %v963 = vunpack.c.h.b16 %v290
      %v964 = vunpack.c.l.b16 %v291
      %v965 = vunpack.c.h.b16 %v291
      %v966 = vunpack.c.l.b16 %v292
      %v967 = vunpack.c.h.b16 %v292
      %v968 = vunpack.c.l.b16 %v293
      %v969 = vunpack.c.h.b16 %v293
      %v970 = vunpack.c.l.b16 %v294
      %v971 = vunpack.c.h.b16 %v294
      %v972 = vunpack.c.l.b16 %v295
      %v973 = vunpack.c.h.b16 %v295
      %v974 = vunpack.c.l.b16 %v296
      %v975 = vunpack.c.h.b16 %v296
      %v976 = vunpack.c.l.b16 %v297
      %v977 = vunpack.c.h.b16 %v297
      %v978 = vunpack.c.l.b16 %v298
      %v979 = vunpack.c.h.b16 %v298
      %v980 = vunpack.c.l.b16 %v299
      %v981 = vunpack.c.h.b16 %v299
      %v982 = vunpack.c.l.b16 %v300
      %v983 = vunpack.c.h.b16 %v300
      %v984 = vunpack.c.l.b16 %v301
      %v985 = vunpack.c.h.b16 %v301
      %v986 = vunpack.c.l.b16 %v302
      %v987 = vunpack.c.h.b16 %v302
      %v988 = vunpack.c.l.b16 %v303
      %v989 = vunpack.c.h.b16 %v303
      %v990 = vunpack.c.l.b16 %v304
      %v991 = vunpack.c.h.b16 %v304
      %v992 = vunpack.c.l.b16 %v305
      %v993 = vunpack.c.h.b16 %v305
      %v994 = vunpack.c.l.b16 %v306
      %v995 = vunpack.c.h.b16 %v306
      %v996 = vunpack.c.l.b16 %v307
      %v997 = vunpack.c.h.b16 %v307
      %v998 = vunpack.c.l.b16 %v308
      %v999 = vunpack.c.h.b16 %v308
      %v1000 = vunpack.c.l.b16 %v309
      %v1001 = vunpack.c.h.b16 %v309
      %v1002 = vunpack.c.l.b16 %v310
      %v1003 = vunpack.c.h.b16 %v310
      %v1004 = vunpack.c.l.b16 %v311
      %v1005 = vunpack.c.h.b16 %v311
      %v1006 = vunpack.c.l.b16 %v312
      %v1007 = vunpack.c.h.b16 %v312
      %v1008 = vunpack.c.l.b16 %v313
      %v1009 = vunpack.c.h.b16 %v313
      %v1010 = vunpack.c.l.b16 %v314
      %v1011 = vunpack.c.h.b16 %v314
      %v1012 = vunpack.c.l.b16 %v315
      %v1013 = vunpack.c.h.b16 %v315
      %v1014 = vunpack.c.l.b16 %v316
      %v1015 = vunpack.c.h.b16 %v316
      %v1016 = vunpack.c.l.b16 %v317
      %v1017 = vunpack.c.h.b16 %v317
      %v1018 = vunpack.c.l.b16 %v318
      %v1019 = vunpack.c.h.b16 %v318
      %v1020 = vunpack.c.l.b16 %v319
      %v1021 = vunpack.c.h.b16 %v319
      %v1022 = vunpack.c.l.b16 %v320
      %v1023 = vunpack.c.h.b16 %v320
      %v1024 = vunpack.c.l.b16 %v321
      %v1025 = vunpack.c.h.b16 %v321
      %v1026 = vunpack.c.l.b16 %v322
      %v1027 = vunpack.c.h.b16 %v322
      %v1028 = vunpack.c.l.b16 %v323
      %v1029 = vunpack.c.h.b16 %v323
      %v1030 = vunpack.c.l.b16 %v324
      %v1031 = vunpack.c.h.b16 %v324
      %v1032 = vunpack.c.l.b16 %v325
      %v1033 = vunpack.c.h.b16 %v325
      %v1034 = vunpack.c.l.b16 %v326
      %v1035 = vunpack.c.h.b16 %v326
      %v1036 = vunpack.c.l.b16 %v327
      %v1037 = vunpack.c.h.b16 %v327
      %v1038 = vunpack.c.l.b16 %v328
      %v1039 = vunpack.c.h.b16 %v328
      %v1040 = vunpack.c.l.b16 %v329
      %v1041 = vunpack.c.h.b16 %v329
      %v1042 = vunpack.c.l.b16 %v330
      %v1043 = vunpack.c.h.b16 %v330
      %v1044 = vunpack.c.l.b16 %v331
      %v1045 = vunpack.c.h.b16 %v331
      %v1046 = vunpack.c.l.b16 %v332
      %v1047 = vunpack.c.h.b16 %v332
      %v1048 = vunpack.c.l.b16 %v333
      %v1049 = vunpack.c.h.b16 %v333
      %v1050 = vunpack.c.l.b16 %v334
      %v1051 = vunpack.c.h.b16 %v334
      %v1052 = vunpack.c.l.b16 %v335
      %v1053 = vunpack.c.h.b16 %v335
      %v1054 = vunpack.c.l.b16 %v336
      %v1055 = vunpack.c.h.b16 %v336
      %v1056 = vunpack.c.l.b16 %v337
      %v1057 = vunpack.c.h.b16 %v337
      %v1058 = vunpack.c.l.b16 %v338
      %v1059 = vunpack.c.h.b16 %v338
      %v1060 = vunpack.c.l.b16 %v339
      %v1061 = vunpack.c.h.b16 %v339
      %v1062 = vunpack.c.l.b16 %v340
      %v1063 = vunpack.c.h.b16 %v340
      %v1064 = vunpack.c.l.b16 %v341
      %v1065 = vunpack.c.h.b16 %v341
      %v1066 = vunpack.c.l.b16 %v342
      %v1067 = vunpack.c.h.b16 %v342
      %v1068 = vunpack.c.l.b16 %v343
      %v1069 = vunpack.c.h.b16 %v343
      %v1070 = vunpack.c.l.b16 %v344
      %v1071 = vunpack.c.h.b16 %v344
      %v1072 = vunpack.c.l.b16 %v345
      %v1073 = vunpack.c.h.b16 %v345
      %v1074 = vunpack.c.l.b16 %v346
      %v1075 = vunpack.c.h.b16 %v346
      %v1076 = vunpack.c.l.b16 %v347
      %v1077 = vunpack.c.h.b16 %v347
      %v1078 = vunpack.c.l.b16 %v348
      %v1079 = vunpack.c.h.b16 %v348
      %v1080 = vunpack.c.l.b16 %v349
      %v1081 = vunpack.c.h.b16 %v349
      %v1082 = vunpack.c.l.b16 %v350
      %v1083 = vunpack.c.h.b16 %v350
      %v1084 = vunpack.c.l.b16 %v351
      %v1085 = vunpack.c.h.b16 %v351
      %v1086 = vunpack.c.l.b16 %v352
      %v1087 = vunpack.c.h.b16 %v352
      %v1088 = vunpack.c.l.b16 %v353
      %v1089 = vunpack.c.h.b16 %v353
      %v1090 = vunpack.c.l.b16 %v354
      %v1091 = vunpack.c.h.b16 %v354
      %v1092 = vunpack.c.l.b16 %v355
      %v1093 = vunpack.c.h.b16 %v355
      %v1094 = vunpack.c.l.b16 %v356
      %v1095 = vunpack.c.h.b16 %v356
      %v1096 = vunpack.c.l.b16 %v357
      %v1097 = vunpack.c.h.b16 %v357
      %v1098 = vunpack.c.l.b16 %v358
      %v1099 = vunpack.c.h.b16 %v358
      %v1100 = vunpack.c.l.b16 %v359
      %v1101 = vunpack.c.h.b16 %v359
      %v1102 = vunpack.c.l.b16 %v360
      %v1103 = vunpack.c.h.b16 %v360
      %v1104 = vunpack.c.l.b16 %v361
      %v1105 = vunpack.c.h.b16 %v361
      %v1106 = vunpack.c.l.b16 %v362
      %v1107 = vunpack.c.h.b16 %v362
      %v1108 = vunpack.c.l.b16 %v363
      %v1109 = vunpack.c.h.b16 %v363
      %v1110 = vunpack.c.l.b16 %v364
      %v1111 = vunpack.c.h.b16 %v364
      %v1112 = vunpack.c.l.b16 %v365
      %v1113 = vunpack.c.h.b16 %v365
      %v1114 = vunpack.c.l.b16 %v366
      %v1115 = vunpack.c.h.b16 %v366
      %v1116 = vunpack.c.l.b16 %v367
      %v1117 = vunpack.c.h.b16 %v367
      %v1118 = vunpack.c.l.b16 %v368
      %v1119 = vunpack.c.h.b16 %v368
      %v1120 = vunpack.c.l.b16 %v369
      %v1121 = vunpack.c.h.b16 %v369
      %v1122 = vunpack.c.l.b16 %v370
      %v1123 = vunpack.c.h.b16 %v370
      %v1124 = vunpack.c.l.b16 %v371
      %v1125 = vunpack.c.h.b16 %v371
      %v1126 = vunpack.c.l.b16 %v372
      %v1127 = vunpack.c.h.b16 %v372
      %v1128 = vunpack.c.l.b16 %v373
      %v1129 = vunpack.c.h.b16 %v373
      %v1130 = vunpack.c.l.b16 %v374
      %v1131 = vunpack.c.h.b16 %v374
      %v1132 = vunpack.c.l.b16 %v375
      %v1133 = vunpack.c.h.b16 %v375
      %v1134 = vunpack.c.l.b16 %v376
      %v1135 = vunpack.c.h.b16 %v376
      %v1136 = vunpack.c.l.b16 %v377
      %v1137 = vunpack.c.h.b16 %v377
      %v1138 = vunpack.c.l.b16 %v378
      %v1139 = vunpack.c.h.b16 %v378
      %v1140 = vunpack.c.l.b16 %v379
      %v1141 = vunpack.c.h.b16 %v379
      %v1142 = vunpack.c.l.b16 %v380
      %v1143 = vunpack.c.h.b16 %v380
      %v1144 = vunpack.c.l.b16 %v381
      %v1145 = vunpack.c.h.b16 %v381
      %v1146 = vunpack.c.l.b16 %v382
      %v1147 = vunpack.c.h.b16 %v382
      %v1148 = vunpack.c.l.b16 %v383
      %v1149 = vunpack.c.h.b16 %v383
      %v1150 = vunpack.c.l.b16 %v384
      %v1151 = vunpack.c.h.b16 %v384
      %v1152 = vunpack.c.l.b16 %v385
      %v1153 = vunpack.c.h.b16 %v385
      %v1154 = vunpack.c.l.b16 %v386
      %v1155 = vunpack.c.h.b16 %v386
      %v1156 = vunpack.c.l.b16 %v387
      %v1157 = vunpack.c.h.b16 %v387
      %v1158 = vunpack.c.l.b16 %v388
      %v1159 = vunpack.c.h.b16 %v388
      %v1160 = vunpack.c.l.b16 %v389
      %v1161 = vunpack.c.h.b16 %v389
      %v1162 = vunpack.c.l.b16 %v390
      %v1163 = vunpack.c.h.b16 %v390
      %v1164 = vunpack.c.l.b16 %v391
      %v1165 = vunpack.c.h.b16 %v391
      %v1166 = vunpack.c.l.b16 %v392
      %v1167 = vunpack.c.h.b16 %v392
      %v1168 = vunpack.c.l.b16 %v393
      %v1169 = vunpack.c.h.b16 %v393
      %v1170 = vunpack.c.l.b16 %v394
      %v1171 = vunpack.c.h.b16 %v394
      %v1172 = vunpack.c.l.b16 %v395
      %v1173 = vunpack.c.h.b16 %v395
      %v1174 = vunpack.c.l.b16 %v396
      %v1175 = vunpack.c.h.b16 %v396
      %v1176 = vunpack.c.l.b16 %v397
      %v1177 = vunpack.c.h.b16 %v397
      %v1178 = vunpack.c.l.b16 %v398
      %v1179 = vunpack.c.h.b16 %v398
      %v1180 = vunpack.c.l.b16 %v399
      %v1181 = vunpack.c.h.b16 %v399
      %v1182 = vunpack.c.l.b16 %v400
      %v1183 = vunpack.c.h.b16 %v400
      %v1184 = vunpack.c.l.b16 %v401
      %v1185 = vunpack.c.h.b16 %v401
      %v1186 = vunpack.c.l.b16 %v402
      %v1187 = vunpack.c.h.b16 %v402
      %v1188 = vunpack.c.l.b16 %v403
      %v1189 = vunpack.c.h.b16 %v403
      %v1190 = vunpack.c.l.b16 %v404
      %v1191 = vunpack.c.h.b16 %v404
      %v1192 = vunpack.c.l.b16 %v405
      %v1193 = vunpack.c.h.b16 %v405
      %v1194 = vunpack.c.l.b16 %v406
      %v1195 = vunpack.c.h.b16 %v406
      %v1196 = vunpack.c.l.b16 %v407
      %v1197 = vunpack.c.h.b16 %v407
      %v1198 = vunpack.c.l.b16 %v408
      %v1199 = vunpack.c.h.b16 %v408
      %v1200 = vunpack.c.l.b16 %v409
      %v1201 = vunpack.c.h.b16 %v409
      %v1202 = vunpack.c.l.b16 %v410
      %v1203 = vunpack.c.h.b16 %v410
      %v1204 = vunpack.c.l.b16 %v411
      %v1205 = vunpack.c.h.b16 %v411
      %v1206 = vunpack.c.l.b16 %v412
      %v1207 = vunpack.c.h.b16 %v412
      %v1208 = vunpack.c.l.b16 %v413
      %v1209 = vunpack.c.h.b16 %v413
      %v1210 = vunpack.c.l.b16 %v414
      %v1211 = vunpack.c.h.b16 %v414
      %v1212 = vunpack.c.l.b16 %v415
      %v1213 = vunpack.c.h.b16 %v415
      %v1214 = vunpack.c.l.b16 %v416
      %v1215 = vunpack.c.h.b16 %v416
      %v1216 = vunpack.c.l.b16 %v417
      %v1217 = vunpack.c.h.b16 %v417
      %v1218 = vunpack.c.l.b16 %v418
      %v1219 = vunpack.c.h.b16 %v418
      %v1220 = vunpack.c.l.b16 %v419
      %v1221 = vunpack.c.h.b16 %v419
      %v1222 = vunpack.c.l.b16 %v420
      %v1223 = vunpack.c.h.b16 %v420
      %v1224 = vunpack.c.l.b16 %v421
      %v1225 = vunpack.c.h.b16 %v421
      %v1226 = vunpack.c.l.b16 %v422
      %v1227 = vunpack.c.h.b16 %v422
      %v1228 = vunpack.c.l.b16 %v423
      %v1229 = vunpack.c.h.b16 %v423
      %v1230 = vunpack.c.l.b16 %v424
      %v1231 = vunpack.c.h.b16 %v424
      %v1232 = vunpack.c.l.b16 %v425
      %v1233 = vunpack.c.h.b16 %v425
      %v1234 = vunpack.c.l.b16 %v426
      %v1235 = vunpack.c.h.b16 %v426
      %v1236 = vunpack.c.l.b16 %v427
      %v1237 = vunpack.c.h.b16 %v427
      %v1238 = vunpack.c.l.b16 %v428
      %v1239 = vunpack.c.h.b16 %v428
      %v1240 = vunpack.c.l.b16 %v429
      %v1241 = vunpack.c.h.b16 %v429
      %v1242 = vunpack.c.l.b16 %v430
      %v1243 = vunpack.c.h.b16 %v430
      %v1244 = vunpack.c.l.b16 %v431
      %v1245 = vunpack.c.h.b16 %v431
      %v1246 = vunpack.c.l.b16 %v432
      %v1247 = vunpack.c.h.b16 %v432
      %v1248 = vunpack.c.l.b16 %v433
      %v1249 = vunpack.c.h.b16 %v433
      %v1250 = vunpack.c.l.b16 %v434
      %v1251 = vunpack.c.h.b16 %v434
      %v1252 = vunpack.c.l.b16 %v435
      %v1253 = vunpack.c.h.b16 %v435
      %v1254 = vunpack.c.l.b16 %v436
      %v1255 = vunpack.c.h.b16 %v436
      %v1256 = vunpack.c.l.b16 %v437
      %v1257 = vunpack.c.h.b16 %v437
      %v1258 = vunpack.c.l.b16 %v438
      %v1259 = vunpack.c.h.b16 %v438
      %v1260 = vunpack.c.l.b16 %v439
      %v1261 = vunpack.c.h.b16 %v439
      %v1262 = vunpack.c.l.b16 %v440
      %v1263 = vunpack.c.h.b16 %v440
      %v1264 = vunpack.c.l.b16 %v441
      %v1265 = vunpack.c.h.b16 %v441
      %v1266 = vunpack.c.l.b16 %v442
      %v1267 = vunpack.c.h.b16 %v442
      %v1268 = vunpack.c.l.b16 %v443
      %v1269 = vunpack.c.h.b16 %v443
      %v1270 = vunpack.c.l.b16 %v444
      %v1271 = vunpack.c.h.b16 %v444
      %v1272 = vunpack.c.l.b16 %v445
      %v1273 = vunpack.c.h.b16 %v445
      %v1274 = vunpack.c.l.b16 %v446
      %v1275 = vunpack.c.h.b16 %v446
      %v1276 = vunpack.c.l.b16 %v447
      %v1277 = vunpack.c.h.b16 %v447
      %v1278 = vunpack.c.l.b16 %v448
      %v1279 = vunpack.c.h.b16 %v448
      %v1280 = vunpack.c.l.b16 %v449
      %v1281 = vunpack.c.h.b16 %v449
      %v1282 = vunpack.c.l.b16 %v450
      %v1283 = vunpack.c.h.b16 %v450
      %v1284 = vunpack.c.l.b16 %v451
      %v1285 = vunpack.c.h.b16 %v451
      %v1286 = vunpack.c.l.b16 %v452
      %v1287 = vunpack.c.h.b16 %v452
      %v1288 = vunpack.c.l.b16 %v453
      %v1289 = vunpack.c.h.b16 %v453
      %v1290 = vunpack.c.l.b16 %v454
      %v1291 = vunpack.c.h.b16 %v454
      %v1292 = vunpack.c.l.b16 %v455
      %v1293 = vunpack.c.h.b16 %v455
      %v1294 = vunpack.c.l.b16 %v456
      %v1295 = vunpack.c.h.b16 %v456
      %v1296 = vunpack.c.l.b16 %v457
      %v1297 = vunpack.c.h.b16 %v457
      %v1298 = vunpack.c.l.b16 %v458
      %v1299 = vunpack.c.h.b16 %v458
      %v1300 = vunpack.c.l.b16 %v459
      %v1301 = vunpack.c.h.b16 %v459
      %v1302 = vunpack.c.l.b16 %v460
      %v1303 = vunpack.c.h.b16 %v460
      %v1304 = vunpack.c.l.b16 %v461
      %v1305 = vunpack.c.h.b16 %v461
      %v1306 = vunpack.c.l.b16 %v462
      %v1307 = vunpack.c.h.b16 %v462
      %v1308 = vunpack.c.l.b16 %v463
      %v1309 = vunpack.c.h.b16 %v463
      %v1310 = vunpack.c.l.b16 %v464
      %v1311 = vunpack.c.h.b16 %v464
      %v1312 = vunpack.c.l.b16 %v465
      %v1313 = vunpack.c.h.b16 %v465
      %v1314 = vunpack.c.l.b16 %v466
      %v1315 = vunpack.c.h.b16 %v466
      %v1316 = vunpack.c.l.b16 %v467
      %v1317 = vunpack.c.h.b16 %v467
      %v1318 = vunpack.c.l.b16 %v468
      %v1319 = vunpack.c.h.b16 %v468
      %v1320 = vunpack.c.l.b16 %v469
      %v1321 = vunpack.c.h.b16 %v469
      %v1322 = vunpack.c.l.b16 %v470
      %v1323 = vunpack.c.h.b16 %v470
      %v1324 = vunpack.c.l.b16 %v471
      %v1325 = vunpack.c.h.b16 %v471
      %v1326 = vunpack.c.l.b16 %v472
      %v1327 = vunpack.c.h.b16 %v472
      %v1328 = vunpack.c.l.b16 %v473
      %v1329 = vunpack.c.h.b16 %v473
      %v1330 = vunpack.c.l.b16 %v474
      %v1331 = vunpack.c.h.b16 %v474
      %v1332 = vunpack.c.l.b16 %v475
      %v1333 = vunpack.c.h.b16 %v475
      %v1334 = vunpack.c.l.b16 %v476
      %v1335 = vunpack.c.h.b16 %v476
      %v1336 = vunpack.c.l.b16 %v477
      %v1337 = vunpack.c.h.b16 %v477
      %v1338 = vunpack.c.l.b16 %v478
      %v1339 = vunpack.c.h.b16 %v478
      %v1340 = vunpack.c.l.b16 %v479
      %v1341 = vunpack.c.h.b16 %v479
      %v1342 = vunpack.c.l.b16 %v480
      %v1343 = vunpack.c.h.b16 %v480
      %v1344 = vunpack.c.l.b16 %v481
      %v1345 = vunpack.c.h.b16 %v481
      %v1346 = vunpack.c.l.b16 %v482
      %v1347 = vunpack.c.h.b16 %v482
      %v1348 = vunpack.c.l.b16 %v483
      %v1349 = vunpack.c.h.b16 %v483
      %v1350 = vunpack.c.l.b16 %v484
      %v1351 = vunpack.c.h.b16 %v484
      %v1352 = vunpack.c.l.b16 %v485
      %v1353 = vunpack.c.h.b16 %v485
      %v1354 = vunpack.c.l.b16 %v486
      %v1355 = vunpack.c.h.b16 %v486
      %v1356 = vunpack.c.l.b16 %v487
      %v1357 = vunpack.c.h.b16 %v487
      %v1358 = vunpack.c.l.b16 %v488
      %v1359 = vunpack.c.h.b16 %v488
      %v1360 = vunpack.c.l.b16 %v489
      %v1361 = vunpack.c.h.b16 %v489
      %v1362 = vunpack.c.l.b16 %v490
      %v1363 = vunpack.c.h.b16 %v490
      %v1364 = vunpack.c.l.b16 %v491
      %v1365 = vunpack.c.h.b16 %v491
      %v1366 = vunpack.c.l.b16 %v492
      %v1367 = vunpack.c.h.b16 %v492
      %v1368 = vunpack.c.l.b16 %v493
      %v1369 = vunpack.c.h.b16 %v493
      %v1370 = vunpack.c.l.b16 %v494
      %v1371 = vunpack.c.h.b16 %v494
      %v1372 = vunpack.c.l.b16 %v495
      %v1373 = vunpack.c.h.b16 %v495
      %v1374 = vunpack.c.l.b16 %v496
      %v1375 = vunpack.c.h.b16 %v496
      %v1376 = vunpack.c.l.b16 %v497
      %v1377 = vunpack.c.h.b16 %v497
      %v1378 = vunpack.c.l.b16 %v498
      %v1379 = vunpack.c.h.b16 %v498
      %v1380 = vunpack.c.l.b16 %v499
      %v1381 = vunpack.c.h.b16 %v499
      %v1382 = vunpack.c.l.b16 %v500
      %v1383 = vunpack.c.h.b16 %v500
      %v1384 = vunpack.c.l.b16 %v501
      %v1385 = vunpack.c.h.b16 %v501
      %v1386 = vunpack.c.l.b16 %v502
      %v1387 = vunpack.c.h.b16 %v502
      %v1388 = vunpack.c.l.b16 %v503
      %v1389 = vunpack.c.h.b16 %v503
      %v1390 = vunpack.c.l.b16 %v504
      %v1391 = vunpack.c.h.b16 %v504
      %v1392 = vunpack.c.l.b16 %v505
      %v1393 = vunpack.c.h.b16 %v505
      %v1394 = vunpack.c.l.b16 %v506
      %v1395 = vunpack.c.h.b16 %v506
      %v1396 = vunpack.c.l.b16 %v507
      %v1397 = vunpack.c.h.b16 %v507
      %v1398 = vunpack.c.l.b16 %v508
      %v1399 = vunpack.c.h.b16 %v508
      %v1400 = vunpack.c.l.b16 %v509
      %v1401 = vunpack.c.h.b16 %v509
      %v1402 = vunpack.c.l.b16 %v510
      %v1403 = vunpack.c.h.b16 %v510
      %v1404 = vunpack.c.l.b16 %v511
      %v1405 = vunpack.c.h.b16 %v511
      %v1406 = vunpack.c.l.b16 %v512
      %v1407 = vunpack.c.h.b16 %v512
      %v1408 = vunpack.c.l.b16 %v513
      %v1409 = vunpack.c.h.b16 %v513
      %v1410 = vunpack.c.l.b16 %v514
      %v1411 = vunpack.c.h.b16 %v514
      %v1412 = vunpack.c.l.b16 %v515
      %v1413 = vunpack.c.h.b16 %v515
      %v1414 = vunpack.c.l.b16 %v516
      %v1415 = vunpack.c.h.b16 %v516
      %v1416 = vunpack.c.l.b16 %v517
      %v1417 = vunpack.c.h.b16 %v517
      %v1418 = vunpack.c.l.b16 %v518
      %v1419 = vunpack.c.h.b16 %v518
      %v1420 = vunpack.c.l.b16 %v519
      %v1421 = vunpack.c.h.b16 %v519
      %v1422 = vunpack.c.l.b16 %v520
      %v1423 = vunpack.c.h.b16 %v520
      %v1424 = vunpack.c.l.b16 %v521
      %v1425 = vunpack.c.h.b16 %v521
      %v1426 = vunpack.c.l.b16 %v522
      %v1427 = vunpack.c.h.b16 %v522
      %v1428 = vunpack.c.l.b16 %v523
      %v1429 = vunpack.c.h.b16 %v523
      %v1430 = vunpack.c.l.b16 %v524
      %v1431 = vunpack.c.h.b16 %v524
      %v1432 = vunpack.c.l.b16 %v525
      %v1433 = vunpack.c.h.b16 %v525
      %v1434 = vunpack.c.l.b16 %v526
      %v1435 = vunpack.c.h.b16 %v526
      %v1436 = vunpack.c.l.b16 %v527
      %v1437 = vunpack.c.h.b16 %v527
      %v1438 = vunpack.c.l.b16 %v528
      %v1439 = vunpack.c.h.b16 %v528
      %v1440 = vunpack.c.l.b16 %v529
      %v1441 = vunpack.c.h.b16 %v529
      %v1442 = vunpack.c.l.b16 %v530
      %v1443 = vunpack.c.h.b16 %v530
      %v1444 = vunpack.c.l.b16 %v531
      %v1445 = vunpack.c.h.b16 %v531
      %v1446 = vunpack.c.l.b16 %v532
      %v1447 = vunpack.c.h.b16 %v532
      %v1448 = vunpack.c.l.b16 %v533
      %v1449 = vunpack.c.h.b16 %v533
      %v1450 = vunpack.c.l.b16 %v534
      %v1451 = vunpack.c.h.b16 %v534
      %v1452 = vunpack.c.l.b16 %v535
      %v1453 = vunpack.c.h.b16 %v535
      %v1454 = vunpack.c.l.b16 %v536
      %v1455 = vunpack.c.h.b16 %v536
      %v1456 = vunpack.c.l.b16 %v537
      %v1457 = vunpack.c.h.b16 %v537
      %v1458 = vunpack.c.l.b16 %v538
      %v1459 = vunpack.c.h.b16 %v538
      %v1460 = vunpack.c.l.b16 %v539
      %v1461 = vunpack.c.h.b16 %v539
      %v1462 = vunpack.c.l.b16 %v540
      %v1463 = vunpack.c.h.b16 %v540
      %v1464 = vunpack.c.l.b16 %v541
      %v1465 = vunpack.c.h.b16 %v541
      %v1466 = vunpack.c.l.b16 %v542
      %v1467 = vunpack.c.h.b16 %v542
      %v1468 = vunpack.c.l.b16 %v543
      %v1469 = vunpack.c.h.b16 %v543
      %v1470 = vunpack.c.l.b16 %v544
      %v1471 = vunpack.c.h.b16 %v544
      %v1472 = vunpack.c.l.b16 %v545
      %v1473 = vunpack.c.h.b16 %v545
      %v1474 = vpack.c.b16 %v964, %v962
      %v1475 = vpack.c.b16 %v965, %v963
      %v1476 = vpack.c.b16 %v968, %v966
      %v1477 = vpack.c.b16 %v969, %v967
      %v1478 = vpack.c.b16 %v972, %v970
      %v1479 = vpack.c.b16 %v973, %v971
      %v1480 = vpack.c.b16 %v976, %v974
      %v1481 = vpack.c.b16 %v977, %v975
      %v1482 = vpack.c.b16 %v980, %v978
      %v1483 = vpack.c.b16 %v981, %v979
      %v1484 = vpack.c.b16 %v984, %v982
      %v1485 = vpack.c.b16 %v985, %v983
      %v1486 = vpack.c.b16 %v988, %v986
      %v1487 = vpack.c.b16 %v989, %v987
      %v1488 = vpack.c.b16 %v992, %v990
      %v1489 = vpack.c.b16 %v993, %v991
      %v1490 = vpack.c.b16 %v996, %v994
      %v1491 = vpack.c.b16 %v997, %v995
      %v1492 = vpack.c.b16 %v1000, %v998
      %v1493 = vpack.c.b16 %v1001, %v999
      %v1494 = vpack.c.b16 %v1004, %v1002
      %v1495 = vpack.c.b16 %v1005, %v1003
      %v1496 = vpack.c.b16 %v1008, %v1006
      %v1497 = vpack.c.b16 %v1009, %v1007
      %v1498 = vpack.c.b16 %v1012, %v1010
      %v1499 = vpack.c.b16 %v1013, %v1011
      %v1500 = vpack.c.b16 %v1016, %v1014
      %v1501 = vpack.c.b16 %v1017, %v1015
      %v1502 = vpack.c.b16 %v1020, %v1018
      %v1503 = vpack.c.b16 %v1021, %v1019
      %v1504 = vpack.c.b16 %v1024, %v1022
      %v1505 = vpack.c.b16 %v1025, %v1023
      %v1506 = vpack.c.b16 %v1028, %v1026
      %v1507 = vpack.c.b16 %v1029, %v1027
      %v1508 = vpack.c.b16 %v1032, %v1030
      %v1509 = vpack.c.b16 %v1033, %v1031
      %v1510 = vpack.c.b16 %v1036, %v1034
      %v1511 = vpack.c.b16 %v1037, %v1035
      %v1512 = vpack.c.b16 %v1040, %v1038
      %v1513 = vpack.c.b16 %v1041, %v1039
      %v1514 = vpack.c.b16 %v1044, %v1042
      %v1515 = vpack.c.b16 %v1045, %v1043
      %v1516 = vpack.c.b16 %v1048, %v1046
      %v1517 = vpack.c.b16 %v1049, %v1047
      %v1518 = vpack.c.b16 %v1052, %v1050
      %v1519 = vpack.c.b16 %v1053, %v1051
      %v1520 = vpack.c.b16 %v1056, %v1054
      %v1521 = vpack.c.b16 %v1057, %v1055
      %v1522 = vpack.c.b16 %v1060, %v1058
      %v1523 = vpack.c.b16 %v1061, %v1059
      %v1524 = vpack.c.b16 %v1064, %v1062
      %v1525 = vpack.c.b16 %v1065, %v1063
      %v1526 = vpack.c.b16 %v1068, %v1066
      %v1527 = vpack.c.b16 %v1069, %v1067
      %v1528 = vpack.c.b16 %v1072, %v1070
      %v1529 = vpack.c.b16 %v1073, %v1071
      %v1530 = vpack.c.b16 %v1076, %v1074
      %v1531 = vpack.c.b16 %v1077, %v1075
      %v1532 = vpack.c.b16 %v1080, %v1078
      %v1533 = vpack.c.b16 %v1081, %v1079
      %v1534 = vpack.c.b16 %v1084, %v1082
      %v1535 = vpack.c.b16 %v1085, %v1083
      %v1536 = vpack.c.b16 %v1088, %v1086
      %v1537 = vpack.c.b16 %v1089, %v1087
      %v1538 = vpack.c.b16 %v1092, %v1090
      %v1539 = vpack.c.b16 %v1093, %v1091
      %v1540 = vpack.c.b16 %v1096, %v1094
      %v1541 = vpack.c.b16 %v1097, %v1095
      %v1542 = vpack.c.b16 %v1100, %v1098
      %v1543 = vpack.c.b16 %v1101, %v1099
      %v1544 = vpack.c.b16 %v1104, %v1102
      %v1545 = vpack.c.b16 %v1105, %v1103
      %v1546 = vpack.c.b16 %v1108, %v1106
      %v1547 = vpack.c.b16 %v1109, %v1107
      %v1548 = vpack.c.b16 %v1112, %v1110
      %v1549 = vpack.c.b16 %v1113, %v1111
      %v1550 = vpack.c.b16 %v1116, %v1114
      %v1551 = vpack.c.b16 %v1117, %v1115
      %v1552 = vpack.c.b16 %v1120, %v1118
      %v1553 = vpack.c.b16 %v1121, %v1119
      %v1554 = vpack.c.b16 %v1124, %v1122
      %v1555 = vpack.c.b16 %v1125, %v1123
      %v1556 = vpack.c.b16 %v1128, %v1126
      %v1557 = vpack.c.b16 %v1129, %v1127
      %v1558 = vpack.c.b16 %v1132, %v1130
      %v1559 = vpack.c.b16 %v1133, %v1131
      %v1560 = vpack.c.b16 %v1136, %v1134
      %v1561 = vpack.c.b16 %v1137, %v1135
      %v1562 = vpack.c.b16 %v1140, %v1138
      %v1563 = vpack.c.b16 %v1141, %v1139
      %v1564 = vpack.c.b16 %v1144, %v1142
      %v1565 = vpack.c.b16 %v1145, %v1143
      %v1566 = vpack.c.b16 %v1148, %v1146
      %v1567 = vpack.c.b16 %v1149, %v1147
      %v1568 = vpack.c.b16 %v1152, %v1150
      %v1569 = vpack.c.b16 %v1153, %v1151
      %v1570 = vpack.c.b16 %v1156, %v1154
      %v1571 = vpack.c.b16 %v1157, %v1155
      %v1572 = vpack.c.b16 %v1160, %v1158
      %v1573 = vpack.c.b16 %v1161, %v1159
      %v1574 = vpack.c.b16 %v1164, %v1162
      %v1575 = vpack.c.b16 %v1165, %v1163
      %v1576 = vpack.c.b16 %v1168, %v1166
      %v1577 = vpack.c.b16 %v1169, %v1167
      %v1578 = vpack.c.b16 %v1172, %v1170
      %v1579 = vpack.c.b16 %v1173, %v1171
      %v1580 = vpack.c.b16 %v1176, %v1174
      %v1581 = vpack.c.b16 %v1177, %v1175
      %v1582 = vpack.c.b16 %v1180, %v1178
      %v1583 = vpack.c.b16 %v1181, %v1179
      %v1584 = vpack.c.b16 %v1184, %v1182
      %v1585 = vpack.c.b16 %v1185, %v1183
      %v1586 = vpack.c.b16 %v1188, %v1186
      %v1587 = vpack.c.b16 %v1189, %v1187
      %v1588 = vpack.c.b16 %v1192, %v1190
      %v1589 = vpack.c.b16 %v1193, %v1191
      %v1590 = vpack.c.b16 %v1196, %v1194
      %v1591 = vpack.c.b16 %v1197, %v1195
      %v1592 = vpack.c.b16 %v1200, %v1198
      %v1593 = vpack.c.b16 %v1201, %v1199
      %v1594 = vpack.c.b16 %v1204, %v1202
      %v1595 = vpack.c.b16 %v1205, %v1203
      %v1596 = vpack.c.b16 %v1208, %v1206
      %v1597 = vpack.c.b16 %v1209, %v1207
      %v1598 = vpack.c.b16 %v1212, %v1210
      %v1599 = vpack.c.b16 %v1213, %v1211
      %v1600 = vpack.c.b16 %v1216, %v1214
      %v1601 = vpack.c.b16 %v1217, %v1215
      %v1602 = vpack.c.b16 %v1220, %v1218
      %v1603 = vpack.c.b16 %v1221, %v1219
      %v1604 = vpack.c.b16 %v1224, %v1222
      %v1605 = vpack.c.b16 %v1225, %v1223
      %v1606 = vpack.c.b16 %v1228, %v1226
      %v1607 = vpack.c.b16 %v1229, %v1227
      %v1608 = vpack.c.b16 %v1232, %v1230
      %v1609 = vpack.c.b16 %v1233, %v1231
      %v1610 = vpack.c.b16 %v1236, %v1234
      %v1611 = vpack.c.b16 %v1237, %v1235
      %v1612 = vpack.c.b16 %v1240, %v1238
      %v1613 = vpack.c.b16 %v1241, %v1239
      %v1614 = vpack.c.b16 %v1244, %v1242
      %v1615 = vpack.c.b16 %v1245, %v1243
      %v1616 = vpack.c.b16 %v1248, %v1246
      %v1617 = vpack.c.b16 %v1249, %v1247
      %v1618 = vpack.c.b16 %v1252, %v1250
      %v1619 = vpack.c.b16 %v1253, %v1251
      %v1620 = vpack.c.b16 %v1256, %v1254
      %v1621 = vpack.c.b16 %v1257, %v1255
      %v1622 = vpack.c.b16 %v1260, %v1258
      %v1623 = vpack.c.b16 %v1261, %v1259
      %v1624 = vpack.c.b16 %v1264, %v1262
      %v1625 = vpack.c.b16 %v1265, %v1263
      %v1626 = vpack.c.b16 %v1268, %v1266
      %v1627 = vpack.c.b16 %v1269, %v1267
      %v1628 = vpack.c.b16 %v1272, %v1270
      %v1629 = vpack.c.b16 %v1273, %v1271
      %v1630 = vpack.c.b16 %v1276, %v1274
      %v1631 = vpack.c.b16 %v1277, %v1275
      %v1632 = vpack.c.b16 %v1280, %v1278
      %v1633 = vpack.c.b16 %v1281, %v1279
      %v1634 = vpack.c.b16 %v1284, %v1282
      %v1635 = vpack.c.b16 %v1285, %v1283
      %v1636 = vpack.c.b16 %v1288, %v1286
      %v1637 = vpack.c.b16 %v1289, %v1287
      %v1638 = vpack.c.b16 %v1292, %v1290
      %v1639 = vpack.c.b16 %v1293, %v1291
      %v1640 = vpack.c.b16 %v1296, %v1294
      %v1641 = vpack.c.b16 %v1297, %v1295
      %v1642 = vpack.c.b16 %v1300, %v1298
      %v1643 = vpack.c.b16 %v1301, %v1299
      %v1644 = vpack.c.b16 %v1304, %v1302
      %v1645 = vpack.c.b16 %v1305, %v1303
      %v1646 = vpack.c.b16 %v1308, %v1306
      %v1647 = vpack.c.b16 %v1309, %v1307
      %v1648 = vpack.c.b16 %v1312, %v1310
      %v1649 = vpack.c.b16 %v1313, %v1311
      %v1650 = vpack.c.b16 %v1316, %v1314
      %v1651 = vpack.c.b16 %v1317, %v1315
      %v1652 = vpack.c.b16 %v1320, %v1318
      %v1653 = vpack.c.b16 %v1321, %v1319
      %v1654 = vpack.c.b16 %v1324, %v1322
      %v1655 = vpack.c.b16 %v1325, %v1323
      %v1656 = vpack.c.b16 %v1328, %v1326
      %v1657 = vpack.c.b16 %v1329, %v1327
      %v1658 = vpack.c.b16 %v1332, %v1330
      %v1659 = vpack.c.b16 %v1333, %v1331
      %v1660 = vpack.c.b16 %v1336, %v1334
      %v1661 = vpack.c.b16 %v1337, %v1335
      %v1662 = vpack.c.b16 %v1340, %v1338
      %v1663 = vpack.c.b16 %v1341, %v1339
      %v1664 = vpack.c.b16 %v1344, %v1342
      %v1665 = vpack.c.b16 %v1345, %v1343
      %v1666 = vpack.c.b16 %v1348, %v1346
      %v1667 = vpack.c.b16 %v1349, %v1347
      %v1668 = vpack.c.b16 %v1352, %v1350
      %v1669 = vpack.c.b16 %v1353, %v1351
      %v1670 = vpack.c.b16 %v1356, %v1354
      %v1671 = vpack.c.b16 %v1357, %v1355
      %v1672 = vpack.c.b16 %v1360, %v1358
      %v1673 = vpack.c.b16 %v1361, %v1359
      %v1674 = vpack.c.b16 %v1364, %v1362
      %v1675 = vpack.c.b16 %v1365, %v1363
      %v1676 = vpack.c.b16 %v1368, %v1366
      %v1677 = vpack.c.b16 %v1369, %v1367
      %v1678 = vpack.c.b16 %v1372, %v1370
      %v1679 = vpack.c.b16 %v1373, %v1371
      %v1680 = vpack.c.b16 %v1376, %v1374
      %v1681 = vpack.c.b16 %v1377, %v1375
      %v1682 = vpack.c.b16 %v1380, %v1378
      %v1683 = vpack.c.b16 %v1381, %v1379
      %v1684 = vpack.c.b16 %v1384, %v1382
      %v1685 = vpack.c.b16 %v1385, %v1383
      %v1686 = vpack.c.b16 %v1388, %v1386
      %v1687 = vpack.c.b16 %v1389, %v1387
      %v1688 = vpack.c.b16 %v1392, %v1390
      %v1689 = vpack.c.b16 %v1393, %v1391
      %v1690 = vpack.c.b16 %v1396, %v1394
      %v1691 = vpack.c.b16 %v1397, %v1395
      %v1692 = vpack.c.b16 %v1400, %v1398
      %v1693 = vpack.c.b16 %v1401, %v1399
      %v1694 = vpack.c.b16 %v1404, %v1402
      %v1695 = vpack.c.b16 %v1405, %v1403
      %v1696 = vpack.c.b16 %v1408, %v1406
      %v1697 = vpack.c.b16 %v1409, %v1407
      %v1698 = vpack.c.b16 %v1412, %v1410
      %v1699 = vpack.c.b16 %v1413, %v1411
      %v1700 = vpack.c.b16 %v1416, %v1414
      %v1701 = vpack.c.b16 %v1417, %v1415
      %v1702 = vpack.c.b16 %v1420, %v1418
      %v1703 = vpack.c.b16 %v1421, %v1419
      %v1704 = vpack.c.b16 %v1424, %v1422
      %v1705 = vpack.c.b16 %v1425, %v1423
      %v1706 = vpack.c.b16 %v1428, %v1426
      %v1707 = vpack.c.b16 %v1429, %v1427
      %v1708 = vpack.c.b16 %v1432, %v1430
      %v1709 = vpack.c.b16 %v1433, %v1431
      %v1710 = vpack.c.b16 %v1436, %v1434
      %v1711 = vpack.c.b16 %v1437, %v1435
      %v1712 = vpack.c.b16 %v1440, %v1438
      %v1713 = vpack.c.b16 %v1441, %v1439
      %v1714 = vpack.c.b16 %v1444, %v1442
      %v1715 = vpack.c.b16 %v1445, %v1443
      %v1716 = vpack.c.b16 %v1448, %v1446
      %v1717 = vpack.c.b16 %v1449, %v1447
      %v1718 = vpack.c.b16 %v1452, %v1450
      %v1719 = vpack.c.b16 %v1453, %v1451
      %v1720 = vpack.c.b16 %v1456, %v1454
      %v1721 = vpack.c.b16 %v1457, %v1455
      %v1722 = vpack.c.b16 %v1460, %v1458
      %v1723 = vpack.c.b16 %v1461, %v1459
      %v1724 = vpack.c.b16 %v1464, %v1462
      %v1725 = vpack.c.b16 %v1465, %v1463
      %v1726 = vpack.c.b16 %v1468, %v1466
      %v1727 = vpack.c.b16 %v1469, %v1467
      %v1728 = vpack.c.b16 %v1472, %v1470
      %v1729 = vpack.c.b16 %v1473, %v1471
      %1986 = vmatpush.bf16.msra.mxu0 %v1488
      %1987 = vmatpush.bf16.msra.mxu0 %v1486
      %1988 = vmatpush.bf16.msra.mxu0 %v1484
      %1989 = vmatpush.bf16.msra.mxu0 %v1482
      %1990 = vmatpush.bf16.msra.mxu0 %v1480
      %1991 = vmatpush.bf16.msra.mxu0 %v1478
      %1992 = vmatpush.bf16.msra.mxu0 %v1476
      %1993 = vmatpush.bf16.msra.mxu0 %v1474
      %1994 = vmatmul.bf16.gmra.mxu0 %v642
      %v1995 = vpop.f32.mrf.mxu0
      %v1996 = vadd.f32 0.0, %v1995
      %v1997 = vpop.f32.mrf.mxu0
      %v1998 = vadd.f32 0.0, %v1997
      %1999 = vmatmul.bf16.gmra.mxu0 %v658
      %v2000 = vpop.f32.mrf.mxu0
      %v2001 = vadd.f32 0.0, %v2000
      %v2002 = vpop.f32.mrf.mxu0
      %v2003 = vadd.f32 0.0, %v2002
      %2004 = vdwg.mxu0
      %2005 = vmatpush.bf16.msra.mxu0 %v1504
      %2006 = vmatpush.bf16.msra.mxu0 %v1502
      %2007 = vmatpush.bf16.msra.mxu0 %v1500
      %2008 = vmatpush.bf16.msra.mxu0 %v1498
      %2009 = vmatpush.bf16.msra.mxu0 %v1496
      %2010 = vmatpush.bf16.msra.mxu0 %v1494
      %2011 = vmatpush.bf16.msra.mxu0 %v1492
      %2012 = vmatpush.bf16.msra.mxu0 %v1490
      %2013 = vmatmul.bf16.gmra.mxu0 %v643
      %v2014 = vpop.f32.mrf.mxu0
      %v2015 = vadd.f32 %v1996, %v2014
      %v2016 = vpop.f32.mrf.mxu0
      %v2017 = vadd.f32 %v1998, %v2016
      %2018 = vmatmul.bf16.gmra.mxu0 %v659
      %v2019 = vpop.f32.mrf.mxu0
      %v2020 = vadd.f32 %v2001, %v2019
      %v2021 = vpop.f32.mrf.mxu0
      %v2022 = vadd.f32 %v2003, %v2021
      %2023 = vdwg.mxu0
      %2024 = vmatpush.bf16.msra.mxu0 %v1520
      %2025 = vmatpush.bf16.msra.mxu0 %v1518
      %2026 = vmatpush.bf16.msra.mxu0 %v1516
      %2027 = vmatpush.bf16.msra.mxu0 %v1514
      %2028 = vmatpush.bf16.msra.mxu0 %v1512
      %2029 = vmatpush.bf16.msra.mxu0 %v1510
      %2030 = vmatpush.bf16.msra.mxu0 %v1508
      %2031 = vmatpush.bf16.msra.mxu0 %v1506
      %2032 = vmatmul.bf16.gmra.mxu0 %v644
      %v2033 = vpop.f32.mrf.mxu0
      %v2034 = vadd.f32 %v2015, %v2033
      %v2035 = vpop.f32.mrf.mxu0
      %v2036 = vadd.f32 %v2017, %v2035
      %2037 = vmatmul.bf16.gmra.mxu0 %v660
      %v2038 = vpop.f32.mrf.mxu0
      %v2039 = vadd.f32 %v2020, %v2038
      %v2040 = vpop.f32.mrf.mxu0
      %v2041 = vadd.f32 %v2022, %v2040
      %2042 = vdwg.mxu0
      %2043 = vmatpush.bf16.msra.mxu0 %v1536
      %2044 = vmatpush.bf16.msra.mxu0 %v1534
      %2045 = vmatpush.bf16.msra.mxu0 %v1532
      %2046 = vmatpush.bf16.msra.mxu0 %v1530
      %2047 = vmatpush.bf16.msra.mxu0 %v1528
      %2048 = vmatpush.bf16.msra.mxu0 %v1526
      %2049 = vmatpush.bf16.msra.mxu0 %v1524
      %2050 = vmatpush.bf16.msra.mxu0 %v1522
      %2051 = vmatmul.bf16.gmra.mxu0 %v645
      %v2052 = vpop.f32.mrf.mxu0
      %v2053 = vadd.f32 %v2034, %v2052
      %v2054 = vpop.f32.mrf.mxu0
      %v2055 = vadd.f32 %v2036, %v2054
      %2056 = vmatmul.bf16.gmra.mxu0 %v661
      %v2057 = vpop.f32.mrf.mxu0
      %v2058 = vadd.f32 %v2039, %v2057
      %v2059 = vpop.f32.mrf.mxu0
      %v2060 = vadd.f32 %v2041, %v2059
      %2061 = vdwg.mxu0
      %2062 = vmatpush.bf16.msra.mxu0 %v1552
      %2063 = vmatpush.bf16.msra.mxu0 %v1550
      %2064 = vmatpush.bf16.msra.mxu0 %v1548
      %2065 = vmatpush.bf16.msra.mxu0 %v1546
      %2066 = vmatpush.bf16.msra.mxu0 %v1544
      %2067 = vmatpush.bf16.msra.mxu0 %v1542
      %2068 = vmatpush.bf16.msra.mxu0 %v1540
      %2069 = vmatpush.bf16.msra.mxu0 %v1538
      %2070 = vmatmul.bf16.gmra.mxu0 %v646
      %v2071 = vpop.f32.mrf.mxu0
      %v2072 = vadd.f32 %v2053, %v2071
      %v2073 = vpop.f32.mrf.mxu0
      %v2074 = vadd.f32 %v2055, %v2073
      %2075 = vmatmul.bf16.gmra.mxu0 %v662
      %v2076 = vpop.f32.mrf.mxu0
      %v2077 = vadd.f32 %v2058, %v2076
      %v2078 = vpop.f32.mrf.mxu0
      %v2079 = vadd.f32 %v2060, %v2078
      %2080 = vdwg.mxu0
      %2081 = vmatpush.bf16.msra.mxu0 %v1568
      %2082 = vmatpush.bf16.msra.mxu0 %v1566
      %2083 = vmatpush.bf16.msra.mxu0 %v1564
      %2084 = vmatpush.bf16.msra.mxu0 %v1562
      %2085 = vmatpush.bf16.msra.mxu0 %v1560
      %2086 = vmatpush.bf16.msra.mxu0 %v1558
      %2087 = vmatpush.bf16.msra.mxu0 %v1556
      %2088 = vmatpush.bf16.msra.mxu0 %v1554
      %2089 = vmatmul.bf16.gmra.mxu0 %v647
      %v2090 = vpop.f32.mrf.mxu0
      %v2091 = vadd.f32 %v2072, %v2090
      %v2092 = vpop.f32.mrf.mxu0
      %v2093 = vadd.f32 %v2074, %v2092
      %2094 = vmatmul.bf16.gmra.mxu0 %v663
      %v2095 = vpop.f32.mrf.mxu0
      %v2096 = vadd.f32 %v2077, %v2095
      %v2097 = vpop.f32.mrf.mxu0
      %v2098 = vadd.f32 %v2079, %v2097
      %2099 = vdwg.mxu0
      %2100 = vmatpush.bf16.msra.mxu0 %v1584
      %2101 = vmatpush.bf16.msra.mxu0 %v1582
      %2102 = vmatpush.bf16.msra.mxu0 %v1580
      %2103 = vmatpush.bf16.msra.mxu0 %v1578
      %2104 = vmatpush.bf16.msra.mxu0 %v1576
      %2105 = vmatpush.bf16.msra.mxu0 %v1574
      %2106 = vmatpush.bf16.msra.mxu0 %v1572
      %2107 = vmatpush.bf16.msra.mxu0 %v1570
      %2108 = vmatmul.bf16.gmra.mxu0 %v648
      %v2109 = vpop.f32.mrf.mxu0
      %v2110 = vadd.f32 %v2091, %v2109
      %v2111 = vpop.f32.mrf.mxu0
      %v2112 = vadd.f32 %v2093, %v2111
      %2113 = vmatmul.bf16.gmra.mxu0 %v664
      %v2114 = vpop.f32.mrf.mxu0
      %v2115 = vadd.f32 %v2096, %v2114
      %v2116 = vpop.f32.mrf.mxu0
      %v2117 = vadd.f32 %v2098, %v2116
      %2118 = vdwg.mxu0
      %2119 = vmatpush.bf16.msra.mxu0 %v1600
      %2120 = vmatpush.bf16.msra.mxu0 %v1598
      %2121 = vmatpush.bf16.msra.mxu0 %v1596
      %2122 = vmatpush.bf16.msra.mxu0 %v1594
      %2123 = vmatpush.bf16.msra.mxu0 %v1592
      %2124 = vmatpush.bf16.msra.mxu0 %v1590
      %2125 = vmatpush.bf16.msra.mxu0 %v1588
      %2126 = vmatpush.bf16.msra.mxu0 %v1586
      %2127 = vmatmul.bf16.gmra.mxu0 %v649
      %v2128 = vpop.f32.mrf.mxu0
      %v2129 = vadd.f32 %v2110, %v2128
      %v2130 = vpop.f32.mrf.mxu0
      %v2131 = vadd.f32 %v2112, %v2130
      %2132 = vmatmul.bf16.gmra.mxu0 %v665
      %v2133 = vpop.f32.mrf.mxu0
      %v2134 = vadd.f32 %v2115, %v2133
      %v2135 = vpop.f32.mrf.mxu0
      %v2136 = vadd.f32 %v2117, %v2135
      %2137 = vdwg.mxu0
      %2138 = vmatpush.bf16.msra.mxu0 %v1616
      %2139 = vmatpush.bf16.msra.mxu0 %v1614
      %2140 = vmatpush.bf16.msra.mxu0 %v1612
      %2141 = vmatpush.bf16.msra.mxu0 %v1610
      %2142 = vmatpush.bf16.msra.mxu0 %v1608
      %2143 = vmatpush.bf16.msra.mxu0 %v1606
      %2144 = vmatpush.bf16.msra.mxu0 %v1604
      %2145 = vmatpush.bf16.msra.mxu0 %v1602
      %2146 = vmatmul.bf16.gmra.mxu0 %v650
      %v2147 = vpop.f32.mrf.mxu0
      %v2148 = vadd.f32 %v2129, %v2147
      %v2149 = vpop.f32.mrf.mxu0
      %v2150 = vadd.f32 %v2131, %v2149
      %2151 = vmatmul.bf16.gmra.mxu0 %v666
      %v2152 = vpop.f32.mrf.mxu0
      %v2153 = vadd.f32 %v2134, %v2152
      %v2154 = vpop.f32.mrf.mxu0
      %v2155 = vadd.f32 %v2136, %v2154
      %2156 = vdwg.mxu0
      %2157 = vmatpush.bf16.msra.mxu0 %v1632
      %2158 = vmatpush.bf16.msra.mxu0 %v1630
      %2159 = vmatpush.bf16.msra.mxu0 %v1628
      %2160 = vmatpush.bf16.msra.mxu0 %v1626
      %2161 = vmatpush.bf16.msra.mxu0 %v1624
      %2162 = vmatpush.bf16.msra.mxu0 %v1622
      %2163 = vmatpush.bf16.msra.mxu0 %v1620
      %2164 = vmatpush.bf16.msra.mxu0 %v1618
      %2165 = vmatmul.bf16.gmra.mxu0 %v651
      %v2166 = vpop.f32.mrf.mxu0
      %v2167 = vadd.f32 %v2148, %v2166
      %v2168 = vpop.f32.mrf.mxu0
      %v2169 = vadd.f32 %v2150, %v2168
      %2170 = vmatmul.bf16.gmra.mxu0 %v667
      %v2171 = vpop.f32.mrf.mxu0
      %v2172 = vadd.f32 %v2153, %v2171
      %v2173 = vpop.f32.mrf.mxu0
      %v2174 = vadd.f32 %v2155, %v2173
      %2175 = vdwg.mxu0
      %2176 = vmatpush.bf16.msra.mxu0 %v1648
      %2177 = vmatpush.bf16.msra.mxu0 %v1646
      %2178 = vmatpush.bf16.msra.mxu0 %v1644
      %2179 = vmatpush.bf16.msra.mxu0 %v1642
      %2180 = vmatpush.bf16.msra.mxu0 %v1640
      %2181 = vmatpush.bf16.msra.mxu0 %v1638
      %2182 = vmatpush.bf16.msra.mxu0 %v1636
      %2183 = vmatpush.bf16.msra.mxu0 %v1634
      %2184 = vmatmul.bf16.gmra.mxu0 %v652
      %v2185 = vpop.f32.mrf.mxu0
      %v2186 = vadd.f32 %v2167, %v2185
      %v2187 = vpop.f32.mrf.mxu0
      %v2188 = vadd.f32 %v2169, %v2187
      %2189 = vmatmul.bf16.gmra.mxu0 %v668
      %v2190 = vpop.f32.mrf.mxu0
      %v2191 = vadd.f32 %v2172, %v2190
      %v2192 = vpop.f32.mrf.mxu0
      %v2193 = vadd.f32 %v2174, %v2192
      %2194 = vdwg.mxu0
      %2195 = vmatpush.bf16.msra.mxu0 %v1664
      %2196 = vmatpush.bf16.msra.mxu0 %v1662
      %2197 = vmatpush.bf16.msra.mxu0 %v1660
      %2198 = vmatpush.bf16.msra.mxu0 %v1658
      %2199 = vmatpush.bf16.msra.mxu0 %v1656
      %2200 = vmatpush.bf16.msra.mxu0 %v1654
      %2201 = vmatpush.bf16.msra.mxu0 %v1652
      %2202 = vmatpush.bf16.msra.mxu0 %v1650
      %2203 = vmatmul.bf16.gmra.mxu0 %v653
      %v2204 = vpop.f32.mrf.mxu0
      %v2205 = vadd.f32 %v2186, %v2204
      %v2206 = vpop.f32.mrf.mxu0
      %v2207 = vadd.f32 %v2188, %v2206
      %2208 = vmatmul.bf16.gmra.mxu0 %v669
      %v2209 = vpop.f32.mrf.mxu0
      %v2210 = vadd.f32 %v2191, %v2209
      %v2211 = vpop.f32.mrf.mxu0
      %v2212 = vadd.f32 %v2193, %v2211
      %2213 = vdwg.mxu0
      %2214 = vmatpush.bf16.msra.mxu0 %v1680
      %2215 = vmatpush.bf16.msra.mxu0 %v1678
      %2216 = vmatpush.bf16.msra.mxu0 %v1676
      %2217 = vmatpush.bf16.msra.mxu0 %v1674
      %2218 = vmatpush.bf16.msra.mxu0 %v1672
      %2219 = vmatpush.bf16.msra.mxu0 %v1670
      %2220 = vmatpush.bf16.msra.mxu0 %v1668
      %2221 = vmatpush.bf16.msra.mxu0 %v1666
      %2222 = vmatmul.bf16.gmra.mxu0 %v654
      %v2223 = vpop.f32.mrf.mxu0
      %v2224 = vadd.f32 %v2205, %v2223
      %v2225 = vpop.f32.mrf.mxu0
      %v2226 = vadd.f32 %v2207, %v2225
      %2227 = vmatmul.bf16.gmra.mxu0 %v670
      %v2228 = vpop.f32.mrf.mxu0
      %v2229 = vadd.f32 %v2210, %v2228
      %v2230 = vpop.f32.mrf.mxu0
      %v2231 = vadd.f32 %v2212, %v2230
      %2232 = vdwg.mxu0
      %2233 = vmatpush.bf16.msra.mxu0 %v1696
      %2234 = vmatpush.bf16.msra.mxu0 %v1694
      %2235 = vmatpush.bf16.msra.mxu0 %v1692
      %2236 = vmatpush.bf16.msra.mxu0 %v1690
      %2237 = vmatpush.bf16.msra.mxu0 %v1688
      %2238 = vmatpush.bf16.msra.mxu0 %v1686
      %2239 = vmatpush.bf16.msra.mxu0 %v1684
      %2240 = vmatpush.bf16.msra.mxu0 %v1682
      %2241 = vmatmul.bf16.gmra.mxu0 %v655
      %v2242 = vpop.f32.mrf.mxu0
      %v2243 = vadd.f32 %v2224, %v2242
      %v2244 = vpop.f32.mrf.mxu0
      %v2245 = vadd.f32 %v2226, %v2244
      %2246 = vmatmul.bf16.gmra.mxu0 %v671
      %v2247 = vpop.f32.mrf.mxu0
      %v2248 = vadd.f32 %v2229, %v2247
      %v2249 = vpop.f32.mrf.mxu0
      %v2250 = vadd.f32 %v2231, %v2249
      %2251 = vdwg.mxu0
      %2252 = vmatpush.bf16.msra.mxu0 %v1712
      %2253 = vmatpush.bf16.msra.mxu0 %v1710
      %2254 = vmatpush.bf16.msra.mxu0 %v1708
      %2255 = vmatpush.bf16.msra.mxu0 %v1706
      %2256 = vmatpush.bf16.msra.mxu0 %v1704
      %2257 = vmatpush.bf16.msra.mxu0 %v1702
      %2258 = vmatpush.bf16.msra.mxu0 %v1700
      %2259 = vmatpush.bf16.msra.mxu0 %v1698
      %2260 = vmatmul.bf16.gmra.mxu0 %v656
      %v2261 = vpop.f32.mrf.mxu0
      %v2262 = vadd.f32 %v2243, %v2261
      %v2263 = vpop.f32.mrf.mxu0
      %v2264 = vadd.f32 %v2245, %v2263
      %2265 = vmatmul.bf16.gmra.mxu0 %v672
      %v2266 = vpop.f32.mrf.mxu0
      %v2267 = vadd.f32 %v2248, %v2266
      %v2268 = vpop.f32.mrf.mxu0
      %v2269 = vadd.f32 %v2250, %v2268
      %2270 = vdwg.mxu0
      %2271 = vmatpush.bf16.msra.mxu0 %v1728
      %2272 = vmatpush.bf16.msra.mxu0 %v1726
      %2273 = vmatpush.bf16.msra.mxu0 %v1724
      %2274 = vmatpush.bf16.msra.mxu0 %v1722
      %2275 = vmatpush.bf16.msra.mxu0 %v1720
      %2276 = vmatpush.bf16.msra.mxu0 %v1718
      %2277 = vmatpush.bf16.msra.mxu0 %v1716
      %2278 = vmatpush.bf16.msra.mxu0 %v1714
      %2279 = vmatmul.bf16.gmra.mxu0 %v657
      %v2280 = vpop.f32.mrf.mxu0
      %v2281 = vadd.f32 %v2262, %v2280
      %v2282 = vpop.f32.mrf.mxu0
      %v2283 = vadd.f32 %v2264, %v2282
      %2284 = vmatmul.bf16.gmra.mxu0 %v673
      %v2285 = vpop.f32.mrf.mxu0
      %v2286 = vadd.f32 %v2267, %v2285
      %v2287 = vpop.f32.mrf.mxu0
      %v2288 = vadd.f32 %v2269, %v2287
      %2289 = vdwg.mxu0
      %2290 = vmatpush.bf16.msra.mxu0 %v1489
      %2291 = vmatpush.bf16.msra.mxu0 %v1487
      %2292 = vmatpush.bf16.msra.mxu0 %v1485
      %2293 = vmatpush.bf16.msra.mxu0 %v1483
      %2294 = vmatpush.bf16.msra.mxu0 %v1481
      %2295 = vmatpush.bf16.msra.mxu0 %v1479
      %2296 = vmatpush.bf16.msra.mxu0 %v1477
      %2297 = vmatpush.bf16.msra.mxu0 %v1475
      %2298 = vmatmul.bf16.gmra.mxu0 %v642
      %v2299 = vpop.f32.mrf.mxu0
      %v2300 = vadd.f32 0.0, %v2299
      %v2301 = vpop.f32.mrf.mxu0
      %v2302 = vadd.f32 0.0, %v2301
      %2303 = vmatmul.bf16.gmra.mxu0 %v658
      %v2304 = vpop.f32.mrf.mxu0
      %v2305 = vadd.f32 0.0, %v2304
      %v2306 = vpop.f32.mrf.mxu0
      %v2307 = vadd.f32 0.0, %v2306
      %2308 = vdwg.mxu0
      %2309 = vmatpush.bf16.msra.mxu0 %v1505
      %2310 = vmatpush.bf16.msra.mxu0 %v1503
      %2311 = vmatpush.bf16.msra.mxu0 %v1501
      %2312 = vmatpush.bf16.msra.mxu0 %v1499
      %2313 = vmatpush.bf16.msra.mxu0 %v1497
      %2314 = vmatpush.bf16.msra.mxu0 %v1495
      %2315 = vmatpush.bf16.msra.mxu0 %v1493
      %2316 = vmatpush.bf16.msra.mxu0 %v1491
      %2317 = vmatmul.bf16.gmra.mxu0 %v643
      %v2318 = vpop.f32.mrf.mxu0
      %v2319 = vadd.f32 %v2300, %v2318
      %v2320 = vpop.f32.mrf.mxu0
      %v2321 = vadd.f32 %v2302, %v2320
      %2322 = vmatmul.bf16.gmra.mxu0 %v659
      %v2323 = vpop.f32.mrf.mxu0
      %v2324 = vadd.f32 %v2305, %v2323
      %v2325 = vpop.f32.mrf.mxu0
      %v2326 = vadd.f32 %v2307, %v2325
      %2327 = vdwg.mxu0
      %2328 = vmatpush.bf16.msra.mxu0 %v1521
      %2329 = vmatpush.bf16.msra.mxu0 %v1519
      %2330 = vmatpush.bf16.msra.mxu0 %v1517
      %2331 = vmatpush.bf16.msra.mxu0 %v1515
      %2332 = vmatpush.bf16.msra.mxu0 %v1513
      %2333 = vmatpush.bf16.msra.mxu0 %v1511
      %2334 = vmatpush.bf16.msra.mxu0 %v1509
      %2335 = vmatpush.bf16.msra.mxu0 %v1507
      %2336 = vmatmul.bf16.gmra.mxu0 %v644
      %v2337 = vpop.f32.mrf.mxu0
      %v2338 = vadd.f32 %v2319, %v2337
      %v2339 = vpop.f32.mrf.mxu0
      %v2340 = vadd.f32 %v2321, %v2339
      %2341 = vmatmul.bf16.gmra.mxu0 %v660
      %v2342 = vpop.f32.mrf.mxu0
      %v2343 = vadd.f32 %v2324, %v2342
      %v2344 = vpop.f32.mrf.mxu0
      %v2345 = vadd.f32 %v2326, %v2344
      %2346 = vdwg.mxu0
      %2347 = vmatpush.bf16.msra.mxu0 %v1537
      %2348 = vmatpush.bf16.msra.mxu0 %v1535
      %2349 = vmatpush.bf16.msra.mxu0 %v1533
      %2350 = vmatpush.bf16.msra.mxu0 %v1531
      %2351 = vmatpush.bf16.msra.mxu0 %v1529
      %2352 = vmatpush.bf16.msra.mxu0 %v1527
      %2353 = vmatpush.bf16.msra.mxu0 %v1525
      %2354 = vmatpush.bf16.msra.mxu0 %v1523
      %2355 = vmatmul.bf16.gmra.mxu0 %v645
      %v2356 = vpop.f32.mrf.mxu0
      %v2357 = vadd.f32 %v2338, %v2356
      %v2358 = vpop.f32.mrf.mxu0
      %v2359 = vadd.f32 %v2340, %v2358
      %2360 = vmatmul.bf16.gmra.mxu0 %v661
      %v2361 = vpop.f32.mrf.mxu0
      %v2362 = vadd.f32 %v2343, %v2361
      %v2363 = vpop.f32.mrf.mxu0
      %v2364 = vadd.f32 %v2345, %v2363
      %2365 = vdwg.mxu0
      %2366 = vmatpush.bf16.msra.mxu0 %v1553
      %2367 = vmatpush.bf16.msra.mxu0 %v1551
      %2368 = vmatpush.bf16.msra.mxu0 %v1549
      %2369 = vmatpush.bf16.msra.mxu0 %v1547
      %2370 = vmatpush.bf16.msra.mxu0 %v1545
      %2371 = vmatpush.bf16.msra.mxu0 %v1543
      %2372 = vmatpush.bf16.msra.mxu0 %v1541
      %2373 = vmatpush.bf16.msra.mxu0 %v1539
      %2374 = vmatmul.bf16.gmra.mxu0 %v646
      %v2375 = vpop.f32.mrf.mxu0
      %v2376 = vadd.f32 %v2357, %v2375
      %v2377 = vpop.f32.mrf.mxu0
      %v2378 = vadd.f32 %v2359, %v2377
      %2379 = vmatmul.bf16.gmra.mxu0 %v662
      %v2380 = vpop.f32.mrf.mxu0
      %v2381 = vadd.f32 %v2362, %v2380
      %v2382 = vpop.f32.mrf.mxu0
      %v2383 = vadd.f32 %v2364, %v2382
      %2384 = vdwg.mxu0
      %2385 = vmatpush.bf16.msra.mxu0 %v1569
      %2386 = vmatpush.bf16.msra.mxu0 %v1567
      %2387 = vmatpush.bf16.msra.mxu0 %v1565
      %2388 = vmatpush.bf16.msra.mxu0 %v1563
      %2389 = vmatpush.bf16.msra.mxu0 %v1561
      %2390 = vmatpush.bf16.msra.mxu0 %v1559
      %2391 = vmatpush.bf16.msra.mxu0 %v1557
      %2392 = vmatpush.bf16.msra.mxu0 %v1555
      %2393 = vmatmul.bf16.gmra.mxu0 %v647
      %v2394 = vpop.f32.mrf.mxu0
      %v2395 = vadd.f32 %v2376, %v2394
      %v2396 = vpop.f32.mrf.mxu0
      %v2397 = vadd.f32 %v2378, %v2396
      %2398 = vmatmul.bf16.gmra.mxu0 %v663
      %v2399 = vpop.f32.mrf.mxu0
      %v2400 = vadd.f32 %v2381, %v2399
      %v2401 = vpop.f32.mrf.mxu0
      %v2402 = vadd.f32 %v2383, %v2401
      %2403 = vdwg.mxu0
      %2404 = vmatpush.bf16.msra.mxu0 %v1585
      %2405 = vmatpush.bf16.msra.mxu0 %v1583
      %2406 = vmatpush.bf16.msra.mxu0 %v1581
      %2407 = vmatpush.bf16.msra.mxu0 %v1579
      %2408 = vmatpush.bf16.msra.mxu0 %v1577
      %2409 = vmatpush.bf16.msra.mxu0 %v1575
      %2410 = vmatpush.bf16.msra.mxu0 %v1573
      %2411 = vmatpush.bf16.msra.mxu0 %v1571
      %2412 = vmatmul.bf16.gmra.mxu0 %v648
      %v2413 = vpop.f32.mrf.mxu0
      %v2414 = vadd.f32 %v2395, %v2413
      %v2415 = vpop.f32.mrf.mxu0
      %v2416 = vadd.f32 %v2397, %v2415
      %2417 = vmatmul.bf16.gmra.mxu0 %v664
      %v2418 = vpop.f32.mrf.mxu0
      %v2419 = vadd.f32 %v2400, %v2418
      %v2420 = vpop.f32.mrf.mxu0
      %v2421 = vadd.f32 %v2402, %v2420
      %2422 = vdwg.mxu0
      %2423 = vmatpush.bf16.msra.mxu0 %v1601
      %2424 = vmatpush.bf16.msra.mxu0 %v1599
      %2425 = vmatpush.bf16.msra.mxu0 %v1597
      %2426 = vmatpush.bf16.msra.mxu0 %v1595
      %2427 = vmatpush.bf16.msra.mxu0 %v1593
      %2428 = vmatpush.bf16.msra.mxu0 %v1591
      %2429 = vmatpush.bf16.msra.mxu0 %v1589
      %2430 = vmatpush.bf16.msra.mxu0 %v1587
      %2431 = vmatmul.bf16.gmra.mxu0 %v649
      %v2432 = vpop.f32.mrf.mxu0
      %v2433 = vadd.f32 %v2414, %v2432
      %v2434 = vpop.f32.mrf.mxu0
      %v2435 = vadd.f32 %v2416, %v2434
      %2436 = vmatmul.bf16.gmra.mxu0 %v665
      %v2437 = vpop.f32.mrf.mxu0
      %v2438 = vadd.f32 %v2419, %v2437
      %v2439 = vpop.f32.mrf.mxu0
      %v2440 = vadd.f32 %v2421, %v2439
      %2441 = vdwg.mxu0
      %2442 = vmatpush.bf16.msra.mxu0 %v1617
      %2443 = vmatpush.bf16.msra.mxu0 %v1615
      %2444 = vmatpush.bf16.msra.mxu0 %v1613
      %2445 = vmatpush.bf16.msra.mxu0 %v1611
      %2446 = vmatpush.bf16.msra.mxu0 %v1609
      %2447 = vmatpush.bf16.msra.mxu0 %v1607
      %2448 = vmatpush.bf16.msra.mxu0 %v1605
      %2449 = vmatpush.bf16.msra.mxu0 %v1603
      %2450 = vmatmul.bf16.gmra.mxu0 %v650
      %v2451 = vpop.f32.mrf.mxu0
      %v2452 = vadd.f32 %v2433, %v2451
      %v2453 = vpop.f32.mrf.mxu0
      %v2454 = vadd.f32 %v2435, %v2453
      %2455 = vmatmul.bf16.gmra.mxu0 %v666
      %v2456 = vpop.f32.mrf.mxu0
      %v2457 = vadd.f32 %v2438, %v2456
      %v2458 = vpop.f32.mrf.mxu0
      %v2459 = vadd.f32 %v2440, %v2458
      %2460 = vdwg.mxu0
      %2461 = vmatpush.bf16.msra.mxu0 %v1633
      %2462 = vmatpush.bf16.msra.mxu0 %v1631
      %2463 = vmatpush.bf16.msra.mxu0 %v1629
      %2464 = vmatpush.bf16.msra.mxu0 %v1627
      %2465 = vmatpush.bf16.msra.mxu0 %v1625
      %2466 = vmatpush.bf16.msra.mxu0 %v1623
      %2467 = vmatpush.bf16.msra.mxu0 %v1621
      %2468 = vmatpush.bf16.msra.mxu0 %v1619
      %2469 = vmatmul.bf16.gmra.mxu0 %v651
      %v2470 = vpop.f32.mrf.mxu0
      %v2471 = vadd.f32 %v2452, %v2470
      %v2472 = vpop.f32.mrf.mxu0
      %v2473 = vadd.f32 %v2454, %v2472
      %2474 = vmatmul.bf16.gmra.mxu0 %v667
      %v2475 = vpop.f32.mrf.mxu0
      %v2476 = vadd.f32 %v2457, %v2475
      %v2477 = vpop.f32.mrf.mxu0
      %v2478 = vadd.f32 %v2459, %v2477
      %2479 = vdwg.mxu0
      %2480 = vmatpush.bf16.msra.mxu0 %v1649
      %2481 = vmatpush.bf16.msra.mxu0 %v1647
      %2482 = vmatpush.bf16.msra.mxu0 %v1645
      %2483 = vmatpush.bf16.msra.mxu0 %v1643
      %2484 = vmatpush.bf16.msra.mxu0 %v1641
      %2485 = vmatpush.bf16.msra.mxu0 %v1639
      %2486 = vmatpush.bf16.msra.mxu0 %v1637
      %2487 = vmatpush.bf16.msra.mxu0 %v1635
      %2488 = vmatmul.bf16.gmra.mxu0 %v652
      %v2489 = vpop.f32.mrf.mxu0
      %v2490 = vadd.f32 %v2471, %v2489
      %v2491 = vpop.f32.mrf.mxu0
      %v2492 = vadd.f32 %v2473, %v2491
      %2493 = vmatmul.bf16.gmra.mxu0 %v668
      %v2494 = vpop.f32.mrf.mxu0
      %v2495 = vadd.f32 %v2476, %v2494
      %v2496 = vpop.f32.mrf.mxu0
      %v2497 = vadd.f32 %v2478, %v2496
      %2498 = vdwg.mxu0
      %2499 = vmatpush.bf16.msra.mxu0 %v1665
      %2500 = vmatpush.bf16.msra.mxu0 %v1663
      %2501 = vmatpush.bf16.msra.mxu0 %v1661
      %2502 = vmatpush.bf16.msra.mxu0 %v1659
      %2503 = vmatpush.bf16.msra.mxu0 %v1657
      %2504 = vmatpush.bf16.msra.mxu0 %v1655
      %2505 = vmatpush.bf16.msra.mxu0 %v1653
      %2506 = vmatpush.bf16.msra.mxu0 %v1651
      %2507 = vmatmul.bf16.gmra.mxu0 %v653
      %v2508 = vpop.f32.mrf.mxu0
      %v2509 = vadd.f32 %v2490, %v2508
      %v2510 = vpop.f32.mrf.mxu0
      %v2511 = vadd.f32 %v2492, %v2510
      %2512 = vmatmul.bf16.gmra.mxu0 %v669
      %v2513 = vpop.f32.mrf.mxu0
      %v2514 = vadd.f32 %v2495, %v2513
      %v2515 = vpop.f32.mrf.mxu0
      %v2516 = vadd.f32 %v2497, %v2515
      %2517 = vdwg.mxu0
      %2518 = vmatpush.bf16.msra.mxu0 %v1681
      %2519 = vmatpush.bf16.msra.mxu0 %v1679
      %2520 = vmatpush.bf16.msra.mxu0 %v1677
      %2521 = vmatpush.bf16.msra.mxu0 %v1675
      %2522 = vmatpush.bf16.msra.mxu0 %v1673
      %2523 = vmatpush.bf16.msra.mxu0 %v1671
      %2524 = vmatpush.bf16.msra.mxu0 %v1669
      %2525 = vmatpush.bf16.msra.mxu0 %v1667
      %2526 = vmatmul.bf16.gmra.mxu0 %v654
      %v2527 = vpop.f32.mrf.mxu0
      %v2528 = vadd.f32 %v2509, %v2527
      %v2529 = vpop.f32.mrf.mxu0
      %v2530 = vadd.f32 %v2511, %v2529
      %2531 = vmatmul.bf16.gmra.mxu0 %v670
      %v2532 = vpop.f32.mrf.mxu0
      %v2533 = vadd.f32 %v2514, %v2532
      %v2534 = vpop.f32.mrf.mxu0
      %v2535 = vadd.f32 %v2516, %v2534
      %2536 = vdwg.mxu0
      %2537 = vmatpush.bf16.msra.mxu0 %v1697
      %2538 = vmatpush.bf16.msra.mxu0 %v1695
      %2539 = vmatpush.bf16.msra.mxu0 %v1693
      %2540 = vmatpush.bf16.msra.mxu0 %v1691
      %2541 = vmatpush.bf16.msra.mxu0 %v1689
      %2542 = vmatpush.bf16.msra.mxu0 %v1687
      %2543 = vmatpush.bf16.msra.mxu0 %v1685
      %2544 = vmatpush.bf16.msra.mxu0 %v1683
      %2545 = vmatmul.bf16.gmra.mxu0 %v655
      %v2546 = vpop.f32.mrf.mxu0
      %v2547 = vadd.f32 %v2528, %v2546
      %v2548 = vpop.f32.mrf.mxu0
      %v2549 = vadd.f32 %v2530, %v2548
      %2550 = vmatmul.bf16.gmra.mxu0 %v671
      %v2551 = vpop.f32.mrf.mxu0
      %v2552 = vadd.f32 %v2533, %v2551
      %v2553 = vpop.f32.mrf.mxu0
      %v2554 = vadd.f32 %v2535, %v2553
      %2555 = vdwg.mxu0
      %2556 = vmatpush.bf16.msra.mxu0 %v1713
      %2557 = vmatpush.bf16.msra.mxu0 %v1711
      %2558 = vmatpush.bf16.msra.mxu0 %v1709
      %2559 = vmatpush.bf16.msra.mxu0 %v1707
      %2560 = vmatpush.bf16.msra.mxu0 %v1705
      %2561 = vmatpush.bf16.msra.mxu0 %v1703
      %2562 = vmatpush.bf16.msra.mxu0 %v1701
      %2563 = vmatpush.bf16.msra.mxu0 %v1699
      %2564 = vmatmul.bf16.gmra.mxu0 %v656
      %v2565 = vpop.f32.mrf.mxu0
      %v2566 = vadd.f32 %v2547, %v2565
      %v2567 = vpop.f32.mrf.mxu0
      %v2568 = vadd.f32 %v2549, %v2567
      %2569 = vmatmul.bf16.gmra.mxu0 %v672
      %v2570 = vpop.f32.mrf.mxu0
      %v2571 = vadd.f32 %v2552, %v2570
      %v2572 = vpop.f32.mrf.mxu0
      %v2573 = vadd.f32 %v2554, %v2572
      %2574 = vdwg.mxu0
      %2575 = vmatpush.bf16.msra.mxu0 %v1729
      %2576 = vmatpush.bf16.msra.mxu0 %v1727
      %2577 = vmatpush.bf16.msra.mxu0 %v1725
      %2578 = vmatpush.bf16.msra.mxu0 %v1723
      %2579 = vmatpush.bf16.msra.mxu0 %v1721
      %2580 = vmatpush.bf16.msra.mxu0 %v1719
      %2581 = vmatpush.bf16.msra.mxu0 %v1717
      %2582 = vmatpush.bf16.msra.mxu0 %v1715
      %2583 = vmatmul.bf16.gmra.mxu0 %v657
      %v2584 = vpop.f32.mrf.mxu0
      %v2585 = vadd.f32 %v2566, %v2584
      %v2586 = vpop.f32.mrf.mxu0
      %v2587 = vadd.f32 %v2568, %v2586
      %2588 = vmatmul.bf16.gmra.mxu0 %v673
      %v2589 = vpop.f32.mrf.mxu0
      %v2590 = vadd.f32 %v2571, %v2589
      %v2591 = vpop.f32.mrf.mxu0
      %v2592 = vadd.f32 %v2573, %v2591
      %2593 = vdwg.mxu0
      %2594 = vst [vmem:[%s247] sm:$0xff] %v2281
      %2595 = vst [vmem:[%s247 + $0x8] sm:$0xff] %v2585
      %2596 = vst [vmem:[%s247 + $0x10] sm:$0xff] %v2283
      %2597 = vst [vmem:[%s247 + $0x18] sm:$0xff] %v2587
      %2598 = vst [vmem:[%s247 + $0x20] sm:$0xff] %v2286
      %2599 = vst [vmem:[%s247 + $0x28] sm:$0xff] %v2590
      %2600 = vst [vmem:[%s247 + $0x30] sm:$0xff] %v2288
      %2601 = vst [vmem:[%s247 + $0x38] sm:$0xff] %v2592
      %v2602 = vadd.f32 %v2281, %v2283
      %v2603 = vadd.f32 %v2602, %v2286
      %v2604 = vadd.f32 %v2603, %v2288
      %v2605 = vrot.slane %v2604, 4
      %v2606 = vadd.f32 %v2604, %v2605
      %v2607 = vrot.slane %v2606, 2
      %v2608 = vadd.f32 %v2606, %v2607
      %v2609 = vrot.slane %v2608, 1
      %v2610 = vadd.f32 %v2608, %v2609
      %v2611 = vadd.f32 %v2585, %v2587
      %v2612 = vadd.f32 %v2611, %v2590
      %v2613 = vadd.f32 %v2612, %v2592
      %v2614 = vrot.slane %v2613, 4
      %v2615 = vadd.f32 %v2613, %v2614
      %v2616 = vrot.slane %v2615, 2
      %v2617 = vadd.f32 %v2615, %v2616
      %v2618 = vrot.slane %v2617, 1
      %v2619 = vadd.f32 %v2617, %v2618
      %v2622 = vrot.slane %v2619, 7
      %vm2623 = vcmask 1040384
      %v2624 = vsel %vm2623, %v2610, %v2622
      %v2626 = vlaneseq
      %vm2627 = vcmp.ge.s32.totalorder %v2626, 0
      %vm2628 = vcmp.lt.s32.totalorder %v2626, 256
      %vm2629 = vmand %vm2627, %vm2628
      %2630 = vst.msk [vmem:[%s257] ss:$2 sm:$0x3] %vm2629, %v2624
      %v2631 = vmul.f32 %v2281, %v2281
      %v2632 = vmul.f32 %v2585, %v2585
      %v2633 = vmul.f32 %v2283, %v2283
      %v2634 = vmul.f32 %v2587, %v2587
      %v2635 = vmul.f32 %v2286, %v2286
      %v2636 = vmul.f32 %v2590, %v2590
      %v2637 = vmul.f32 %v2288, %v2288
      %v2638 = vmul.f32 %v2592, %v2592
      %v2639 = vadd.f32 %v2631, %v2633
      %v2640 = vadd.f32 %v2639, %v2635
      %v2641 = vadd.f32 %v2640, %v2637
      %v2642 = vrot.slane %v2641, 4
      %v2643 = vadd.f32 %v2641, %v2642
      %v2644 = vrot.slane %v2643, 2
      %v2645 = vadd.f32 %v2643, %v2644
      %v2646 = vrot.slane %v2645, 1
      %v2647 = vadd.f32 %v2645, %v2646
      %v2648 = vadd.f32 %v2632, %v2634
      %v2649 = vadd.f32 %v2648, %v2636
      %v2650 = vadd.f32 %v2649, %v2638
      %v2651 = vrot.slane %v2650, 4
      %v2652 = vadd.f32 %v2650, %v2651
      %v2653 = vrot.slane %v2652, 2
      %v2654 = vadd.f32 %v2652, %v2653
      %v2655 = vrot.slane %v2654, 1
      %v2656 = vadd.f32 %v2654, %v2655
      %v2659 = vrot.slane %v2656, 7
      %v2660 = vsel %vm2623, %v2647, %v2659
      %s2662 = scalar_lea.vmem %s257, 1
      %2663 = vst.msk [vmem:[%s2662] ss:$2 sm:$0x3] %vm2629, %v2660
      %s2664 = smul.u32 4, %s20
      %p2665 = scmp.lt.s32.totalorder %s19, 3
      %s2666 = scalar_select %p2665, %s19, 3
      %p2667 = scmp.lt.s32.totalorder %s2664, 3
      %s2668 = scalar_select %p2667, %s2664, 3
      %s2669 = smul.addr %s2668, 2
      %s2670 = smul.addr %s2666, 8
      %s2671 = sadd.s32 %s2669, %s2670
      %s2672 = smul.addr %s2671, 8
      %s2673 = scalar_lea.vmem %s2, %s2672
      %p2674 = scmp.lt.s32.totalorder %s19, 3
      %s2675 = scalar_select %p2674, %s19, 3
      %p2676 = scmp.lt.s32.totalorder %s20, 0
      %s2677 = scalar_select %p2676, %s20, 0
      %s2678 = smul.addr %s2677, 2
      %s2679 = smul.addr %s2675, 2
      %s2680 = sadd.s32 %s2678, %s2679
      %s2681 = smul.addr %s2680, 2
      %s2682 = scalar_lea.vmem %s3, %s2681
      // Predicated region
      $region29: #{generator_forward.11} parent=27 // pred_check
        %p2683 = pneg %p101
      $region30: #{generator_forward.11} parent=27 // pred_check_branch
        %2685 = sbr.rel (%p2683) target = $region32
      $region31: #{generator_forward.11} parent=27 // pred_region
        %s2686 = smul.u32 4, %s20
      $region32: #{generator_forward.11} parent=27 // pred_fallthru
        _
      // Predicated region
      $region33: #{generator_forward.11} parent=27 // pred_check
        %p2687 = pneg %p129
      $region34: #{generator_forward.11} parent=27 // pred_check_branch
        %2689 = sbr.rel (%p2687) target = $region36
      $region35: #{generator_forward.11} parent=27 // pred_region
        _
      $region36: #{generator_forward.11} parent=27 // pred_fallthru
        _
    $region28: #{generator_forward.11} parent=5 // pred_fallthru
      _
    %p2690 = scmp.le.s32.totalorder 2, %s10
    // Predicated region
    $region37: #{generator_forward.11} parent=5 // pred_check
      %p2691 = pneg %p2690
    $region38: #{generator_forward.11} parent=5 // pred_check_branch
      %2693 = sbr.rel (%p2691) target = $region40
    $region39: #{generator_forward.11} parent=5 // pred_region
      %s2694 = ssub.s32 %s10, 2
      // Predicated region
      $region41: #{generator_forward.11} parent=39 // pred_check
        %p2695 = pneg %p107
      $region42: #{generator_forward.11} parent=39 // pred_check_branch
        %2697 = sbr.rel (%p2695) target = $region44
      $region43: #{generator_forward.11} parent=39 // pred_region
        %s2698 = smul.u32 4, %s22
        %p2699 = scmp.lt.s32.totalorder %s21, 3
        %s2700 = scalar_select %p2699, %s21, 3
        %p2701 = scmp.lt.s32.totalorder %s2698, 3
        %s2702 = scalar_select %p2701, %s2698, 3
        %s2703 = smul.addr %s2702, 2
        %s2704 = smul.addr %s2700, 8
        %s2705 = sadd.s32 %s2703, %s2704
        %s2706 = smul.addr %s2705, 8
        %s2707 = scalar_lea.vmem %s2, %s2706
      $region44: #{generator_forward.11} parent=39 // pred_fallthru
        _
      // Predicated region
      $region45: #{generator_forward.11} parent=39 // pred_check
        %p2708 = pneg %p135
      $region46: #{generator_forward.11} parent=39 // pred_check_branch
        %2710 = sbr.rel (%p2708) target = $region48
      $region47: #{generator_forward.11} parent=39 // pred_region
        %p2711 = scmp.lt.s32.totalorder %s21, 3
        %s2712 = scalar_select %p2711, %s21, 3
        %p2713 = scmp.lt.s32.totalorder %s22, 0
        %s2714 = scalar_select %p2713, %s22, 0
        %s2715 = smul.addr %s2714, 2
        %s2716 = smul.addr %s2712, 2
        %s2717 = sadd.s32 %s2715, %s2716
        %s2718 = smul.addr %s2717, 2
        %s2719 = scalar_lea.vmem %s3, %s2718
      $region48: #{generator_forward.11} parent=39 // pred_fallthru
        _
    $region40: #{generator_forward.11} parent=5 // pred_fallthru
      _
  $region6: #{generator_forward.11} parent=0 // loop_footer
    %s14 = sadd.s32 1, %s10
  $region7: #{generator_forward.11} parent=0 // loop_footer_branch
    %9 = sbr.rel target = $region3
  $region8: #{generator_forward.11} parent=0 // loop_exit
    _

// kernel: generator_forward.14
$region0: #{generator_forward.14}
  #allocation0 [shape = 'u32[]', space=smem, size = 0x4, offset = 0x4, fixed_abs, tag = 'smem constant byte address 0x4 - core index']
  #allocation1 [shape = 'u32[72,128]{1,0:T(1,128)}', space=vmem, size = 0x9000, scoped, tag = 'internal scratch']
  %s0 = inlined_call_operand.vmem [shape: f32[512,128], index: 0, kind: input, shape index: {}]
  %s1 = inlined_call_operand.vmem [shape: f32[1,128], index: 1, kind: input, shape index: {}]
  %s2 = inlined_call_operand.vmem [shape: f32[1,128], index: 2, kind: input, shape index: {}]
  %s3 = inlined_call_operand.vmem [shape: bf16[512,128], index: 3, kind: output, shape index: {}]
  %s4 = sld [smem:[#allocation0]]
  $region22: #{generator_forward.14} parent=0
    _
  %s6 = ssub.s32 1, %s4
  %s7 = scalar_select 0, %s6, %s4
  // Predicated region
  $region2: #{generator_forward.14} parent=0 // pred_check
    _
  $region3: #{generator_forward.14} parent=0 // pred_check_branch
    %9 = sbr.rel (0) target = $region5
  $region4: #{generator_forward.14} parent=0 // pred_region
    _
  $region5: #{generator_forward.14} parent=0 // pred_fallthru
    _
  // Predicated region
  $region6: #{generator_forward.14} parent=0 // pred_check
    _
  $region7: #{generator_forward.14} parent=0 // pred_check_branch
    %11 = sbr.rel (0) target = $region9
  $region8: #{generator_forward.14} parent=0 // pred_region
    _
  $region9: #{generator_forward.14} parent=0 // pred_fallthru
    _
  // Predicated region
  $region10: #{generator_forward.14} parent=0 // pred_check
    _
  $region11: #{generator_forward.14} parent=0 // pred_check_branch
    %13 = sbr.rel (0) target = $region13
  $region12: #{generator_forward.14} parent=0 // pred_region
    _
  $region13: #{generator_forward.14} parent=0 // pred_fallthru
    _
  %v14 = vld [vmem:[%s0] sm:$0xff]
  %v15 = vld [vmem:[%s0 + $0x8] sm:$0xff]
  %v16 = vld [vmem:[%s0 + $0x10] sm:$0xff]
  %v17 = vld [vmem:[%s0 + $0x18] sm:$0xff]
  %v18 = vld [vmem:[%s0 + $0x20] sm:$0xff]
  %v19 = vld [vmem:[%s0 + $0x28] sm:$0xff]
  %v20 = vld [vmem:[%s0 + $0x30] sm:$0xff]
  %v21 = vld [vmem:[%s0 + $0x38] sm:$0xff]
  %v22 = vld [vmem:[%s0 + $0x40] sm:$0xff]
  %v23 = vld [vmem:[%s0 + $0x48] sm:$0xff]
  %v24 = vld [vmem:[%s0 + $0x50] sm:$0xff]
  %v25 = vld [vmem:[%s0 + $0x58] sm:$0xff]
  %v26 = vld [vmem:[%s0 + $0x60] sm:$0xff]
  %v27 = vld [vmem:[%s0 + $0x68] sm:$0xff]
  %v28 = vld [vmem:[%s0 + $0x70] sm:$0xff]
  %v29 = vld [vmem:[%s0 + $0x78] sm:$0xff]
  %v30 = vld [vmem:[%s0 + $0x80] sm:$0xff]
  %v31 = vld [vmem:[%s0 + $0x88] sm:$0xff]
  %v32 = vld [vmem:[%s0 + $0x90] sm:$0xff]
  %v33 = vld [vmem:[%s0 + $0x98] sm:$0xff]
  %v34 = vld [vmem:[%s0 + $0xa0] sm:$0xff]
  %v35 = vld [vmem:[%s0 + $0xa8] sm:$0xff]
  %v36 = vld [vmem:[%s0 + $0xb0] sm:$0xff]
  %v37 = vld [vmem:[%s0 + $0xb8] sm:$0xff]
  %v38 = vld [vmem:[%s0 + $0xc0] sm:$0xff]
  %v39 = vld [vmem:[%s0 + $0xc8] sm:$0xff]
  %v40 = vld [vmem:[%s0 + $0xd0] sm:$0xff]
  %v41 = vld [vmem:[%s0 + $0xd8] sm:$0xff]
  %v42 = vld [vmem:[%s0 + $0xe0] sm:$0xff]
  %v43 = vld [vmem:[%s0 + $0xe8] sm:$0xff]
  %v44 = vld [vmem:[%s0 + $0xf0] sm:$0xff]
  %v45 = vld [vmem:[%s0 + $0xf8] sm:$0xff]
  %v46 = vld [vmem:[%s0 + $0x100] sm:$0xff]
  %v47 = vld [vmem:[%s0 + $0x108] sm:$0xff]
  %v48 = vld [vmem:[%s0 + $0x110] sm:$0xff]
  %v49 = vld [vmem:[%s0 + $0x118] sm:$0xff]
  %v50 = vld [vmem:[%s0 + $0x120] sm:$0xff]
  %v51 = vld [vmem:[%s0 + $0x128] sm:$0xff]
  %v52 = vld [vmem:[%s0 + $0x130] sm:$0xff]
  %v53 = vld [vmem:[%s0 + $0x138] sm:$0xff]
  %v54 = vld [vmem:[%s0 + $0x140] sm:$0xff]
  %v55 = vld [vmem:[%s0 + $0x148] sm:$0xff]
  %v56 = vld [vmem:[%s0 + $0x150] sm:$0xff]
  %v57 = vld [vmem:[%s0 + $0x158] sm:$0xff]
  %v58 = vld [vmem:[%s0 + $0x160] sm:$0xff]
  %v59 = vld [vmem:[%s0 + $0x168] sm:$0xff]
  %v60 = vld [vmem:[%s0 + $0x170] sm:$0xff]
  %v61 = vld [vmem:[%s0 + $0x178] sm:$0xff]
  %v62 = vld [vmem:[%s0 + $0x180] sm:$0xff]
  %v63 = vld [vmem:[%s0 + $0x188] sm:$0xff]
  %v64 = vld [vmem:[%s0 + $0x190] sm:$0xff]
  %v65 = vld [vmem:[%s0 + $0x198] sm:$0xff]
  %v66 = vld [vmem:[%s0 + $0x1a0] sm:$0xff]
  %v67 = vld [vmem:[%s0 + $0x1a8] sm:$0xff]
  %v68 = vld [vmem:[%s0 + $0x1b0] sm:$0xff]
  %v69 = vld [vmem:[%s0 + $0x1b8] sm:$0xff]
  %v70 = vld [vmem:[%s0 + $0x1c0] sm:$0xff]
  %v71 = vld [vmem:[%s0 + $0x1c8] sm:$0xff]
  %v72 = vld [vmem:[%s0 + $0x1d0] sm:$0xff]
  %v73 = vld [vmem:[%s0 + $0x1d8] sm:$0xff]
  %v74 = vld [vmem:[%s0 + $0x1e0] sm:$0xff]
  %v75 = vld [vmem:[%s0 + $0x1e8] sm:$0xff]
  %v76 = vld [vmem:[%s0 + $0x1f0] sm:$0xff]
  %v77 = vld [vmem:[%s0 + $0x1f8] sm:$0xff]
  %v78 = vld [vmem:[%s1] sm:$0x1]
  %v80 = vperm.slane %v78, 0
  %v82 = vmul.f32 %v14, %v80
  %v83 = vmul.f32 %v15, %v80
  %v84 = vmul.f32 %v16, %v80
  %v85 = vmul.f32 %v17, %v80
  %v86 = vmul.f32 %v18, %v80
  %v87 = vmul.f32 %v19, %v80
  %v88 = vmul.f32 %v20, %v80
  %v89 = vmul.f32 %v21, %v80
  %v90 = vmul.f32 %v22, %v80
  %v91 = vmul.f32 %v23, %v80
  %v92 = vmul.f32 %v24, %v80
  %v93 = vmul.f32 %v25, %v80
  %v94 = vmul.f32 %v26, %v80
  %v95 = vmul.f32 %v27, %v80
  %v96 = vmul.f32 %v28, %v80
  %v97 = vmul.f32 %v29, %v80
  %v98 = vmul.f32 %v30, %v80
  %v99 = vmul.f32 %v31, %v80
  %v100 = vmul.f32 %v32, %v80
  %v101 = vmul.f32 %v33, %v80
  %v102 = vmul.f32 %v34, %v80
  %v103 = vmul.f32 %v35, %v80
  %v104 = vmul.f32 %v36, %v80
  %v105 = vmul.f32 %v37, %v80
  %v106 = vmul.f32 %v38, %v80
  %v107 = vmul.f32 %v39, %v80
  %v108 = vmul.f32 %v40, %v80
  %v109 = vmul.f32 %v41, %v80
  %v110 = vmul.f32 %v42, %v80
  %v111 = vmul.f32 %v43, %v80
  %v112 = vmul.f32 %v44, %v80
  %v113 = vmul.f32 %v45, %v80
  %v114 = vmul.f32 %v46, %v80
  %v115 = vmul.f32 %v47, %v80
  %v116 = vmul.f32 %v48, %v80
  %v117 = vmul.f32 %v49, %v80
  %v118 = vmul.f32 %v50, %v80
  %v119 = vmul.f32 %v51, %v80
  %v120 = vmul.f32 %v52, %v80
  %v121 = vmul.f32 %v53, %v80
  %v122 = vmul.f32 %v54, %v80
  %v123 = vmul.f32 %v55, %v80
  %v124 = vmul.f32 %v56, %v80
  %v125 = vmul.f32 %v57, %v80
  %v126 = vmul.f32 %v58, %v80
  %v127 = vmul.f32 %v59, %v80
  %v128 = vmul.f32 %v60, %v80
  %v129 = vmul.f32 %v61, %v80
  %v130 = vmul.f32 %v62, %v80
  %v131 = vmul.f32 %v63, %v80
  %v132 = vmul.f32 %v64, %v80
  %v133 = vmul.f32 %v65, %v80
  %v134 = vmul.f32 %v66, %v80
  %v135 = vmul.f32 %v67, %v80
  %v136 = vmul.f32 %v68, %v80
  %v137 = vmul.f32 %v69, %v80
  %v138 = vmul.f32 %v70, %v80
  %v139 = vmul.f32 %v71, %v80
  %v140 = vmul.f32 %v72, %v80
  %v141 = vmul.f32 %v73, %v80
  %v142 = vmul.f32 %v74, %v80
  %v143 = vmul.f32 %v75, %v80
  %v144 = vmul.f32 %v76, %v80
  %v145 = vmul.f32 %v77, %v80
  %v146 = vld [vmem:[%s2] sm:$0x1]
  %v148 = vperm.slane %v146, 0
  %v150 = vadd.f32 %v82, %v148
  %v151 = vadd.f32 %v83, %v148
  %v152 = vadd.f32 %v84, %v148
  %v153 = vadd.f32 %v85, %v148
  %v154 = vadd.f32 %v86, %v148
  %v155 = vadd.f32 %v87, %v148
  %v156 = vadd.f32 %v88, %v148
  %v157 = vadd.f32 %v89, %v148
  %v158 = vadd.f32 %v90, %v148
  %v159 = vadd.f32 %v91, %v148
  %v160 = vadd.f32 %v92, %v148
  %v161 = vadd.f32 %v93, %v148
  %v162 = vadd.f32 %v94, %v148
  %v163 = vadd.f32 %v95, %v148
  %v164 = vadd.f32 %v96, %v148
  %v165 = vadd.f32 %v97, %v148
  %v166 = vadd.f32 %v98, %v148
  %v167 = vadd.f32 %v99, %v148
  %v168 = vadd.f32 %v100, %v148
  %v169 = vadd.f32 %v101, %v148
  %v170 = vadd.f32 %v102, %v148
  %v171 = vadd.f32 %v103, %v148
  %v172 = vadd.f32 %v104, %v148
  %v173 = vadd.f32 %v105, %v148
  %v174 = vadd.f32 %v106, %v148
  %v175 = vadd.f32 %v107, %v148
  %v176 = vadd.f32 %v108, %v148
  %v177 = vadd.f32 %v109, %v148
  %v178 = vadd.f32 %v110, %v148
  %v179 = vadd.f32 %v111, %v148
  %v180 = vadd.f32 %v112, %v148
  %v181 = vadd.f32 %v113, %v148
  %v182 = vadd.f32 %v114, %v148
  %v183 = vadd.f32 %v115, %v148
  %v184 = vadd.f32 %v116, %v148
  %v185 = vadd.f32 %v117, %v148
  %v186 = vadd.f32 %v118, %v148
  %v187 = vadd.f32 %v119, %v148
  %v188 = vadd.f32 %v120, %v148
  %v189 = vadd.f32 %v121, %v148
  %v190 = vadd.f32 %v122, %v148
  %v191 = vadd.f32 %v123, %v148
  %v192 = vadd.f32 %v124, %v148
  %v193 = vadd.f32 %v125, %v148
  %v194 = vadd.f32 %v126, %v148
  %v195 = vadd.f32 %v127, %v148
  %v196 = vadd.f32 %v128, %v148
  %v197 = vadd.f32 %v129, %v148
  %v198 = vadd.f32 %v130, %v148
  %v199 = vadd.f32 %v131, %v148
  %v200 = vadd.f32 %v132, %v148
  %v201 = vadd.f32 %v133, %v148
  %v202 = vadd.f32 %v134, %v148
  %v203 = vadd.f32 %v135, %v148
  %v204 = vadd.f32 %v136, %v148
  %v205 = vadd.f32 %v137, %v148
  %v206 = vadd.f32 %v138, %v148
  %v207 = vadd.f32 %v139, %v148
  %v208 = vadd.f32 %v140, %v148
  %v209 = vadd.f32 %v141, %v148
  %v210 = vadd.f32 %v142, %v148
  %v211 = vadd.f32 %v143, %v148
  %v212 = vadd.f32 %v144, %v148
  %v213 = vadd.f32 %v145, %v148
  %v214 = vmax.f32 %v150, 0.0
  %v215 = vmax.f32 %v151, 0.0
  %v216 = vmax.f32 %v152, 0.0
  %v217 = vmax.f32 %v153, 0.0
  %v218 = vmax.f32 %v154, 0.0
  %v219 = vmax.f32 %v155, 0.0
  %v220 = vmax.f32 %v156, 0.0
  %v221 = vmax.f32 %v157, 0.0
  %v222 = vmax.f32 %v158, 0.0
  %v223 = vmax.f32 %v159, 0.0
  %v224 = vmax.f32 %v160, 0.0
  %v225 = vmax.f32 %v161, 0.0
  %v226 = vmax.f32 %v162, 0.0
  %v227 = vmax.f32 %v163, 0.0
  %v228 = vmax.f32 %v164, 0.0
  %v229 = vmax.f32 %v165, 0.0
  %v230 = vmax.f32 %v166, 0.0
  %v231 = vmax.f32 %v167, 0.0
  %v232 = vmax.f32 %v168, 0.0
  %v233 = vmax.f32 %v169, 0.0
  %v234 = vmax.f32 %v170, 0.0
  %v235 = vmax.f32 %v171, 0.0
  %v236 = vmax.f32 %v172, 0.0
  %v237 = vmax.f32 %v173, 0.0
  %v238 = vmax.f32 %v174, 0.0
  %v239 = vmax.f32 %v175, 0.0
  %v240 = vmax.f32 %v176, 0.0
  %v241 = vmax.f32 %v177, 0.0
  %v242 = vmax.f32 %v178, 0.0
  %v243 = vmax.f32 %v179, 0.0
  %v244 = vmax.f32 %v180, 0.0
  %v245 = vmax.f32 %v181, 0.0
  %v246 = vmax.f32 %v182, 0.0
  %v247 = vmax.f32 %v183, 0.0
  %v248 = vmax.f32 %v184, 0.0
  %v249 = vmax.f32 %v185, 0.0
  %v250 = vmax.f32 %v186, 0.0
  %v251 = vmax.f32 %v187, 0.0
  %v252 = vmax.f32 %v188, 0.0
  %v253 = vmax.f32 %v189, 0.0
  %v254 = vmax.f32 %v190, 0.0
  %v255 = vmax.f32 %v191, 0.0
  %v256 = vmax.f32 %v192, 0.0
  %v257 = vmax.f32 %v193, 0.0
  %v258 = vmax.f32 %v194, 0.0
  %v259 = vmax.f32 %v195, 0.0
  %v260 = vmax.f32 %v196, 0.0
  %v261 = vmax.f32 %v197, 0.0
  %v262 = vmax.f32 %v198, 0.0
  %v263 = vmax.f32 %v199, 0.0
  %v264 = vmax.f32 %v200, 0.0
  %v265 = vmax.f32 %v201, 0.0
  %v266 = vmax.f32 %v202, 0.0
  %v267 = vmax.f32 %v203, 0.0
  %v268 = vmax.f32 %v204, 0.0
  %v269 = vmax.f32 %v205, 0.0
  %v270 = vmax.f32 %v206, 0.0
  %v271 = vmax.f32 %v207, 0.0
  %v272 = vmax.f32 %v208, 0.0
  %v273 = vmax.f32 %v209, 0.0
  %v274 = vmax.f32 %v210, 0.0
  %v275 = vmax.f32 %v211, 0.0
  %v276 = vmax.f32 %v212, 0.0
  %v277 = vmax.f32 %v213, 0.0
  %v278 = vpack.c.bf16 %v214, %v214
  %v279 = vpack.c.bf16 %v215, %v215
  %v280 = vpack.c.bf16 %v216, %v216
  %v281 = vpack.c.bf16 %v217, %v217
  %v282 = vpack.c.bf16 %v218, %v218
  %v283 = vpack.c.bf16 %v219, %v219
  %v284 = vpack.c.bf16 %v220, %v220
  %v285 = vpack.c.bf16 %v221, %v221
  %v286 = vpack.c.bf16 %v222, %v222
  %v287 = vpack.c.bf16 %v223, %v223
  %v288 = vpack.c.bf16 %v224, %v224
  %v289 = vpack.c.bf16 %v225, %v225
  %v290 = vpack.c.bf16 %v226, %v226
  %v291 = vpack.c.bf16 %v227, %v227
  %v292 = vpack.c.bf16 %v228, %v228
  %v293 = vpack.c.bf16 %v229, %v229
  %v294 = vpack.c.bf16 %v230, %v230
  %v295 = vpack.c.bf16 %v231, %v231
  %v296 = vpack.c.bf16 %v232, %v232
  %v297 = vpack.c.bf16 %v233, %v233
  %v298 = vpack.c.bf16 %v234, %v234
  %v299 = vpack.c.bf16 %v235, %v235
  %v300 = vpack.c.bf16 %v236, %v236
  %v301 = vpack.c.bf16 %v237, %v237
  %v302 = vpack.c.bf16 %v238, %v238
  %v303 = vpack.c.bf16 %v239, %v239
  %v304 = vpack.c.bf16 %v240, %v240
  %v305 = vpack.c.bf16 %v241, %v241
  %v306 = vpack.c.bf16 %v242, %v242
  %v307 = vpack.c.bf16 %v243, %v243
  %v308 = vpack.c.bf16 %v244, %v244
  %v309 = vpack.c.bf16 %v245, %v245
  %v310 = vpack.c.bf16 %v246, %v246
  %v311 = vpack.c.bf16 %v247, %v247
  %v312 = vpack.c.bf16 %v248, %v248
  %v313 = vpack.c.bf16 %v249, %v249
  %v314 = vpack.c.bf16 %v250, %v250
  %v315 = vpack.c.bf16 %v251, %v251
  %v316 = vpack.c.bf16 %v252, %v252
  %v317 = vpack.c.bf16 %v253, %v253
  %v318 = vpack.c.bf16 %v254, %v254
  %v319 = vpack.c.bf16 %v255, %v255
  %v320 = vpack.c.bf16 %v256, %v256
  %v321 = vpack.c.bf16 %v257, %v257
  %v322 = vpack.c.bf16 %v258, %v258
  %v323 = vpack.c.bf16 %v259, %v259
  %v324 = vpack.c.bf16 %v260, %v260
  %v325 = vpack.c.bf16 %v261, %v261
  %v326 = vpack.c.bf16 %v262, %v262
  %v327 = vpack.c.bf16 %v263, %v263
  %v328 = vpack.c.bf16 %v264, %v264
  %v329 = vpack.c.bf16 %v265, %v265
  %v330 = vpack.c.bf16 %v266, %v266
  %v331 = vpack.c.bf16 %v267, %v267
  %v332 = vpack.c.bf16 %v268, %v268
  %v333 = vpack.c.bf16 %v269, %v269
  %v334 = vpack.c.bf16 %v270, %v270
  %v335 = vpack.c.bf16 %v271, %v271
  %v336 = vpack.c.bf16 %v272, %v272
  %v337 = vpack.c.bf16 %v273, %v273
  %v338 = vpack.c.bf16 %v274, %v274
  %v339 = vpack.c.bf16 %v275, %v275
  %v340 = vpack.c.bf16 %v276, %v276
  %v341 = vpack.c.bf16 %v277, %v277
  %342 = vst [vmem:[%s3] sm:$0xf] %v278
  %343 = vst [vmem:[%s3 + $0x4] sm:$0xf] %v279
  %344 = vst [vmem:[%s3 + $0x8] sm:$0xf] %v280
  %345 = vst [vmem:[%s3 + $0xc] sm:$0xf] %v281
  %346 = vst [vmem:[%s3 + $0x10] sm:$0xf] %v282
  %347 = vst [vmem:[%s3 + $0x14] sm:$0xf] %v283
  %348 = vst [vmem:[%s3 + $0x18] sm:$0xf] %v284
  %349 = vst [vmem:[%s3 + $0x1c] sm:$0xf] %v285
  %350 = vst [vmem:[%s3 + $0x20] sm:$0xf] %v286
  %351 = vst [vmem:[%s3 + $0x24] sm:$0xf] %v287
  %352 = vst [vmem:[%s3 + $0x28] sm:$0xf] %v288
  %353 = vst [vmem:[%s3 + $0x2c] sm:$0xf] %v289
  %354 = vst [vmem:[%s3 + $0x30] sm:$0xf] %v290
  %355 = vst [vmem:[%s3 + $0x34] sm:$0xf] %v291
  %356 = vst [vmem:[%s3 + $0x38] sm:$0xf] %v292
  %357 = vst [vmem:[%s3 + $0x3c] sm:$0xf] %v293
  %358 = vst [vmem:[%s3 + $0x40] sm:$0xf] %v294
  %359 = vst [vmem:[%s3 + $0x44] sm:$0xf] %v295
  %360 = vst [vmem:[%s3 + $0x48] sm:$0xf] %v296
  %361 = vst [vmem:[%s3 + $0x4c] sm:$0xf] %v297
  %362 = vst [vmem:[%s3 + $0x50] sm:$0xf] %v298
  %363 = vst [vmem:[%s3 + $0x54] sm:$0xf] %v299
  %364 = vst [vmem:[%s3 + $0x58] sm:$0xf] %v300
  %365 = vst [vmem:[%s3 + $0x5c] sm:$0xf] %v301
  %366 = vst [vmem:[%s3 + $0x60] sm:$0xf] %v302
  %367 = vst [vmem:[%s3 + $0x64] sm:$0xf] %v303
  %368 = vst [vmem:[%s3 + $0x68] sm:$0xf] %v304
  %369 = vst [vmem:[%s3 + $0x6c] sm:$0xf] %v305
  %370 = vst [vmem:[%s3 + $0x70] sm:$0xf] %v306
  %371 = vst [vmem:[%s3 + $0x74] sm:$0xf] %v307
  %372 = vst [vmem:[%s3 + $0x78] sm:$0xf] %v308
  %373 = vst [vmem:[%s3 + $0x7c] sm:$0xf] %v309
  %374 = vst [vmem:[%s3 + $0x80] sm:$0xf] %v310
  %375 = vst [vmem:[%s3 + $0x84] sm:$0xf] %v311
  %376 = vst [vmem:[%s3 + $0x88] sm:$0xf] %v312
  %377 = vst [vmem:[%s3 + $0x8c] sm:$0xf] %v313
  %378 = vst [vmem:[%s3 + $0x90] sm:$0xf] %v314
  %379 = vst [vmem:[%s3 + $0x94] sm:$0xf] %v315
  %380 = vst [vmem:[%s3 + $0x98] sm:$0xf] %v316
  %381 = vst [vmem:[%s3 + $0x9c] sm:$0xf] %v317
  %382 = vst [vmem:[%s3 + $0xa0] sm:$0xf] %v318
  %383 = vst [vmem:[%s3 + $0xa4] sm:$0xf] %v319
  %384 = vst [vmem:[%s3 + $0xa8] sm:$0xf] %v320
  %385 = vst [vmem:[%s3 + $0xac] sm:$0xf] %v321
  %386 = vst [vmem:[%s3 + $0xb0] sm:$0xf] %v322
  %387 = vst [vmem:[%s3 + $0xb4] sm:$0xf] %v323
  %388 = vst [vmem:[%s3 + $0xb8] sm:$0xf] %v324
  %389 = vst [vmem:[%s3 + $0xbc] sm:$0xf] %v325
  %390 = vst [vmem:[%s3 + $0xc0] sm:$0xf] %v326
  %391 = vst [vmem:[%s3 + $0xc4] sm:$0xf] %v327
  %392 = vst [vmem:[%s3 + $0xc8] sm:$0xf] %v328
  %393 = vst [vmem:[%s3 + $0xcc] sm:$0xf] %v329
  %394 = vst [vmem:[%s3 + $0xd0] sm:$0xf] %v330
  %395 = vst [vmem:[%s3 + $0xd4] sm:$0xf] %v331
  %396 = vst [vmem:[%s3 + $0xd8] sm:$0xf] %v332
  %397 = vst [vmem:[%s3 + $0xdc] sm:$0xf] %v333
  %398 = vst [vmem:[%s3 + $0xe0] sm:$0xf] %v334
  %399 = vst [vmem:[%s3 + $0xe4] sm:$0xf] %v335
  %400 = vst [vmem:[%s3 + $0xe8] sm:$0xf] %v336
  %401 = vst [vmem:[%s3 + $0xec] sm:$0xf] %v337
  %402 = vst [vmem:[%s3 + $0xf0] sm:$0xf] %v338
  %403 = vst [vmem:[%s3 + $0xf4] sm:$0xf] %v339
  %404 = vst [vmem:[%s3 + $0xf8] sm:$0xf] %v340
  %405 = vst [vmem:[%s3 + $0xfc] sm:$0xf] %v341
  // Predicated region
  $region14: #{generator_forward.14} parent=0 // pred_check
    _
  $region15: #{generator_forward.14} parent=0 // pred_check_branch
    %407 = sbr.rel (0) target = $region17
  $region16: #{generator_forward.14} parent=0 // pred_region
    _
  $region17: #{generator_forward.14} parent=0 // pred_fallthru
    _
  // Predicated region
  $region18: #{generator_forward.14} parent=0 // pred_check
    _
  $region19: #{generator_forward.14} parent=0 // pred_check_branch
    %409 = sbr.rel (0) target = $region21
  $region20: #{generator_forward.14} parent=0 // pred_region
    _
  $region21: #{generator_forward.14} parent=0 // pred_fallthru
    _

// kernel: generator_forward.13
$region0: #{generator_forward.13}
  #allocation0 [shape = 'u32[]', space=smem, size = 0x4, offset = 0x4, fixed_abs, tag = 'smem constant byte address 0x4 - core index']
  #allocation1 [shape = 'u32[72,128]{1,0:T(1,128)}', space=vmem, size = 0x9000, scoped, tag = 'internal scratch']
  %s0 = inlined_call_operand.vmem [shape: bf16[4,128,1024], index: 0, kind: input, shape index: {}]
  %s1 = inlined_call_operand.vmem [shape: bf16[4,1024,128], index: 1, kind: input, shape index: {}]
  %s2 = inlined_call_operand.vmem [shape: f32[4,128,128], index: 2, kind: output, shape index: {0}]
  %s3 = inlined_call_operand.vmem [shape: f32[4,1,2,128], index: 3, kind: output, shape index: {1}]
  %4 = xla_tuple %s2, %s3
  %s5 = sld [smem:[#allocation0]]
  $region49: #{generator_forward.13} parent=0
    _
  %s7 = ssub.s32 1, %s5
  %s8 = scalar_select 0, %s7, %s5
  loop: start=0, step=1, limit=6
  $region2: #{generator_forward.13} parent=0 // loop_pre_header
    _
  $region3: #{generator_forward.13} parent=0 // loop_header
    %s10 = sphi 0, %s14
    %p11 = scmp.ge.s32.totalorder %s10, 6
    %s17 = sphi 0, %s29
    %s18 = sphi 0, %s25
    %s19 = sphi 0, %s17
    %s20 = sphi 0, %s18
    %s21 = sphi 0, %s19
    %s22 = sphi 0, %s20
    %s34 = sphi 0, %s36
    %s37 = sphi 0, %s34
    %s38 = sphi 0, %s37
    %s54 = sphi 0, %s38
    %s60 = sphi 0, %s62
    %s63 = sphi 0, %s60
    %s64 = sphi 0, %s63
    %s80 = sphi 0, %s64
    %s88 = sphi 0, %s90
    %s91 = sphi 0, %s88
    %s92 = sphi 0, %s91
    %s108 = sphi 0, %s92
    %s116 = sphi 0, %s118
    %s119 = sphi 0, %s116
    %s120 = sphi 0, %s119
    %s136 = sphi 0, %s120
  $region4: #{generator_forward.13} parent=0 // loop_header_branch
    %13 = sbr.rel (%p11) target = $region8
  $region5: #{generator_forward.13} parent=0 // loop_body
    %s15 = ssub.s32 %s10, 1
    %s16 = ssub.s32 %s10, 2
    %s23 = sadd.s32 1, %s18
    %p24 = scmp.ge.s32.totalorder %s23, 1
    %s25 = scalar_select %p24, 0, %s23
    %s26 = sadd.s32 1, %s17
    %s27 = scalar_select %p24, %s26, %s17
    %p28 = scmp.ge.s32.totalorder %s27, 4
    %s29 = scalar_select %p28, 0, %s27
    %s30 = ssub.s32 %s17, %s29
    %s31 = ssub.s32 %s18, %s25
    %s32 = sor.u32 %s30, %s31
    %p33 = scmp.eq.s32.totalorder %s32, 0
    %s35 = sadd.s32 %s34, 1
    %s36 = scalar_select %p33, %s34, %s35
    %p39 = pneg %p33
    %p40 = scmp.eq.s32.totalorder %s10, 3
    %p41 = por %p39, %p40
    %p42 = scmp.ne.s32.totalorder %s34, %s37
    %p43 = scmp.eq.s32.totalorder %s10, 0
    %p44 = por %p42, %p43
    %p45 = scmp.ne.s32.totalorder %s34, %s37
    %p46 = scmp.eq.s32.totalorder %s15, 3
    %p47 = por %p45, %p46
    %p48 = scmp.ne.s32.totalorder %s37, %s38
    %p49 = scmp.eq.s32.totalorder %s15, 0
    %p50 = por %p48, %p49
    %p51 = scmp.ne.s32.totalorder %s37, %s38
    %p52 = scmp.eq.s32.totalorder %s16, 3
    %p53 = por %p51, %p52
    %p55 = scmp.ne.s32.totalorder %s38, %s54
    %p56 = scmp.eq.s32.totalorder %s16, 0
    %p57 = por %p55, %p56
    %s58 = ssub.s32 %s17, %s29
    %p59 = scmp.eq.s32.totalorder %s58, 0
    %s61 = sadd.s32 %s60, 1
    %s62 = scalar_select %p59, %s60, %s61
    %p65 = pneg %p59
    %p66 = scmp.eq.s32.totalorder %s10, 3
    %p67 = por %p65, %p66
    %p68 = scmp.ne.s32.totalorder %s60, %s63
    %p69 = scmp.eq.s32.totalorder %s10, 0
    %p70 = por %p68, %p69
    %p71 = scmp.ne.s32.totalorder %s60, %s63
    %p72 = scmp.eq.s32.totalorder %s15, 3
    %p73 = por %p71, %p72
    %p74 = scmp.ne.s32.totalorder %s63, %s64
    %p75 = scmp.eq.s32.totalorder %s15, 0
    %p76 = por %p74, %p75
    %p77 = scmp.ne.s32.totalorder %s63, %s64
    %p78 = scmp.eq.s32.totalorder %s16, 3
    %p79 = por %p77, %p78
    %p81 = scmp.ne.s32.totalorder %s64, %s80
    %p82 = scmp.eq.s32.totalorder %s16, 0
    %p83 = por %p81, %p82
    %s84 = ssub.s32 %s17, %s29
    %s85 = ssub.s32 %s18, %s25
    %s86 = sor.u32 %s84, %s85
    %p87 = scmp.eq.s32.totalorder %s86, 0
    %s89 = sadd.s32 %s88, 1
    %s90 = scalar_select %p87, %s88, %s89
    %p93 = pneg %p87
    %p94 = scmp.eq.s32.totalorder %s10, 3
    %p95 = por %p93, %p94
    %p96 = scmp.ne.s32.totalorder %s88, %s91
    %p97 = scmp.eq.s32.totalorder %s10, 0
    %p98 = por %p96, %p97
    %p99 = scmp.ne.s32.totalorder %s88, %s91
    %p100 = scmp.eq.s32.totalorder %s15, 3
    %p101 = por %p99, %p100
    %p102 = scmp.ne.s32.totalorder %s91, %s92
    %p103 = scmp.eq.s32.totalorder %s15, 0
    %p104 = por %p102, %p103
    %p105 = scmp.ne.s32.totalorder %s91, %s92
    %p106 = scmp.eq.s32.totalorder %s16, 3
    %p107 = por %p105, %p106
    %p109 = scmp.ne.s32.totalorder %s92, %s108
    %p110 = scmp.eq.s32.totalorder %s16, 0
    %p111 = por %p109, %p110
    %s112 = ssub.s32 %s17, %s29
    %s113 = ssub.s32 %s18, %s25
    %s114 = sor.u32 %s112, %s113
    %p115 = scmp.eq.s32.totalorder %s114, 0
    %s117 = sadd.s32 %s116, 1
    %s118 = scalar_select %p115, %s116, %s117
    %p121 = pneg %p115
    %p122 = scmp.eq.s32.totalorder %s10, 3
    %p123 = por %p121, %p122
    %p124 = scmp.ne.s32.totalorder %s116, %s119
    %p125 = scmp.eq.s32.totalorder %s10, 0
    %p126 = por %p124, %p125
    %p127 = scmp.ne.s32.totalorder %s116, %s119
    %p128 = scmp.eq.s32.totalorder %s15, 3
    %p129 = por %p127, %p128
    %p130 = scmp.ne.s32.totalorder %s119, %s120
    %p131 = scmp.eq.s32.totalorder %s15, 0
    %p132 = por %p130, %p131
    %p133 = scmp.ne.s32.totalorder %s119, %s120
    %p134 = scmp.eq.s32.totalorder %s16, 3
    %p135 = por %p133, %p134
    %p137 = scmp.ne.s32.totalorder %s120, %s136
    %p138 = scmp.eq.s32.totalorder %s16, 0
    %p139 = por %p137, %p138
    %p140 = scmp.le.s32.totalorder 1, %s10
    %p141 = scmp.lt.s32.totalorder %s10, 5
    %p142 = pnand %p140, %p141
    %p143 = pneg %p142
    // Predicated region
    $region9: #{generator_forward.13} parent=5 // pred_check
      _
    $region10: #{generator_forward.13} parent=5 // pred_check_branch
      %145 = sbr.rel (%p142) target = $region12
    $region11: #{generator_forward.13} parent=5 // pred_region
      %s146 = ssub.s32 %s10, 1
    $region12: #{generator_forward.13} parent=5 // pred_fallthru
      _
    %p147 = scmp.lt.s32.totalorder %s10, 4
    // Predicated region
    $region13: #{generator_forward.13} parent=5 // pred_check
      %p148 = pneg %p147
    $region14: #{generator_forward.13} parent=5 // pred_check_branch
      %150 = sbr.rel (%p148) target = $region16
    $region15: #{generator_forward.13} parent=5 // pred_region
      // Predicated region
      $region17: #{generator_forward.13} parent=15 // pred_check
        %p151 = pneg %p44
      $region18: #{generator_forward.13} parent=15 // pred_check_branch
        %153 = sbr.rel (%p151) target = $region20
      $region19: #{generator_forward.13} parent=15 // pred_region
        %s154 = smul.u32 16, %s18
        %p155 = scmp.lt.s32.totalorder %s17, 3
        %s156 = scalar_select %p155, %s17, 3
        %p157 = scmp.lt.s32.totalorder %s154, 15
        %s158 = scalar_select %p157, %s154, 15
        %s159 = smul.addr %s158, 8
        %s160 = smul.addr %s156, 128
        %s161 = sadd.s32 %s159, %s160
        %s162 = smul.addr %s161, 4
        %s163 = scalar_lea.vmem %s0, %s162
        %s164 = smul.u32 16, %s18
      $region20: #{generator_forward.13} parent=15 // pred_fallthru
        _
      // Predicated region
      $region21: #{generator_forward.13} parent=15 // pred_check
        %p165 = pneg %p70
      $region22: #{generator_forward.13} parent=15 // pred_check_branch
        %167 = sbr.rel (%p165) target = $region24
      $region23: #{generator_forward.13} parent=15 // pred_region
        %p168 = scmp.lt.s32.totalorder %s17, 3
        %s169 = scalar_select %p168, %s17, 3
        %s170 = smul.addr %s169, 128
        %s171 = smul.addr %s170, 4
        %s172 = scalar_lea.vmem %s1, %s171
      $region24: #{generator_forward.13} parent=15 // pred_fallthru
        _
    $region16: #{generator_forward.13} parent=5 // pred_fallthru
      _
    %p173 = scmp.le.s32.totalorder 1, %s10
    %p174 = scmp.lt.s32.totalorder %s10, 5
    %p175 = pnand %p173, %p174
    %p176 = pneg %p175
    // Predicated region
    $region25: #{generator_forward.13} parent=5 // pred_check
      _
    $region26: #{generator_forward.13} parent=5 // pred_check_branch
      %178 = sbr.rel (%p175) target = $region28
    $region27: #{generator_forward.13} parent=5 // pred_region
      %s179 = ssub.s32 %s10, 1
      %s180 = smul.u32 16, %s20
      %p181 = scmp.lt.s32.totalorder %s19, 3
      %s182 = scalar_select %p181, %s19, 3
      %p183 = scmp.lt.s32.totalorder %s180, 15
      %s184 = scalar_select %p183, %s180, 15
      %s185 = smul.addr %s184, 8
      %s186 = smul.addr %s182, 128
      %s187 = sadd.s32 %s185, %s186
      %s188 = smul.addr %s187, 4
      %s189 = scalar_lea.vmem %s0, %s188
      %p190 = pneg %p50
      %p191 = pneg %p47
      %p192 = scmp.lt.s32.totalorder %s19, 3
      %s193 = scalar_select %p192, %s19, 3
      %s194 = smul.addr %s193, 128
      %s195 = smul.addr %s194, 4
      %s196 = scalar_lea.vmem %s1, %s195
      %p197 = pneg %p76
      %p198 = pneg %p73
      %p199 = pneg %p104
      %p200 = pneg %p101
      %s201 = smul.u32 16, %s20
      %p202 = scmp.lt.s32.totalorder %s19, 3
      %s203 = scalar_select %p202, %s19, 3
      %p204 = scmp.lt.s32.totalorder %s201, 15
      %s205 = scalar_select %p204, %s201, 15
      %s206 = smul.addr %s203, 16
      %s207 = sadd.s32 %s205, %s206
      %s208 = smul.addr %s207, 8
      %s209 = scalar_lea.vmem %s2, %s208
      %p210 = pneg %p132
      %p211 = pneg %p129
      %p212 = scmp.lt.s32.totalorder %s19, 3
      %s213 = scalar_select %p212, %s19, 3
      %p214 = scmp.lt.s32.totalorder %s20, 0
      %s215 = scalar_select %p214, %s20, 0
      %s216 = sadd.s32 %s215, %s213
      %s217 = smul.addr %s216, 2
      %s218 = scalar_lea.vmem %s3, %s217
      %s219 = smul.u32 16, %s20
      %p220 = scmp.lt.s32.totalorder %s19, 3
      %s221 = scalar_select %p220, %s19, 3
      %p222 = scmp.lt.s32.totalorder %s219, 15
      %s223 = scalar_select %p222, %s219, 15
      %s224 = smul.addr %s223, 8
      %s225 = smul.addr %s221, 128
      %s226 = sadd.s32 %s224, %s225
      %s227 = smul.addr %s226, 4
      %s228 = scalar_lea.vmem %s0, %s227
      %s229 = smul.u32 16, %s20
      %p230 = scmp.lt.s32.totalorder %s19, 3
      %s231 = scalar_select %p230, %s19, 3
      %s232 = smul.addr %s231, 128
      %s233 = smul.addr %s232, 4
      %s234 = scalar_lea.vmem %s1, %s233
      %s235 = smul.u32 16, %s20
      %p236 = scmp.lt.s32.totalorder %s19, 3
      %s237 = scalar_select %p236, %s19, 3
      %p238 = scmp.lt.s32.totalorder %s235, 15
      %s239 = scalar_select %p238, %s235, 15
      %s240 = smul.addr %s237, 16
      %s241 = sadd.s32 %s239, %s240
      %s242 = smul.addr %s241, 8
      %s243 = scalar_lea.vmem %s2, %s242
      %s244 = smul.u32 16, %s20
      %p245 = scmp.lt.s32.totalorder %s19, 3
      %s246 = scalar_select %p245, %s19, 3
      %p247 = scmp.lt.s32.totalorder %s20, 0
      %s248 = scalar_select %p247, %s20, 0
      %s249 = sadd.s32 %s248, %s246
      %s250 = smul.addr %s249, 2
      %s251 = scalar_lea.vmem %s3, %s250
      %v252 = vld [vmem:[%s228] sm:$0xff]
      %v253 = vld [vmem:[%s228 + $0x8] sm:$0xff]
      %v254 = vld [vmem:[%s228 + $0x10] sm:$0xff]
      %v255 = vld [vmem:[%s228 + $0x18] sm:$0xff]
      %v256 = vld [vmem:[%s228 + $0x20] sm:$0xff]
      %v257 = vld [vmem:[%s228 + $0x28] sm:$0xff]
      %v258 = vld [vmem:[%s228 + $0x30] sm:$0xff]
      %v259 = vld [vmem:[%s228 + $0x38] sm:$0xff]
      %v260 = vld [vmem:[%s228 + $0x40] sm:$0xff]
      %v261 = vld [vmem:[%s228 + $0x48] sm:$0xff]
      %v262 = vld [vmem:[%s228 + $0x50] sm:$0xff]
      %v263 = vld [vmem:[%s228 + $0x58] sm:$0xff]
      %v264 = vld [vmem:[%s228 + $0x60] sm:$0xff]
      %v265 = vld [vmem:[%s228 + $0x68] sm:$0xff]
      %v266 = vld [vmem:[%s228 + $0x70] sm:$0xff]
      %v267 = vld [vmem:[%s228 + $0x78] sm:$0xff]
      %v268 = vld [vmem:[%s228 + $0x80] sm:$0xff]
      %v269 = vld [vmem:[%s228 + $0x88] sm:$0xff]
      %v270 = vld [vmem:[%s228 + $0x90] sm:$0xff]
      %v271 = vld [vmem:[%s228 + $0x98] sm:$0xff]
      %v272 = vld [vmem:[%s228 + $0xa0] sm:$0xff]
      %v273 = vld [vmem:[%s228 + $0xa8] sm:$0xff]
      %v274 = vld [vmem:[%s228 + $0xb0] sm:$0xff]
      %v275 = vld [vmem:[%s228 + $0xb8] sm:$0xff]
      %v276 = vld [vmem:[%s228 + $0xc0] sm:$0xff]
      %v277 = vld [vmem:[%s228 + $0xc8] sm:$0xff]
      %v278 = vld [vmem:[%s228 + $0xd0] sm:$0xff]
      %v279 = vld [vmem:[%s228 + $0xd8] sm:$0xff]
      %v280 = vld [vmem:[%s228 + $0xe0] sm:$0xff]
      %v281 = vld [vmem:[%s228 + $0xe8] sm:$0xff]
      %v282 = vld [vmem:[%s228 + $0xf0] sm:$0xff]
      %v283 = vld [vmem:[%s228 + $0xf8] sm:$0xff]
      %v284 = vld [vmem:[%s228 + $0x100] sm:$0xff]
      %v285 = vld [vmem:[%s228 + $0x108] sm:$0xff]
      %v286 = vld [vmem:[%s228 + $0x110] sm:$0xff]
      %v287 = vld [vmem:[%s228 + $0x118] sm:$0xff]
      %v288 = vld [vmem:[%s228 + $0x120] sm:$0xff]
      %v289 = vld [vmem:[%s228 + $0x128] sm:$0xff]
      %v290 = vld [vmem:[%s228 + $0x130] sm:$0xff]
      %v291 = vld [vmem:[%s228 + $0x138] sm:$0xff]
      %v292 = vld [vmem:[%s228 + $0x140] sm:$0xff]
      %v293 = vld [vmem:[%s228 + $0x148] sm:$0xff]
      %v294 = vld [vmem:[%s228 + $0x150] sm:$0xff]
      %v295 = vld [vmem:[%s228 + $0x158] sm:$0xff]
      %v296 = vld [vmem:[%s228 + $0x160] sm:$0xff]
      %v297 = vld [vmem:[%s228 + $0x168] sm:$0xff]
      %v298 = vld [vmem:[%s228 + $0x170] sm:$0xff]
      %v299 = vld [vmem:[%s228 + $0x178] sm:$0xff]
      %v300 = vld [vmem:[%s228 + $0x180] sm:$0xff]
      %v301 = vld [vmem:[%s228 + $0x188] sm:$0xff]
      %v302 = vld [vmem:[%s228 + $0x190] sm:$0xff]
      %v303 = vld [vmem:[%s228 + $0x198] sm:$0xff]
      %v304 = vld [vmem:[%s228 + $0x1a0] sm:$0xff]
      %v305 = vld [vmem:[%s228 + $0x1a8] sm:$0xff]
      %v306 = vld [vmem:[%s228 + $0x1b0] sm:$0xff]
      %v307 = vld [vmem:[%s228 + $0x1b8] sm:$0xff]
      %v308 = vld [vmem:[%s228 + $0x1c0] sm:$0xff]
      %v309 = vld [vmem:[%s228 + $0x1c8] sm:$0xff]
      %v310 = vld [vmem:[%s228 + $0x1d0] sm:$0xff]
      %v311 = vld [vmem:[%s228 + $0x1d8] sm:$0xff]
      %v312 = vld [vmem:[%s228 + $0x1e0] sm:$0xff]
      %v313 = vld [vmem:[%s228 + $0x1e8] sm:$0xff]
      %v314 = vld [vmem:[%s228 + $0x1f0] sm:$0xff]
      %v315 = vld [vmem:[%s228 + $0x1f8] sm:$0xff]
      %v316 = vld [vmem:[%s234] sm:$0xf]
      %v317 = vld [vmem:[%s234 + $0x4] sm:$0xf]
      %v318 = vld [vmem:[%s234 + $0x8] sm:$0xf]
      %v319 = vld [vmem:[%s234 + $0xc] sm:$0xf]
      %v320 = vld [vmem:[%s234 + $0x10] sm:$0xf]
      %v321 = vld [vmem:[%s234 + $0x14] sm:$0xf]
      %v322 = vld [vmem:[%s234 + $0x18] sm:$0xf]
      %v323 = vld [vmem:[%s234 + $0x1c] sm:$0xf]
      %v324 = vld [vmem:[%s234 + $0x20] sm:$0xf]
      %v325 = vld [vmem:[%s234 + $0x24] sm:$0xf]
      %v326 = vld [vmem:[%s234 + $0x28] sm:$0xf]
      %v327 = vld [vmem:[%s234 + $0x2c] sm:$0xf]
      %v328 = vld [vmem:[%s234 + $0x30] sm:$0xf]
      %v329 = vld [vmem:[%s234 + $0x34] sm:$0xf]
      %v330 = vld [vmem:[%s234 + $0x38] sm:$0xf]
      %v331 = vld [vmem:[%s234 + $0x3c] sm:$0xf]
      %v332 = vld [vmem:[%s234 + $0x40] sm:$0xf]
      %v333 = vld [vmem:[%s234 + $0x44] sm:$0xf]
      %v334 = vld [vmem:[%s234 + $0x48] sm:$0xf]
      %v335 = vld [vmem:[%s234 + $0x4c] sm:$0xf]
      %v336 = vld [vmem:[%s234 + $0x50] sm:$0xf]
      %v337 = vld [vmem:[%s234 + $0x54] sm:$0xf]
      %v338 = vld [vmem:[%s234 + $0x58] sm:$0xf]
      %v339 = vld [vmem:[%s234 + $0x5c] sm:$0xf]
      %v340 = vld [vmem:[%s234 + $0x60] sm:$0xf]
      %v341 = vld [vmem:[%s234 + $0x64] sm:$0xf]
      %v342 = vld [vmem:[%s234 + $0x68] sm:$0xf]
      %v343 = vld [vmem:[%s234 + $0x6c] sm:$0xf]
      %v344 = vld [vmem:[%s234 + $0x70] sm:$0xf]
      %v345 = vld [vmem:[%s234 + $0x74] sm:$0xf]
      %v346 = vld [vmem:[%s234 + $0x78] sm:$0xf]
      %v347 = vld [vmem:[%s234 + $0x7c] sm:$0xf]
      %v348 = vld [vmem:[%s234 + $0x80] sm:$0xf]
      %v349 = vld [vmem:[%s234 + $0x84] sm:$0xf]
      %v350 = vld [vmem:[%s234 + $0x88] sm:$0xf]
      %v351 = vld [vmem:[%s234 + $0x8c] sm:$0xf]
      %v352 = vld [vmem:[%s234 + $0x90] sm:$0xf]
      %v353 = vld [vmem:[%s234 + $0x94] sm:$0xf]
      %v354 = vld [vmem:[%s234 + $0x98] sm:$0xf]
      %v355 = vld [vmem:[%s234 + $0x9c] sm:$0xf]
      %v356 = vld [vmem:[%s234 + $0xa0] sm:$0xf]
      %v357 = vld [vmem:[%s234 + $0xa4] sm:$0xf]
      %v358 = vld [vmem:[%s234 + $0xa8] sm:$0xf]
      %v359 = vld [vmem:[%s234 + $0xac] sm:$0xf]
      %v360 = vld [vmem:[%s234 + $0xb0] sm:$0xf]
      %v361 = vld [vmem:[%s234 + $0xb4] sm:$0xf]
      %v362 = vld [vmem:[%s234 + $0xb8] sm:$0xf]
      %v363 = vld [vmem:[%s234 + $0xbc] sm:$0xf]
      %v364 = vld [vmem:[%s234 + $0xc0] sm:$0xf]
      %v365 = vld [vmem:[%s234 + $0xc4] sm:$0xf]
      %v366 = vld [vmem:[%s234 + $0xc8] sm:$0xf]
      %v367 = vld [vmem:[%s234 + $0xcc] sm:$0xf]
      %v368 = vld [vmem:[%s234 + $0xd0] sm:$0xf]
      %v369 = vld [vmem:[%s234 + $0xd4] sm:$0xf]
      %v370 = vld [vmem:[%s234 + $0xd8] sm:$0xf]
      %v371 = vld [vmem:[%s234 + $0xdc] sm:$0xf]
      %v372 = vld [vmem:[%s234 + $0xe0] sm:$0xf]
      %v373 = vld [vmem:[%s234 + $0xe4] sm:$0xf]
      %v374 = vld [vmem:[%s234 + $0xe8] sm:$0xf]
      %v375 = vld [vmem:[%s234 + $0xec] sm:$0xf]
      %v376 = vld [vmem:[%s234 + $0xf0] sm:$0xf]
      %v377 = vld [vmem:[%s234 + $0xf4] sm:$0xf]
      %v378 = vld [vmem:[%s234 + $0xf8] sm:$0xf]
      %v379 = vld [vmem:[%s234 + $0xfc] sm:$0xf]
      %v380 = vld [vmem:[%s234 + $0x100] sm:$0xf]
      %v381 = vld [vmem:[%s234 + $0x104] sm:$0xf]
      %v382 = vld [vmem:[%s234 + $0x108] sm:$0xf]
      %v383 = vld [vmem:[%s234 + $0x10c] sm:$0xf]
      %v384 = vld [vmem:[%s234 + $0x110] sm:$0xf]
      %v385 = vld [vmem:[%s234 + $0x114] sm:$0xf]
      %v386 = vld [vmem:[%s234 + $0x118] sm:$0xf]
      %v387 = vld [vmem:[%s234 + $0x11c] sm:$0xf]
      %v388 = vld [vmem:[%s234 + $0x120] sm:$0xf]
      %v389 = vld [vmem:[%s234 + $0x124] sm:$0xf]
      %v390 = vld [vmem:[%s234 + $0x128] sm:$0xf]
      %v391 = vld [vmem:[%s234 + $0x12c] sm:$0xf]
      %v392 = vld [vmem:[%s234 + $0x130] sm:$0xf]
      %v393 = vld [vmem:[%s234 + $0x134] sm:$0xf]
      %v394 = vld [vmem:[%s234 + $0x138] sm:$0xf]
      %v395 = vld [vmem:[%s234 + $0x13c] sm:$0xf]
      %v396 = vld [vmem:[%s234 + $0x140] sm:$0xf]
      %v397 = vld [vmem:[%s234 + $0x144] sm:$0xf]
      %v398 = vld [vmem:[%s234 + $0x148] sm:$0xf]
      %v399 = vld [vmem:[%s234 + $0x14c] sm:$0xf]
      %v400 = vld [vmem:[%s234 + $0x150] sm:$0xf]
      %v401 = vld [vmem:[%s234 + $0x154] sm:$0xf]
      %v402 = vld [vmem:[%s234 + $0x158] sm:$0xf]
      %v403 = vld [vmem:[%s234 + $0x15c] sm:$0xf]
      %v404 = vld [vmem:[%s234 + $0x160] sm:$0xf]
      %v405 = vld [vmem:[%s234 + $0x164] sm:$0xf]
      %v406 = vld [vmem:[%s234 + $0x168] sm:$0xf]
      %v407 = vld [vmem:[%s234 + $0x16c] sm:$0xf]
      %v408 = vld [vmem:[%s234 + $0x170] sm:$0xf]
      %v409 = vld [vmem:[%s234 + $0x174] sm:$0xf]
      %v410 = vld [vmem:[%s234 + $0x178] sm:$0xf]
      %v411 = vld [vmem:[%s234 + $0x17c] sm:$0xf]
      %v412 = vld [vmem:[%s234 + $0x180] sm:$0xf]
      %v413 = vld [vmem:[%s234 + $0x184] sm:$0xf]
      %v414 = vld [vmem:[%s234 + $0x188] sm:$0xf]
      %v415 = vld [vmem:[%s234 + $0x18c] sm:$0xf]
      %v416 = vld [vmem:[%s234 + $0x190] sm:$0xf]
      %v417 = vld [vmem:[%s234 + $0x194] sm:$0xf]
      %v418 = vld [vmem:[%s234 + $0x198] sm:$0xf]
      %v419 = vld [vmem:[%s234 + $0x19c] sm:$0xf]
      %v420 = vld [vmem:[%s234 + $0x1a0] sm:$0xf]
      %v421 = vld [vmem:[%s234 + $0x1a4] sm:$0xf]
      %v422 = vld [vmem:[%s234 + $0x1a8] sm:$0xf]
      %v423 = vld [vmem:[%s234 + $0x1ac] sm:$0xf]
      %v424 = vld [vmem:[%s234 + $0x1b0] sm:$0xf]
      %v425 = vld [vmem:[%s234 + $0x1b4] sm:$0xf]
      %v426 = vld [vmem:[%s234 + $0x1b8] sm:$0xf]
      %v427 = vld [vmem:[%s234 + $0x1bc] sm:$0xf]
      %v428 = vld [vmem:[%s234 + $0x1c0] sm:$0xf]
      %v429 = vld [vmem:[%s234 + $0x1c4] sm:$0xf]
      %v430 = vld [vmem:[%s234 + $0x1c8] sm:$0xf]
      %v431 = vld [vmem:[%s234 + $0x1cc] sm:$0xf]
      %v432 = vld [vmem:[%s234 + $0x1d0] sm:$0xf]
      %v433 = vld [vmem:[%s234 + $0x1d4] sm:$0xf]
      %v434 = vld [vmem:[%s234 + $0x1d8] sm:$0xf]
      %v435 = vld [vmem:[%s234 + $0x1dc] sm:$0xf]
      %v436 = vld [vmem:[%s234 + $0x1e0] sm:$0xf]
      %v437 = vld [vmem:[%s234 + $0x1e4] sm:$0xf]
      %v438 = vld [vmem:[%s234 + $0x1e8] sm:$0xf]
      %v439 = vld [vmem:[%s234 + $0x1ec] sm:$0xf]
      %v440 = vld [vmem:[%s234 + $0x1f0] sm:$0xf]
      %v441 = vld [vmem:[%s234 + $0x1f4] sm:$0xf]
      %v442 = vld [vmem:[%s234 + $0x1f8] sm:$0xf]
      %v443 = vld [vmem:[%s234 + $0x1fc] sm:$0xf]
      %v508 = vunpack.c.l.b16 %v252
      %v509 = vunpack.c.h.b16 %v252
      %v510 = vunpack.c.l.b16 %v253
      %v511 = vunpack.c.h.b16 %v253
      %v512 = vunpack.c.l.b16 %v254
      %v513 = vunpack.c.h.b16 %v254
      %v514 = vunpack.c.l.b16 %v255
      %v515 = vunpack.c.h.b16 %v255
      %v516 = vunpack.c.l.b16 %v256
      %v517 = vunpack.c.h.b16 %v256
      %v518 = vunpack.c.l.b16 %v257
      %v519 = vunpack.c.h.b16 %v257
      %v520 = vunpack.c.l.b16 %v258
      %v521 = vunpack.c.h.b16 %v258
      %v522 = vunpack.c.l.b16 %v259
      %v523 = vunpack.c.h.b16 %v259
      %v524 = vunpack.c.l.b16 %v260
      %v525 = vunpack.c.h.b16 %v260
      %v526 = vunpack.c.l.b16 %v261
      %v527 = vunpack.c.h.b16 %v261
      %v528 = vunpack.c.l.b16 %v262
      %v529 = vunpack.c.h.b16 %v262
      %v530 = vunpack.c.l.b16 %v263
      %v531 = vunpack.c.h.b16 %v263
      %v532 = vunpack.c.l.b16 %v264
      %v533 = vunpack.c.h.b16 %v264
      %v534 = vunpack.c.l.b16 %v265
      %v535 = vunpack.c.h.b16 %v265
      %v536 = vunpack.c.l.b16 %v266
      %v537 = vunpack.c.h.b16 %v266
      %v538 = vunpack.c.l.b16 %v267
      %v539 = vunpack.c.h.b16 %v267
      %v540 = vunpack.c.l.b16 %v268
      %v541 = vunpack.c.h.b16 %v268
      %v542 = vunpack.c.l.b16 %v269
      %v543 = vunpack.c.h.b16 %v269
      %v544 = vunpack.c.l.b16 %v270
      %v545 = vunpack.c.h.b16 %v270
      %v546 = vunpack.c.l.b16 %v271
      %v547 = vunpack.c.h.b16 %v271
      %v548 = vunpack.c.l.b16 %v272
      %v549 = vunpack.c.h.b16 %v272
      %v550 = vunpack.c.l.b16 %v273
      %v551 = vunpack.c.h.b16 %v273
      %v552 = vunpack.c.l.b16 %v274
      %v553 = vunpack.c.h.b16 %v274
      %v554 = vunpack.c.l.b16 %v275
      %v555 = vunpack.c.h.b16 %v275
      %v556 = vunpack.c.l.b16 %v276
      %v557 = vunpack.c.h.b16 %v276
      %v558 = vunpack.c.l.b16 %v277
      %v559 = vunpack.c.h.b16 %v277
      %v560 = vunpack.c.l.b16 %v278
      %v561 = vunpack.c.h.b16 %v278
      %v562 = vunpack.c.l.b16 %v279
      %v563 = vunpack.c.h.b16 %v279
      %v564 = vunpack.c.l.b16 %v280
      %v565 = vunpack.c.h.b16 %v280
      %v566 = vunpack.c.l.b16 %v281
      %v567 = vunpack.c.h.b16 %v281
      %v568 = vunpack.c.l.b16 %v282
      %v569 = vunpack.c.h.b16 %v282
      %v570 = vunpack.c.l.b16 %v283
      %v571 = vunpack.c.h.b16 %v283
      %v572 = vunpack.c.l.b16 %v284
      %v573 = vunpack.c.h.b16 %v284
      %v574 = vunpack.c.l.b16 %v285
      %v575 = vunpack.c.h.b16 %v285
      %v576 = vunpack.c.l.b16 %v286
      %v577 = vunpack.c.h.b16 %v286
      %v578 = vunpack.c.l.b16 %v287
      %v579 = vunpack.c.h.b16 %v287
      %v580 = vunpack.c.l.b16 %v288
      %v581 = vunpack.c.h.b16 %v288
      %v582 = vunpack.c.l.b16 %v289
      %v583 = vunpack.c.h.b16 %v289
      %v584 = vunpack.c.l.b16 %v290
      %v585 = vunpack.c.h.b16 %v290
      %v586 = vunpack.c.l.b16 %v291
      %v587 = vunpack.c.h.b16 %v291
      %v588 = vunpack.c.l.b16 %v292
      %v589 = vunpack.c.h.b16 %v292
      %v590 = vunpack.c.l.b16 %v293
      %v591 = vunpack.c.h.b16 %v293
      %v592 = vunpack.c.l.b16 %v294
      %v593 = vunpack.c.h.b16 %v294
      %v594 = vunpack.c.l.b16 %v295
      %v595 = vunpack.c.h.b16 %v295
      %v596 = vunpack.c.l.b16 %v296
      %v597 = vunpack.c.h.b16 %v296
      %v598 = vunpack.c.l.b16 %v297
      %v599 = vunpack.c.h.b16 %v297
      %v600 = vunpack.c.l.b16 %v298
      %v601 = vunpack.c.h.b16 %v298
      %v602 = vunpack.c.l.b16 %v299
      %v603 = vunpack.c.h.b16 %v299
      %v604 = vunpack.c.l.b16 %v300
      %v605 = vunpack.c.h.b16 %v300
      %v606 = vunpack.c.l.b16 %v301
      %v607 = vunpack.c.h.b16 %v301
      %v608 = vunpack.c.l.b16 %v302
      %v609 = vunpack.c.h.b16 %v302
      %v610 = vunpack.c.l.b16 %v303
      %v611 = vunpack.c.h.b16 %v303
      %v612 = vunpack.c.l.b16 %v304
      %v613 = vunpack.c.h.b16 %v304
      %v614 = vunpack.c.l.b16 %v305
      %v615 = vunpack.c.h.b16 %v305
      %v616 = vunpack.c.l.b16 %v306
      %v617 = vunpack.c.h.b16 %v306
      %v618 = vunpack.c.l.b16 %v307
      %v619 = vunpack.c.h.b16 %v307
      %v620 = vunpack.c.l.b16 %v308
      %v621 = vunpack.c.h.b16 %v308
      %v622 = vunpack.c.l.b16 %v309
      %v623 = vunpack.c.h.b16 %v309
      %v624 = vunpack.c.l.b16 %v310
      %v625 = vunpack.c.h.b16 %v310
      %v626 = vunpack.c.l.b16 %v311
      %v627 = vunpack.c.h.b16 %v311
      %v628 = vunpack.c.l.b16 %v312
      %v629 = vunpack.c.h.b16 %v312
      %v630 = vunpack.c.l.b16 %v313
      %v631 = vunpack.c.h.b16 %v313
      %v632 = vunpack.c.l.b16 %v314
      %v633 = vunpack.c.h.b16 %v314
      %v634 = vunpack.c.l.b16 %v315
      %v635 = vunpack.c.h.b16 %v315
      %v636 = vpack.c.b16 %v516, %v508
      %v637 = vpack.c.b16 %v517, %v509
      %v638 = vpack.c.b16 %v518, %v510
      %v639 = vpack.c.b16 %v519, %v511
      %v640 = vpack.c.b16 %v520, %v512
      %v641 = vpack.c.b16 %v521, %v513
      %v642 = vpack.c.b16 %v522, %v514
      %v643 = vpack.c.b16 %v523, %v515
      %v644 = vpack.c.b16 %v532, %v524
      %v645 = vpack.c.b16 %v533, %v525
      %v646 = vpack.c.b16 %v534, %v526
      %v647 = vpack.c.b16 %v535, %v527
      %v648 = vpack.c.b16 %v536, %v528
      %v649 = vpack.c.b16 %v537, %v529
      %v650 = vpack.c.b16 %v538, %v530
      %v651 = vpack.c.b16 %v539, %v531
      %v652 = vpack.c.b16 %v548, %v540
      %v653 = vpack.c.b16 %v549, %v541
      %v654 = vpack.c.b16 %v550, %v542
      %v655 = vpack.c.b16 %v551, %v543
      %v656 = vpack.c.b16 %v552, %v544
      %v657 = vpack.c.b16 %v553, %v545
      %v658 = vpack.c.b16 %v554, %v546
      %v659 = vpack.c.b16 %v555, %v547
      %v660 = vpack.c.b16 %v564, %v556
      %v661 = vpack.c.b16 %v565, %v557
      %v662 = vpack.c.b16 %v566, %v558
      %v663 = vpack.c.b16 %v567, %v559
      %v664 = vpack.c.b16 %v568, %v560
      %v665 = vpack.c.b16 %v569, %v561
      %v666 = vpack.c.b16 %v570, %v562
      %v667 = vpack.c.b16 %v571, %v563
      %v668 = vpack.c.b16 %v580, %v572
      %v669 = vpack.c.b16 %v581, %v573
      %v670 = vpack.c.b16 %v582, %v574
      %v671 = vpack.c.b16 %v583, %v575
      %v672 = vpack.c.b16 %v584, %v576
      %v673 = vpack.c.b16 %v585, %v577
      %v674 = vpack.c.b16 %v586, %v578
      %v675 = vpack.c.b16 %v587, %v579
      %v676 = vpack.c.b16 %v596, %v588
      %v677 = vpack.c.b16 %v597, %v589
      %v678 = vpack.c.b16 %v598, %v590
      %v679 = vpack.c.b16 %v599, %v591
      %v680 = vpack.c.b16 %v600, %v592
      %v681 = vpack.c.b16 %v601, %v593
      %v682 = vpack.c.b16 %v602, %v594
      %v683 = vpack.c.b16 %v603, %v595
      %v684 = vpack.c.b16 %v612, %v604
      %v685 = vpack.c.b16 %v613, %v605
      %v686 = vpack.c.b16 %v614, %v606
      %v687 = vpack.c.b16 %v615, %v607
      %v688 = vpack.c.b16 %v616, %v608
      %v689 = vpack.c.b16 %v617, %v609
      %v690 = vpack.c.b16 %v618, %v610
      %v691 = vpack.c.b16 %v619, %v611
      %v692 = vpack.c.b16 %v628, %v620
      %v693 = vpack.c.b16 %v629, %v621
      %v694 = vpack.c.b16 %v630, %v622
      %v695 = vpack.c.b16 %v631, %v623
      %v696 = vpack.c.b16 %v632, %v624
      %v697 = vpack.c.b16 %v633, %v625
      %v698 = vpack.c.b16 %v634, %v626
      %v699 = vpack.c.b16 %v635, %v627
      %v892 = vunpack.c.l.b16 %v316
      %v893 = vunpack.c.l.b16 %v317
      %v894 = vunpack.c.l.b16 %v318
      %v895 = vunpack.c.l.b16 %v319
      %v896 = vunpack.c.l.b16 %v320
      %v897 = vunpack.c.l.b16 %v321
      %v898 = vunpack.c.l.b16 %v322
      %v899 = vunpack.c.l.b16 %v323
      %v900 = vunpack.c.l.b16 %v324
      %v901 = vunpack.c.l.b16 %v325
      %v902 = vunpack.c.l.b16 %v326
      %v903 = vunpack.c.l.b16 %v327
      %v904 = vunpack.c.l.b16 %v328
      %v905 = vunpack.c.l.b16 %v329
      %v906 = vunpack.c.l.b16 %v330
      %v907 = vunpack.c.l.b16 %v331
      %v908 = vunpack.c.l.b16 %v332
      %v909 = vunpack.c.l.b16 %v333
      %v910 = vunpack.c.l.b16 %v334
      %v911 = vunpack.c.l.b16 %v335
      %v912 = vunpack.c.l.b16 %v336
      %v913 = vunpack.c.l.b16 %v337
      %v914 = vunpack.c.l.b16 %v338
      %v915 = vunpack.c.l.b16 %v339
      %v916 = vunpack.c.l.b16 %v340
      %v917 = vunpack.c.l.b16 %v341
      %v918 = vunpack.c.l.b16 %v342
      %v919 = vunpack.c.l.b16 %v343
      %v920 = vunpack.c.l.b16 %v344
      %v921 = vunpack.c.l.b16 %v345
      %v922 = vunpack.c.l.b16 %v346
      %v923 = vunpack.c.l.b16 %v347
      %v924 = vunpack.c.l.b16 %v348
      %v925 = vunpack.c.l.b16 %v349
      %v926 = vunpack.c.l.b16 %v350
      %v927 = vunpack.c.l.b16 %v351
      %v928 = vunpack.c.l.b16 %v352
      %v929 = vunpack.c.l.b16 %v353
      %v930 = vunpack.c.l.b16 %v354
      %v931 = vunpack.c.l.b16 %v355
      %v932 = vunpack.c.l.b16 %v356
      %v933 = vunpack.c.l.b16 %v357
      %v934 = vunpack.c.l.b16 %v358
      %v935 = vunpack.c.l.b16 %v359
      %v936 = vunpack.c.l.b16 %v360
      %v937 = vunpack.c.l.b16 %v361
      %v938 = vunpack.c.l.b16 %v362
      %v939 = vunpack.c.l.b16 %v363
      %v940 = vunpack.c.l.b16 %v364
      %v941 = vunpack.c.l.b16 %v365
      %v942 = vunpack.c.l.b16 %v366
      %v943 = vunpack.c.l.b16 %v367
      %v944 = vunpack.c.l.b16 %v368
      %v945 = vunpack.c.l.b16 %v369
      %v946 = vunpack.c.l.b16 %v370
      %v947 = vunpack.c.l.b16 %v371
      %v948 = vunpack.c.l.b16 %v372
      %v949 = vunpack.c.l.b16 %v373
      %v950 = vunpack.c.l.b16 %v374
      %v951 = vunpack.c.l.b16 %v375
      %v952 = vunpack.c.l.b16 %v376
      %v953 = vunpack.c.l.b16 %v377
      %v954 = vunpack.c.l.b16 %v378
      %v955 = vunpack.c.l.b16 %v379
      %v956 = vunpack.c.l.b16 %v380
      %v957 = vunpack.c.l.b16 %v381
      %v958 = vunpack.c.l.b16 %v382
      %v959 = vunpack.c.l.b16 %v383
      %v960 = vunpack.c.l.b16 %v384
      %v961 = vunpack.c.l.b16 %v385
      %v962 = vunpack.c.l.b16 %v386
      %v963 = vunpack.c.l.b16 %v387
      %v964 = vunpack.c.l.b16 %v388
      %v965 = vunpack.c.l.b16 %v389
      %v966 = vunpack.c.l.b16 %v390
      %v967 = vunpack.c.l.b16 %v391
      %v968 = vunpack.c.l.b16 %v392
      %v969 = vunpack.c.l.b16 %v393
      %v970 = vunpack.c.l.b16 %v394
      %v971 = vunpack.c.l.b16 %v395
      %v972 = vunpack.c.l.b16 %v396
      %v973 = vunpack.c.l.b16 %v397
      %v974 = vunpack.c.l.b16 %v398
      %v975 = vunpack.c.l.b16 %v399
      %v976 = vunpack.c.l.b16 %v400
      %v977 = vunpack.c.l.b16 %v401
      %v978 = vunpack.c.l.b16 %v402
      %v979 = vunpack.c.l.b16 %v403
      %v980 = vunpack.c.l.b16 %v404
      %v981 = vunpack.c.l.b16 %v405
      %v982 = vunpack.c.l.b16 %v406
      %v983 = vunpack.c.l.b16 %v407
      %v984 = vunpack.c.l.b16 %v408
      %v985 = vunpack.c.l.b16 %v409
      %v986 = vunpack.c.l.b16 %v410
      %v987 = vunpack.c.l.b16 %v411
      %v988 = vunpack.c.l.b16 %v412
      %v989 = vunpack.c.l.b16 %v413
      %v990 = vunpack.c.l.b16 %v414
      %v991 = vunpack.c.l.b16 %v415
      %v992 = vunpack.c.l.b16 %v416
      %v993 = vunpack.c.l.b16 %v417
      %v994 = vunpack.c.l.b16 %v418
      %v995 = vunpack.c.l.b16 %v419
      %v996 = vunpack.c.l.b16 %v420
      %v997 = vunpack.c.l.b16 %v421
      %v998 = vunpack.c.l.b16 %v422
      %v999 = vunpack.c.l.b16 %v423
      %v1000 = vunpack.c.l.b16 %v424
      %v1001 = vunpack.c.l.b16 %v425
      %v1002 = vunpack.c.l.b16 %v426
      %v1003 = vunpack.c.l.b16 %v427
      %v1004 = vunpack.c.l.b16 %v428
      %v1005 = vunpack.c.l.b16 %v429
      %v1006 = vunpack.c.l.b16 %v430
      %v1007 = vunpack.c.l.b16 %v431
      %v1008 = vunpack.c.l.b16 %v432
      %v1009 = vunpack.c.l.b16 %v433
      %v1010 = vunpack.c.l.b16 %v434
      %v1011 = vunpack.c.l.b16 %v435
      %v1012 = vunpack.c.l.b16 %v436
      %v1013 = vunpack.c.l.b16 %v437
      %v1014 = vunpack.c.l.b16 %v438
      %v1015 = vunpack.c.l.b16 %v439
      %v1016 = vunpack.c.l.b16 %v440
      %v1017 = vunpack.c.l.b16 %v441
      %v1018 = vunpack.c.l.b16 %v442
      %v1019 = vunpack.c.l.b16 %v443
      %v1020 = vpack.c.b16 %v893, %v892
      %v1021 = vpack.c.b16 %v895, %v894
      %v1022 = vpack.c.b16 %v897, %v896
      %v1023 = vpack.c.b16 %v899, %v898
      %v1024 = vpack.c.b16 %v901, %v900
      %v1025 = vpack.c.b16 %v903, %v902
      %v1026 = vpack.c.b16 %v905, %v904
      %v1027 = vpack.c.b16 %v907, %v906
      %v1028 = vpack.c.b16 %v909, %v908
      %v1029 = vpack.c.b16 %v911, %v910
      %v1030 = vpack.c.b16 %v913, %v912
      %v1031 = vpack.c.b16 %v915, %v914
      %v1032 = vpack.c.b16 %v917, %v916
      %v1033 = vpack.c.b16 %v919, %v918
      %v1034 = vpack.c.b16 %v921, %v920
      %v1035 = vpack.c.b16 %v923, %v922
      %v1036 = vpack.c.b16 %v925, %v924
      %v1037 = vpack.c.b16 %v927, %v926
      %v1038 = vpack.c.b16 %v929, %v928
      %v1039 = vpack.c.b16 %v931, %v930
      %v1040 = vpack.c.b16 %v933, %v932
      %v1041 = vpack.c.b16 %v935, %v934
      %v1042 = vpack.c.b16 %v937, %v936
      %v1043 = vpack.c.b16 %v939, %v938
      %v1044 = vpack.c.b16 %v941, %v940
      %v1045 = vpack.c.b16 %v943, %v942
      %v1046 = vpack.c.b16 %v945, %v944
      %v1047 = vpack.c.b16 %v947, %v946
      %v1048 = vpack.c.b16 %v949, %v948
      %v1049 = vpack.c.b16 %v951, %v950
      %v1050 = vpack.c.b16 %v953, %v952
      %v1051 = vpack.c.b16 %v955, %v954
      %v1052 = vpack.c.b16 %v957, %v956
      %v1053 = vpack.c.b16 %v959, %v958
      %v1054 = vpack.c.b16 %v961, %v960
      %v1055 = vpack.c.b16 %v963, %v962
      %v1056 = vpack.c.b16 %v965, %v964
      %v1057 = vpack.c.b16 %v967, %v966
      %v1058 = vpack.c.b16 %v969, %v968
      %v1059 = vpack.c.b16 %v971, %v970
      %v1060 = vpack.c.b16 %v973, %v972
      %v1061 = vpack.c.b16 %v975, %v974
      %v1062 = vpack.c.b16 %v977, %v976
      %v1063 = vpack.c.b16 %v979, %v978
      %v1064 = vpack.c.b16 %v981, %v980
      %v1065 = vpack.c.b16 %v983, %v982
      %v1066 = vpack.c.b16 %v985, %v984
      %v1067 = vpack.c.b16 %v987, %v986
      %v1068 = vpack.c.b16 %v989, %v988
      %v1069 = vpack.c.b16 %v991, %v990
      %v1070 = vpack.c.b16 %v993, %v992
      %v1071 = vpack.c.b16 %v995, %v994
      %v1072 = vpack.c.b16 %v997, %v996
      %v1073 = vpack.c.b16 %v999, %v998
      %v1074 = vpack.c.b16 %v1001, %v1000
      %v1075 = vpack.c.b16 %v1003, %v1002
      %v1076 = vpack.c.b16 %v1005, %v1004
      %v1077 = vpack.c.b16 %v1007, %v1006
      %v1078 = vpack.c.b16 %v1009, %v1008
      %v1079 = vpack.c.b16 %v1011, %v1010
      %v1080 = vpack.c.b16 %v1013, %v1012
      %v1081 = vpack.c.b16 %v1015, %v1014
      %v1082 = vpack.c.b16 %v1017, %v1016
      %v1083 = vpack.c.b16 %v1019, %v1018
      %1148 = vmatpush.bf16.msra.mxu0 %v1027
      %1149 = vmatpush.bf16.msra.mxu0 %v1026
      %1150 = vmatpush.bf16.msra.mxu0 %v1025
      %1151 = vmatpush.bf16.msra.mxu0 %v1024
      %1152 = vmatpush.bf16.msra.mxu0 %v1023
      %1153 = vmatpush.bf16.msra.mxu0 %v1022
      %1154 = vmatpush.bf16.msra.mxu0 %v1021
      %1155 = vmatpush.bf16.msra.mxu0 %v1020
      %1156 = vmatmul.bf16.gmra.mxu0 %v636
      %v1157 = vpop.f32.mrf.mxu0
      %v1158 = vadd.f32 0.0, %v1157
      %v1159 = vpop.f32.mrf.mxu0
      %v1160 = vadd.f32 0.0, %v1159
      %1161 = vmatmul.bf16.gmra.mxu0 %v644
      %v1162 = vpop.f32.mrf.mxu0
      %v1163 = vadd.f32 0.0, %v1162
      %v1164 = vpop.f32.mrf.mxu0
      %v1165 = vadd.f32 0.0, %v1164
      %1166 = vmatmul.bf16.gmra.mxu0 %v652
      %v1167 = vpop.f32.mrf.mxu0
      %v1168 = vadd.f32 0.0, %v1167
      %v1169 = vpop.f32.mrf.mxu0
      %v1170 = vadd.f32 0.0, %v1169
      %1171 = vmatmul.bf16.gmra.mxu0 %v660
      %v1172 = vpop.f32.mrf.mxu0
      %v1173 = vadd.f32 0.0, %v1172
      %v1174 = vpop.f32.mrf.mxu0
      %v1175 = vadd.f32 0.0, %v1174
      %1176 = vmatmul.bf16.gmra.mxu0 %v668
      %v1177 = vpop.f32.mrf.mxu0
      %v1178 = vadd.f32 0.0, %v1177
      %v1179 = vpop.f32.mrf.mxu0
      %v1180 = vadd.f32 0.0, %v1179
      %1181 = vmatmul.bf16.gmra.mxu0 %v676
      %v1182 = vpop.f32.mrf.mxu0
      %v1183 = vadd.f32 0.0, %v1182
      %v1184 = vpop.f32.mrf.mxu0
      %v1185 = vadd.f32 0.0, %v1184
      %1186 = vmatmul.bf16.gmra.mxu0 %v684
      %v1187 = vpop.f32.mrf.mxu0
      %v1188 = vadd.f32 0.0, %v1187
      %v1189 = vpop.f32.mrf.mxu0
      %v1190 = vadd.f32 0.0, %v1189
      %1191 = vmatmul.bf16.gmra.mxu0 %v692
      %v1192 = vpop.f32.mrf.mxu0
      %v1193 = vadd.f32 0.0, %v1192
      %v1194 = vpop.f32.mrf.mxu0
      %v1195 = vadd.f32 0.0, %v1194
      %1196 = vdwg.mxu0
      %1197 = vmatpush.bf16.msra.mxu0 %v1035
      %1198 = vmatpush.bf16.msra.mxu0 %v1034
      %1199 = vmatpush.bf16.msra.mxu0 %v1033
      %1200 = vmatpush.bf16.msra.mxu0 %v1032
      %1201 = vmatpush.bf16.msra.mxu0 %v1031
      %1202 = vmatpush.bf16.msra.mxu0 %v1030
      %1203 = vmatpush.bf16.msra.mxu0 %v1029
      %1204 = vmatpush.bf16.msra.mxu0 %v1028
      %1205 = vmatmul.bf16.gmra.mxu0 %v637
      %v1206 = vpop.f32.mrf.mxu0
      %v1207 = vadd.f32 %v1158, %v1206
      %v1208 = vpop.f32.mrf.mxu0
      %v1209 = vadd.f32 %v1160, %v1208
      %1210 = vmatmul.bf16.gmra.mxu0 %v645
      %v1211 = vpop.f32.mrf.mxu0
      %v1212 = vadd.f32 %v1163, %v1211
      %v1213 = vpop.f32.mrf.mxu0
      %v1214 = vadd.f32 %v1165, %v1213
      %1215 = vmatmul.bf16.gmra.mxu0 %v653
      %v1216 = vpop.f32.mrf.mxu0
      %v1217 = vadd.f32 %v1168, %v1216
      %v1218 = vpop.f32.mrf.mxu0
      %v1219 = vadd.f32 %v1170, %v1218
      %1220 = vmatmul.bf16.gmra.mxu0 %v661
      %v1221 = vpop.f32.mrf.mxu0
      %v1222 = vadd.f32 %v1173, %v1221
      %v1223 = vpop.f32.mrf.mxu0
      %v1224 = vadd.f32 %v1175, %v1223
      %1225 = vmatmul.bf16.gmra.mxu0 %v669
      %v1226 = vpop.f32.mrf.mxu0
      %v1227 = vadd.f32 %v1178, %v1226
      %v1228 = vpop.f32.mrf.mxu0
      %v1229 = vadd.f32 %v1180, %v1228
      %1230 = vmatmul.bf16.gmra.mxu0 %v677
      %v1231 = vpop.f32.mrf.mxu0
      %v1232 = vadd.f32 %v1183, %v1231
      %v1233 = vpop.f32.mrf.mxu0
      %v1234 = vadd.f32 %v1185, %v1233
      %1235 = vmatmul.bf16.gmra.mxu0 %v685
      %v1236 = vpop.f32.mrf.mxu0
      %v1237 = vadd.f32 %v1188, %v1236
      %v1238 = vpop.f32.mrf.mxu0
      %v1239 = vadd.f32 %v1190, %v1238
      %1240 = vmatmul.bf16.gmra.mxu0 %v693
      %v1241 = vpop.f32.mrf.mxu0
      %v1242 = vadd.f32 %v1193, %v1241
      %v1243 = vpop.f32.mrf.mxu0
      %v1244 = vadd.f32 %v1195, %v1243
      %1245 = vdwg.mxu0
      %1246 = vmatpush.bf16.msra.mxu0 %v1043
      %1247 = vmatpush.bf16.msra.mxu0 %v1042
      %1248 = vmatpush.bf16.msra.mxu0 %v1041
      %1249 = vmatpush.bf16.msra.mxu0 %v1040
      %1250 = vmatpush.bf16.msra.mxu0 %v1039
      %1251 = vmatpush.bf16.msra.mxu0 %v1038
      %1252 = vmatpush.bf16.msra.mxu0 %v1037
      %1253 = vmatpush.bf16.msra.mxu0 %v1036
      %1254 = vmatmul.bf16.gmra.mxu0 %v638
      %v1255 = vpop.f32.mrf.mxu0
      %v1256 = vadd.f32 %v1207, %v1255
      %v1257 = vpop.f32.mrf.mxu0
      %v1258 = vadd.f32 %v1209, %v1257
      %1259 = vmatmul.bf16.gmra.mxu0 %v646
      %v1260 = vpop.f32.mrf.mxu0
      %v1261 = vadd.f32 %v1212, %v1260
      %v1262 = vpop.f32.mrf.mxu0
      %v1263 = vadd.f32 %v1214, %v1262
      %1264 = vmatmul.bf16.gmra.mxu0 %v654
      %v1265 = vpop.f32.mrf.mxu0
      %v1266 = vadd.f32 %v1217, %v1265
      %v1267 = vpop.f32.mrf.mxu0
      %v1268 = vadd.f32 %v1219, %v1267
      %1269 = vmatmul.bf16.gmra.mxu0 %v662
      %v1270 = vpop.f32.mrf.mxu0
      %v1271 = vadd.f32 %v1222, %v1270
      %v1272 = vpop.f32.mrf.mxu0
      %v1273 = vadd.f32 %v1224, %v1272
      %1274 = vmatmul.bf16.gmra.mxu0 %v670
      %v1275 = vpop.f32.mrf.mxu0
      %v1276 = vadd.f32 %v1227, %v1275
      %v1277 = vpop.f32.mrf.mxu0
      %v1278 = vadd.f32 %v1229, %v1277
      %1279 = vmatmul.bf16.gmra.mxu0 %v678
      %v1280 = vpop.f32.mrf.mxu0
      %v1281 = vadd.f32 %v1232, %v1280
      %v1282 = vpop.f32.mrf.mxu0
      %v1283 = vadd.f32 %v1234, %v1282
      %1284 = vmatmul.bf16.gmra.mxu0 %v686
      %v1285 = vpop.f32.mrf.mxu0
      %v1286 = vadd.f32 %v1237, %v1285
      %v1287 = vpop.f32.mrf.mxu0
      %v1288 = vadd.f32 %v1239, %v1287
      %1289 = vmatmul.bf16.gmra.mxu0 %v694
      %v1290 = vpop.f32.mrf.mxu0
      %v1291 = vadd.f32 %v1242, %v1290
      %v1292 = vpop.f32.mrf.mxu0
      %v1293 = vadd.f32 %v1244, %v1292
      %1294 = vdwg.mxu0
      %1295 = vmatpush.bf16.msra.mxu0 %v1051
      %1296 = vmatpush.bf16.msra.mxu0 %v1050
      %1297 = vmatpush.bf16.msra.mxu0 %v1049
      %1298 = vmatpush.bf16.msra.mxu0 %v1048
      %1299 = vmatpush.bf16.msra.mxu0 %v1047
      %1300 = vmatpush.bf16.msra.mxu0 %v1046
      %1301 = vmatpush.bf16.msra.mxu0 %v1045
      %1302 = vmatpush.bf16.msra.mxu0 %v1044
      %1303 = vmatmul.bf16.gmra.mxu0 %v639
      %v1304 = vpop.f32.mrf.mxu0
      %v1305 = vadd.f32 %v1256, %v1304
      %v1306 = vpop.f32.mrf.mxu0
      %v1307 = vadd.f32 %v1258, %v1306
      %1308 = vmatmul.bf16.gmra.mxu0 %v647
      %v1309 = vpop.f32.mrf.mxu0
      %v1310 = vadd.f32 %v1261, %v1309
      %v1311 = vpop.f32.mrf.mxu0
      %v1312 = vadd.f32 %v1263, %v1311
      %1313 = vmatmul.bf16.gmra.mxu0 %v655
      %v1314 = vpop.f32.mrf.mxu0
      %v1315 = vadd.f32 %v1266, %v1314
      %v1316 = vpop.f32.mrf.mxu0
      %v1317 = vadd.f32 %v1268, %v1316
      %1318 = vmatmul.bf16.gmra.mxu0 %v663
      %v1319 = vpop.f32.mrf.mxu0
      %v1320 = vadd.f32 %v1271, %v1319
      %v1321 = vpop.f32.mrf.mxu0
      %v1322 = vadd.f32 %v1273, %v1321
      %1323 = vmatmul.bf16.gmra.mxu0 %v671
      %v1324 = vpop.f32.mrf.mxu0
      %v1325 = vadd.f32 %v1276, %v1324
      %v1326 = vpop.f32.mrf.mxu0
      %v1327 = vadd.f32 %v1278, %v1326
      %1328 = vmatmul.bf16.gmra.mxu0 %v679
      %v1329 = vpop.f32.mrf.mxu0
      %v1330 = vadd.f32 %v1281, %v1329
      %v1331 = vpop.f32.mrf.mxu0
      %v1332 = vadd.f32 %v1283, %v1331
      %1333 = vmatmul.bf16.gmra.mxu0 %v687
      %v1334 = vpop.f32.mrf.mxu0
      %v1335 = vadd.f32 %v1286, %v1334
      %v1336 = vpop.f32.mrf.mxu0
      %v1337 = vadd.f32 %v1288, %v1336
      %1338 = vmatmul.bf16.gmra.mxu0 %v695
      %v1339 = vpop.f32.mrf.mxu0
      %v1340 = vadd.f32 %v1291, %v1339
      %v1341 = vpop.f32.mrf.mxu0
      %v1342 = vadd.f32 %v1293, %v1341
      %1343 = vdwg.mxu0
      %1344 = vmatpush.bf16.msra.mxu0 %v1059
      %1345 = vmatpush.bf16.msra.mxu0 %v1058
      %1346 = vmatpush.bf16.msra.mxu0 %v1057
      %1347 = vmatpush.bf16.msra.mxu0 %v1056
      %1348 = vmatpush.bf16.msra.mxu0 %v1055
      %1349 = vmatpush.bf16.msra.mxu0 %v1054
      %1350 = vmatpush.bf16.msra.mxu0 %v1053
      %1351 = vmatpush.bf16.msra.mxu0 %v1052
      %1352 = vmatmul.bf16.gmra.mxu0 %v640
      %v1353 = vpop.f32.mrf.mxu0
      %v1354 = vadd.f32 %v1305, %v1353
      %v1355 = vpop.f32.mrf.mxu0
      %v1356 = vadd.f32 %v1307, %v1355
      %1357 = vmatmul.bf16.gmra.mxu0 %v648
      %v1358 = vpop.f32.mrf.mxu0
      %v1359 = vadd.f32 %v1310, %v1358
      %v1360 = vpop.f32.mrf.mxu0
      %v1361 = vadd.f32 %v1312, %v1360
      %1362 = vmatmul.bf16.gmra.mxu0 %v656
      %v1363 = vpop.f32.mrf.mxu0
      %v1364 = vadd.f32 %v1315, %v1363
      %v1365 = vpop.f32.mrf.mxu0
      %v1366 = vadd.f32 %v1317, %v1365
      %1367 = vmatmul.bf16.gmra.mxu0 %v664
      %v1368 = vpop.f32.mrf.mxu0
      %v1369 = vadd.f32 %v1320, %v1368
      %v1370 = vpop.f32.mrf.mxu0
      %v1371 = vadd.f32 %v1322, %v1370
      %1372 = vmatmul.bf16.gmra.mxu0 %v672
      %v1373 = vpop.f32.mrf.mxu0
      %v1374 = vadd.f32 %v1325, %v1373
      %v1375 = vpop.f32.mrf.mxu0
      %v1376 = vadd.f32 %v1327, %v1375
      %1377 = vmatmul.bf16.gmra.mxu0 %v680
      %v1378 = vpop.f32.mrf.mxu0
      %v1379 = vadd.f32 %v1330, %v1378
      %v1380 = vpop.f32.mrf.mxu0
      %v1381 = vadd.f32 %v1332, %v1380
      %1382 = vmatmul.bf16.gmra.mxu0 %v688
      %v1383 = vpop.f32.mrf.mxu0
      %v1384 = vadd.f32 %v1335, %v1383
      %v1385 = vpop.f32.mrf.mxu0
      %v1386 = vadd.f32 %v1337, %v1385
      %1387 = vmatmul.bf16.gmra.mxu0 %v696
      %v1388 = vpop.f32.mrf.mxu0
      %v1389 = vadd.f32 %v1340, %v1388
      %v1390 = vpop.f32.mrf.mxu0
      %v1391 = vadd.f32 %v1342, %v1390
      %1392 = vdwg.mxu0
      %1393 = vmatpush.bf16.msra.mxu0 %v1067
      %1394 = vmatpush.bf16.msra.mxu0 %v1066
      %1395 = vmatpush.bf16.msra.mxu0 %v1065
      %1396 = vmatpush.bf16.msra.mxu0 %v1064
      %1397 = vmatpush.bf16.msra.mxu0 %v1063
      %1398 = vmatpush.bf16.msra.mxu0 %v1062
      %1399 = vmatpush.bf16.msra.mxu0 %v1061
      %1400 = vmatpush.bf16.msra.mxu0 %v1060
      %1401 = vmatmul.bf16.gmra.mxu0 %v641
      %v1402 = vpop.f32.mrf.mxu0
      %v1403 = vadd.f32 %v1354, %v1402
      %v1404 = vpop.f32.mrf.mxu0
      %v1405 = vadd.f32 %v1356, %v1404
      %1406 = vmatmul.bf16.gmra.mxu0 %v649
      %v1407 = vpop.f32.mrf.mxu0
      %v1408 = vadd.f32 %v1359, %v1407
      %v1409 = vpop.f32.mrf.mxu0
      %v1410 = vadd.f32 %v1361, %v1409
      %1411 = vmatmul.bf16.gmra.mxu0 %v657
      %v1412 = vpop.f32.mrf.mxu0
      %v1413 = vadd.f32 %v1364, %v1412
      %v1414 = vpop.f32.mrf.mxu0
      %v1415 = vadd.f32 %v1366, %v1414
      %1416 = vmatmul.bf16.gmra.mxu0 %v665
      %v1417 = vpop.f32.mrf.mxu0
      %v1418 = vadd.f32 %v1369, %v1417
      %v1419 = vpop.f32.mrf.mxu0
      %v1420 = vadd.f32 %v1371, %v1419
      %1421 = vmatmul.bf16.gmra.mxu0 %v673
      %v1422 = vpop.f32.mrf.mxu0
      %v1423 = vadd.f32 %v1374, %v1422
      %v1424 = vpop.f32.mrf.mxu0
      %v1425 = vadd.f32 %v1376, %v1424
      %1426 = vmatmul.bf16.gmra.mxu0 %v681
      %v1427 = vpop.f32.mrf.mxu0
      %v1428 = vadd.f32 %v1379, %v1427
      %v1429 = vpop.f32.mrf.mxu0
      %v1430 = vadd.f32 %v1381, %v1429
      %1431 = vmatmul.bf16.gmra.mxu0 %v689
      %v1432 = vpop.f32.mrf.mxu0
      %v1433 = vadd.f32 %v1384, %v1432
      %v1434 = vpop.f32.mrf.mxu0
      %v1435 = vadd.f32 %v1386, %v1434
      %1436 = vmatmul.bf16.gmra.mxu0 %v697
      %v1437 = vpop.f32.mrf.mxu0
      %v1438 = vadd.f32 %v1389, %v1437
      %v1439 = vpop.f32.mrf.mxu0
      %v1440 = vadd.f32 %v1391, %v1439
      %1441 = vdwg.mxu0
      %1442 = vmatpush.bf16.msra.mxu0 %v1075
      %1443 = vmatpush.bf16.msra.mxu0 %v1074
      %1444 = vmatpush.bf16.msra.mxu0 %v1073
      %1445 = vmatpush.bf16.msra.mxu0 %v1072
      %1446 = vmatpush.bf16.msra.mxu0 %v1071
      %1447 = vmatpush.bf16.msra.mxu0 %v1070
      %1448 = vmatpush.bf16.msra.mxu0 %v1069
      %1449 = vmatpush.bf16.msra.mxu0 %v1068
      %1450 = vmatmul.bf16.gmra.mxu0 %v642
      %v1451 = vpop.f32.mrf.mxu0
      %v1452 = vadd.f32 %v1403, %v1451
      %v1453 = vpop.f32.mrf.mxu0
      %v1454 = vadd.f32 %v1405, %v1453
      %1455 = vmatmul.bf16.gmra.mxu0 %v650
      %v1456 = vpop.f32.mrf.mxu0
      %v1457 = vadd.f32 %v1408, %v1456
      %v1458 = vpop.f32.mrf.mxu0
      %v1459 = vadd.f32 %v1410, %v1458
      %1460 = vmatmul.bf16.gmra.mxu0 %v658
      %v1461 = vpop.f32.mrf.mxu0
      %v1462 = vadd.f32 %v1413, %v1461
      %v1463 = vpop.f32.mrf.mxu0
      %v1464 = vadd.f32 %v1415, %v1463
      %1465 = vmatmul.bf16.gmra.mxu0 %v666
      %v1466 = vpop.f32.mrf.mxu0
      %v1467 = vadd.f32 %v1418, %v1466
      %v1468 = vpop.f32.mrf.mxu0
      %v1469 = vadd.f32 %v1420, %v1468
      %1470 = vmatmul.bf16.gmra.mxu0 %v674
      %v1471 = vpop.f32.mrf.mxu0
      %v1472 = vadd.f32 %v1423, %v1471
      %v1473 = vpop.f32.mrf.mxu0
      %v1474 = vadd.f32 %v1425, %v1473
      %1475 = vmatmul.bf16.gmra.mxu0 %v682
      %v1476 = vpop.f32.mrf.mxu0
      %v1477 = vadd.f32 %v1428, %v1476
      %v1478 = vpop.f32.mrf.mxu0
      %v1479 = vadd.f32 %v1430, %v1478
      %1480 = vmatmul.bf16.gmra.mxu0 %v690
      %v1481 = vpop.f32.mrf.mxu0
      %v1482 = vadd.f32 %v1433, %v1481
      %v1483 = vpop.f32.mrf.mxu0
      %v1484 = vadd.f32 %v1435, %v1483
      %1485 = vmatmul.bf16.gmra.mxu0 %v698
      %v1486 = vpop.f32.mrf.mxu0
      %v1487 = vadd.f32 %v1438, %v1486
      %v1488 = vpop.f32.mrf.mxu0
      %v1489 = vadd.f32 %v1440, %v1488
      %1490 = vdwg.mxu0
      %1491 = vmatpush.bf16.msra.mxu0 %v1083
      %1492 = vmatpush.bf16.msra.mxu0 %v1082
      %1493 = vmatpush.bf16.msra.mxu0 %v1081
      %1494 = vmatpush.bf16.msra.mxu0 %v1080
      %1495 = vmatpush.bf16.msra.mxu0 %v1079
      %1496 = vmatpush.bf16.msra.mxu0 %v1078
      %1497 = vmatpush.bf16.msra.mxu0 %v1077
      %1498 = vmatpush.bf16.msra.mxu0 %v1076
      %1499 = vmatmul.bf16.gmra.mxu0 %v643
      %v1500 = vpop.f32.mrf.mxu0
      %v1501 = vadd.f32 %v1452, %v1500
      %v1502 = vpop.f32.mrf.mxu0
      %v1503 = vadd.f32 %v1454, %v1502
      %1504 = vmatmul.bf16.gmra.mxu0 %v651
      %v1505 = vpop.f32.mrf.mxu0
      %v1506 = vadd.f32 %v1457, %v1505
      %v1507 = vpop.f32.mrf.mxu0
      %v1508 = vadd.f32 %v1459, %v1507
      %1509 = vmatmul.bf16.gmra.mxu0 %v659
      %v1510 = vpop.f32.mrf.mxu0
      %v1511 = vadd.f32 %v1462, %v1510
      %v1512 = vpop.f32.mrf.mxu0
      %v1513 = vadd.f32 %v1464, %v1512
      %1514 = vmatmul.bf16.gmra.mxu0 %v667
      %v1515 = vpop.f32.mrf.mxu0
      %v1516 = vadd.f32 %v1467, %v1515
      %v1517 = vpop.f32.mrf.mxu0
      %v1518 = vadd.f32 %v1469, %v1517
      %1519 = vmatmul.bf16.gmra.mxu0 %v675
      %v1520 = vpop.f32.mrf.mxu0
      %v1521 = vadd.f32 %v1472, %v1520
      %v1522 = vpop.f32.mrf.mxu0
      %v1523 = vadd.f32 %v1474, %v1522
      %1524 = vmatmul.bf16.gmra.mxu0 %v683
      %v1525 = vpop.f32.mrf.mxu0
      %v1526 = vadd.f32 %v1477, %v1525
      %v1527 = vpop.f32.mrf.mxu0
      %v1528 = vadd.f32 %v1479, %v1527
      %1529 = vmatmul.bf16.gmra.mxu0 %v691
      %v1530 = vpop.f32.mrf.mxu0
      %v1531 = vadd.f32 %v1482, %v1530
      %v1532 = vpop.f32.mrf.mxu0
      %v1533 = vadd.f32 %v1484, %v1532
      %1534 = vmatmul.bf16.gmra.mxu0 %v699
      %v1535 = vpop.f32.mrf.mxu0
      %v1536 = vadd.f32 %v1487, %v1535
      %v1537 = vpop.f32.mrf.mxu0
      %v1538 = vadd.f32 %v1489, %v1537
      %1539 = vdwg.mxu0
      %1540 = vst [vmem:[%s243] sm:$0xff] %v1501
      %1541 = vst [vmem:[%s243 + $0x8] sm:$0xff] %v1503
      %1542 = vst [vmem:[%s243 + $0x10] sm:$0xff] %v1506
      %1543 = vst [vmem:[%s243 + $0x18] sm:$0xff] %v1508
      %1544 = vst [vmem:[%s243 + $0x20] sm:$0xff] %v1511
      %1545 = vst [vmem:[%s243 + $0x28] sm:$0xff] %v1513
      %1546 = vst [vmem:[%s243 + $0x30] sm:$0xff] %v1516
      %1547 = vst [vmem:[%s243 + $0x38] sm:$0xff] %v1518
      %1548 = vst [vmem:[%s243 + $0x40] sm:$0xff] %v1521
      %1549 = vst [vmem:[%s243 + $0x48] sm:$0xff] %v1523
      %1550 = vst [vmem:[%s243 + $0x50] sm:$0xff] %v1526
      %1551 = vst [vmem:[%s243 + $0x58] sm:$0xff] %v1528
      %1552 = vst [vmem:[%s243 + $0x60] sm:$0xff] %v1531
      %1553 = vst [vmem:[%s243 + $0x68] sm:$0xff] %v1533
      %1554 = vst [vmem:[%s243 + $0x70] sm:$0xff] %v1536
      %1555 = vst [vmem:[%s243 + $0x78] sm:$0xff] %v1538
      %v1556 = vadd.f32 %v1501, %v1503
      %v1557 = vadd.f32 %v1556, %v1506
      %v1558 = vadd.f32 %v1557, %v1508
      %v1559 = vadd.f32 %v1558, %v1511
      %v1560 = vadd.f32 %v1559, %v1513
      %v1561 = vadd.f32 %v1560, %v1516
      %v1562 = vadd.f32 %v1561, %v1518
      %v1563 = vadd.f32 %v1562, %v1521
      %v1564 = vadd.f32 %v1563, %v1523
      %v1565 = vadd.f32 %v1564, %v1526
      %v1566 = vadd.f32 %v1565, %v1528
      %v1567 = vadd.f32 %v1566, %v1531
      %v1568 = vadd.f32 %v1567, %v1533
      %v1569 = vadd.f32 %v1568, %v1536
      %v1570 = vadd.f32 %v1569, %v1538
      %v1571 = vrot.slane %v1570, 4
      %v1572 = vadd.f32 %v1570, %v1571
      %v1573 = vrot.slane %v1572, 2
      %v1574 = vadd.f32 %v1572, %v1573
      %v1575 = vrot.slane %v1574, 1
      %v1576 = vadd.f32 %v1574, %v1575
      %1577 = vst [vmem:[%s251] sm:$0x1] %v1576
      %v1578 = vmul.f32 %v1501, %v1501
      %v1579 = vmul.f32 %v1503, %v1503
      %v1580 = vmul.f32 %v1506, %v1506
      %v1581 = vmul.f32 %v1508, %v1508
      %v1582 = vmul.f32 %v1511, %v1511
      %v1583 = vmul.f32 %v1513, %v1513
      %v1584 = vmul.f32 %v1516, %v1516
      %v1585 = vmul.f32 %v1518, %v1518
      %v1586 = vmul.f32 %v1521, %v1521
      %v1587 = vmul.f32 %v1523, %v1523
      %v1588 = vmul.f32 %v1526, %v1526
      %v1589 = vmul.f32 %v1528, %v1528
      %v1590 = vmul.f32 %v1531, %v1531
      %v1591 = vmul.f32 %v1533, %v1533
      %v1592 = vmul.f32 %v1536, %v1536
      %v1593 = vmul.f32 %v1538, %v1538
      %v1594 = vadd.f32 %v1578, %v1579
      %v1595 = vadd.f32 %v1594, %v1580
      %v1596 = vadd.f32 %v1595, %v1581
      %v1597 = vadd.f32 %v1596, %v1582
      %v1598 = vadd.f32 %v1597, %v1583
      %v1599 = vadd.f32 %v1598, %v1584
      %v1600 = vadd.f32 %v1599, %v1585
      %v1601 = vadd.f32 %v1600, %v1586
      %v1602 = vadd.f32 %v1601, %v1587
      %v1603 = vadd.f32 %v1602, %v1588
      %v1604 = vadd.f32 %v1603, %v1589
      %v1605 = vadd.f32 %v1604, %v1590
      %v1606 = vadd.f32 %v1605, %v1591
      %v1607 = vadd.f32 %v1606, %v1592
      %v1608 = vadd.f32 %v1607, %v1593
      %v1609 = vrot.slane %v1608, 4
      %v1610 = vadd.f32 %v1608, %v1609
      %v1611 = vrot.slane %v1610, 2
      %v1612 = vadd.f32 %v1610, %v1611
      %v1613 = vrot.slane %v1612, 1
      %v1614 = vadd.f32 %v1612, %v1613
      %1615 = vst [vmem:[%s251 + $0x1] sm:$0x1] %v1614
      %s1616 = smul.u32 16, %s20
      %p1617 = scmp.lt.s32.totalorder %s19, 3
      %s1618 = scalar_select %p1617, %s19, 3
      %p1619 = scmp.lt.s32.totalorder %s1616, 15
      %s1620 = scalar_select %p1619, %s1616, 15
      %s1621 = smul.addr %s1618, 16
      %s1622 = sadd.s32 %s1620, %s1621
      %s1623 = smul.addr %s1622, 8
      %s1624 = scalar_lea.vmem %s2, %s1623
      %p1625 = scmp.lt.s32.totalorder %s19, 3
      %s1626 = scalar_select %p1625, %s19, 3
      %p1627 = scmp.lt.s32.totalorder %s20, 0
      %s1628 = scalar_select %p1627, %s20, 0
      %s1629 = sadd.s32 %s1628, %s1626
      %s1630 = smul.addr %s1629, 2
      %s1631 = scalar_lea.vmem %s3, %s1630
      // Predicated region
      $region29: #{generator_forward.13} parent=27 // pred_check
        %p1632 = pneg %p101
      $region30: #{generator_forward.13} parent=27 // pred_check_branch
        %1634 = sbr.rel (%p1632) target = $region32
      $region31: #{generator_forward.13} parent=27 // pred_region
        %s1635 = smul.u32 16, %s20
      $region32: #{generator_forward.13} parent=27 // pred_fallthru
        _
      // Predicated region
      $region33: #{generator_forward.13} parent=27 // pred_check
        %p1636 = pneg %p129
      $region34: #{generator_forward.13} parent=27 // pred_check_branch
        %1638 = sbr.rel (%p1636) target = $region36
      $region35: #{generator_forward.13} parent=27 // pred_region
        _
      $region36: #{generator_forward.13} parent=27 // pred_fallthru
        _
    $region28: #{generator_forward.13} parent=5 // pred_fallthru
      _
    %p1639 = scmp.le.s32.totalorder 2, %s10
    // Predicated region
    $region37: #{generator_forward.13} parent=5 // pred_check
      %p1640 = pneg %p1639
    $region38: #{generator_forward.13} parent=5 // pred_check_branch
      %1642 = sbr.rel (%p1640) target = $region40
    $region39: #{generator_forward.13} parent=5 // pred_region
      %s1643 = ssub.s32 %s10, 2
      // Predicated region
      $region41: #{generator_forward.13} parent=39 // pred_check
        %p1644 = pneg %p107
      $region42: #{generator_forward.13} parent=39 // pred_check_branch
        %1646 = sbr.rel (%p1644) target = $region44
      $region43: #{generator_forward.13} parent=39 // pred_region
        %s1647 = smul.u32 16, %s22
        %p1648 = scmp.lt.s32.totalorder %s21, 3
        %s1649 = scalar_select %p1648, %s21, 3
        %p1650 = scmp.lt.s32.totalorder %s1647, 15
        %s1651 = scalar_select %p1650, %s1647, 15
        %s1652 = smul.addr %s1649, 16
        %s1653 = sadd.s32 %s1651, %s1652
        %s1654 = smul.addr %s1653, 8
        %s1655 = scalar_lea.vmem %s2, %s1654
      $region44: #{generator_forward.13} parent=39 // pred_fallthru
        _
      // Predicated region
      $region45: #{generator_forward.13} parent=39 // pred_check
        %p1656 = pneg %p135
      $region46: #{generator_forward.13} parent=39 // pred_check_branch
        %1658 = sbr.rel (%p1656) target = $region48
      $region47: #{generator_forward.13} parent=39 // pred_region
        %p1659 = scmp.lt.s32.totalorder %s21, 3
        %s1660 = scalar_select %p1659, %s21, 3
        %p1661 = scmp.lt.s32.totalorder %s22, 0
        %s1662 = scalar_select %p1661, %s22, 0
        %s1663 = sadd.s32 %s1662, %s1660
        %s1664 = smul.addr %s1663, 2
        %s1665 = scalar_lea.vmem %s3, %s1664
      $region48: #{generator_forward.13} parent=39 // pred_fallthru
        _
    $region40: #{generator_forward.13} parent=5 // pred_fallthru
      _
  $region6: #{generator_forward.13} parent=0 // loop_footer
    %s14 = sadd.s32 1, %s10
  $region7: #{generator_forward.13} parent=0 // loop_footer_branch
    %9 = sbr.rel target = $region3
  $region8: #{generator_forward.13} parent=0 // loop_exit
    _

// kernel: generator_forward.16
$region0: #{generator_forward.16}
  #allocation0 [shape = 'u32[]', space=smem, size = 0x4, offset = 0x4, fixed_abs, tag = 'smem constant byte address 0x4 - core index']
  #allocation1 [shape = 'u32[72,128]{1,0:T(1,128)}', space=vmem, size = 0x9000, scoped, tag = 'internal scratch']
  %s0 = inlined_call_operand.vmem [shape: f32[2048,64], index: 0, kind: input, shape index: {}]
  %s1 = inlined_call_operand.vmem [shape: f32[1,64], index: 1, kind: input, shape index: {}]
  %s2 = inlined_call_operand.vmem [shape: f32[1,64], index: 2, kind: input, shape index: {}]
  %s3 = inlined_call_operand.vmem [shape: bf16[2048,64], index: 3, kind: output, shape index: {}]
  %s4 = sld [smem:[#allocation0]]
  $region45: #{generator_forward.16} parent=0
    _
  %s6 = ssub.s32 1, %s4
  %s7 = scalar_select 0, %s6, %s4
  loop: start=0, step=1, limit=6
  $region2: #{generator_forward.16} parent=0 // loop_pre_header
    _
  $region3: #{generator_forward.16} parent=0 // loop_header
    %s9 = sphi 0, %s13
    %p10 = scmp.ge.s32.totalorder %s9, 6
    %s19 = sphi 0, %s21
    %s22 = sphi 0, %s19
    %s23 = sphi 0, %s22
    %s39 = sphi 0, %s23
    %s43 = sphi 0, %s43
    %s45 = sphi 0, %s43
    %s46 = sphi 0, %s45
    %s60 = sphi 0, %s46
    %s64 = sphi 0, %s64
    %s66 = sphi 0, %s64
    %s67 = sphi 0, %s66
    %s81 = sphi 0, %s67
    %s87 = sphi 0, %s89
    %s90 = sphi 0, %s87
    %s91 = sphi 0, %s90
    %s107 = sphi 0, %s91
  $region4: #{generator_forward.16} parent=0 // loop_header_branch
    %12 = sbr.rel (%p10) target = $region8
  $region5: #{generator_forward.16} parent=0 // loop_body
    %s14 = ssub.s32 %s9, 1
    %s15 = ssub.s32 %s9, 2
    %s16 = sadd.s32 %s9, 1
    %s17 = ssub.s32 %s9, %s16
    %p18 = scmp.eq.s32.totalorder %s17, 0
    %s20 = sadd.s32 %s19, 1
    %s21 = scalar_select %p18, %s19, %s20
    %p24 = pneg %p18
    %p25 = scmp.eq.s32.totalorder %s9, 3
    %p26 = por %p24, %p25
    %p27 = scmp.ne.s32.totalorder %s19, %s22
    %p28 = scmp.eq.s32.totalorder %s9, 0
    %p29 = por %p27, %p28
    %p30 = scmp.ne.s32.totalorder %s19, %s22
    %p31 = scmp.eq.s32.totalorder %s14, 3
    %p32 = por %p30, %p31
    %p33 = scmp.ne.s32.totalorder %s22, %s23
    %p34 = scmp.eq.s32.totalorder %s14, 0
    %p35 = por %p33, %p34
    %p36 = scmp.ne.s32.totalorder %s22, %s23
    %p37 = scmp.eq.s32.totalorder %s15, 3
    %p38 = por %p36, %p37
    %p40 = scmp.ne.s32.totalorder %s23, %s39
    %p41 = scmp.eq.s32.totalorder %s15, 0
    %p42 = por %p40, %p41
    %s44 = sadd.s32 %s43, 1
    %p47 = scmp.eq.s32.totalorder %s9, 3
    %p48 = scmp.ne.s32.totalorder %s43, %s45
    %p49 = scmp.eq.s32.totalorder %s9, 0
    %p50 = por %p48, %p49
    %p51 = scmp.ne.s32.totalorder %s43, %s45
    %p52 = scmp.eq.s32.totalorder %s14, 3
    %p53 = por %p51, %p52
    %p54 = scmp.ne.s32.totalorder %s45, %s46
    %p55 = scmp.eq.s32.totalorder %s14, 0
    %p56 = por %p54, %p55
    %p57 = scmp.ne.s32.totalorder %s45, %s46
    %p58 = scmp.eq.s32.totalorder %s15, 3
    %p59 = por %p57, %p58
    %p61 = scmp.ne.s32.totalorder %s46, %s60
    %p62 = scmp.eq.s32.totalorder %s15, 0
    %p63 = por %p61, %p62
    %s65 = sadd.s32 %s64, 1
    %p68 = scmp.eq.s32.totalorder %s9, 3
    %p69 = scmp.ne.s32.totalorder %s64, %s66
    %p70 = scmp.eq.s32.totalorder %s9, 0
    %p71 = por %p69, %p70
    %p72 = scmp.ne.s32.totalorder %s64, %s66
    %p73 = scmp.eq.s32.totalorder %s14, 3
    %p74 = por %p72, %p73
    %p75 = scmp.ne.s32.totalorder %s66, %s67
    %p76 = scmp.eq.s32.totalorder %s14, 0
    %p77 = por %p75, %p76
    %p78 = scmp.ne.s32.totalorder %s66, %s67
    %p79 = scmp.eq.s32.totalorder %s15, 3
    %p80 = por %p78, %p79
    %p82 = scmp.ne.s32.totalorder %s67, %s81
    %p83 = scmp.eq.s32.totalorder %s15, 0
    %p84 = por %p82, %p83
    %s85 = ssub.s32 %s9, %s16
    %p86 = scmp.eq.s32.totalorder %s85, 0
    %s88 = sadd.s32 %s87, 1
    %s89 = scalar_select %p86, %s87, %s88
    %p92 = pneg %p86
    %p93 = scmp.eq.s32.totalorder %s9, 3
    %p94 = por %p92, %p93
    %p95 = scmp.ne.s32.totalorder %s87, %s90
    %p96 = scmp.eq.s32.totalorder %s9, 0
    %p97 = por %p95, %p96
    %p98 = scmp.ne.s32.totalorder %s87, %s90
    %p99 = scmp.eq.s32.totalorder %s14, 3
    %p100 = por %p98, %p99
    %p101 = scmp.ne.s32.totalorder %s90, %s91
    %p102 = scmp.eq.s32.totalorder %s14, 0
    %p103 = por %p101, %p102
    %p104 = scmp.ne.s32.totalorder %s90, %s91
    %p105 = scmp.eq.s32.totalorder %s15, 3
    %p106 = por %p104, %p105
    %p108 = scmp.ne.s32.totalorder %s91, %s107
    %p109 = scmp.eq.s32.totalorder %s15, 0
    %p110 = por %p108, %p109
    %p111 = scmp.le.s32.totalorder 1, %s9
    %p112 = scmp.lt.s32.totalorder %s9, 5
    %p113 = pnand %p111, %p112
    %p114 = pneg %p113
    // Predicated region
    $region9: #{generator_forward.16} parent=5 // pred_check
      _
    $region10: #{generator_forward.16} parent=5 // pred_check_branch
      %116 = sbr.rel (%p113) target = $region12
    $region11: #{generator_forward.16} parent=5 // pred_region
      %s117 = ssub.s32 %s9, 1
      // Predicated region
      $region13: #{generator_forward.16} parent=11 // pred_check
        %p118 = pneg %p56
      $region14: #{generator_forward.16} parent=11 // pred_check_branch
        %120 = sbr.rel (%p118) target = $region16
      $region15: #{generator_forward.16} parent=11 // pred_region
        _
      $region16: #{generator_forward.16} parent=11 // pred_fallthru
        _
      // Predicated region
      $region17: #{generator_forward.16} parent=11 // pred_check
        %p121 = pneg %p77
      $region18: #{generator_forward.16} parent=11 // pred_check_branch
        %123 = sbr.rel (%p121) target = $region20
      $region19: #{generator_forward.16} parent=11 // pred_region
        _
      $region20: #{generator_forward.16} parent=11 // pred_fallthru
        _
    $region12: #{generator_forward.16} parent=5 // pred_fallthru
      _
    %p124 = scmp.lt.s32.totalorder %s9, 4
    // Predicated region
    $region21: #{generator_forward.16} parent=5 // pred_check
      %p125 = pneg %p124
    $region22: #{generator_forward.16} parent=5 // pred_check_branch
      %127 = sbr.rel (%p125) target = $region24
    $region23: #{generator_forward.16} parent=5 // pred_region
      // Predicated region
      $region25: #{generator_forward.16} parent=23 // pred_check
        %p128 = pneg %p29
      $region26: #{generator_forward.16} parent=23 // pred_check_branch
        %130 = sbr.rel (%p128) target = $region28
      $region27: #{generator_forward.16} parent=23 // pred_region
        %s131 = smul.u32 64, %s9
        %p132 = scmp.lt.s32.totalorder %s131, 255
        %s133 = scalar_select %p132, %s131, 255
        %s134 = smul.addr %s133, 8
        %s135 = scalar_lea.vmem %s0, %s134
        %s136 = smul.u32 64, %s9
      $region28: #{generator_forward.16} parent=23 // pred_fallthru
        _
    $region24: #{generator_forward.16} parent=5 // pred_fallthru
      _
    %p137 = scmp.le.s32.totalorder 1, %s9
    %p138 = scmp.lt.s32.totalorder %s9, 5
    %p139 = pnand %p137, %p138
    %p140 = pneg %p139
    // Predicated region
    $region29: #{generator_forward.16} parent=5 // pred_check
      _
    $region30: #{generator_forward.16} parent=5 // pred_check_branch
      %142 = sbr.rel (%p139) target = $region32
    $region31: #{generator_forward.16} parent=5 // pred_region
      %s143 = ssub.s32 %s9, 1
      %s144 = smul.u32 64, %s14
      %p145 = scmp.lt.s32.totalorder %s144, 255
      %s146 = scalar_select %p145, %s144, 255
      %s147 = smul.addr %s146, 8
      %s148 = scalar_lea.vmem %s0, %s147
      %p149 = pneg %p35
      %p150 = pneg %p32
      %p151 = pneg %p56
      %p152 = pneg %p53
      %p153 = pneg %p77
      %p154 = pneg %p74
      %p155 = pneg %p103
      %p156 = pneg %p100
      %s157 = smul.u32 64, %s14
      %p158 = scmp.lt.s32.totalorder %s157, 255
      %s159 = scalar_select %p158, %s157, 255
      %s160 = smul.addr %s159, 4
      %s161 = scalar_lea.vmem %s3, %s160
      %s162 = smul.u32 64, %s14
      %p163 = scmp.lt.s32.totalorder %s162, 255
      %s164 = scalar_select %p163, %s162, 255
      %s165 = smul.addr %s164, 8
      %s166 = scalar_lea.vmem %s0, %s165
      %s167 = smul.u32 64, %s14
      %s168 = smul.u32 64, %s14
      %p169 = scmp.lt.s32.totalorder %s168, 255
      %s170 = scalar_select %p169, %s168, 255
      %s171 = smul.addr %s170, 4
      %s172 = scalar_lea.vmem %s3, %s171
      %s173 = smul.u32 64, %s14
      %v174 = vld [vmem:[%s166] sm:$0xff]
      %v175 = vld [vmem:[%s166 + $0x8] sm:$0xff]
      %v176 = vld [vmem:[%s166 + $0x10] sm:$0xff]
      %v177 = vld [vmem:[%s166 + $0x18] sm:$0xff]
      %v178 = vld [vmem:[%s166 + $0x20] sm:$0xff]
      %v179 = vld [vmem:[%s166 + $0x28] sm:$0xff]
      %v180 = vld [vmem:[%s166 + $0x30] sm:$0xff]
      %v181 = vld [vmem:[%s166 + $0x38] sm:$0xff]
      %v182 = vld [vmem:[%s166 + $0x40] sm:$0xff]
      %v183 = vld [vmem:[%s166 + $0x48] sm:$0xff]
      %v184 = vld [vmem:[%s166 + $0x50] sm:$0xff]
      %v185 = vld [vmem:[%s166 + $0x58] sm:$0xff]
      %v186 = vld [vmem:[%s166 + $0x60] sm:$0xff]
      %v187 = vld [vmem:[%s166 + $0x68] sm:$0xff]
      %v188 = vld [vmem:[%s166 + $0x70] sm:$0xff]
      %v189 = vld [vmem:[%s166 + $0x78] sm:$0xff]
      %v190 = vld [vmem:[%s166 + $0x80] sm:$0xff]
      %v191 = vld [vmem:[%s166 + $0x88] sm:$0xff]
      %v192 = vld [vmem:[%s166 + $0x90] sm:$0xff]
      %v193 = vld [vmem:[%s166 + $0x98] sm:$0xff]
      %v194 = vld [vmem:[%s166 + $0xa0] sm:$0xff]
      %v195 = vld [vmem:[%s166 + $0xa8] sm:$0xff]
      %v196 = vld [vmem:[%s166 + $0xb0] sm:$0xff]
      %v197 = vld [vmem:[%s166 + $0xb8] sm:$0xff]
      %v198 = vld [vmem:[%s166 + $0xc0] sm:$0xff]
      %v199 = vld [vmem:[%s166 + $0xc8] sm:$0xff]
      %v200 = vld [vmem:[%s166 + $0xd0] sm:$0xff]
      %v201 = vld [vmem:[%s166 + $0xd8] sm:$0xff]
      %v202 = vld [vmem:[%s166 + $0xe0] sm:$0xff]
      %v203 = vld [vmem:[%s166 + $0xe8] sm:$0xff]
      %v204 = vld [vmem:[%s166 + $0xf0] sm:$0xff]
      %v205 = vld [vmem:[%s166 + $0xf8] sm:$0xff]
      %v206 = vld [vmem:[%s166 + $0x100] sm:$0xff]
      %v207 = vld [vmem:[%s166 + $0x108] sm:$0xff]
      %v208 = vld [vmem:[%s166 + $0x110] sm:$0xff]
      %v209 = vld [vmem:[%s166 + $0x118] sm:$0xff]
      %v210 = vld [vmem:[%s166 + $0x120] sm:$0xff]
      %v211 = vld [vmem:[%s166 + $0x128] sm:$0xff]
      %v212 = vld [vmem:[%s166 + $0x130] sm:$0xff]
      %v213 = vld [vmem:[%s166 + $0x138] sm:$0xff]
      %v214 = vld [vmem:[%s166 + $0x140] sm:$0xff]
      %v215 = vld [vmem:[%s166 + $0x148] sm:$0xff]
      %v216 = vld [vmem:[%s166 + $0x150] sm:$0xff]
      %v217 = vld [vmem:[%s166 + $0x158] sm:$0xff]
      %v218 = vld [vmem:[%s166 + $0x160] sm:$0xff]
      %v219 = vld [vmem:[%s166 + $0x168] sm:$0xff]
      %v220 = vld [vmem:[%s166 + $0x170] sm:$0xff]
      %v221 = vld [vmem:[%s166 + $0x178] sm:$0xff]
      %v222 = vld [vmem:[%s166 + $0x180] sm:$0xff]
      %v223 = vld [vmem:[%s166 + $0x188] sm:$0xff]
      %v224 = vld [vmem:[%s166 + $0x190] sm:$0xff]
      %v225 = vld [vmem:[%s166 + $0x198] sm:$0xff]
      %v226 = vld [vmem:[%s166 + $0x1a0] sm:$0xff]
      %v227 = vld [vmem:[%s166 + $0x1a8] sm:$0xff]
      %v228 = vld [vmem:[%s166 + $0x1b0] sm:$0xff]
      %v229 = vld [vmem:[%s166 + $0x1b8] sm:$0xff]
      %v230 = vld [vmem:[%s166 + $0x1c0] sm:$0xff]
      %v231 = vld [vmem:[%s166 + $0x1c8] sm:$0xff]
      %v232 = vld [vmem:[%s166 + $0x1d0] sm:$0xff]
      %v233 = vld [vmem:[%s166 + $0x1d8] sm:$0xff]
      %v234 = vld [vmem:[%s166 + $0x1e0] sm:$0xff]
      %v235 = vld [vmem:[%s166 + $0x1e8] sm:$0xff]
      %v236 = vld [vmem:[%s166 + $0x1f0] sm:$0xff]
      %v237 = vld [vmem:[%s166 + $0x1f8] sm:$0xff]
      %v238 = vld [vmem:[%s1] sm:$0x1]
      %v240 = vperm.slane %v238, 0
      %v242 = vmul.f32 %v174, %v240
      %v243 = vmul.f32 %v175, %v240
      %v244 = vmul.f32 %v176, %v240
      %v245 = vmul.f32 %v177, %v240
      %v246 = vmul.f32 %v178, %v240
      %v247 = vmul.f32 %v179, %v240
      %v248 = vmul.f32 %v180, %v240
      %v249 = vmul.f32 %v181, %v240
      %v250 = vmul.f32 %v182, %v240
      %v251 = vmul.f32 %v183, %v240
      %v252 = vmul.f32 %v184, %v240
      %v253 = vmul.f32 %v185, %v240
      %v254 = vmul.f32 %v186, %v240
      %v255 = vmul.f32 %v187, %v240
      %v256 = vmul.f32 %v188, %v240
      %v257 = vmul.f32 %v189, %v240
      %v258 = vmul.f32 %v190, %v240
      %v259 = vmul.f32 %v191, %v240
      %v260 = vmul.f32 %v192, %v240
      %v261 = vmul.f32 %v193, %v240
      %v262 = vmul.f32 %v194, %v240
      %v263 = vmul.f32 %v195, %v240
      %v264 = vmul.f32 %v196, %v240
      %v265 = vmul.f32 %v197, %v240
      %v266 = vmul.f32 %v198, %v240
      %v267 = vmul.f32 %v199, %v240
      %v268 = vmul.f32 %v200, %v240
      %v269 = vmul.f32 %v201, %v240
      %v270 = vmul.f32 %v202, %v240
      %v271 = vmul.f32 %v203, %v240
      %v272 = vmul.f32 %v204, %v240
      %v273 = vmul.f32 %v205, %v240
      %v274 = vmul.f32 %v206, %v240
      %v275 = vmul.f32 %v207, %v240
      %v276 = vmul.f32 %v208, %v240
      %v277 = vmul.f32 %v209, %v240
      %v278 = vmul.f32 %v210, %v240
      %v279 = vmul.f32 %v211, %v240
      %v280 = vmul.f32 %v212, %v240
      %v281 = vmul.f32 %v213, %v240
      %v282 = vmul.f32 %v214, %v240
      %v283 = vmul.f32 %v215, %v240
      %v284 = vmul.f32 %v216, %v240
      %v285 = vmul.f32 %v217, %v240
      %v286 = vmul.f32 %v218, %v240
      %v287 = vmul.f32 %v219, %v240
      %v288 = vmul.f32 %v220, %v240
      %v289 = vmul.f32 %v221, %v240
      %v290 = vmul.f32 %v222, %v240
      %v291 = vmul.f32 %v223, %v240
      %v292 = vmul.f32 %v224, %v240
      %v293 = vmul.f32 %v225, %v240
      %v294 = vmul.f32 %v226, %v240
      %v295 = vmul.f32 %v227, %v240
      %v296 = vmul.f32 %v228, %v240
      %v297 = vmul.f32 %v229, %v240
      %v298 = vmul.f32 %v230, %v240
      %v299 = vmul.f32 %v231, %v240
      %v300 = vmul.f32 %v232, %v240
      %v301 = vmul.f32 %v233, %v240
      %v302 = vmul.f32 %v234, %v240
      %v303 = vmul.f32 %v235, %v240
      %v304 = vmul.f32 %v236, %v240
      %v305 = vmul.f32 %v237, %v240
      %v306 = vld [vmem:[%s2] sm:$0x1]
      %v308 = vperm.slane %v306, 0
      %v310 = vadd.f32 %v242, %v308
      %v311 = vadd.f32 %v243, %v308
      %v312 = vadd.f32 %v244, %v308
      %v313 = vadd.f32 %v245, %v308
      %v314 = vadd.f32 %v246, %v308
      %v315 = vadd.f32 %v247, %v308
      %v316 = vadd.f32 %v248, %v308
      %v317 = vadd.f32 %v249, %v308
      %v318 = vadd.f32 %v250, %v308
      %v319 = vadd.f32 %v251, %v308
      %v320 = vadd.f32 %v252, %v308
      %v321 = vadd.f32 %v253, %v308
      %v322 = vadd.f32 %v254, %v308
      %v323 = vadd.f32 %v255, %v308
      %v324 = vadd.f32 %v256, %v308
      %v325 = vadd.f32 %v257, %v308
      %v326 = vadd.f32 %v258, %v308
      %v327 = vadd.f32 %v259, %v308
      %v328 = vadd.f32 %v260, %v308
      %v329 = vadd.f32 %v261, %v308
      %v330 = vadd.f32 %v262, %v308
      %v331 = vadd.f32 %v263, %v308
      %v332 = vadd.f32 %v264, %v308
      %v333 = vadd.f32 %v265, %v308
      %v334 = vadd.f32 %v266, %v308
      %v335 = vadd.f32 %v267, %v308
      %v336 = vadd.f32 %v268, %v308
      %v337 = vadd.f32 %v269, %v308
      %v338 = vadd.f32 %v270, %v308
      %v339 = vadd.f32 %v271, %v308
      %v340 = vadd.f32 %v272, %v308
      %v341 = vadd.f32 %v273, %v308
      %v342 = vadd.f32 %v274, %v308
      %v343 = vadd.f32 %v275, %v308
      %v344 = vadd.f32 %v276, %v308
      %v345 = vadd.f32 %v277, %v308
      %v346 = vadd.f32 %v278, %v308
      %v347 = vadd.f32 %v279, %v308
      %v348 = vadd.f32 %v280, %v308
      %v349 = vadd.f32 %v281, %v308
      %v350 = vadd.f32 %v282, %v308
      %v351 = vadd.f32 %v283, %v308
      %v352 = vadd.f32 %v284, %v308
      %v353 = vadd.f32 %v285, %v308
      %v354 = vadd.f32 %v286, %v308
      %v355 = vadd.f32 %v287, %v308
      %v356 = vadd.f32 %v288, %v308
      %v357 = vadd.f32 %v289, %v308
      %v358 = vadd.f32 %v290, %v308
      %v359 = vadd.f32 %v291, %v308
      %v360 = vadd.f32 %v292, %v308
      %v361 = vadd.f32 %v293, %v308
      %v362 = vadd.f32 %v294, %v308
      %v363 = vadd.f32 %v295, %v308
      %v364 = vadd.f32 %v296, %v308
      %v365 = vadd.f32 %v297, %v308
      %v366 = vadd.f32 %v298, %v308
      %v367 = vadd.f32 %v299, %v308
      %v368 = vadd.f32 %v300, %v308
      %v369 = vadd.f32 %v301, %v308
      %v370 = vadd.f32 %v302, %v308
      %v371 = vadd.f32 %v303, %v308
      %v372 = vadd.f32 %v304, %v308
      %v373 = vadd.f32 %v305, %v308
      %v374 = vmax.f32 %v310, 0.0
      %v375 = vmax.f32 %v311, 0.0
      %v376 = vmax.f32 %v312, 0.0
      %v377 = vmax.f32 %v313, 0.0
      %v378 = vmax.f32 %v314, 0.0
      %v379 = vmax.f32 %v315, 0.0
      %v380 = vmax.f32 %v316, 0.0
      %v381 = vmax.f32 %v317, 0.0
      %v382 = vmax.f32 %v318, 0.0
      %v383 = vmax.f32 %v319, 0.0
      %v384 = vmax.f32 %v320, 0.0
      %v385 = vmax.f32 %v321, 0.0
      %v386 = vmax.f32 %v322, 0.0
      %v387 = vmax.f32 %v323, 0.0
      %v388 = vmax.f32 %v324, 0.0
      %v389 = vmax.f32 %v325, 0.0
      %v390 = vmax.f32 %v326, 0.0
      %v391 = vmax.f32 %v327, 0.0
      %v392 = vmax.f32 %v328, 0.0
      %v393 = vmax.f32 %v329, 0.0
      %v394 = vmax.f32 %v330, 0.0
      %v395 = vmax.f32 %v331, 0.0
      %v396 = vmax.f32 %v332, 0.0
      %v397 = vmax.f32 %v333, 0.0
      %v398 = vmax.f32 %v334, 0.0
      %v399 = vmax.f32 %v335, 0.0
      %v400 = vmax.f32 %v336, 0.0
      %v401 = vmax.f32 %v337, 0.0
      %v402 = vmax.f32 %v338, 0.0
      %v403 = vmax.f32 %v339, 0.0
      %v404 = vmax.f32 %v340, 0.0
      %v405 = vmax.f32 %v341, 0.0
      %v406 = vmax.f32 %v342, 0.0
      %v407 = vmax.f32 %v343, 0.0
      %v408 = vmax.f32 %v344, 0.0
      %v409 = vmax.f32 %v345, 0.0
      %v410 = vmax.f32 %v346, 0.0
      %v411 = vmax.f32 %v347, 0.0
      %v412 = vmax.f32 %v348, 0.0
      %v413 = vmax.f32 %v349, 0.0
      %v414 = vmax.f32 %v350, 0.0
      %v415 = vmax.f32 %v351, 0.0
      %v416 = vmax.f32 %v352, 0.0
      %v417 = vmax.f32 %v353, 0.0
      %v418 = vmax.f32 %v354, 0.0
      %v419 = vmax.f32 %v355, 0.0
      %v420 = vmax.f32 %v356, 0.0
      %v421 = vmax.f32 %v357, 0.0
      %v422 = vmax.f32 %v358, 0.0
      %v423 = vmax.f32 %v359, 0.0
      %v424 = vmax.f32 %v360, 0.0
      %v425 = vmax.f32 %v361, 0.0
      %v426 = vmax.f32 %v362, 0.0
      %v427 = vmax.f32 %v363, 0.0
      %v428 = vmax.f32 %v364, 0.0
      %v429 = vmax.f32 %v365, 0.0
      %v430 = vmax.f32 %v366, 0.0
      %v431 = vmax.f32 %v367, 0.0
      %v432 = vmax.f32 %v368, 0.0
      %v433 = vmax.f32 %v369, 0.0
      %v434 = vmax.f32 %v370, 0.0
      %v435 = vmax.f32 %v371, 0.0
      %v436 = vmax.f32 %v372, 0.0
      %v437 = vmax.f32 %v373, 0.0
      %v438 = vpack.c.bf16 %v374, %v374
      %v439 = vpack.c.bf16 %v375, %v375
      %v440 = vpack.c.bf16 %v376, %v376
      %v441 = vpack.c.bf16 %v377, %v377
      %v442 = vpack.c.bf16 %v378, %v378
      %v443 = vpack.c.bf16 %v379, %v379
      %v444 = vpack.c.bf16 %v380, %v380
      %v445 = vpack.c.bf16 %v381, %v381
      %v446 = vpack.c.bf16 %v382, %v382
      %v447 = vpack.c.bf16 %v383, %v383
      %v448 = vpack.c.bf16 %v384, %v384
      %v449 = vpack.c.bf16 %v385, %v385
      %v450 = vpack.c.bf16 %v386, %v386
      %v451 = vpack.c.bf16 %v387, %v387
      %v452 = vpack.c.bf16 %v388, %v388
      %v453 = vpack.c.bf16 %v389, %v389
      %v454 = vpack.c.bf16 %v390, %v390
      %v455 = vpack.c.bf16 %v391, %v391
      %v456 = vpack.c.bf16 %v392, %v392
      %v457 = vpack.c.bf16 %v393, %v393
      %v458 = vpack.c.bf16 %v394, %v394
      %v459 = vpack.c.bf16 %v395, %v395
      %v460 = vpack.c.bf16 %v396, %v396
      %v461 = vpack.c.bf16 %v397, %v397
      %v462 = vpack.c.bf16 %v398, %v398
      %v463 = vpack.c.bf16 %v399, %v399
      %v464 = vpack.c.bf16 %v400, %v400
      %v465 = vpack.c.bf16 %v401, %v401
      %v466 = vpack.c.bf16 %v402, %v402
      %v467 = vpack.c.bf16 %v403, %v403
      %v468 = vpack.c.bf16 %v404, %v404
      %v469 = vpack.c.bf16 %v405, %v405
      %v470 = vpack.c.bf16 %v406, %v406
      %v471 = vpack.c.bf16 %v407, %v407
      %v472 = vpack.c.bf16 %v408, %v408
      %v473 = vpack.c.bf16 %v409, %v409
      %v474 = vpack.c.bf16 %v410, %v410
      %v475 = vpack.c.bf16 %v411, %v411
      %v476 = vpack.c.bf16 %v412, %v412
      %v477 = vpack.c.bf16 %v413, %v413
      %v478 = vpack.c.bf16 %v414, %v414
      %v479 = vpack.c.bf16 %v415, %v415
      %v480 = vpack.c.bf16 %v416, %v416
      %v481 = vpack.c.bf16 %v417, %v417
      %v482 = vpack.c.bf16 %v418, %v418
      %v483 = vpack.c.bf16 %v419, %v419
      %v484 = vpack.c.bf16 %v420, %v420
      %v485 = vpack.c.bf16 %v421, %v421
      %v486 = vpack.c.bf16 %v422, %v422
      %v487 = vpack.c.bf16 %v423, %v423
      %v488 = vpack.c.bf16 %v424, %v424
      %v489 = vpack.c.bf16 %v425, %v425
      %v490 = vpack.c.bf16 %v426, %v426
      %v491 = vpack.c.bf16 %v427, %v427
      %v492 = vpack.c.bf16 %v428, %v428
      %v493 = vpack.c.bf16 %v429, %v429
      %v494 = vpack.c.bf16 %v430, %v430
      %v495 = vpack.c.bf16 %v431, %v431
      %v496 = vpack.c.bf16 %v432, %v432
      %v497 = vpack.c.bf16 %v433, %v433
      %v498 = vpack.c.bf16 %v434, %v434
      %v499 = vpack.c.bf16 %v435, %v435
      %v500 = vpack.c.bf16 %v436, %v436
      %v501 = vpack.c.bf16 %v437, %v437
      %vm502 = vcmask 519168
      %503 = vst.msk [vmem:[%s172] sm:$0xf] %vm502, %v438
      %504 = vst.msk [vmem:[%s172 + $0x4] sm:$0xf] %vm502, %v439
      %505 = vst.msk [vmem:[%s172 + $0x8] sm:$0xf] %vm502, %v440
      %506 = vst.msk [vmem:[%s172 + $0xc] sm:$0xf] %vm502, %v441
      %507 = vst.msk [vmem:[%s172 + $0x10] sm:$0xf] %vm502, %v442
      %508 = vst.msk [vmem:[%s172 + $0x14] sm:$0xf] %vm502, %v443
      %509 = vst.msk [vmem:[%s172 + $0x18] sm:$0xf] %vm502, %v444
      %510 = vst.msk [vmem:[%s172 + $0x1c] sm:$0xf] %vm502, %v445
      %511 = vst.msk [vmem:[%s172 + $0x20] sm:$0xf] %vm502, %v446
      %512 = vst.msk [vmem:[%s172 + $0x24] sm:$0xf] %vm502, %v447
      %513 = vst.msk [vmem:[%s172 + $0x28] sm:$0xf] %vm502, %v448
      %514 = vst.msk [vmem:[%s172 + $0x2c] sm:$0xf] %vm502, %v449
      %515 = vst.msk [vmem:[%s172 + $0x30] sm:$0xf] %vm502, %v450
      %516 = vst.msk [vmem:[%s172 + $0x34] sm:$0xf] %vm502, %v451
      %517 = vst.msk [vmem:[%s172 + $0x38] sm:$0xf] %vm502, %v452
      %518 = vst.msk [vmem:[%s172 + $0x3c] sm:$0xf] %vm502, %v453
      %519 = vst.msk [vmem:[%s172 + $0x40] sm:$0xf] %vm502, %v454
      %520 = vst.msk [vmem:[%s172 + $0x44] sm:$0xf] %vm502, %v455
      %521 = vst.msk [vmem:[%s172 + $0x48] sm:$0xf] %vm502, %v456
      %522 = vst.msk [vmem:[%s172 + $0x4c] sm:$0xf] %vm502, %v457
      %523 = vst.msk [vmem:[%s172 + $0x50] sm:$0xf] %vm502, %v458
      %524 = vst.msk [vmem:[%s172 + $0x54] sm:$0xf] %vm502, %v459
      %525 = vst.msk [vmem:[%s172 + $0x58] sm:$0xf] %vm502, %v460
      %526 = vst.msk [vmem:[%s172 + $0x5c] sm:$0xf] %vm502, %v461
      %527 = vst.msk [vmem:[%s172 + $0x60] sm:$0xf] %vm502, %v462
      %528 = vst.msk [vmem:[%s172 + $0x64] sm:$0xf] %vm502, %v463
      %529 = vst.msk [vmem:[%s172 + $0x68] sm:$0xf] %vm502, %v464
      %530 = vst.msk [vmem:[%s172 + $0x6c] sm:$0xf] %vm502, %v465
      %531 = vst.msk [vmem:[%s172 + $0x70] sm:$0xf] %vm502, %v466
      %532 = vst.msk [vmem:[%s172 + $0x74] sm:$0xf] %vm502, %v467
      %533 = vst.msk [vmem:[%s172 + $0x78] sm:$0xf] %vm502, %v468
      %534 = vst.msk [vmem:[%s172 + $0x7c] sm:$0xf] %vm502, %v469
      %535 = vst.msk [vmem:[%s172 + $0x80] sm:$0xf] %vm502, %v470
      %536 = vst.msk [vmem:[%s172 + $0x84] sm:$0xf] %vm502, %v471
      %537 = vst.msk [vmem:[%s172 + $0x88] sm:$0xf] %vm502, %v472
      %538 = vst.msk [vmem:[%s172 + $0x8c] sm:$0xf] %vm502, %v473
      %539 = vst.msk [vmem:[%s172 + $0x90] sm:$0xf] %vm502, %v474
      %540 = vst.msk [vmem:[%s172 + $0x94] sm:$0xf] %vm502, %v475
      %541 = vst.msk [vmem:[%s172 + $0x98] sm:$0xf] %vm502, %v476
      %542 = vst.msk [vmem:[%s172 + $0x9c] sm:$0xf] %vm502, %v477
      %543 = vst.msk [vmem:[%s172 + $0xa0] sm:$0xf] %vm502, %v478
      %544 = vst.msk [vmem:[%s172 + $0xa4] sm:$0xf] %vm502, %v479
      %545 = vst.msk [vmem:[%s172 + $0xa8] sm:$0xf] %vm502, %v480
      %546 = vst.msk [vmem:[%s172 + $0xac] sm:$0xf] %vm502, %v481
      %547 = vst.msk [vmem:[%s172 + $0xb0] sm:$0xf] %vm502, %v482
      %548 = vst.msk [vmem:[%s172 + $0xb4] sm:$0xf] %vm502, %v483
      %549 = vst.msk [vmem:[%s172 + $0xb8] sm:$0xf] %vm502, %v484
      %550 = vst.msk [vmem:[%s172 + $0xbc] sm:$0xf] %vm502, %v485
      %551 = vst.msk [vmem:[%s172 + $0xc0] sm:$0xf] %vm502, %v486
      %552 = vst.msk [vmem:[%s172 + $0xc4] sm:$0xf] %vm502, %v487
      %553 = vst.msk [vmem:[%s172 + $0xc8] sm:$0xf] %vm502, %v488
      %554 = vst.msk [vmem:[%s172 + $0xcc] sm:$0xf] %vm502, %v489
      %555 = vst.msk [vmem:[%s172 + $0xd0] sm:$0xf] %vm502, %v490
      %556 = vst.msk [vmem:[%s172 + $0xd4] sm:$0xf] %vm502, %v491
      %557 = vst.msk [vmem:[%s172 + $0xd8] sm:$0xf] %vm502, %v492
      %558 = vst.msk [vmem:[%s172 + $0xdc] sm:$0xf] %vm502, %v493
      %559 = vst.msk [vmem:[%s172 + $0xe0] sm:$0xf] %vm502, %v494
      %560 = vst.msk [vmem:[%s172 + $0xe4] sm:$0xf] %vm502, %v495
      %561 = vst.msk [vmem:[%s172 + $0xe8] sm:$0xf] %vm502, %v496
      %562 = vst.msk [vmem:[%s172 + $0xec] sm:$0xf] %vm502, %v497
      %563 = vst.msk [vmem:[%s172 + $0xf0] sm:$0xf] %vm502, %v498
      %564 = vst.msk [vmem:[%s172 + $0xf4] sm:$0xf] %vm502, %v499
      %565 = vst.msk [vmem:[%s172 + $0xf8] sm:$0xf] %vm502, %v500
      %566 = vst.msk [vmem:[%s172 + $0xfc] sm:$0xf] %vm502, %v501
      %s567 = smul.u32 64, %s14
      %p568 = scmp.lt.s32.totalorder %s567, 255
      %s569 = scalar_select %p568, %s567, 255
      %s570 = smul.addr %s569, 4
      %s571 = scalar_lea.vmem %s3, %s570
      // Predicated region
      $region33: #{generator_forward.16} parent=31 // pred_check
        %p572 = pneg %p100
      $region34: #{generator_forward.16} parent=31 // pred_check_branch
        %574 = sbr.rel (%p572) target = $region36
      $region35: #{generator_forward.16} parent=31 // pred_region
        %s575 = smul.u32 64, %s14
      $region36: #{generator_forward.16} parent=31 // pred_fallthru
        _
    $region32: #{generator_forward.16} parent=5 // pred_fallthru
      _
    %p576 = scmp.le.s32.totalorder 2, %s9
    // Predicated region
    $region37: #{generator_forward.16} parent=5 // pred_check
      %p577 = pneg %p576
    $region38: #{generator_forward.16} parent=5 // pred_check_branch
      %579 = sbr.rel (%p577) target = $region40
    $region39: #{generator_forward.16} parent=5 // pred_region
      %s580 = ssub.s32 %s9, 2
      // Predicated region
      $region41: #{generator_forward.16} parent=39 // pred_check
        %p581 = pneg %p106
      $region42: #{generator_forward.16} parent=39 // pred_check_branch
        %583 = sbr.rel (%p581) target = $region44
      $region43: #{generator_forward.16} parent=39 // pred_region
        %s584 = smul.u32 64, %s15
        %p585 = scmp.lt.s32.totalorder %s584, 255
        %s586 = scalar_select %p585, %s584, 255
        %s587 = smul.addr %s586, 4
        %s588 = scalar_lea.vmem %s3, %s587
      $region44: #{generator_forward.16} parent=39 // pred_fallthru
        _
    $region40: #{generator_forward.16} parent=5 // pred_fallthru
      _
  $region6: #{generator_forward.16} parent=0 // loop_footer
    %s13 = sadd.s32 1, %s9
  $region7: #{generator_forward.16} parent=0 // loop_footer_branch
    %8 = sbr.rel target = $region3
  $region8: #{generator_forward.16} parent=0 // loop_exit
    _

// kernel: generator_forward.15
$region0: #{generator_forward.15}
  #allocation0 [shape = 'u32[]', space=smem, size = 0x4, offset = 0x4, fixed_abs, tag = 'smem constant byte address 0x4 - core index']
  #allocation1 [shape = 'u32[72,128]{1,0:T(1,128)}', space=vmem, size = 0x9000, scoped, tag = 'internal scratch']
  %s0 = inlined_call_operand.vmem [shape: bf16[4,512,512], index: 0, kind: input, shape index: {}]
  %s1 = inlined_call_operand.vmem [shape: bf16[4,512,64], index: 1, kind: input, shape index: {}]
  %s2 = inlined_call_operand.vmem [shape: f32[4,512,64], index: 2, kind: output, shape index: {0}]
  %s3 = inlined_call_operand.vmem [shape: f32[4,1,2,64], index: 3, kind: output, shape index: {1}]
  %4 = xla_tuple %s2, %s3
  %s5 = sld [smem:[#allocation0]]
  $region49: #{generator_forward.15} parent=0
    _
  %s7 = ssub.s32 1, %s5
  %s8 = scalar_select 0, %s7, %s5
  loop: start=0, step=1, limit=6
  $region2: #{generator_forward.15} parent=0 // loop_pre_header
    _
  $region3: #{generator_forward.15} parent=0 // loop_header
    %s10 = sphi 0, %s14
    %p11 = scmp.ge.s32.totalorder %s10, 6
    %s17 = sphi 0, %s29
    %s18 = sphi 0, %s25
    %s19 = sphi 0, %s17
    %s20 = sphi 0, %s18
    %s21 = sphi 0, %s19
    %s22 = sphi 0, %s20
    %s34 = sphi 0, %s36
    %s37 = sphi 0, %s34
    %s38 = sphi 0, %s37
    %s54 = sphi 0, %s38
    %s60 = sphi 0, %s62
    %s63 = sphi 0, %s60
    %s64 = sphi 0, %s63
    %s80 = sphi 0, %s64
    %s88 = sphi 0, %s90
    %s91 = sphi 0, %s88
    %s92 = sphi 0, %s91
    %s108 = sphi 0, %s92
    %s116 = sphi 0, %s118
    %s119 = sphi 0, %s116
    %s120 = sphi 0, %s119
    %s136 = sphi 0, %s120
  $region4: #{generator_forward.15} parent=0 // loop_header_branch
    %13 = sbr.rel (%p11) target = $region8
  $region5: #{generator_forward.15} parent=0 // loop_body
    %s15 = ssub.s32 %s10, 1
    %s16 = ssub.s32 %s10, 2
    %s23 = sadd.s32 1, %s18
    %p24 = scmp.ge.s32.totalorder %s23, 1
    %s25 = scalar_select %p24, 0, %s23
    %s26 = sadd.s32 1, %s17
    %s27 = scalar_select %p24, %s26, %s17
    %p28 = scmp.ge.s32.totalorder %s27, 4
    %s29 = scalar_select %p28, 0, %s27
    %s30 = ssub.s32 %s17, %s29
    %s31 = ssub.s32 %s18, %s25
    %s32 = sor.u32 %s30, %s31
    %p33 = scmp.eq.s32.totalorder %s32, 0
    %s35 = sadd.s32 %s34, 1
    %s36 = scalar_select %p33, %s34, %s35
    %p39 = pneg %p33
    %p40 = scmp.eq.s32.totalorder %s10, 3
    %p41 = por %p39, %p40
    %p42 = scmp.ne.s32.totalorder %s34, %s37
    %p43 = scmp.eq.s32.totalorder %s10, 0
    %p44 = por %p42, %p43
    %p45 = scmp.ne.s32.totalorder %s34, %s37
    %p46 = scmp.eq.s32.totalorder %s15, 3
    %p47 = por %p45, %p46
    %p48 = scmp.ne.s32.totalorder %s37, %s38
    %p49 = scmp.eq.s32.totalorder %s15, 0
    %p50 = por %p48, %p49
    %p51 = scmp.ne.s32.totalorder %s37, %s38
    %p52 = scmp.eq.s32.totalorder %s16, 3
    %p53 = por %p51, %p52
    %p55 = scmp.ne.s32.totalorder %s38, %s54
    %p56 = scmp.eq.s32.totalorder %s16, 0
    %p57 = por %p55, %p56
    %s58 = ssub.s32 %s17, %s29
    %p59 = scmp.eq.s32.totalorder %s58, 0
    %s61 = sadd.s32 %s60, 1
    %s62 = scalar_select %p59, %s60, %s61
    %p65 = pneg %p59
    %p66 = scmp.eq.s32.totalorder %s10, 3
    %p67 = por %p65, %p66
    %p68 = scmp.ne.s32.totalorder %s60, %s63
    %p69 = scmp.eq.s32.totalorder %s10, 0
    %p70 = por %p68, %p69
    %p71 = scmp.ne.s32.totalorder %s60, %s63
    %p72 = scmp.eq.s32.totalorder %s15, 3
    %p73 = por %p71, %p72
    %p74 = scmp.ne.s32.totalorder %s63, %s64
    %p75 = scmp.eq.s32.totalorder %s15, 0
    %p76 = por %p74, %p75
    %p77 = scmp.ne.s32.totalorder %s63, %s64
    %p78 = scmp.eq.s32.totalorder %s16, 3
    %p79 = por %p77, %p78
    %p81 = scmp.ne.s32.totalorder %s64, %s80
    %p82 = scmp.eq.s32.totalorder %s16, 0
    %p83 = por %p81, %p82
    %s84 = ssub.s32 %s17, %s29
    %s85 = ssub.s32 %s18, %s25
    %s86 = sor.u32 %s84, %s85
    %p87 = scmp.eq.s32.totalorder %s86, 0
    %s89 = sadd.s32 %s88, 1
    %s90 = scalar_select %p87, %s88, %s89
    %p93 = pneg %p87
    %p94 = scmp.eq.s32.totalorder %s10, 3
    %p95 = por %p93, %p94
    %p96 = scmp.ne.s32.totalorder %s88, %s91
    %p97 = scmp.eq.s32.totalorder %s10, 0
    %p98 = por %p96, %p97
    %p99 = scmp.ne.s32.totalorder %s88, %s91
    %p100 = scmp.eq.s32.totalorder %s15, 3
    %p101 = por %p99, %p100
    %p102 = scmp.ne.s32.totalorder %s91, %s92
    %p103 = scmp.eq.s32.totalorder %s15, 0
    %p104 = por %p102, %p103
    %p105 = scmp.ne.s32.totalorder %s91, %s92
    %p106 = scmp.eq.s32.totalorder %s16, 3
    %p107 = por %p105, %p106
    %p109 = scmp.ne.s32.totalorder %s92, %s108
    %p110 = scmp.eq.s32.totalorder %s16, 0
    %p111 = por %p109, %p110
    %s112 = ssub.s32 %s17, %s29
    %s113 = ssub.s32 %s18, %s25
    %s114 = sor.u32 %s112, %s113
    %p115 = scmp.eq.s32.totalorder %s114, 0
    %s117 = sadd.s32 %s116, 1
    %s118 = scalar_select %p115, %s116, %s117
    %p121 = pneg %p115
    %p122 = scmp.eq.s32.totalorder %s10, 3
    %p123 = por %p121, %p122
    %p124 = scmp.ne.s32.totalorder %s116, %s119
    %p125 = scmp.eq.s32.totalorder %s10, 0
    %p126 = por %p124, %p125
    %p127 = scmp.ne.s32.totalorder %s116, %s119
    %p128 = scmp.eq.s32.totalorder %s15, 3
    %p129 = por %p127, %p128
    %p130 = scmp.ne.s32.totalorder %s119, %s120
    %p131 = scmp.eq.s32.totalorder %s15, 0
    %p132 = por %p130, %p131
    %p133 = scmp.ne.s32.totalorder %s119, %s120
    %p134 = scmp.eq.s32.totalorder %s16, 3
    %p135 = por %p133, %p134
    %p137 = scmp.ne.s32.totalorder %s120, %s136
    %p138 = scmp.eq.s32.totalorder %s16, 0
    %p139 = por %p137, %p138
    %p140 = scmp.le.s32.totalorder 1, %s10
    %p141 = scmp.lt.s32.totalorder %s10, 5
    %p142 = pnand %p140, %p141
    %p143 = pneg %p142
    // Predicated region
    $region9: #{generator_forward.15} parent=5 // pred_check
      _
    $region10: #{generator_forward.15} parent=5 // pred_check_branch
      %145 = sbr.rel (%p142) target = $region12
    $region11: #{generator_forward.15} parent=5 // pred_region
      %s146 = ssub.s32 %s10, 1
    $region12: #{generator_forward.15} parent=5 // pred_fallthru
      _
    %p147 = scmp.lt.s32.totalorder %s10, 4
    // Predicated region
    $region13: #{generator_forward.15} parent=5 // pred_check
      %p148 = pneg %p147
    $region14: #{generator_forward.15} parent=5 // pred_check_branch
      %150 = sbr.rel (%p148) target = $region16
    $region15: #{generator_forward.15} parent=5 // pred_region
      // Predicated region
      $region17: #{generator_forward.15} parent=15 // pred_check
        %p151 = pneg %p44
      $region18: #{generator_forward.15} parent=15 // pred_check_branch
        %153 = sbr.rel (%p151) target = $region20
      $region19: #{generator_forward.15} parent=15 // pred_region
        %s154 = smul.u32 64, %s18
        %p155 = scmp.lt.s32.totalorder %s17, 3
        %s156 = scalar_select %p155, %s17, 3
        %p157 = scmp.lt.s32.totalorder %s154, 63
        %s158 = scalar_select %p157, %s154, 63
        %s159 = smul.addr %s158, 4
        %s160 = smul.addr %s156, 256
        %s161 = sadd.s32 %s159, %s160
        %s162 = smul.addr %s161, 4
        %s163 = scalar_lea.vmem %s0, %s162
        %s164 = smul.u32 64, %s18
      $region20: #{generator_forward.15} parent=15 // pred_fallthru
        _
      // Predicated region
      $region21: #{generator_forward.15} parent=15 // pred_check
        %p165 = pneg %p70
      $region22: #{generator_forward.15} parent=15 // pred_check_branch
        %167 = sbr.rel (%p165) target = $region24
      $region23: #{generator_forward.15} parent=15 // pred_region
        %p168 = scmp.lt.s32.totalorder %s17, 3
        %s169 = scalar_select %p168, %s17, 3
        %s170 = smul.addr %s169, 64
        %s171 = smul.addr %s170, 4
        %s172 = scalar_lea.vmem %s1, %s171
      $region24: #{generator_forward.15} parent=15 // pred_fallthru
        _
    $region16: #{generator_forward.15} parent=5 // pred_fallthru
      _
    %p173 = scmp.le.s32.totalorder 1, %s10
    %p174 = scmp.lt.s32.totalorder %s10, 5
    %p175 = pnand %p173, %p174
    %p176 = pneg %p175
    // Predicated region
    $region25: #{generator_forward.15} parent=5 // pred_check
      _
    $region26: #{generator_forward.15} parent=5 // pred_check_branch
      %178 = sbr.rel (%p175) target = $region28
    $region27: #{generator_forward.15} parent=5 // pred_region
      %s179 = ssub.s32 %s10, 1
      %s180 = smul.u32 64, %s20
      %p181 = scmp.lt.s32.totalorder %s19, 3
      %s182 = scalar_select %p181, %s19, 3
      %p183 = scmp.lt.s32.totalorder %s180, 63
      %s184 = scalar_select %p183, %s180, 63
      %s185 = smul.addr %s184, 4
      %s186 = smul.addr %s182, 256
      %s187 = sadd.s32 %s185, %s186
      %s188 = smul.addr %s187, 4
      %s189 = scalar_lea.vmem %s0, %s188
      %p190 = pneg %p50
      %p191 = pneg %p47
      %p192 = scmp.lt.s32.totalorder %s19, 3
      %s193 = scalar_select %p192, %s19, 3
      %s194 = smul.addr %s193, 64
      %s195 = smul.addr %s194, 4
      %s196 = scalar_lea.vmem %s1, %s195
      %p197 = pneg %p76
      %p198 = pneg %p73
      %p199 = pneg %p104
      %p200 = pneg %p101
      %s201 = smul.u32 64, %s20
      %p202 = scmp.lt.s32.totalorder %s19, 3
      %s203 = scalar_select %p202, %s19, 3
      %p204 = scmp.lt.s32.totalorder %s201, 63
      %s205 = scalar_select %p204, %s201, 63
      %s206 = smul.addr %s203, 64
      %s207 = sadd.s32 %s205, %s206
      %s208 = smul.addr %s207, 8
      %s209 = scalar_lea.vmem %s2, %s208
      %p210 = pneg %p132
      %p211 = pneg %p129
      %p212 = scmp.lt.s32.totalorder %s19, 3
      %s213 = scalar_select %p212, %s19, 3
      %p214 = scmp.lt.s32.totalorder %s20, 0
      %s215 = scalar_select %p214, %s20, 0
      %s216 = sadd.s32 %s215, %s213
      %s217 = smul.addr %s216, 2
      %s218 = scalar_lea.vmem %s3, %s217
      %s219 = smul.u32 64, %s20
      %p220 = scmp.lt.s32.totalorder %s19, 3
      %s221 = scalar_select %p220, %s19, 3
      %p222 = scmp.lt.s32.totalorder %s219, 63
      %s223 = scalar_select %p222, %s219, 63
      %s224 = smul.addr %s223, 4
      %s225 = smul.addr %s221, 256
      %s226 = sadd.s32 %s224, %s225
      %s227 = smul.addr %s226, 4
      %s228 = scalar_lea.vmem %s0, %s227
      %s229 = smul.u32 64, %s20
      %p230 = scmp.lt.s32.totalorder %s19, 3
      %s231 = scalar_select %p230, %s19, 3
      %s232 = smul.addr %s231, 64
      %s233 = smul.addr %s232, 4
      %s234 = scalar_lea.vmem %s1, %s233
      %s235 = smul.u32 64, %s20
      %p236 = scmp.lt.s32.totalorder %s19, 3
      %s237 = scalar_select %p236, %s19, 3
      %p238 = scmp.lt.s32.totalorder %s235, 63
      %s239 = scalar_select %p238, %s235, 63
      %s240 = smul.addr %s237, 64
      %s241 = sadd.s32 %s239, %s240
      %s242 = smul.addr %s241, 8
      %s243 = scalar_lea.vmem %s2, %s242
      %s244 = smul.u32 64, %s20
      %p245 = scmp.lt.s32.totalorder %s19, 3
      %s246 = scalar_select %p245, %s19, 3
      %p247 = scmp.lt.s32.totalorder %s20, 0
      %s248 = scalar_select %p247, %s20, 0
      %s249 = sadd.s32 %s248, %s246
      %s250 = smul.addr %s249, 2
      %s251 = scalar_lea.vmem %s3, %s250
      %v252 = vld [vmem:[%s228] sm:$0xff]
      %v253 = vld [vmem:[%s228 + $0x8] sm:$0xff]
      %v254 = vld [vmem:[%s228 + $0x10] sm:$0xff]
      %v255 = vld [vmem:[%s228 + $0x18] sm:$0xff]
      %v256 = vld [vmem:[%s228 + $0x20] sm:$0xff]
      %v257 = vld [vmem:[%s228 + $0x28] sm:$0xff]
      %v258 = vld [vmem:[%s228 + $0x30] sm:$0xff]
      %v259 = vld [vmem:[%s228 + $0x38] sm:$0xff]
      %v260 = vld [vmem:[%s228 + $0x40] sm:$0xff]
      %v261 = vld [vmem:[%s228 + $0x48] sm:$0xff]
      %v262 = vld [vmem:[%s228 + $0x50] sm:$0xff]
      %v263 = vld [vmem:[%s228 + $0x58] sm:$0xff]
      %v264 = vld [vmem:[%s228 + $0x60] sm:$0xff]
      %v265 = vld [vmem:[%s228 + $0x68] sm:$0xff]
      %v266 = vld [vmem:[%s228 + $0x70] sm:$0xff]
      %v267 = vld [vmem:[%s228 + $0x78] sm:$0xff]
      %v268 = vld [vmem:[%s228 + $0x80] sm:$0xff]
      %v269 = vld [vmem:[%s228 + $0x88] sm:$0xff]
      %v270 = vld [vmem:[%s228 + $0x90] sm:$0xff]
      %v271 = vld [vmem:[%s228 + $0x98] sm:$0xff]
      %v272 = vld [vmem:[%s228 + $0xa0] sm:$0xff]
      %v273 = vld [vmem:[%s228 + $0xa8] sm:$0xff]
      %v274 = vld [vmem:[%s228 + $0xb0] sm:$0xff]
      %v275 = vld [vmem:[%s228 + $0xb8] sm:$0xff]
      %v276 = vld [vmem:[%s228 + $0xc0] sm:$0xff]
      %v277 = vld [vmem:[%s228 + $0xc8] sm:$0xff]
      %v278 = vld [vmem:[%s228 + $0xd0] sm:$0xff]
      %v279 = vld [vmem:[%s228 + $0xd8] sm:$0xff]
      %v280 = vld [vmem:[%s228 + $0xe0] sm:$0xff]
      %v281 = vld [vmem:[%s228 + $0xe8] sm:$0xff]
      %v282 = vld [vmem:[%s228 + $0xf0] sm:$0xff]
      %v283 = vld [vmem:[%s228 + $0xf8] sm:$0xff]
      %v284 = vld [vmem:[%s228 + $0x100] sm:$0xff]
      %v285 = vld [vmem:[%s228 + $0x108] sm:$0xff]
      %v286 = vld [vmem:[%s228 + $0x110] sm:$0xff]
      %v287 = vld [vmem:[%s228 + $0x118] sm:$0xff]
      %v288 = vld [vmem:[%s228 + $0x120] sm:$0xff]
      %v289 = vld [vmem:[%s228 + $0x128] sm:$0xff]
      %v290 = vld [vmem:[%s228 + $0x130] sm:$0xff]
      %v291 = vld [vmem:[%s228 + $0x138] sm:$0xff]
      %v292 = vld [vmem:[%s228 + $0x140] sm:$0xff]
      %v293 = vld [vmem:[%s228 + $0x148] sm:$0xff]
      %v294 = vld [vmem:[%s228 + $0x150] sm:$0xff]
      %v295 = vld [vmem:[%s228 + $0x158] sm:$0xff]
      %v296 = vld [vmem:[%s228 + $0x160] sm:$0xff]
      %v297 = vld [vmem:[%s228 + $0x168] sm:$0xff]
      %v298 = vld [vmem:[%s228 + $0x170] sm:$0xff]
      %v299 = vld [vmem:[%s228 + $0x178] sm:$0xff]
      %v300 = vld [vmem:[%s228 + $0x180] sm:$0xff]
      %v301 = vld [vmem:[%s228 + $0x188] sm:$0xff]
      %v302 = vld [vmem:[%s228 + $0x190] sm:$0xff]
      %v303 = vld [vmem:[%s228 + $0x198] sm:$0xff]
      %v304 = vld [vmem:[%s228 + $0x1a0] sm:$0xff]
      %v305 = vld [vmem:[%s228 + $0x1a8] sm:$0xff]
      %v306 = vld [vmem:[%s228 + $0x1b0] sm:$0xff]
      %v307 = vld [vmem:[%s228 + $0x1b8] sm:$0xff]
      %v308 = vld [vmem:[%s228 + $0x1c0] sm:$0xff]
      %v309 = vld [vmem:[%s228 + $0x1c8] sm:$0xff]
      %v310 = vld [vmem:[%s228 + $0x1d0] sm:$0xff]
      %v311 = vld [vmem:[%s228 + $0x1d8] sm:$0xff]
      %v312 = vld [vmem:[%s228 + $0x1e0] sm:$0xff]
      %v313 = vld [vmem:[%s228 + $0x1e8] sm:$0xff]
      %v314 = vld [vmem:[%s228 + $0x1f0] sm:$0xff]
      %v315 = vld [vmem:[%s228 + $0x1f8] sm:$0xff]
      %v316 = vld [vmem:[%s228 + $0x200] sm:$0xff]
      %v317 = vld [vmem:[%s228 + $0x208] sm:$0xff]
      %v318 = vld [vmem:[%s228 + $0x210] sm:$0xff]
      %v319 = vld [vmem:[%s228 + $0x218] sm:$0xff]
      %v320 = vld [vmem:[%s228 + $0x220] sm:$0xff]
      %v321 = vld [vmem:[%s228 + $0x228] sm:$0xff]
      %v322 = vld [vmem:[%s228 + $0x230] sm:$0xff]
      %v323 = vld [vmem:[%s228 + $0x238] sm:$0xff]
      %v324 = vld [vmem:[%s228 + $0x240] sm:$0xff]
      %v325 = vld [vmem:[%s228 + $0x248] sm:$0xff]
      %v326 = vld [vmem:[%s228 + $0x250] sm:$0xff]
      %v327 = vld [vmem:[%s228 + $0x258] sm:$0xff]
      %v328 = vld [vmem:[%s228 + $0x260] sm:$0xff]
      %v329 = vld [vmem:[%s228 + $0x268] sm:$0xff]
      %v330 = vld [vmem:[%s228 + $0x270] sm:$0xff]
      %v331 = vld [vmem:[%s228 + $0x278] sm:$0xff]
      %v332 = vld [vmem:[%s228 + $0x280] sm:$0xff]
      %v333 = vld [vmem:[%s228 + $0x288] sm:$0xff]
      %v334 = vld [vmem:[%s228 + $0x290] sm:$0xff]
      %v335 = vld [vmem:[%s228 + $0x298] sm:$0xff]
      %v336 = vld [vmem:[%s228 + $0x2a0] sm:$0xff]
      %v337 = vld [vmem:[%s228 + $0x2a8] sm:$0xff]
      %v338 = vld [vmem:[%s228 + $0x2b0] sm:$0xff]
      %v339 = vld [vmem:[%s228 + $0x2b8] sm:$0xff]
      %v340 = vld [vmem:[%s228 + $0x2c0] sm:$0xff]
      %v341 = vld [vmem:[%s228 + $0x2c8] sm:$0xff]
      %v342 = vld [vmem:[%s228 + $0x2d0] sm:$0xff]
      %v343 = vld [vmem:[%s228 + $0x2d8] sm:$0xff]
      %v344 = vld [vmem:[%s228 + $0x2e0] sm:$0xff]
      %v345 = vld [vmem:[%s228 + $0x2e8] sm:$0xff]
      %v346 = vld [vmem:[%s228 + $0x2f0] sm:$0xff]
      %v347 = vld [vmem:[%s228 + $0x2f8] sm:$0xff]
      %v348 = vld [vmem:[%s228 + $0x300] sm:$0xff]
      %v349 = vld [vmem:[%s228 + $0x308] sm:$0xff]
      %v350 = vld [vmem:[%s228 + $0x310] sm:$0xff]
      %v351 = vld [vmem:[%s228 + $0x318] sm:$0xff]
      %v352 = vld [vmem:[%s228 + $0x320] sm:$0xff]
      %v353 = vld [vmem:[%s228 + $0x328] sm:$0xff]
      %v354 = vld [vmem:[%s228 + $0x330] sm:$0xff]
      %v355 = vld [vmem:[%s228 + $0x338] sm:$0xff]
      %v356 = vld [vmem:[%s228 + $0x340] sm:$0xff]
      %v357 = vld [vmem:[%s228 + $0x348] sm:$0xff]
      %v358 = vld [vmem:[%s228 + $0x350] sm:$0xff]
      %v359 = vld [vmem:[%s228 + $0x358] sm:$0xff]
      %v360 = vld [vmem:[%s228 + $0x360] sm:$0xff]
      %v361 = vld [vmem:[%s228 + $0x368] sm:$0xff]
      %v362 = vld [vmem:[%s228 + $0x370] sm:$0xff]
      %v363 = vld [vmem:[%s228 + $0x378] sm:$0xff]
      %v364 = vld [vmem:[%s228 + $0x380] sm:$0xff]
      %v365 = vld [vmem:[%s228 + $0x388] sm:$0xff]
      %v366 = vld [vmem:[%s228 + $0x390] sm:$0xff]
      %v367 = vld [vmem:[%s228 + $0x398] sm:$0xff]
      %v368 = vld [vmem:[%s228 + $0x3a0] sm:$0xff]
      %v369 = vld [vmem:[%s228 + $0x3a8] sm:$0xff]
      %v370 = vld [vmem:[%s228 + $0x3b0] sm:$0xff]
      %v371 = vld [vmem:[%s228 + $0x3b8] sm:$0xff]
      %v372 = vld [vmem:[%s228 + $0x3c0] sm:$0xff]
      %v373 = vld [vmem:[%s228 + $0x3c8] sm:$0xff]
      %v374 = vld [vmem:[%s228 + $0x3d0] sm:$0xff]
      %v375 = vld [vmem:[%s228 + $0x3d8] sm:$0xff]
      %v376 = vld [vmem:[%s228 + $0x3e0] sm:$0xff]
      %v377 = vld [vmem:[%s228 + $0x3e8] sm:$0xff]
      %v378 = vld [vmem:[%s228 + $0x3f0] sm:$0xff]
      %v379 = vld [vmem:[%s228 + $0x3f8] sm:$0xff]
      %v380 = vld [vmem:[%s234] sm:$0xf]
      %v381 = vld [vmem:[%s234 + $0x4] sm:$0xf]
      %v382 = vld [vmem:[%s234 + $0x8] sm:$0xf]
      %v383 = vld [vmem:[%s234 + $0xc] sm:$0xf]
      %v384 = vld [vmem:[%s234 + $0x10] sm:$0xf]
      %v385 = vld [vmem:[%s234 + $0x14] sm:$0xf]
      %v386 = vld [vmem:[%s234 + $0x18] sm:$0xf]
      %v387 = vld [vmem:[%s234 + $0x1c] sm:$0xf]
      %v388 = vld [vmem:[%s234 + $0x20] sm:$0xf]
      %v389 = vld [vmem:[%s234 + $0x24] sm:$0xf]
      %v390 = vld [vmem:[%s234 + $0x28] sm:$0xf]
      %v391 = vld [vmem:[%s234 + $0x2c] sm:$0xf]
      %v392 = vld [vmem:[%s234 + $0x30] sm:$0xf]
      %v393 = vld [vmem:[%s234 + $0x34] sm:$0xf]
      %v394 = vld [vmem:[%s234 + $0x38] sm:$0xf]
      %v395 = vld [vmem:[%s234 + $0x3c] sm:$0xf]
      %v396 = vld [vmem:[%s234 + $0x40] sm:$0xf]
      %v397 = vld [vmem:[%s234 + $0x44] sm:$0xf]
      %v398 = vld [vmem:[%s234 + $0x48] sm:$0xf]
      %v399 = vld [vmem:[%s234 + $0x4c] sm:$0xf]
      %v400 = vld [vmem:[%s234 + $0x50] sm:$0xf]
      %v401 = vld [vmem:[%s234 + $0x54] sm:$0xf]
      %v402 = vld [vmem:[%s234 + $0x58] sm:$0xf]
      %v403 = vld [vmem:[%s234 + $0x5c] sm:$0xf]
      %v404 = vld [vmem:[%s234 + $0x60] sm:$0xf]
      %v405 = vld [vmem:[%s234 + $0x64] sm:$0xf]
      %v406 = vld [vmem:[%s234 + $0x68] sm:$0xf]
      %v407 = vld [vmem:[%s234 + $0x6c] sm:$0xf]
      %v408 = vld [vmem:[%s234 + $0x70] sm:$0xf]
      %v409 = vld [vmem:[%s234 + $0x74] sm:$0xf]
      %v410 = vld [vmem:[%s234 + $0x78] sm:$0xf]
      %v411 = vld [vmem:[%s234 + $0x7c] sm:$0xf]
      %v412 = vld [vmem:[%s234 + $0x80] sm:$0xf]
      %v413 = vld [vmem:[%s234 + $0x84] sm:$0xf]
      %v414 = vld [vmem:[%s234 + $0x88] sm:$0xf]
      %v415 = vld [vmem:[%s234 + $0x8c] sm:$0xf]
      %v416 = vld [vmem:[%s234 + $0x90] sm:$0xf]
      %v417 = vld [vmem:[%s234 + $0x94] sm:$0xf]
      %v418 = vld [vmem:[%s234 + $0x98] sm:$0xf]
      %v419 = vld [vmem:[%s234 + $0x9c] sm:$0xf]
      %v420 = vld [vmem:[%s234 + $0xa0] sm:$0xf]
      %v421 = vld [vmem:[%s234 + $0xa4] sm:$0xf]
      %v422 = vld [vmem:[%s234 + $0xa8] sm:$0xf]
      %v423 = vld [vmem:[%s234 + $0xac] sm:$0xf]
      %v424 = vld [vmem:[%s234 + $0xb0] sm:$0xf]
      %v425 = vld [vmem:[%s234 + $0xb4] sm:$0xf]
      %v426 = vld [vmem:[%s234 + $0xb8] sm:$0xf]
      %v427 = vld [vmem:[%s234 + $0xbc] sm:$0xf]
      %v428 = vld [vmem:[%s234 + $0xc0] sm:$0xf]
      %v429 = vld [vmem:[%s234 + $0xc4] sm:$0xf]
      %v430 = vld [vmem:[%s234 + $0xc8] sm:$0xf]
      %v431 = vld [vmem:[%s234 + $0xcc] sm:$0xf]
      %v432 = vld [vmem:[%s234 + $0xd0] sm:$0xf]
      %v433 = vld [vmem:[%s234 + $0xd4] sm:$0xf]
      %v434 = vld [vmem:[%s234 + $0xd8] sm:$0xf]
      %v435 = vld [vmem:[%s234 + $0xdc] sm:$0xf]
      %v436 = vld [vmem:[%s234 + $0xe0] sm:$0xf]
      %v437 = vld [vmem:[%s234 + $0xe4] sm:$0xf]
      %v438 = vld [vmem:[%s234 + $0xe8] sm:$0xf]
      %v439 = vld [vmem:[%s234 + $0xec] sm:$0xf]
      %v440 = vld [vmem:[%s234 + $0xf0] sm:$0xf]
      %v441 = vld [vmem:[%s234 + $0xf4] sm:$0xf]
      %v442 = vld [vmem:[%s234 + $0xf8] sm:$0xf]
      %v443 = vld [vmem:[%s234 + $0xfc] sm:$0xf]
      %v572 = vunpack.c.l.b16 %v252
      %v573 = vunpack.c.h.b16 %v252
      %v574 = vunpack.c.l.b16 %v253
      %v575 = vunpack.c.h.b16 %v253
      %v576 = vunpack.c.l.b16 %v254
      %v577 = vunpack.c.h.b16 %v254
      %v578 = vunpack.c.l.b16 %v255
      %v579 = vunpack.c.h.b16 %v255
      %v580 = vunpack.c.l.b16 %v256
      %v581 = vunpack.c.h.b16 %v256
      %v582 = vunpack.c.l.b16 %v257
      %v583 = vunpack.c.h.b16 %v257
      %v584 = vunpack.c.l.b16 %v258
      %v585 = vunpack.c.h.b16 %v258
      %v586 = vunpack.c.l.b16 %v259
      %v587 = vunpack.c.h.b16 %v259
      %v588 = vunpack.c.l.b16 %v260
      %v589 = vunpack.c.h.b16 %v260
      %v590 = vunpack.c.l.b16 %v261
      %v591 = vunpack.c.h.b16 %v261
      %v592 = vunpack.c.l.b16 %v262
      %v593 = vunpack.c.h.b16 %v262
      %v594 = vunpack.c.l.b16 %v263
      %v595 = vunpack.c.h.b16 %v263
      %v596 = vunpack.c.l.b16 %v264
      %v597 = vunpack.c.h.b16 %v264
      %v598 = vunpack.c.l.b16 %v265
      %v599 = vunpack.c.h.b16 %v265
      %v600 = vunpack.c.l.b16 %v266
      %v601 = vunpack.c.h.b16 %v266
      %v602 = vunpack.c.l.b16 %v267
      %v603 = vunpack.c.h.b16 %v267
      %v604 = vunpack.c.l.b16 %v268
      %v605 = vunpack.c.h.b16 %v268
      %v606 = vunpack.c.l.b16 %v269
      %v607 = vunpack.c.h.b16 %v269
      %v608 = vunpack.c.l.b16 %v270
      %v609 = vunpack.c.h.b16 %v270
      %v610 = vunpack.c.l.b16 %v271
      %v611 = vunpack.c.h.b16 %v271
      %v612 = vunpack.c.l.b16 %v272
      %v613 = vunpack.c.h.b16 %v272
      %v614 = vunpack.c.l.b16 %v273
      %v615 = vunpack.c.h.b16 %v273
      %v616 = vunpack.c.l.b16 %v274
      %v617 = vunpack.c.h.b16 %v274
      %v618 = vunpack.c.l.b16 %v275
      %v619 = vunpack.c.h.b16 %v275
      %v620 = vunpack.c.l.b16 %v276
      %v621 = vunpack.c.h.b16 %v276
      %v622 = vunpack.c.l.b16 %v277
      %v623 = vunpack.c.h.b16 %v277
      %v624 = vunpack.c.l.b16 %v278
      %v625 = vunpack.c.h.b16 %v278
      %v626 = vunpack.c.l.b16 %v279
      %v627 = vunpack.c.h.b16 %v279
      %v628 = vunpack.c.l.b16 %v280
      %v629 = vunpack.c.h.b16 %v280
      %v630 = vunpack.c.l.b16 %v281
      %v631 = vunpack.c.h.b16 %v281
      %v632 = vunpack.c.l.b16 %v282
      %v633 = vunpack.c.h.b16 %v282
      %v634 = vunpack.c.l.b16 %v283
      %v635 = vunpack.c.h.b16 %v283
      %v636 = vunpack.c.l.b16 %v284
      %v637 = vunpack.c.h.b16 %v284
      %v638 = vunpack.c.l.b16 %v285
      %v639 = vunpack.c.h.b16 %v285
      %v640 = vunpack.c.l.b16 %v286
      %v641 = vunpack.c.h.b16 %v286
      %v642 = vunpack.c.l.b16 %v287
      %v643 = vunpack.c.h.b16 %v287
      %v644 = vunpack.c.l.b16 %v288
      %v645 = vunpack.c.h.b16 %v288
      %v646 = vunpack.c.l.b16 %v289
      %v647 = vunpack.c.h.b16 %v289
      %v648 = vunpack.c.l.b16 %v290
      %v649 = vunpack.c.h.b16 %v290
      %v650 = vunpack.c.l.b16 %v291
      %v651 = vunpack.c.h.b16 %v291
      %v652 = vunpack.c.l.b16 %v292
      %v653 = vunpack.c.h.b16 %v292
      %v654 = vunpack.c.l.b16 %v293
      %v655 = vunpack.c.h.b16 %v293
      %v656 = vunpack.c.l.b16 %v294
      %v657 = vunpack.c.h.b16 %v294
      %v658 = vunpack.c.l.b16 %v295
      %v659 = vunpack.c.h.b16 %v295
      %v660 = vunpack.c.l.b16 %v296
      %v661 = vunpack.c.h.b16 %v296
      %v662 = vunpack.c.l.b16 %v297
      %v663 = vunpack.c.h.b16 %v297
      %v664 = vunpack.c.l.b16 %v298
      %v665 = vunpack.c.h.b16 %v298
      %v666 = vunpack.c.l.b16 %v299
      %v667 = vunpack.c.h.b16 %v299
      %v668 = vunpack.c.l.b16 %v300
      %v669 = vunpack.c.h.b16 %v300
      %v670 = vunpack.c.l.b16 %v301
      %v671 = vunpack.c.h.b16 %v301
      %v672 = vunpack.c.l.b16 %v302
      %v673 = vunpack.c.h.b16 %v302
      %v674 = vunpack.c.l.b16 %v303
      %v675 = vunpack.c.h.b16 %v303
      %v676 = vunpack.c.l.b16 %v304
      %v677 = vunpack.c.h.b16 %v304
      %v678 = vunpack.c.l.b16 %v305
      %v679 = vunpack.c.h.b16 %v305
      %v680 = vunpack.c.l.b16 %v306
      %v681 = vunpack.c.h.b16 %v306
      %v682 = vunpack.c.l.b16 %v307
      %v683 = vunpack.c.h.b16 %v307
      %v684 = vunpack.c.l.b16 %v308
      %v685 = vunpack.c.h.b16 %v308
      %v686 = vunpack.c.l.b16 %v309
      %v687 = vunpack.c.h.b16 %v309
      %v688 = vunpack.c.l.b16 %v310
      %v689 = vunpack.c.h.b16 %v310
      %v690 = vunpack.c.l.b16 %v311
      %v691 = vunpack.c.h.b16 %v311
      %v692 = vunpack.c.l.b16 %v312
      %v693 = vunpack.c.h.b16 %v312
      %v694 = vunpack.c.l.b16 %v313
      %v695 = vunpack.c.h.b16 %v313
      %v696 = vunpack.c.l.b16 %v314
      %v697 = vunpack.c.h.b16 %v314
      %v698 = vunpack.c.l.b16 %v315
      %v699 = vunpack.c.h.b16 %v315
      %v700 = vunpack.c.l.b16 %v316
      %v701 = vunpack.c.h.b16 %v316
      %v702 = vunpack.c.l.b16 %v317
      %v703 = vunpack.c.h.b16 %v317
      %v704 = vunpack.c.l.b16 %v318
      %v705 = vunpack.c.h.b16 %v318
      %v706 = vunpack.c.l.b16 %v319
      %v707 = vunpack.c.h.b16 %v319
      %v708 = vunpack.c.l.b16 %v320
      %v709 = vunpack.c.h.b16 %v320
      %v710 = vunpack.c.l.b16 %v321
      %v711 = vunpack.c.h.b16 %v321
      %v712 = vunpack.c.l.b16 %v322
      %v713 = vunpack.c.h.b16 %v322
      %v714 = vunpack.c.l.b16 %v323
      %v715 = vunpack.c.h.b16 %v323
      %v716 = vunpack.c.l.b16 %v324
      %v717 = vunpack.c.h.b16 %v324
      %v718 = vunpack.c.l.b16 %v325
      %v719 = vunpack.c.h.b16 %v325
      %v720 = vunpack.c.l.b16 %v326
      %v721 = vunpack.c.h.b16 %v326
      %v722 = vunpack.c.l.b16 %v327
      %v723 = vunpack.c.h.b16 %v327
      %v724 = vunpack.c.l.b16 %v328
      %v725 = vunpack.c.h.b16 %v328
      %v726 = vunpack.c.l.b16 %v329
      %v727 = vunpack.c.h.b16 %v329
      %v728 = vunpack.c.l.b16 %v330
      %v729 = vunpack.c.h.b16 %v330
      %v730 = vunpack.c.l.b16 %v331
      %v731 = vunpack.c.h.b16 %v331
      %v732 = vunpack.c.l.b16 %v332
      %v733 = vunpack.c.h.b16 %v332
      %v734 = vunpack.c.l.b16 %v333
      %v735 = vunpack.c.h.b16 %v333
      %v736 = vunpack.c.l.b16 %v334
      %v737 = vunpack.c.h.b16 %v334
      %v738 = vunpack.c.l.b16 %v335
      %v739 = vunpack.c.h.b16 %v335
      %v740 = vunpack.c.l.b16 %v336
      %v741 = vunpack.c.h.b16 %v336
      %v742 = vunpack.c.l.b16 %v337
      %v743 = vunpack.c.h.b16 %v337
      %v744 = vunpack.c.l.b16 %v338
      %v745 = vunpack.c.h.b16 %v338
      %v746 = vunpack.c.l.b16 %v339
      %v747 = vunpack.c.h.b16 %v339
      %v748 = vunpack.c.l.b16 %v340
      %v749 = vunpack.c.h.b16 %v340
      %v750 = vunpack.c.l.b16 %v341
      %v751 = vunpack.c.h.b16 %v341
      %v752 = vunpack.c.l.b16 %v342
      %v753 = vunpack.c.h.b16 %v342
      %v754 = vunpack.c.l.b16 %v343
      %v755 = vunpack.c.h.b16 %v343
      %v756 = vunpack.c.l.b16 %v344
      %v757 = vunpack.c.h.b16 %v344
      %v758 = vunpack.c.l.b16 %v345
      %v759 = vunpack.c.h.b16 %v345
      %v760 = vunpack.c.l.b16 %v346
      %v761 = vunpack.c.h.b16 %v346
      %v762 = vunpack.c.l.b16 %v347
      %v763 = vunpack.c.h.b16 %v347
      %v764 = vunpack.c.l.b16 %v348
      %v765 = vunpack.c.h.b16 %v348
      %v766 = vunpack.c.l.b16 %v349
      %v767 = vunpack.c.h.b16 %v349
      %v768 = vunpack.c.l.b16 %v350
      %v769 = vunpack.c.h.b16 %v350
      %v770 = vunpack.c.l.b16 %v351
      %v771 = vunpack.c.h.b16 %v351
      %v772 = vunpack.c.l.b16 %v352
      %v773 = vunpack.c.h.b16 %v352
      %v774 = vunpack.c.l.b16 %v353
      %v775 = vunpack.c.h.b16 %v353
      %v776 = vunpack.c.l.b16 %v354
      %v777 = vunpack.c.h.b16 %v354
      %v778 = vunpack.c.l.b16 %v355
      %v779 = vunpack.c.h.b16 %v355
      %v780 = vunpack.c.l.b16 %v356
      %v781 = vunpack.c.h.b16 %v356
      %v782 = vunpack.c.l.b16 %v357
      %v783 = vunpack.c.h.b16 %v357
      %v784 = vunpack.c.l.b16 %v358
      %v785 = vunpack.c.h.b16 %v358
      %v786 = vunpack.c.l.b16 %v359
      %v787 = vunpack.c.h.b16 %v359
      %v788 = vunpack.c.l.b16 %v360
      %v789 = vunpack.c.h.b16 %v360
      %v790 = vunpack.c.l.b16 %v361
      %v791 = vunpack.c.h.b16 %v361
      %v792 = vunpack.c.l.b16 %v362
      %v793 = vunpack.c.h.b16 %v362
      %v794 = vunpack.c.l.b16 %v363
      %v795 = vunpack.c.h.b16 %v363
      %v796 = vunpack.c.l.b16 %v364
      %v797 = vunpack.c.h.b16 %v364
      %v798 = vunpack.c.l.b16 %v365
      %v799 = vunpack.c.h.b16 %v365
      %v800 = vunpack.c.l.b16 %v366
      %v801 = vunpack.c.h.b16 %v366
      %v802 = vunpack.c.l.b16 %v367
      %v803 = vunpack.c.h.b16 %v367
      %v804 = vunpack.c.l.b16 %v368
      %v805 = vunpack.c.h.b16 %v368
      %v806 = vunpack.c.l.b16 %v369
      %v807 = vunpack.c.h.b16 %v369
      %v808 = vunpack.c.l.b16 %v370
      %v809 = vunpack.c.h.b16 %v370
      %v810 = vunpack.c.l.b16 %v371
      %v811 = vunpack.c.h.b16 %v371
      %v812 = vunpack.c.l.b16 %v372
      %v813 = vunpack.c.h.b16 %v372
      %v814 = vunpack.c.l.b16 %v373
      %v815 = vunpack.c.h.b16 %v373
      %v816 = vunpack.c.l.b16 %v374
      %v817 = vunpack.c.h.b16 %v374
      %v818 = vunpack.c.l.b16 %v375
      %v819 = vunpack.c.h.b16 %v375
      %v820 = vunpack.c.l.b16 %v376
      %v821 = vunpack.c.h.b16 %v376
      %v822 = vunpack.c.l.b16 %v377
      %v823 = vunpack.c.h.b16 %v377
      %v824 = vunpack.c.l.b16 %v378
      %v825 = vunpack.c.h.b16 %v378
      %v826 = vunpack.c.l.b16 %v379
      %v827 = vunpack.c.h.b16 %v379
      %v828 = vpack.c.b16 %v576, %v572
      %v829 = vpack.c.b16 %v577, %v573
      %v830 = vpack.c.b16 %v578, %v574
      %v831 = vpack.c.b16 %v579, %v575
      %v832 = vpack.c.b16 %v584, %v580
      %v833 = vpack.c.b16 %v585, %v581
      %v834 = vpack.c.b16 %v586, %v582
      %v835 = vpack.c.b16 %v587, %v583
      %v836 = vpack.c.b16 %v592, %v588
      %v837 = vpack.c.b16 %v593, %v589
      %v838 = vpack.c.b16 %v594, %v590
      %v839 = vpack.c.b16 %v595, %v591
      %v840 = vpack.c.b16 %v600, %v596
      %v841 = vpack.c.b16 %v601, %v597
      %v842 = vpack.c.b16 %v602, %v598
      %v843 = vpack.c.b16 %v603, %v599
      %v844 = vpack.c.b16 %v608, %v604
      %v845 = vpack.c.b16 %v609, %v605
      %v846 = vpack.c.b16 %v610, %v606
      %v847 = vpack.c.b16 %v611, %v607
      %v848 = vpack.c.b16 %v616, %v612
      %v849 = vpack.c.b16 %v617, %v613
      %v850 = vpack.c.b16 %v618, %v614
      %v851 = vpack.c.b16 %v619, %v615
      %v852 = vpack.c.b16 %v624, %v620
      %v853 = vpack.c.b16 %v625, %v621
      %v854 = vpack.c.b16 %v626, %v622
      %v855 = vpack.c.b16 %v627, %v623
      %v856 = vpack.c.b16 %v632, %v628
      %v857 = vpack.c.b16 %v633, %v629
      %v858 = vpack.c.b16 %v634, %v630
      %v859 = vpack.c.b16 %v635, %v631
      %v860 = vpack.c.b16 %v640, %v636
      %v861 = vpack.c.b16 %v641, %v637
      %v862 = vpack.c.b16 %v642, %v638
      %v863 = vpack.c.b16 %v643, %v639
      %v864 = vpack.c.b16 %v648, %v644
      %v865 = vpack.c.b16 %v649, %v645
      %v866 = vpack.c.b16 %v650, %v646
      %v867 = vpack.c.b16 %v651, %v647
      %v868 = vpack.c.b16 %v656, %v652
      %v869 = vpack.c.b16 %v657, %v653
      %v870 = vpack.c.b16 %v658, %v654
      %v871 = vpack.c.b16 %v659, %v655
      %v872 = vpack.c.b16 %v664, %v660
      %v873 = vpack.c.b16 %v665, %v661
      %v874 = vpack.c.b16 %v666, %v662
      %v875 = vpack.c.b16 %v667, %v663
      %v876 = vpack.c.b16 %v672, %v668
      %v877 = vpack.c.b16 %v673, %v669
      %v878 = vpack.c.b16 %v674, %v670
      %v879 = vpack.c.b16 %v675, %v671
      %v880 = vpack.c.b16 %v680, %v676
      %v881 = vpack.c.b16 %v681, %v677
      %v882 = vpack.c.b16 %v682, %v678
      %v883 = vpack.c.b16 %v683, %v679
      %v884 = vpack.c.b16 %v688, %v684
      %v885 = vpack.c.b16 %v689, %v685
      %v886 = vpack.c.b16 %v690, %v686
      %v887 = vpack.c.b16 %v691, %v687
      %v888 = vpack.c.b16 %v696, %v692
      %v889 = vpack.c.b16 %v697, %v693
      %v890 = vpack.c.b16 %v698, %v694
      %v891 = vpack.c.b16 %v699, %v695
      %v892 = vpack.c.b16 %v704, %v700
      %v893 = vpack.c.b16 %v705, %v701
      %v894 = vpack.c.b16 %v706, %v702
      %v895 = vpack.c.b16 %v707, %v703
      %v896 = vpack.c.b16 %v712, %v708
      %v897 = vpack.c.b16 %v713, %v709
      %v898 = vpack.c.b16 %v714, %v710
      %v899 = vpack.c.b16 %v715, %v711
      %v900 = vpack.c.b16 %v720, %v716
      %v901 = vpack.c.b16 %v721, %v717
      %v902 = vpack.c.b16 %v722, %v718
      %v903 = vpack.c.b16 %v723, %v719
      %v904 = vpack.c.b16 %v728, %v724
      %v905 = vpack.c.b16 %v729, %v725
      %v906 = vpack.c.b16 %v730, %v726
      %v907 = vpack.c.b16 %v731, %v727
      %v908 = vpack.c.b16 %v736, %v732
      %v909 = vpack.c.b16 %v737, %v733
      %v910 = vpack.c.b16 %v738, %v734
      %v911 = vpack.c.b16 %v739, %v735
      %v912 = vpack.c.b16 %v744, %v740
      %v913 = vpack.c.b16 %v745, %v741
      %v914 = vpack.c.b16 %v746, %v742
      %v915 = vpack.c.b16 %v747, %v743
      %v916 = vpack.c.b16 %v752, %v748
      %v917 = vpack.c.b16 %v753, %v749
      %v918 = vpack.c.b16 %v754, %v750
      %v919 = vpack.c.b16 %v755, %v751
      %v920 = vpack.c.b16 %v760, %v756
      %v921 = vpack.c.b16 %v761, %v757
      %v922 = vpack.c.b16 %v762, %v758
      %v923 = vpack.c.b16 %v763, %v759
      %v924 = vpack.c.b16 %v768, %v764
      %v925 = vpack.c.b16 %v769, %v765
      %v926 = vpack.c.b16 %v770, %v766
      %v927 = vpack.c.b16 %v771, %v767
      %v928 = vpack.c.b16 %v776, %v772
      %v929 = vpack.c.b16 %v777, %v773
      %v930 = vpack.c.b16 %v778, %v774
      %v931 = vpack.c.b16 %v779, %v775
      %v932 = vpack.c.b16 %v784, %v780
      %v933 = vpack.c.b16 %v785, %v781
      %v934 = vpack.c.b16 %v786, %v782
      %v935 = vpack.c.b16 %v787, %v783
      %v936 = vpack.c.b16 %v792, %v788
      %v937 = vpack.c.b16 %v793, %v789
      %v938 = vpack.c.b16 %v794, %v790
      %v939 = vpack.c.b16 %v795, %v791
      %v940 = vpack.c.b16 %v800, %v796
      %v941 = vpack.c.b16 %v801, %v797
      %v942 = vpack.c.b16 %v802, %v798
      %v943 = vpack.c.b16 %v803, %v799
      %v944 = vpack.c.b16 %v808, %v804
      %v945 = vpack.c.b16 %v809, %v805
      %v946 = vpack.c.b16 %v810, %v806
      %v947 = vpack.c.b16 %v811, %v807
      %v948 = vpack.c.b16 %v816, %v812
      %v949 = vpack.c.b16 %v817, %v813
      %v950 = vpack.c.b16 %v818, %v814
      %v951 = vpack.c.b16 %v819, %v815
      %v952 = vpack.c.b16 %v824, %v820
      %v953 = vpack.c.b16 %v825, %v821
      %v954 = vpack.c.b16 %v826, %v822
      %v955 = vpack.c.b16 %v827, %v823
      %v1148 = vunpack.c.l.b16 %v380
      %v1149 = vunpack.c.l.b16 %v381
      %v1150 = vunpack.c.l.b16 %v382
      %v1151 = vunpack.c.l.b16 %v383
      %v1152 = vunpack.c.l.b16 %v384
      %v1153 = vunpack.c.l.b16 %v385
      %v1154 = vunpack.c.l.b16 %v386
      %v1155 = vunpack.c.l.b16 %v387
      %v1156 = vunpack.c.l.b16 %v388
      %v1157 = vunpack.c.l.b16 %v389
      %v1158 = vunpack.c.l.b16 %v390
      %v1159 = vunpack.c.l.b16 %v391
      %v1160 = vunpack.c.l.b16 %v392
      %v1161 = vunpack.c.l.b16 %v393
      %v1162 = vunpack.c.l.b16 %v394
      %v1163 = vunpack.c.l.b16 %v395
      %v1164 = vunpack.c.l.b16 %v396
      %v1165 = vunpack.c.l.b16 %v397
      %v1166 = vunpack.c.l.b16 %v398
      %v1167 = vunpack.c.l.b16 %v399
      %v1168 = vunpack.c.l.b16 %v400
      %v1169 = vunpack.c.l.b16 %v401
      %v1170 = vunpack.c.l.b16 %v402
      %v1171 = vunpack.c.l.b16 %v403
      %v1172 = vunpack.c.l.b16 %v404
      %v1173 = vunpack.c.l.b16 %v405
      %v1174 = vunpack.c.l.b16 %v406
      %v1175 = vunpack.c.l.b16 %v407
      %v1176 = vunpack.c.l.b16 %v408
      %v1177 = vunpack.c.l.b16 %v409
      %v1178 = vunpack.c.l.b16 %v410
      %v1179 = vunpack.c.l.b16 %v411
      %v1180 = vunpack.c.l.b16 %v412
      %v1181 = vunpack.c.l.b16 %v413
      %v1182 = vunpack.c.l.b16 %v414
      %v1183 = vunpack.c.l.b16 %v415
      %v1184 = vunpack.c.l.b16 %v416
      %v1185 = vunpack.c.l.b16 %v417
      %v1186 = vunpack.c.l.b16 %v418
      %v1187 = vunpack.c.l.b16 %v419
      %v1188 = vunpack.c.l.b16 %v420
      %v1189 = vunpack.c.l.b16 %v421
      %v1190 = vunpack.c.l.b16 %v422
      %v1191 = vunpack.c.l.b16 %v423
      %v1192 = vunpack.c.l.b16 %v424
      %v1193 = vunpack.c.l.b16 %v425
      %v1194 = vunpack.c.l.b16 %v426
      %v1195 = vunpack.c.l.b16 %v427
      %v1196 = vunpack.c.l.b16 %v428
      %v1197 = vunpack.c.l.b16 %v429
      %v1198 = vunpack.c.l.b16 %v430
      %v1199 = vunpack.c.l.b16 %v431
      %v1200 = vunpack.c.l.b16 %v432
      %v1201 = vunpack.c.l.b16 %v433
      %v1202 = vunpack.c.l.b16 %v434
      %v1203 = vunpack.c.l.b16 %v435
      %v1204 = vunpack.c.l.b16 %v436
      %v1205 = vunpack.c.l.b16 %v437
      %v1206 = vunpack.c.l.b16 %v438
      %v1207 = vunpack.c.l.b16 %v439
      %v1208 = vunpack.c.l.b16 %v440
      %v1209 = vunpack.c.l.b16 %v441
      %v1210 = vunpack.c.l.b16 %v442
      %v1211 = vunpack.c.l.b16 %v443
      %v1212 = vpack.c.b16 %v1149, %v1148
      %v1213 = vpack.c.b16 %v1151, %v1150
      %v1214 = vpack.c.b16 %v1153, %v1152
      %v1215 = vpack.c.b16 %v1155, %v1154
      %v1216 = vpack.c.b16 %v1157, %v1156
      %v1217 = vpack.c.b16 %v1159, %v1158
      %v1218 = vpack.c.b16 %v1161, %v1160
      %v1219 = vpack.c.b16 %v1163, %v1162
      %v1220 = vpack.c.b16 %v1165, %v1164
      %v1221 = vpack.c.b16 %v1167, %v1166
      %v1222 = vpack.c.b16 %v1169, %v1168
      %v1223 = vpack.c.b16 %v1171, %v1170
      %v1224 = vpack.c.b16 %v1173, %v1172
      %v1225 = vpack.c.b16 %v1175, %v1174
      %v1226 = vpack.c.b16 %v1177, %v1176
      %v1227 = vpack.c.b16 %v1179, %v1178
      %v1228 = vpack.c.b16 %v1181, %v1180
      %v1229 = vpack.c.b16 %v1183, %v1182
      %v1230 = vpack.c.b16 %v1185, %v1184
      %v1231 = vpack.c.b16 %v1187, %v1186
      %v1232 = vpack.c.b16 %v1189, %v1188
      %v1233 = vpack.c.b16 %v1191, %v1190
      %v1234 = vpack.c.b16 %v1193, %v1192
      %v1235 = vpack.c.b16 %v1195, %v1194
      %v1236 = vpack.c.b16 %v1197, %v1196
      %v1237 = vpack.c.b16 %v1199, %v1198
      %v1238 = vpack.c.b16 %v1201, %v1200
      %v1239 = vpack.c.b16 %v1203, %v1202
      %v1240 = vpack.c.b16 %v1205, %v1204
      %v1241 = vpack.c.b16 %v1207, %v1206
      %v1242 = vpack.c.b16 %v1209, %v1208
      %v1243 = vpack.c.b16 %v1211, %v1210
      %1276 = vmatpush.bf16.msra.mxu0 %v1219
      %1277 = vmatpush.bf16.msra.mxu0 %v1218
      %1278 = vmatpush.bf16.msra.mxu0 %v1217
      %1279 = vmatpush.bf16.msra.mxu0 %v1216
      %1280 = vmatpush.bf16.msra.mxu0 %v1215
      %1281 = vmatpush.bf16.msra.mxu0 %v1214
      %1282 = vmatpush.bf16.msra.mxu0 %v1213
      %1283 = vmatpush.bf16.msra.mxu0 %v1212
      %1284 = vmatmul.bf16.gmra.mxu0 %v828
      %v1285 = vpop.f32.mrf.mxu0
      %v1286 = vadd.f32 0.0, %v1285
      %v1287 = vpop.f32.mrf.mxu0
      %v1288 = vadd.f32 0.0, %v1287
      %1289 = vmatmul.bf16.gmra.mxu0 %v832
      %v1290 = vpop.f32.mrf.mxu0
      %v1291 = vadd.f32 0.0, %v1290
      %v1292 = vpop.f32.mrf.mxu0
      %v1293 = vadd.f32 0.0, %v1292
      %1294 = vmatmul.bf16.gmra.mxu0 %v836
      %v1295 = vpop.f32.mrf.mxu0
      %v1296 = vadd.f32 0.0, %v1295
      %v1297 = vpop.f32.mrf.mxu0
      %v1298 = vadd.f32 0.0, %v1297
      %1299 = vmatmul.bf16.gmra.mxu0 %v840
      %v1300 = vpop.f32.mrf.mxu0
      %v1301 = vadd.f32 0.0, %v1300
      %v1302 = vpop.f32.mrf.mxu0
      %v1303 = vadd.f32 0.0, %v1302
      %1304 = vmatmul.bf16.gmra.mxu0 %v844
      %v1305 = vpop.f32.mrf.mxu0
      %v1306 = vadd.f32 0.0, %v1305
      %v1307 = vpop.f32.mrf.mxu0
      %v1308 = vadd.f32 0.0, %v1307
      %1309 = vmatmul.bf16.gmra.mxu0 %v848
      %v1310 = vpop.f32.mrf.mxu0
      %v1311 = vadd.f32 0.0, %v1310
      %v1312 = vpop.f32.mrf.mxu0
      %v1313 = vadd.f32 0.0, %v1312
      %1314 = vmatmul.bf16.gmra.mxu0 %v852
      %v1315 = vpop.f32.mrf.mxu0
      %v1316 = vadd.f32 0.0, %v1315
      %v1317 = vpop.f32.mrf.mxu0
      %v1318 = vadd.f32 0.0, %v1317
      %1319 = vmatmul.bf16.gmra.mxu0 %v856
      %v1320 = vpop.f32.mrf.mxu0
      %v1321 = vadd.f32 0.0, %v1320
      %v1322 = vpop.f32.mrf.mxu0
      %v1323 = vadd.f32 0.0, %v1322
      %1324 = vmatmul.bf16.gmra.mxu0 %v860
      %v1325 = vpop.f32.mrf.mxu0
      %v1326 = vadd.f32 0.0, %v1325
      %v1327 = vpop.f32.mrf.mxu0
      %v1328 = vadd.f32 0.0, %v1327
      %1329 = vmatmul.bf16.gmra.mxu0 %v864
      %v1330 = vpop.f32.mrf.mxu0
      %v1331 = vadd.f32 0.0, %v1330
      %v1332 = vpop.f32.mrf.mxu0
      %v1333 = vadd.f32 0.0, %v1332
      %1334 = vmatmul.bf16.gmra.mxu0 %v868
      %v1335 = vpop.f32.mrf.mxu0
      %v1336 = vadd.f32 0.0, %v1335
      %v1337 = vpop.f32.mrf.mxu0
      %v1338 = vadd.f32 0.0, %v1337
      %1339 = vmatmul.bf16.gmra.mxu0 %v872
      %v1340 = vpop.f32.mrf.mxu0
      %v1341 = vadd.f32 0.0, %v1340
      %v1342 = vpop.f32.mrf.mxu0
      %v1343 = vadd.f32 0.0, %v1342
      %1344 = vmatmul.bf16.gmra.mxu0 %v876
      %v1345 = vpop.f32.mrf.mxu0
      %v1346 = vadd.f32 0.0, %v1345
      %v1347 = vpop.f32.mrf.mxu0
      %v1348 = vadd.f32 0.0, %v1347
      %1349 = vmatmul.bf16.gmra.mxu0 %v880
      %v1350 = vpop.f32.mrf.mxu0
      %v1351 = vadd.f32 0.0, %v1350
      %v1352 = vpop.f32.mrf.mxu0
      %v1353 = vadd.f32 0.0, %v1352
      %1354 = vmatmul.bf16.gmra.mxu0 %v884
      %v1355 = vpop.f32.mrf.mxu0
      %v1356 = vadd.f32 0.0, %v1355
      %v1357 = vpop.f32.mrf.mxu0
      %v1358 = vadd.f32 0.0, %v1357
      %1359 = vmatmul.bf16.gmra.mxu0 %v888
      %v1360 = vpop.f32.mrf.mxu0
      %v1361 = vadd.f32 0.0, %v1360
      %v1362 = vpop.f32.mrf.mxu0
      %v1363 = vadd.f32 0.0, %v1362
      %1364 = vmatmul.bf16.gmra.mxu0 %v892
      %v1365 = vpop.f32.mrf.mxu0
      %v1366 = vadd.f32 0.0, %v1365
      %v1367 = vpop.f32.mrf.mxu0
      %v1368 = vadd.f32 0.0, %v1367
      %1369 = vmatmul.bf16.gmra.mxu0 %v896
      %v1370 = vpop.f32.mrf.mxu0
      %v1371 = vadd.f32 0.0, %v1370
      %v1372 = vpop.f32.mrf.mxu0
      %v1373 = vadd.f32 0.0, %v1372
      %1374 = vmatmul.bf16.gmra.mxu0 %v900
      %v1375 = vpop.f32.mrf.mxu0
      %v1376 = vadd.f32 0.0, %v1375
      %v1377 = vpop.f32.mrf.mxu0
      %v1378 = vadd.f32 0.0, %v1377
      %1379 = vmatmul.bf16.gmra.mxu0 %v904
      %v1380 = vpop.f32.mrf.mxu0
      %v1381 = vadd.f32 0.0, %v1380
      %v1382 = vpop.f32.mrf.mxu0
      %v1383 = vadd.f32 0.0, %v1382
      %1384 = vmatmul.bf16.gmra.mxu0 %v908
      %v1385 = vpop.f32.mrf.mxu0
      %v1386 = vadd.f32 0.0, %v1385
      %v1387 = vpop.f32.mrf.mxu0
      %v1388 = vadd.f32 0.0, %v1387
      %1389 = vmatmul.bf16.gmra.mxu0 %v912
      %v1390 = vpop.f32.mrf.mxu0
      %v1391 = vadd.f32 0.0, %v1390
      %v1392 = vpop.f32.mrf.mxu0
      %v1393 = vadd.f32 0.0, %v1392
      %1394 = vmatmul.bf16.gmra.mxu0 %v916
      %v1395 = vpop.f32.mrf.mxu0
      %v1396 = vadd.f32 0.0, %v1395
      %v1397 = vpop.f32.mrf.mxu0
      %v1398 = vadd.f32 0.0, %v1397
      %1399 = vmatmul.bf16.gmra.mxu0 %v920
      %v1400 = vpop.f32.mrf.mxu0
      %v1401 = vadd.f32 0.0, %v1400
      %v1402 = vpop.f32.mrf.mxu0
      %v1403 = vadd.f32 0.0, %v1402
      %1404 = vmatmul.bf16.gmra.mxu0 %v924
      %v1405 = vpop.f32.mrf.mxu0
      %v1406 = vadd.f32 0.0, %v1405
      %v1407 = vpop.f32.mrf.mxu0
      %v1408 = vadd.f32 0.0, %v1407
      %1409 = vmatmul.bf16.gmra.mxu0 %v928
      %v1410 = vpop.f32.mrf.mxu0
      %v1411 = vadd.f32 0.0, %v1410
      %v1412 = vpop.f32.mrf.mxu0
      %v1413 = vadd.f32 0.0, %v1412
      %1414 = vmatmul.bf16.gmra.mxu0 %v932
      %v1415 = vpop.f32.mrf.mxu0
      %v1416 = vadd.f32 0.0, %v1415
      %v1417 = vpop.f32.mrf.mxu0
      %v1418 = vadd.f32 0.0, %v1417
      %1419 = vmatmul.bf16.gmra.mxu0 %v936
      %v1420 = vpop.f32.mrf.mxu0
      %v1421 = vadd.f32 0.0, %v1420
      %v1422 = vpop.f32.mrf.mxu0
      %v1423 = vadd.f32 0.0, %v1422
      %1424 = vmatmul.bf16.gmra.mxu0 %v940
      %v1425 = vpop.f32.mrf.mxu0
      %v1426 = vadd.f32 0.0, %v1425
      %v1427 = vpop.f32.mrf.mxu0
      %v1428 = vadd.f32 0.0, %v1427
      %1429 = vmatmul.bf16.gmra.mxu0 %v944
      %v1430 = vpop.f32.mrf.mxu0
      %v1431 = vadd.f32 0.0, %v1430
      %v1432 = vpop.f32.mrf.mxu0
      %v1433 = vadd.f32 0.0, %v1432
      %1434 = vmatmul.bf16.gmra.mxu0 %v948
      %v1435 = vpop.f32.mrf.mxu0
      %v1436 = vadd.f32 0.0, %v1435
      %v1437 = vpop.f32.mrf.mxu0
      %v1438 = vadd.f32 0.0, %v1437
      %1439 = vmatmul.bf16.gmra.mxu0 %v952
      %v1440 = vpop.f32.mrf.mxu0
      %v1441 = vadd.f32 0.0, %v1440
      %v1442 = vpop.f32.mrf.mxu0
      %v1443 = vadd.f32 0.0, %v1442
      %1444 = vdwg.mxu0
      %1445 = vmatpush.bf16.msra.mxu0 %v1227
      %1446 = vmatpush.bf16.msra.mxu0 %v1226
      %1447 = vmatpush.bf16.msra.mxu0 %v1225
      %1448 = vmatpush.bf16.msra.mxu0 %v1224
      %1449 = vmatpush.bf16.msra.mxu0 %v1223
      %1450 = vmatpush.bf16.msra.mxu0 %v1222
      %1451 = vmatpush.bf16.msra.mxu0 %v1221
      %1452 = vmatpush.bf16.msra.mxu0 %v1220
      %1453 = vmatmul.bf16.gmra.mxu0 %v829
      %v1454 = vpop.f32.mrf.mxu0
      %v1455 = vadd.f32 %v1286, %v1454
      %v1456 = vpop.f32.mrf.mxu0
      %v1457 = vadd.f32 %v1288, %v1456
      %1458 = vmatmul.bf16.gmra.mxu0 %v833
      %v1459 = vpop.f32.mrf.mxu0
      %v1460 = vadd.f32 %v1291, %v1459
      %v1461 = vpop.f32.mrf.mxu0
      %v1462 = vadd.f32 %v1293, %v1461
      %1463 = vmatmul.bf16.gmra.mxu0 %v837
      %v1464 = vpop.f32.mrf.mxu0
      %v1465 = vadd.f32 %v1296, %v1464
      %v1466 = vpop.f32.mrf.mxu0
      %v1467 = vadd.f32 %v1298, %v1466
      %1468 = vmatmul.bf16.gmra.mxu0 %v841
      %v1469 = vpop.f32.mrf.mxu0
      %v1470 = vadd.f32 %v1301, %v1469
      %v1471 = vpop.f32.mrf.mxu0
      %v1472 = vadd.f32 %v1303, %v1471
      %1473 = vmatmul.bf16.gmra.mxu0 %v845
      %v1474 = vpop.f32.mrf.mxu0
      %v1475 = vadd.f32 %v1306, %v1474
      %v1476 = vpop.f32.mrf.mxu0
      %v1477 = vadd.f32 %v1308, %v1476
      %1478 = vmatmul.bf16.gmra.mxu0 %v849
      %v1479 = vpop.f32.mrf.mxu0
      %v1480 = vadd.f32 %v1311, %v1479
      %v1481 = vpop.f32.mrf.mxu0
      %v1482 = vadd.f32 %v1313, %v1481
      %1483 = vmatmul.bf16.gmra.mxu0 %v853
      %v1484 = vpop.f32.mrf.mxu0
      %v1485 = vadd.f32 %v1316, %v1484
      %v1486 = vpop.f32.mrf.mxu0
      %v1487 = vadd.f32 %v1318, %v1486
      %1488 = vmatmul.bf16.gmra.mxu0 %v857
      %v1489 = vpop.f32.mrf.mxu0
      %v1490 = vadd.f32 %v1321, %v1489
      %v1491 = vpop.f32.mrf.mxu0
      %v1492 = vadd.f32 %v1323, %v1491
      %1493 = vmatmul.bf16.gmra.mxu0 %v861
      %v1494 = vpop.f32.mrf.mxu0
      %v1495 = vadd.f32 %v1326, %v1494
      %v1496 = vpop.f32.mrf.mxu0
      %v1497 = vadd.f32 %v1328, %v1496
      %1498 = vmatmul.bf16.gmra.mxu0 %v865
      %v1499 = vpop.f32.mrf.mxu0
      %v1500 = vadd.f32 %v1331, %v1499
      %v1501 = vpop.f32.mrf.mxu0
      %v1502 = vadd.f32 %v1333, %v1501
      %1503 = vmatmul.bf16.gmra.mxu0 %v869
      %v1504 = vpop.f32.mrf.mxu0
      %v1505 = vadd.f32 %v1336, %v1504
      %v1506 = vpop.f32.mrf.mxu0
      %v1507 = vadd.f32 %v1338, %v1506
      %1508 = vmatmul.bf16.gmra.mxu0 %v873
      %v1509 = vpop.f32.mrf.mxu0
      %v1510 = vadd.f32 %v1341, %v1509
      %v1511 = vpop.f32.mrf.mxu0
      %v1512 = vadd.f32 %v1343, %v1511
      %1513 = vmatmul.bf16.gmra.mxu0 %v877
      %v1514 = vpop.f32.mrf.mxu0
      %v1515 = vadd.f32 %v1346, %v1514
      %v1516 = vpop.f32.mrf.mxu0
      %v1517 = vadd.f32 %v1348, %v1516
      %1518 = vmatmul.bf16.gmra.mxu0 %v881
      %v1519 = vpop.f32.mrf.mxu0
      %v1520 = vadd.f32 %v1351, %v1519
      %v1521 = vpop.f32.mrf.mxu0
      %v1522 = vadd.f32 %v1353, %v1521
      %1523 = vmatmul.bf16.gmra.mxu0 %v885
      %v1524 = vpop.f32.mrf.mxu0
      %v1525 = vadd.f32 %v1356, %v1524
      %v1526 = vpop.f32.mrf.mxu0
      %v1527 = vadd.f32 %v1358, %v1526
      %1528 = vmatmul.bf16.gmra.mxu0 %v889
      %v1529 = vpop.f32.mrf.mxu0
      %v1530 = vadd.f32 %v1361, %v1529
      %v1531 = vpop.f32.mrf.mxu0
      %v1532 = vadd.f32 %v1363, %v1531
      %1533 = vmatmul.bf16.gmra.mxu0 %v893
      %v1534 = vpop.f32.mrf.mxu0
      %v1535 = vadd.f32 %v1366, %v1534
      %v1536 = vpop.f32.mrf.mxu0
      %v1537 = vadd.f32 %v1368, %v1536
      %1538 = vmatmul.bf16.gmra.mxu0 %v897
      %v1539 = vpop.f32.mrf.mxu0
      %v1540 = vadd.f32 %v1371, %v1539
      %v1541 = vpop.f32.mrf.mxu0
      %v1542 = vadd.f32 %v1373, %v1541
      %1543 = vmatmul.bf16.gmra.mxu0 %v901
      %v1544 = vpop.f32.mrf.mxu0
      %v1545 = vadd.f32 %v1376, %v1544
      %v1546 = vpop.f32.mrf.mxu0
      %v1547 = vadd.f32 %v1378, %v1546
      %1548 = vmatmul.bf16.gmra.mxu0 %v905
      %v1549 = vpop.f32.mrf.mxu0
      %v1550 = vadd.f32 %v1381, %v1549
      %v1551 = vpop.f32.mrf.mxu0
      %v1552 = vadd.f32 %v1383, %v1551
      %1553 = vmatmul.bf16.gmra.mxu0 %v909
      %v1554 = vpop.f32.mrf.mxu0
      %v1555 = vadd.f32 %v1386, %v1554
      %v1556 = vpop.f32.mrf.mxu0
      %v1557 = vadd.f32 %v1388, %v1556
      %1558 = vmatmul.bf16.gmra.mxu0 %v913
      %v1559 = vpop.f32.mrf.mxu0
      %v1560 = vadd.f32 %v1391, %v1559
      %v1561 = vpop.f32.mrf.mxu0
      %v1562 = vadd.f32 %v1393, %v1561
      %1563 = vmatmul.bf16.gmra.mxu0 %v917
      %v1564 = vpop.f32.mrf.mxu0
      %v1565 = vadd.f32 %v1396, %v1564
      %v1566 = vpop.f32.mrf.mxu0
      %v1567 = vadd.f32 %v1398, %v1566
      %1568 = vmatmul.bf16.gmra.mxu0 %v921
      %v1569 = vpop.f32.mrf.mxu0
      %v1570 = vadd.f32 %v1401, %v1569
      %v1571 = vpop.f32.mrf.mxu0
      %v1572 = vadd.f32 %v1403, %v1571
      %1573 = vmatmul.bf16.gmra.mxu0 %v925
      %v1574 = vpop.f32.mrf.mxu0
      %v1575 = vadd.f32 %v1406, %v1574
      %v1576 = vpop.f32.mrf.mxu0
      %v1577 = vadd.f32 %v1408, %v1576
      %1578 = vmatmul.bf16.gmra.mxu0 %v929
      %v1579 = vpop.f32.mrf.mxu0
      %v1580 = vadd.f32 %v1411, %v1579
      %v1581 = vpop.f32.mrf.mxu0
      %v1582 = vadd.f32 %v1413, %v1581
      %1583 = vmatmul.bf16.gmra.mxu0 %v933
      %v1584 = vpop.f32.mrf.mxu0
      %v1585 = vadd.f32 %v1416, %v1584
      %v1586 = vpop.f32.mrf.mxu0
      %v1587 = vadd.f32 %v1418, %v1586
      %1588 = vmatmul.bf16.gmra.mxu0 %v937
      %v1589 = vpop.f32.mrf.mxu0
      %v1590 = vadd.f32 %v1421, %v1589
      %v1591 = vpop.f32.mrf.mxu0
      %v1592 = vadd.f32 %v1423, %v1591
      %1593 = vmatmul.bf16.gmra.mxu0 %v941
      %v1594 = vpop.f32.mrf.mxu0
      %v1595 = vadd.f32 %v1426, %v1594
      %v1596 = vpop.f32.mrf.mxu0
      %v1597 = vadd.f32 %v1428, %v1596
      %1598 = vmatmul.bf16.gmra.mxu0 %v945
      %v1599 = vpop.f32.mrf.mxu0
      %v1600 = vadd.f32 %v1431, %v1599
      %v1601 = vpop.f32.mrf.mxu0
      %v1602 = vadd.f32 %v1433, %v1601
      %1603 = vmatmul.bf16.gmra.mxu0 %v949
      %v1604 = vpop.f32.mrf.mxu0
      %v1605 = vadd.f32 %v1436, %v1604
      %v1606 = vpop.f32.mrf.mxu0
      %v1607 = vadd.f32 %v1438, %v1606
      %1608 = vmatmul.bf16.gmra.mxu0 %v953
      %v1609 = vpop.f32.mrf.mxu0
      %v1610 = vadd.f32 %v1441, %v1609
      %v1611 = vpop.f32.mrf.mxu0
      %v1612 = vadd.f32 %v1443, %v1611
      %1613 = vdwg.mxu0
      %1614 = vmatpush.bf16.msra.mxu0 %v1235
      %1615 = vmatpush.bf16.msra.mxu0 %v1234
      %1616 = vmatpush.bf16.msra.mxu0 %v1233
      %1617 = vmatpush.bf16.msra.mxu0 %v1232
      %1618 = vmatpush.bf16.msra.mxu0 %v1231
      %1619 = vmatpush.bf16.msra.mxu0 %v1230
      %1620 = vmatpush.bf16.msra.mxu0 %v1229
      %1621 = vmatpush.bf16.msra.mxu0 %v1228
      %1622 = vmatmul.bf16.gmra.mxu0 %v830
      %v1623 = vpop.f32.mrf.mxu0
      %v1624 = vadd.f32 %v1455, %v1623
      %v1625 = vpop.f32.mrf.mxu0
      %v1626 = vadd.f32 %v1457, %v1625
      %1627 = vmatmul.bf16.gmra.mxu0 %v834
      %v1628 = vpop.f32.mrf.mxu0
      %v1629 = vadd.f32 %v1460, %v1628
      %v1630 = vpop.f32.mrf.mxu0
      %v1631 = vadd.f32 %v1462, %v1630
      %1632 = vmatmul.bf16.gmra.mxu0 %v838
      %v1633 = vpop.f32.mrf.mxu0
      %v1634 = vadd.f32 %v1465, %v1633
      %v1635 = vpop.f32.mrf.mxu0
      %v1636 = vadd.f32 %v1467, %v1635
      %1637 = vmatmul.bf16.gmra.mxu0 %v842
      %v1638 = vpop.f32.mrf.mxu0
      %v1639 = vadd.f32 %v1470, %v1638
      %v1640 = vpop.f32.mrf.mxu0
      %v1641 = vadd.f32 %v1472, %v1640
      %1642 = vmatmul.bf16.gmra.mxu0 %v846
      %v1643 = vpop.f32.mrf.mxu0
      %v1644 = vadd.f32 %v1475, %v1643
      %v1645 = vpop.f32.mrf.mxu0
      %v1646 = vadd.f32 %v1477, %v1645
      %1647 = vmatmul.bf16.gmra.mxu0 %v850
      %v1648 = vpop.f32.mrf.mxu0
      %v1649 = vadd.f32 %v1480, %v1648
      %v1650 = vpop.f32.mrf.mxu0
      %v1651 = vadd.f32 %v1482, %v1650
      %1652 = vmatmul.bf16.gmra.mxu0 %v854
      %v1653 = vpop.f32.mrf.mxu0
      %v1654 = vadd.f32 %v1485, %v1653
      %v1655 = vpop.f32.mrf.mxu0
      %v1656 = vadd.f32 %v1487, %v1655
      %1657 = vmatmul.bf16.gmra.mxu0 %v858
      %v1658 = vpop.f32.mrf.mxu0
      %v1659 = vadd.f32 %v1490, %v1658
      %v1660 = vpop.f32.mrf.mxu0
      %v1661 = vadd.f32 %v1492, %v1660
      %1662 = vmatmul.bf16.gmra.mxu0 %v862
      %v1663 = vpop.f32.mrf.mxu0
      %v1664 = vadd.f32 %v1495, %v1663
      %v1665 = vpop.f32.mrf.mxu0
      %v1666 = vadd.f32 %v1497, %v1665
      %1667 = vmatmul.bf16.gmra.mxu0 %v866
      %v1668 = vpop.f32.mrf.mxu0
      %v1669 = vadd.f32 %v1500, %v1668
      %v1670 = vpop.f32.mrf.mxu0
      %v1671 = vadd.f32 %v1502, %v1670
      %1672 = vmatmul.bf16.gmra.mxu0 %v870
      %v1673 = vpop.f32.mrf.mxu0
      %v1674 = vadd.f32 %v1505, %v1673
      %v1675 = vpop.f32.mrf.mxu0
      %v1676 = vadd.f32 %v1507, %v1675
      %1677 = vmatmul.bf16.gmra.mxu0 %v874
      %v1678 = vpop.f32.mrf.mxu0
      %v1679 = vadd.f32 %v1510, %v1678
      %v1680 = vpop.f32.mrf.mxu0
      %v1681 = vadd.f32 %v1512, %v1680
      %1682 = vmatmul.bf16.gmra.mxu0 %v878
      %v1683 = vpop.f32.mrf.mxu0
      %v1684 = vadd.f32 %v1515, %v1683
      %v1685 = vpop.f32.mrf.mxu0
      %v1686 = vadd.f32 %v1517, %v1685
      %1687 = vmatmul.bf16.gmra.mxu0 %v882
      %v1688 = vpop.f32.mrf.mxu0
      %v1689 = vadd.f32 %v1520, %v1688
      %v1690 = vpop.f32.mrf.mxu0
      %v1691 = vadd.f32 %v1522, %v1690
      %1692 = vmatmul.bf16.gmra.mxu0 %v886
      %v1693 = vpop.f32.mrf.mxu0
      %v1694 = vadd.f32 %v1525, %v1693
      %v1695 = vpop.f32.mrf.mxu0
      %v1696 = vadd.f32 %v1527, %v1695
      %1697 = vmatmul.bf16.gmra.mxu0 %v890
      %v1698 = vpop.f32.mrf.mxu0
      %v1699 = vadd.f32 %v1530, %v1698
      %v1700 = vpop.f32.mrf.mxu0
      %v1701 = vadd.f32 %v1532, %v1700
      %1702 = vmatmul.bf16.gmra.mxu0 %v894
      %v1703 = vpop.f32.mrf.mxu0
      %v1704 = vadd.f32 %v1535, %v1703
      %v1705 = vpop.f32.mrf.mxu0
      %v1706 = vadd.f32 %v1537, %v1705
      %1707 = vmatmul.bf16.gmra.mxu0 %v898
      %v1708 = vpop.f32.mrf.mxu0
      %v1709 = vadd.f32 %v1540, %v1708
      %v1710 = vpop.f32.mrf.mxu0
      %v1711 = vadd.f32 %v1542, %v1710
      %1712 = vmatmul.bf16.gmra.mxu0 %v902
      %v1713 = vpop.f32.mrf.mxu0
      %v1714 = vadd.f32 %v1545, %v1713
      %v1715 = vpop.f32.mrf.mxu0
      %v1716 = vadd.f32 %v1547, %v1715
      %1717 = vmatmul.bf16.gmra.mxu0 %v906
      %v1718 = vpop.f32.mrf.mxu0
      %v1719 = vadd.f32 %v1550, %v1718
      %v1720 = vpop.f32.mrf.mxu0
      %v1721 = vadd.f32 %v1552, %v1720
      %1722 = vmatmul.bf16.gmra.mxu0 %v910
      %v1723 = vpop.f32.mrf.mxu0
      %v1724 = vadd.f32 %v1555, %v1723
      %v1725 = vpop.f32.mrf.mxu0
      %v1726 = vadd.f32 %v1557, %v1725
      %1727 = vmatmul.bf16.gmra.mxu0 %v914
      %v1728 = vpop.f32.mrf.mxu0
      %v1729 = vadd.f32 %v1560, %v1728
      %v1730 = vpop.f32.mrf.mxu0
      %v1731 = vadd.f32 %v1562, %v1730
      %1732 = vmatmul.bf16.gmra.mxu0 %v918
      %v1733 = vpop.f32.mrf.mxu0
      %v1734 = vadd.f32 %v1565, %v1733
      %v1735 = vpop.f32.mrf.mxu0
      %v1736 = vadd.f32 %v1567, %v1735
      %1737 = vmatmul.bf16.gmra.mxu0 %v922
      %v1738 = vpop.f32.mrf.mxu0
      %v1739 = vadd.f32 %v1570, %v1738
      %v1740 = vpop.f32.mrf.mxu0
      %v1741 = vadd.f32 %v1572, %v1740
      %1742 = vmatmul.bf16.gmra.mxu0 %v926
      %v1743 = vpop.f32.mrf.mxu0
      %v1744 = vadd.f32 %v1575, %v1743
      %v1745 = vpop.f32.mrf.mxu0
      %v1746 = vadd.f32 %v1577, %v1745
      %1747 = vmatmul.bf16.gmra.mxu0 %v930
      %v1748 = vpop.f32.mrf.mxu0
      %v1749 = vadd.f32 %v1580, %v1748
      %v1750 = vpop.f32.mrf.mxu0
      %v1751 = vadd.f32 %v1582, %v1750
      %1752 = vmatmul.bf16.gmra.mxu0 %v934
      %v1753 = vpop.f32.mrf.mxu0
      %v1754 = vadd.f32 %v1585, %v1753
      %v1755 = vpop.f32.mrf.mxu0
      %v1756 = vadd.f32 %v1587, %v1755
      %1757 = vmatmul.bf16.gmra.mxu0 %v938
      %v1758 = vpop.f32.mrf.mxu0
      %v1759 = vadd.f32 %v1590, %v1758
      %v1760 = vpop.f32.mrf.mxu0
      %v1761 = vadd.f32 %v1592, %v1760
      %1762 = vmatmul.bf16.gmra.mxu0 %v942
      %v1763 = vpop.f32.mrf.mxu0
      %v1764 = vadd.f32 %v1595, %v1763
      %v1765 = vpop.f32.mrf.mxu0
      %v1766 = vadd.f32 %v1597, %v1765
      %1767 = vmatmul.bf16.gmra.mxu0 %v946
      %v1768 = vpop.f32.mrf.mxu0
      %v1769 = vadd.f32 %v1600, %v1768
      %v1770 = vpop.f32.mrf.mxu0
      %v1771 = vadd.f32 %v1602, %v1770
      %1772 = vmatmul.bf16.gmra.mxu0 %v950
      %v1773 = vpop.f32.mrf.mxu0
      %v1774 = vadd.f32 %v1605, %v1773
      %v1775 = vpop.f32.mrf.mxu0
      %v1776 = vadd.f32 %v1607, %v1775
      %1777 = vmatmul.bf16.gmra.mxu0 %v954
      %v1778 = vpop.f32.mrf.mxu0
      %v1779 = vadd.f32 %v1610, %v1778
      %v1780 = vpop.f32.mrf.mxu0
      %v1781 = vadd.f32 %v1612, %v1780
      %1782 = vdwg.mxu0
      %1783 = vmatpush.bf16.msra.mxu0 %v1243
      %1784 = vmatpush.bf16.msra.mxu0 %v1242
      %1785 = vmatpush.bf16.msra.mxu0 %v1241
      %1786 = vmatpush.bf16.msra.mxu0 %v1240
      %1787 = vmatpush.bf16.msra.mxu0 %v1239
      %1788 = vmatpush.bf16.msra.mxu0 %v1238
      %1789 = vmatpush.bf16.msra.mxu0 %v1237
      %1790 = vmatpush.bf16.msra.mxu0 %v1236
      %1791 = vmatmul.bf16.gmra.mxu0 %v831
      %v1792 = vpop.f32.mrf.mxu0
      %v1793 = vadd.f32 %v1624, %v1792
      %v1794 = vpop.f32.mrf.mxu0
      %v1795 = vadd.f32 %v1626, %v1794
      %1796 = vmatmul.bf16.gmra.mxu0 %v835
      %v1797 = vpop.f32.mrf.mxu0
      %v1798 = vadd.f32 %v1629, %v1797
      %v1799 = vpop.f32.mrf.mxu0
      %v1800 = vadd.f32 %v1631, %v1799
      %1801 = vmatmul.bf16.gmra.mxu0 %v839
      %v1802 = vpop.f32.mrf.mxu0
      %v1803 = vadd.f32 %v1634, %v1802
      %v1804 = vpop.f32.mrf.mxu0
      %v1805 = vadd.f32 %v1636, %v1804
      %1806 = vmatmul.bf16.gmra.mxu0 %v843
      %v1807 = vpop.f32.mrf.mxu0
      %v1808 = vadd.f32 %v1639, %v1807
      %v1809 = vpop.f32.mrf.mxu0
      %v1810 = vadd.f32 %v1641, %v1809
      %1811 = vmatmul.bf16.gmra.mxu0 %v847
      %v1812 = vpop.f32.mrf.mxu0
      %v1813 = vadd.f32 %v1644, %v1812
      %v1814 = vpop.f32.mrf.mxu0
      %v1815 = vadd.f32 %v1646, %v1814
      %1816 = vmatmul.bf16.gmra.mxu0 %v851
      %v1817 = vpop.f32.mrf.mxu0
      %v1818 = vadd.f32 %v1649, %v1817
      %v1819 = vpop.f32.mrf.mxu0
      %v1820 = vadd.f32 %v1651, %v1819
      %1821 = vmatmul.bf16.gmra.mxu0 %v855
      %v1822 = vpop.f32.mrf.mxu0
      %v1823 = vadd.f32 %v1654, %v1822
      %v1824 = vpop.f32.mrf.mxu0
      %v1825 = vadd.f32 %v1656, %v1824
      %1826 = vmatmul.bf16.gmra.mxu0 %v859
      %v1827 = vpop.f32.mrf.mxu0
      %v1828 = vadd.f32 %v1659, %v1827
      %v1829 = vpop.f32.mrf.mxu0
      %v1830 = vadd.f32 %v1661, %v1829
      %1831 = vmatmul.bf16.gmra.mxu0 %v863
      %v1832 = vpop.f32.mrf.mxu0
      %v1833 = vadd.f32 %v1664, %v1832
      %v1834 = vpop.f32.mrf.mxu0
      %v1835 = vadd.f32 %v1666, %v1834
      %1836 = vmatmul.bf16.gmra.mxu0 %v867
      %v1837 = vpop.f32.mrf.mxu0
      %v1838 = vadd.f32 %v1669, %v1837
      %v1839 = vpop.f32.mrf.mxu0
      %v1840 = vadd.f32 %v1671, %v1839
      %1841 = vmatmul.bf16.gmra.mxu0 %v871
      %v1842 = vpop.f32.mrf.mxu0
      %v1843 = vadd.f32 %v1674, %v1842
      %v1844 = vpop.f32.mrf.mxu0
      %v1845 = vadd.f32 %v1676, %v1844
      %1846 = vmatmul.bf16.gmra.mxu0 %v875
      %v1847 = vpop.f32.mrf.mxu0
      %v1848 = vadd.f32 %v1679, %v1847
      %v1849 = vpop.f32.mrf.mxu0
      %v1850 = vadd.f32 %v1681, %v1849
      %1851 = vmatmul.bf16.gmra.mxu0 %v879
      %v1852 = vpop.f32.mrf.mxu0
      %v1853 = vadd.f32 %v1684, %v1852
      %v1854 = vpop.f32.mrf.mxu0
      %v1855 = vadd.f32 %v1686, %v1854
      %1856 = vmatmul.bf16.gmra.mxu0 %v883
      %v1857 = vpop.f32.mrf.mxu0
      %v1858 = vadd.f32 %v1689, %v1857
      %v1859 = vpop.f32.mrf.mxu0
      %v1860 = vadd.f32 %v1691, %v1859
      %1861 = vmatmul.bf16.gmra.mxu0 %v887
      %v1862 = vpop.f32.mrf.mxu0
      %v1863 = vadd.f32 %v1694, %v1862
      %v1864 = vpop.f32.mrf.mxu0
      %v1865 = vadd.f32 %v1696, %v1864
      %1866 = vmatmul.bf16.gmra.mxu0 %v891
      %v1867 = vpop.f32.mrf.mxu0
      %v1868 = vadd.f32 %v1699, %v1867
      %v1869 = vpop.f32.mrf.mxu0
      %v1870 = vadd.f32 %v1701, %v1869
      %1871 = vmatmul.bf16.gmra.mxu0 %v895
      %v1872 = vpop.f32.mrf.mxu0
      %v1873 = vadd.f32 %v1704, %v1872
      %v1874 = vpop.f32.mrf.mxu0
      %v1875 = vadd.f32 %v1706, %v1874
      %1876 = vmatmul.bf16.gmra.mxu0 %v899
      %v1877 = vpop.f32.mrf.mxu0
      %v1878 = vadd.f32 %v1709, %v1877
      %v1879 = vpop.f32.mrf.mxu0
      %v1880 = vadd.f32 %v1711, %v1879
      %1881 = vmatmul.bf16.gmra.mxu0 %v903
      %v1882 = vpop.f32.mrf.mxu0
      %v1883 = vadd.f32 %v1714, %v1882
      %v1884 = vpop.f32.mrf.mxu0
      %v1885 = vadd.f32 %v1716, %v1884
      %1886 = vmatmul.bf16.gmra.mxu0 %v907
      %v1887 = vpop.f32.mrf.mxu0
      %v1888 = vadd.f32 %v1719, %v1887
      %v1889 = vpop.f32.mrf.mxu0
      %v1890 = vadd.f32 %v1721, %v1889
      %1891 = vmatmul.bf16.gmra.mxu0 %v911
      %v1892 = vpop.f32.mrf.mxu0
      %v1893 = vadd.f32 %v1724, %v1892
      %v1894 = vpop.f32.mrf.mxu0
      %v1895 = vadd.f32 %v1726, %v1894
      %1896 = vmatmul.bf16.gmra.mxu0 %v915
      %v1897 = vpop.f32.mrf.mxu0
      %v1898 = vadd.f32 %v1729, %v1897
      %v1899 = vpop.f32.mrf.mxu0
      %v1900 = vadd.f32 %v1731, %v1899
      %1901 = vmatmul.bf16.gmra.mxu0 %v919
      %v1902 = vpop.f32.mrf.mxu0
      %v1903 = vadd.f32 %v1734, %v1902
      %v1904 = vpop.f32.mrf.mxu0
      %v1905 = vadd.f32 %v1736, %v1904
      %1906 = vmatmul.bf16.gmra.mxu0 %v923
      %v1907 = vpop.f32.mrf.mxu0
      %v1908 = vadd.f32 %v1739, %v1907
      %v1909 = vpop.f32.mrf.mxu0
      %v1910 = vadd.f32 %v1741, %v1909
      %1911 = vmatmul.bf16.gmra.mxu0 %v927
      %v1912 = vpop.f32.mrf.mxu0
      %v1913 = vadd.f32 %v1744, %v1912
      %v1914 = vpop.f32.mrf.mxu0
      %v1915 = vadd.f32 %v1746, %v1914
      %1916 = vmatmul.bf16.gmra.mxu0 %v931
      %v1917 = vpop.f32.mrf.mxu0
      %v1918 = vadd.f32 %v1749, %v1917
      %v1919 = vpop.f32.mrf.mxu0
      %v1920 = vadd.f32 %v1751, %v1919
      %1921 = vmatmul.bf16.gmra.mxu0 %v935
      %v1922 = vpop.f32.mrf.mxu0
      %v1923 = vadd.f32 %v1754, %v1922
      %v1924 = vpop.f32.mrf.mxu0
      %v1925 = vadd.f32 %v1756, %v1924
      %1926 = vmatmul.bf16.gmra.mxu0 %v939
      %v1927 = vpop.f32.mrf.mxu0
      %v1928 = vadd.f32 %v1759, %v1927
      %v1929 = vpop.f32.mrf.mxu0
      %v1930 = vadd.f32 %v1761, %v1929
      %1931 = vmatmul.bf16.gmra.mxu0 %v943
      %v1932 = vpop.f32.mrf.mxu0
      %v1933 = vadd.f32 %v1764, %v1932
      %v1934 = vpop.f32.mrf.mxu0
      %v1935 = vadd.f32 %v1766, %v1934
      %1936 = vmatmul.bf16.gmra.mxu0 %v947
      %v1937 = vpop.f32.mrf.mxu0
      %v1938 = vadd.f32 %v1769, %v1937
      %v1939 = vpop.f32.mrf.mxu0
      %v1940 = vadd.f32 %v1771, %v1939
      %1941 = vmatmul.bf16.gmra.mxu0 %v951
      %v1942 = vpop.f32.mrf.mxu0
      %v1943 = vadd.f32 %v1774, %v1942
      %v1944 = vpop.f32.mrf.mxu0
      %v1945 = vadd.f32 %v1776, %v1944
      %1946 = vmatmul.bf16.gmra.mxu0 %v955
      %v1947 = vpop.f32.mrf.mxu0
      %v1948 = vadd.f32 %v1779, %v1947
      %v1949 = vpop.f32.mrf.mxu0
      %v1950 = vadd.f32 %v1781, %v1949
      %1951 = vdwg.mxu0
      %vm1952 = vcmask 523264
      %1953 = vst.msk [vmem:[%s243] sm:$0xff] %vm1952, %v1793
      %1954 = vst.msk [vmem:[%s243 + $0x8] sm:$0xff] %vm1952, %v1795
      %1955 = vst.msk [vmem:[%s243 + $0x10] sm:$0xff] %vm1952, %v1798
      %1956 = vst.msk [vmem:[%s243 + $0x18] sm:$0xff] %vm1952, %v1800
      %1957 = vst.msk [vmem:[%s243 + $0x20] sm:$0xff] %vm1952, %v1803
      %1958 = vst.msk [vmem:[%s243 + $0x28] sm:$0xff] %vm1952, %v1805
      %1959 = vst.msk [vmem:[%s243 + $0x30] sm:$0xff] %vm1952, %v1808
      %1960 = vst.msk [vmem:[%s243 + $0x38] sm:$0xff] %vm1952, %v1810
      %1961 = vst.msk [vmem:[%s243 + $0x40] sm:$0xff] %vm1952, %v1813
      %1962 = vst.msk [vmem:[%s243 + $0x48] sm:$0xff] %vm1952, %v1815
      %1963 = vst.msk [vmem:[%s243 + $0x50] sm:$0xff] %vm1952, %v1818
      %1964 = vst.msk [vmem:[%s243 + $0x58] sm:$0xff] %vm1952, %v1820
      %1965 = vst.msk [vmem:[%s243 + $0x60] sm:$0xff] %vm1952, %v1823
      %1966 = vst.msk [vmem:[%s243 + $0x68] sm:$0xff] %vm1952, %v1825
      %1967 = vst.msk [vmem:[%s243 + $0x70] sm:$0xff] %vm1952, %v1828
      %1968 = vst.msk [vmem:[%s243 + $0x78] sm:$0xff] %vm1952, %v1830
      %1969 = vst.msk [vmem:[%s243 + $0x80] sm:$0xff] %vm1952, %v1833
      %1970 = vst.msk [vmem:[%s243 + $0x88] sm:$0xff] %vm1952, %v1835
      %1971 = vst.msk [vmem:[%s243 + $0x90] sm:$0xff] %vm1952, %v1838
      %1972 = vst.msk [vmem:[%s243 + $0x98] sm:$0xff] %vm1952, %v1840
      %1973 = vst.msk [vmem:[%s243 + $0xa0] sm:$0xff] %vm1952, %v1843
      %1974 = vst.msk [vmem:[%s243 + $0xa8] sm:$0xff] %vm1952, %v1845
      %1975 = vst.msk [vmem:[%s243 + $0xb0] sm:$0xff] %vm1952, %v1848
      %1976 = vst.msk [vmem:[%s243 + $0xb8] sm:$0xff] %vm1952, %v1850
      %1977 = vst.msk [vmem:[%s243 + $0xc0] sm:$0xff] %vm1952, %v1853
      %1978 = vst.msk [vmem:[%s243 + $0xc8] sm:$0xff] %vm1952, %v1855
      %1979 = vst.msk [vmem:[%s243 + $0xd0] sm:$0xff] %vm1952, %v1858
      %1980 = vst.msk [vmem:[%s243 + $0xd8] sm:$0xff] %vm1952, %v1860
      %1981 = vst.msk [vmem:[%s243 + $0xe0] sm:$0xff] %vm1952, %v1863
      %1982 = vst.msk [vmem:[%s243 + $0xe8] sm:$0xff] %vm1952, %v1865
      %1983 = vst.msk [vmem:[%s243 + $0xf0] sm:$0xff] %vm1952, %v1868
      %1984 = vst.msk [vmem:[%s243 + $0xf8] sm:$0xff] %vm1952, %v1870
      %1985 = vst.msk [vmem:[%s243 + $0x100] sm:$0xff] %vm1952, %v1873
      %1986 = vst.msk [vmem:[%s243 + $0x108] sm:$0xff] %vm1952, %v1875
      %1987 = vst.msk [vmem:[%s243 + $0x110] sm:$0xff] %vm1952, %v1878
      %1988 = vst.msk [vmem:[%s243 + $0x118] sm:$0xff] %vm1952, %v1880
      %1989 = vst.msk [vmem:[%s243 + $0x120] sm:$0xff] %vm1952, %v1883
      %1990 = vst.msk [vmem:[%s243 + $0x128] sm:$0xff] %vm1952, %v1885
      %1991 = vst.msk [vmem:[%s243 + $0x130] sm:$0xff] %vm1952, %v1888
      %1992 = vst.msk [vmem:[%s243 + $0x138] sm:$0xff] %vm1952, %v1890
      %1993 = vst.msk [vmem:[%s243 + $0x140] sm:$0xff] %vm1952, %v1893
      %1994 = vst.msk [vmem:[%s243 + $0x148] sm:$0xff] %vm1952, %v1895
      %1995 = vst.msk [vmem:[%s243 + $0x150] sm:$0xff] %vm1952, %v1898
      %1996 = vst.msk [vmem:[%s243 + $0x158] sm:$0xff] %vm1952, %v1900
      %1997 = vst.msk [vmem:[%s243 + $0x160] sm:$0xff] %vm1952, %v1903
      %1998 = vst.msk [vmem:[%s243 + $0x168] sm:$0xff] %vm1952, %v1905
      %1999 = vst.msk [vmem:[%s243 + $0x170] sm:$0xff] %vm1952, %v1908
      %2000 = vst.msk [vmem:[%s243 + $0x178] sm:$0xff] %vm1952, %v1910
      %2001 = vst.msk [vmem:[%s243 + $0x180] sm:$0xff] %vm1952, %v1913
      %2002 = vst.msk [vmem:[%s243 + $0x188] sm:$0xff] %vm1952, %v1915
      %2003 = vst.msk [vmem:[%s243 + $0x190] sm:$0xff] %vm1952, %v1918
      %2004 = vst.msk [vmem:[%s243 + $0x198] sm:$0xff] %vm1952, %v1920
      %2005 = vst.msk [vmem:[%s243 + $0x1a0] sm:$0xff] %vm1952, %v1923
      %2006 = vst.msk [vmem:[%s243 + $0x1a8] sm:$0xff] %vm1952, %v1925
      %2007 = vst.msk [vmem:[%s243 + $0x1b0] sm:$0xff] %vm1952, %v1928
      %2008 = vst.msk [vmem:[%s243 + $0x1b8] sm:$0xff] %vm1952, %v1930
      %2009 = vst.msk [vmem:[%s243 + $0x1c0] sm:$0xff] %vm1952, %v1933
      %2010 = vst.msk [vmem:[%s243 + $0x1c8] sm:$0xff] %vm1952, %v1935
      %2011 = vst.msk [vmem:[%s243 + $0x1d0] sm:$0xff] %vm1952, %v1938
      %2012 = vst.msk [vmem:[%s243 + $0x1d8] sm:$0xff] %vm1952, %v1940
      %2013 = vst.msk [vmem:[%s243 + $0x1e0] sm:$0xff] %vm1952, %v1943
      %2014 = vst.msk [vmem:[%s243 + $0x1e8] sm:$0xff] %vm1952, %v1945
      %2015 = vst.msk [vmem:[%s243 + $0x1f0] sm:$0xff] %vm1952, %v1948
      %2016 = vst.msk [vmem:[%s243 + $0x1f8] sm:$0xff] %vm1952, %v1950
      %v2017 = vsel %vm1952, %v1793, 0.0
      %v2018 = vsel %vm1952, %v1795, 0.0
      %v2019 = vadd.f32 %v2017, %v2018
      %v2020 = vsel %vm1952, %v1798, 0.0
      %v2021 = vadd.f32 %v2019, %v2020
      %v2022 = vsel %vm1952, %v1800, 0.0
      %v2023 = vadd.f32 %v2021, %v2022
      %v2024 = vsel %vm1952, %v1803, 0.0
      %v2025 = vadd.f32 %v2023, %v2024
      %v2026 = vsel %vm1952, %v1805, 0.0
      %v2027 = vadd.f32 %v2025, %v2026
      %v2028 = vsel %vm1952, %v1808, 0.0
      %v2029 = vadd.f32 %v2027, %v2028
      %v2030 = vsel %vm1952, %v1810, 0.0
      %v2031 = vadd.f32 %v2029, %v2030
      %v2032 = vsel %vm1952, %v1813, 0.0
      %v2033 = vadd.f32 %v2031, %v2032
      %v2034 = vsel %vm1952, %v1815, 0.0
      %v2035 = vadd.f32 %v2033, %v2034
      %v2036 = vsel %vm1952, %v1818, 0.0
      %v2037 = vadd.f32 %v2035, %v2036
      %v2038 = vsel %vm1952, %v1820, 0.0
      %v2039 = vadd.f32 %v2037, %v2038
      %v2040 = vsel %vm1952, %v1823, 0.0
      %v2041 = vadd.f32 %v2039, %v2040
      %v2042 = vsel %vm1952, %v1825, 0.0
      %v2043 = vadd.f32 %v2041, %v2042
      %v2044 = vsel %vm1952, %v1828, 0.0
      %v2045 = vadd.f32 %v2043, %v2044
      %v2046 = vsel %vm1952, %v1830, 0.0
      %v2047 = vadd.f32 %v2045, %v2046
      %v2048 = vsel %vm1952, %v1833, 0.0
      %v2049 = vadd.f32 %v2047, %v2048
      %v2050 = vsel %vm1952, %v1835, 0.0
      %v2051 = vadd.f32 %v2049, %v2050
      %v2052 = vsel %vm1952, %v1838, 0.0
      %v2053 = vadd.f32 %v2051, %v2052
      %v2054 = vsel %vm1952, %v1840, 0.0
      %v2055 = vadd.f32 %v2053, %v2054
      %v2056 = vsel %vm1952, %v1843, 0.0
      %v2057 = vadd.f32 %v2055, %v2056
      %v2058 = vsel %vm1952, %v1845, 0.0
      %v2059 = vadd.f32 %v2057, %v2058
      %v2060 = vsel %vm1952, %v1848, 0.0
      %v2061 = vadd.f32 %v2059, %v2060
      %v2062 = vsel %vm1952, %v1850, 0.0
      %v2063 = vadd.f32 %v2061, %v2062
      %v2064 = vsel %vm1952, %v1853, 0.0
      %v2065 = vadd.f32 %v2063, %v2064
      %v2066 = vsel %vm1952, %v1855, 0.0
      %v2067 = vadd.f32 %v2065, %v2066
      %v2068 = vsel %vm1952, %v1858, 0.0
      %v2069 = vadd.f32 %v2067, %v2068
      %v2070 = vsel %vm1952, %v1860, 0.0
      %v2071 = vadd.f32 %v2069, %v2070
      %v2072 = vsel %vm1952, %v1863, 0.0
      %v2073 = vadd.f32 %v2071, %v2072
      %v2074 = vsel %vm1952, %v1865, 0.0
      %v2075 = vadd.f32 %v2073, %v2074
      %v2076 = vsel %vm1952, %v1868, 0.0
      %v2077 = vadd.f32 %v2075, %v2076
      %v2078 = vsel %vm1952, %v1870, 0.0
      %v2079 = vadd.f32 %v2077, %v2078
      %v2080 = vsel %vm1952, %v1873, 0.0
      %v2081 = vadd.f32 %v2079, %v2080
      %v2082 = vsel %vm1952, %v1875, 0.0
      %v2083 = vadd.f32 %v2081, %v2082
      %v2084 = vsel %vm1952, %v1878, 0.0
      %v2085 = vadd.f32 %v2083, %v2084
      %v2086 = vsel %vm1952, %v1880, 0.0
      %v2087 = vadd.f32 %v2085, %v2086
      %v2088 = vsel %vm1952, %v1883, 0.0
      %v2089 = vadd.f32 %v2087, %v2088
      %v2090 = vsel %vm1952, %v1885, 0.0
      %v2091 = vadd.f32 %v2089, %v2090
      %v2092 = vsel %vm1952, %v1888, 0.0
      %v2093 = vadd.f32 %v2091, %v2092
      %v2094 = vsel %vm1952, %v1890, 0.0
      %v2095 = vadd.f32 %v2093, %v2094
      %v2096 = vsel %vm1952, %v1893, 0.0
      %v2097 = vadd.f32 %v2095, %v2096
      %v2098 = vsel %vm1952, %v1895, 0.0
      %v2099 = vadd.f32 %v2097, %v2098
      %v2100 = vsel %vm1952, %v1898, 0.0
      %v2101 = vadd.f32 %v2099, %v2100
      %v2102 = vsel %vm1952, %v1900, 0.0
      %v2103 = vadd.f32 %v2101, %v2102
      %v2104 = vsel %vm1952, %v1903, 0.0
      %v2105 = vadd.f32 %v2103, %v2104
      %v2106 = vsel %vm1952, %v1905, 0.0
      %v2107 = vadd.f32 %v2105, %v2106
      %v2108 = vsel %vm1952, %v1908, 0.0
      %v2109 = vadd.f32 %v2107, %v2108
      %v2110 = vsel %vm1952, %v1910, 0.0
      %v2111 = vadd.f32 %v2109, %v2110
      %v2112 = vsel %vm1952, %v1913, 0.0
      %v2113 = vadd.f32 %v2111, %v2112
      %v2114 = vsel %vm1952, %v1915, 0.0
      %v2115 = vadd.f32 %v2113, %v2114
      %v2116 = vsel %vm1952, %v1918, 0.0
      %v2117 = vadd.f32 %v2115, %v2116
      %v2118 = vsel %vm1952, %v1920, 0.0
      %v2119 = vadd.f32 %v2117, %v2118
      %v2120 = vsel %vm1952, %v1923, 0.0
      %v2121 = vadd.f32 %v2119, %v2120
      %v2122 = vsel %vm1952, %v1925, 0.0
      %v2123 = vadd.f32 %v2121, %v2122
      %v2124 = vsel %vm1952, %v1928, 0.0
      %v2125 = vadd.f32 %v2123, %v2124
      %v2126 = vsel %vm1952, %v1930, 0.0
      %v2127 = vadd.f32 %v2125, %v2126
      %v2128 = vsel %vm1952, %v1933, 0.0
      %v2129 = vadd.f32 %v2127, %v2128
      %v2130 = vsel %vm1952, %v1935, 0.0
      %v2131 = vadd.f32 %v2129, %v2130
      %v2132 = vsel %vm1952, %v1938, 0.0
      %v2133 = vadd.f32 %v2131, %v2132
      %v2134 = vsel %vm1952, %v1940, 0.0
      %v2135 = vadd.f32 %v2133, %v2134
      %v2136 = vsel %vm1952, %v1943, 0.0
      %v2137 = vadd.f32 %v2135, %v2136
      %v2138 = vsel %vm1952, %v1945, 0.0
      %v2139 = vadd.f32 %v2137, %v2138
      %v2140 = vsel %vm1952, %v1948, 0.0
      %v2141 = vadd.f32 %v2139, %v2140
      %v2142 = vsel %vm1952, %v1950, 0.0
      %v2143 = vadd.f32 %v2141, %v2142
      %v2144 = vrot.slane %v2143, 4
      %v2145 = vadd.f32 %v2143, %v2144
      %v2146 = vrot.slane %v2145, 2
      %v2147 = vadd.f32 %v2145, %v2146
      %v2148 = vrot.slane %v2147, 1
      %v2149 = vadd.f32 %v2147, %v2148
      %vm2150 = vcmask 516096
      %2151 = vst.msk [vmem:[%s251] sm:$0x1] %vm2150, %v2149
      %v2152 = vmul.f32 %v1793, %v1793
      %v2153 = vmul.f32 %v1795, %v1795
      %v2154 = vmul.f32 %v1798, %v1798
      %v2155 = vmul.f32 %v1800, %v1800
      %v2156 = vmul.f32 %v1803, %v1803
      %v2157 = vmul.f32 %v1805, %v1805
      %v2158 = vmul.f32 %v1808, %v1808
      %v2159 = vmul.f32 %v1810, %v1810
      %v2160 = vmul.f32 %v1813, %v1813
      %v2161 = vmul.f32 %v1815, %v1815
      %v2162 = vmul.f32 %v1818, %v1818
      %v2163 = vmul.f32 %v1820, %v1820
      %v2164 = vmul.f32 %v1823, %v1823
      %v2165 = vmul.f32 %v1825, %v1825
      %v2166 = vmul.f32 %v1828, %v1828
      %v2167 = vmul.f32 %v1830, %v1830
      %v2168 = vmul.f32 %v1833, %v1833
      %v2169 = vmul.f32 %v1835, %v1835
      %v2170 = vmul.f32 %v1838, %v1838
      %v2171 = vmul.f32 %v1840, %v1840
      %v2172 = vmul.f32 %v1843, %v1843
      %v2173 = vmul.f32 %v1845, %v1845
      %v2174 = vmul.f32 %v1848, %v1848
      %v2175 = vmul.f32 %v1850, %v1850
      %v2176 = vmul.f32 %v1853, %v1853
      %v2177 = vmul.f32 %v1855, %v1855
      %v2178 = vmul.f32 %v1858, %v1858
      %v2179 = vmul.f32 %v1860, %v1860
      %v2180 = vmul.f32 %v1863, %v1863
      %v2181 = vmul.f32 %v1865, %v1865
      %v2182 = vmul.f32 %v1868, %v1868
      %v2183 = vmul.f32 %v1870, %v1870
      %v2184 = vmul.f32 %v1873, %v1873
      %v2185 = vmul.f32 %v1875, %v1875
      %v2186 = vmul.f32 %v1878, %v1878
      %v2187 = vmul.f32 %v1880, %v1880
      %v2188 = vmul.f32 %v1883, %v1883
      %v2189 = vmul.f32 %v1885, %v1885
      %v2190 = vmul.f32 %v1888, %v1888
      %v2191 = vmul.f32 %v1890, %v1890
      %v2192 = vmul.f32 %v1893, %v1893
      %v2193 = vmul.f32 %v1895, %v1895
      %v2194 = vmul.f32 %v1898, %v1898
      %v2195 = vmul.f32 %v1900, %v1900
      %v2196 = vmul.f32 %v1903, %v1903
      %v2197 = vmul.f32 %v1905, %v1905
      %v2198 = vmul.f32 %v1908, %v1908
      %v2199 = vmul.f32 %v1910, %v1910
      %v2200 = vmul.f32 %v1913, %v1913
      %v2201 = vmul.f32 %v1915, %v1915
      %v2202 = vmul.f32 %v1918, %v1918
      %v2203 = vmul.f32 %v1920, %v1920
      %v2204 = vmul.f32 %v1923, %v1923
      %v2205 = vmul.f32 %v1925, %v1925
      %v2206 = vmul.f32 %v1928, %v1928
      %v2207 = vmul.f32 %v1930, %v1930
      %v2208 = vmul.f32 %v1933, %v1933
      %v2209 = vmul.f32 %v1935, %v1935
      %v2210 = vmul.f32 %v1938, %v1938
      %v2211 = vmul.f32 %v1940, %v1940
      %v2212 = vmul.f32 %v1943, %v1943
      %v2213 = vmul.f32 %v1945, %v1945
      %v2214 = vmul.f32 %v1948, %v1948
      %v2215 = vmul.f32 %v1950, %v1950
      %v2216 = vsel %vm1952, %v2152, 0.0
      %v2217 = vsel %vm1952, %v2153, 0.0
      %v2218 = vadd.f32 %v2216, %v2217
      %v2219 = vsel %vm1952, %v2154, 0.0
      %v2220 = vadd.f32 %v2218, %v2219
      %v2221 = vsel %vm1952, %v2155, 0.0
      %v2222 = vadd.f32 %v2220, %v2221
      %v2223 = vsel %vm1952, %v2156, 0.0
      %v2224 = vadd.f32 %v2222, %v2223
      %v2225 = vsel %vm1952, %v2157, 0.0
      %v2226 = vadd.f32 %v2224, %v2225
      %v2227 = vsel %vm1952, %v2158, 0.0
      %v2228 = vadd.f32 %v2226, %v2227
      %v2229 = vsel %vm1952, %v2159, 0.0
      %v2230 = vadd.f32 %v2228, %v2229
      %v2231 = vsel %vm1952, %v2160, 0.0
      %v2232 = vadd.f32 %v2230, %v2231
      %v2233 = vsel %vm1952, %v2161, 0.0
      %v2234 = vadd.f32 %v2232, %v2233
      %v2235 = vsel %vm1952, %v2162, 0.0
      %v2236 = vadd.f32 %v2234, %v2235
      %v2237 = vsel %vm1952, %v2163, 0.0
      %v2238 = vadd.f32 %v2236, %v2237
      %v2239 = vsel %vm1952, %v2164, 0.0
      %v2240 = vadd.f32 %v2238, %v2239
      %v2241 = vsel %vm1952, %v2165, 0.0
      %v2242 = vadd.f32 %v2240, %v2241
      %v2243 = vsel %vm1952, %v2166, 0.0
      %v2244 = vadd.f32 %v2242, %v2243
      %v2245 = vsel %vm1952, %v2167, 0.0
      %v2246 = vadd.f32 %v2244, %v2245
      %v2247 = vsel %vm1952, %v2168, 0.0
      %v2248 = vadd.f32 %v2246, %v2247
      %v2249 = vsel %vm1952, %v2169, 0.0
      %v2250 = vadd.f32 %v2248, %v2249
      %v2251 = vsel %vm1952, %v2170, 0.0
      %v2252 = vadd.f32 %v2250, %v2251
      %v2253 = vsel %vm1952, %v2171, 0.0
      %v2254 = vadd.f32 %v2252, %v2253
      %v2255 = vsel %vm1952, %v2172, 0.0
      %v2256 = vadd.f32 %v2254, %v2255
      %v2257 = vsel %vm1952, %v2173, 0.0
      %v2258 = vadd.f32 %v2256, %v2257
      %v2259 = vsel %vm1952, %v2174, 0.0
      %v2260 = vadd.f32 %v2258, %v2259
      %v2261 = vsel %vm1952, %v2175, 0.0
      %v2262 = vadd.f32 %v2260, %v2261
      %v2263 = vsel %vm1952, %v2176, 0.0
      %v2264 = vadd.f32 %v2262, %v2263
      %v2265 = vsel %vm1952, %v2177, 0.0
      %v2266 = vadd.f32 %v2264, %v2265
      %v2267 = vsel %vm1952, %v2178, 0.0
      %v2268 = vadd.f32 %v2266, %v2267
      %v2269 = vsel %vm1952, %v2179, 0.0
      %v2270 = vadd.f32 %v2268, %v2269
      %v2271 = vsel %vm1952, %v2180, 0.0
      %v2272 = vadd.f32 %v2270, %v2271
      %v2273 = vsel %vm1952, %v2181, 0.0
      %v2274 = vadd.f32 %v2272, %v2273
      %v2275 = vsel %vm1952, %v2182, 0.0
      %v2276 = vadd.f32 %v2274, %v2275
      %v2277 = vsel %vm1952, %v2183, 0.0
      %v2278 = vadd.f32 %v2276, %v2277
      %v2279 = vsel %vm1952, %v2184, 0.0
      %v2280 = vadd.f32 %v2278, %v2279
      %v2281 = vsel %vm1952, %v2185, 0.0
      %v2282 = vadd.f32 %v2280, %v2281
      %v2283 = vsel %vm1952, %v2186, 0.0
      %v2284 = vadd.f32 %v2282, %v2283
      %v2285 = vsel %vm1952, %v2187, 0.0
      %v2286 = vadd.f32 %v2284, %v2285
      %v2287 = vsel %vm1952, %v2188, 0.0
      %v2288 = vadd.f32 %v2286, %v2287
      %v2289 = vsel %vm1952, %v2189, 0.0
      %v2290 = vadd.f32 %v2288, %v2289
      %v2291 = vsel %vm1952, %v2190, 0.0
      %v2292 = vadd.f32 %v2290, %v2291
      %v2293 = vsel %vm1952, %v2191, 0.0
      %v2294 = vadd.f32 %v2292, %v2293
      %v2295 = vsel %vm1952, %v2192, 0.0
      %v2296 = vadd.f32 %v2294, %v2295
      %v2297 = vsel %vm1952, %v2193, 0.0
      %v2298 = vadd.f32 %v2296, %v2297
      %v2299 = vsel %vm1952, %v2194, 0.0
      %v2300 = vadd.f32 %v2298, %v2299
      %v2301 = vsel %vm1952, %v2195, 0.0
      %v2302 = vadd.f32 %v2300, %v2301
      %v2303 = vsel %vm1952, %v2196, 0.0
      %v2304 = vadd.f32 %v2302, %v2303
      %v2305 = vsel %vm1952, %v2197, 0.0
      %v2306 = vadd.f32 %v2304, %v2305
      %v2307 = vsel %vm1952, %v2198, 0.0
      %v2308 = vadd.f32 %v2306, %v2307
      %v2309 = vsel %vm1952, %v2199, 0.0
      %v2310 = vadd.f32 %v2308, %v2309
      %v2311 = vsel %vm1952, %v2200, 0.0
      %v2312 = vadd.f32 %v2310, %v2311
      %v2313 = vsel %vm1952, %v2201, 0.0
      %v2314 = vadd.f32 %v2312, %v2313
      %v2315 = vsel %vm1952, %v2202, 0.0
      %v2316 = vadd.f32 %v2314, %v2315
      %v2317 = vsel %vm1952, %v2203, 0.0
      %v2318 = vadd.f32 %v2316, %v2317
      %v2319 = vsel %vm1952, %v2204, 0.0
      %v2320 = vadd.f32 %v2318, %v2319
      %v2321 = vsel %vm1952, %v2205, 0.0
      %v2322 = vadd.f32 %v2320, %v2321
      %v2323 = vsel %vm1952, %v2206, 0.0
      %v2324 = vadd.f32 %v2322, %v2323
      %v2325 = vsel %vm1952, %v2207, 0.0
      %v2326 = vadd.f32 %v2324, %v2325
      %v2327 = vsel %vm1952, %v2208, 0.0
      %v2328 = vadd.f32 %v2326, %v2327
      %v2329 = vsel %vm1952, %v2209, 0.0
      %v2330 = vadd.f32 %v2328, %v2329
      %v2331 = vsel %vm1952, %v2210, 0.0
      %v2332 = vadd.f32 %v2330, %v2331
      %v2333 = vsel %vm1952, %v2211, 0.0
      %v2334 = vadd.f32 %v2332, %v2333
      %v2335 = vsel %vm1952, %v2212, 0.0
      %v2336 = vadd.f32 %v2334, %v2335
      %v2337 = vsel %vm1952, %v2213, 0.0
      %v2338 = vadd.f32 %v2336, %v2337
      %v2339 = vsel %vm1952, %v2214, 0.0
      %v2340 = vadd.f32 %v2338, %v2339
      %v2341 = vsel %vm1952, %v2215, 0.0
      %v2342 = vadd.f32 %v2340, %v2341
      %v2343 = vrot.slane %v2342, 4
      %v2344 = vadd.f32 %v2342, %v2343
      %v2345 = vrot.slane %v2344, 2
      %v2346 = vadd.f32 %v2344, %v2345
      %v2347 = vrot.slane %v2346, 1
      %v2348 = vadd.f32 %v2346, %v2347
      %2349 = vst.msk [vmem:[%s251 + $0x1] sm:$0x1] %vm2150, %v2348
      %s2350 = smul.u32 64, %s20
      %p2351 = scmp.lt.s32.totalorder %s19, 3
      %s2352 = scalar_select %p2351, %s19, 3
      %p2353 = scmp.lt.s32.totalorder %s2350, 63
      %s2354 = scalar_select %p2353, %s2350, 63
      %s2355 = smul.addr %s2352, 64
      %s2356 = sadd.s32 %s2354, %s2355
      %s2357 = smul.addr %s2356, 8
      %s2358 = scalar_lea.vmem %s2, %s2357
      %p2359 = scmp.lt.s32.totalorder %s19, 3
      %s2360 = scalar_select %p2359, %s19, 3
      %p2361 = scmp.lt.s32.totalorder %s20, 0
      %s2362 = scalar_select %p2361, %s20, 0
      %s2363 = sadd.s32 %s2362, %s2360
      %s2364 = smul.addr %s2363, 2
      %s2365 = scalar_lea.vmem %s3, %s2364
      // Predicated region
      $region29: #{generator_forward.15} parent=27 // pred_check
        %p2366 = pneg %p101
      $region30: #{generator_forward.15} parent=27 // pred_check_branch
        %2368 = sbr.rel (%p2366) target = $region32
      $region31: #{generator_forward.15} parent=27 // pred_region
        %s2369 = smul.u32 64, %s20
      $region32: #{generator_forward.15} parent=27 // pred_fallthru
        _
      // Predicated region
      $region33: #{generator_forward.15} parent=27 // pred_check
        %p2370 = pneg %p129
      $region34: #{generator_forward.15} parent=27 // pred_check_branch
        %2372 = sbr.rel (%p2370) target = $region36
      $region35: #{generator_forward.15} parent=27 // pred_region
        _
      $region36: #{generator_forward.15} parent=27 // pred_fallthru
        _
    $region28: #{generator_forward.15} parent=5 // pred_fallthru
      _
    %p2373 = scmp.le.s32.totalorder 2, %s10
    // Predicated region
    $region37: #{generator_forward.15} parent=5 // pred_check
      %p2374 = pneg %p2373
    $region38: #{generator_forward.15} parent=5 // pred_check_branch
      %2376 = sbr.rel (%p2374) target = $region40
    $region39: #{generator_forward.15} parent=5 // pred_region
      %s2377 = ssub.s32 %s10, 2
      // Predicated region
      $region41: #{generator_forward.15} parent=39 // pred_check
        %p2378 = pneg %p107
      $region42: #{generator_forward.15} parent=39 // pred_check_branch
        %2380 = sbr.rel (%p2378) target = $region44
      $region43: #{generator_forward.15} parent=39 // pred_region
        %s2381 = smul.u32 64, %s22
        %p2382 = scmp.lt.s32.totalorder %s21, 3
        %s2383 = scalar_select %p2382, %s21, 3
        %p2384 = scmp.lt.s32.totalorder %s2381, 63
        %s2385 = scalar_select %p2384, %s2381, 63
        %s2386 = smul.addr %s2383, 64
        %s2387 = sadd.s32 %s2385, %s2386
        %s2388 = smul.addr %s2387, 8
        %s2389 = scalar_lea.vmem %s2, %s2388
      $region44: #{generator_forward.15} parent=39 // pred_fallthru
        _
      // Predicated region
      $region45: #{generator_forward.15} parent=39 // pred_check
        %p2390 = pneg %p135
      $region46: #{generator_forward.15} parent=39 // pred_check_branch
        %2392 = sbr.rel (%p2390) target = $region48
      $region47: #{generator_forward.15} parent=39 // pred_region
        %p2393 = scmp.lt.s32.totalorder %s21, 3
        %s2394 = scalar_select %p2393, %s21, 3
        %p2395 = scmp.lt.s32.totalorder %s22, 0
        %s2396 = scalar_select %p2395, %s22, 0
        %s2397 = sadd.s32 %s2396, %s2394
        %s2398 = smul.addr %s2397, 2
        %s2399 = scalar_lea.vmem %s3, %s2398
      $region48: #{generator_forward.15} parent=39 // pred_fallthru
        _
    $region40: #{generator_forward.15} parent=5 // pred_fallthru
      _
  $region6: #{generator_forward.15} parent=0 // loop_footer
    %s14 = sadd.s32 1, %s10
  $region7: #{generator_forward.15} parent=0 // loop_footer_branch
    %9 = sbr.rel target = $region3
  $region8: #{generator_forward.15} parent=0 // loop_exit
    _

// kernel: generator_forward.17
$region0: #{generator_forward.17}
  #allocation0 [shape = 'u32[]', space=smem, size = 0x4, offset = 0x4, fixed_abs, tag = 'smem constant byte address 0x4 - core index']
  #allocation1 [shape = 'u32[72,128]{1,0:T(1,128)}', space=vmem, size = 0x9000, scoped, tag = 'internal scratch']
  %s0 = inlined_call_operand.vmem [shape: bf16[4,2048,256], index: 0, kind: input, shape index: {}]
  %s1 = inlined_call_operand.vmem [shape: bf16[4,256,3], index: 1, kind: input, shape index: {}]
  %s2 = inlined_call_operand.vmem [shape: f32[4,2048,3], index: 2, kind: output, shape index: {}]
  %s3 = sld [smem:[#allocation0]]
  $region41: #{generator_forward.17} parent=0
    _
  %s5 = ssub.s32 1, %s3
  %s6 = scalar_select 0, %s5, %s3
  loop: start=0, step=1, limit=10
  $region2: #{generator_forward.17} parent=0 // loop_pre_header
    _
  $region3: #{generator_forward.17} parent=0 // loop_header
    %s8 = sphi 0, %s12
    %p9 = scmp.ge.s32.totalorder %s8, 10
    %s15 = sphi 0, %s27
    %s16 = sphi 0, %s23
    %s17 = sphi 0, %s15
    %s18 = sphi 0, %s16
    %s19 = sphi 0, %s17
    %s20 = sphi 0, %s18
    %s32 = sphi 0, %s34
    %s35 = sphi 0, %s32
    %s36 = sphi 0, %s35
    %s52 = sphi 0, %s36
    %s58 = sphi 0, %s60
    %s61 = sphi 0, %s58
    %s62 = sphi 0, %s61
    %s78 = sphi 0, %s62
    %s86 = sphi 0, %s88
    %s89 = sphi 0, %s86
    %s90 = sphi 0, %s89
    %s106 = sphi 0, %s90
  $region4: #{generator_forward.17} parent=0 // loop_header_branch
    %11 = sbr.rel (%p9) target = $region8
  $region5: #{generator_forward.17} parent=0 // loop_body
    %s13 = ssub.s32 %s8, 1
    %s14 = ssub.s32 %s8, 2
    %s21 = sadd.s32 1, %s16
    %p22 = scmp.ge.s32.totalorder %s21, 2
    %s23 = scalar_select %p22, 0, %s21
    %s24 = sadd.s32 1, %s15
    %s25 = scalar_select %p22, %s24, %s15
    %p26 = scmp.ge.s32.totalorder %s25, 4
    %s27 = scalar_select %p26, 0, %s25
    %s28 = ssub.s32 %s15, %s27
    %s29 = ssub.s32 %s16, %s23
    %s30 = sor.u32 %s28, %s29
    %p31 = scmp.eq.s32.totalorder %s30, 0
    %s33 = sadd.s32 %s32, 1
    %s34 = scalar_select %p31, %s32, %s33
    %p37 = pneg %p31
    %p38 = scmp.eq.s32.totalorder %s8, 7
    %p39 = por %p37, %p38
    %p40 = scmp.ne.s32.totalorder %s32, %s35
    %p41 = scmp.eq.s32.totalorder %s8, 0
    %p42 = por %p40, %p41
    %p43 = scmp.ne.s32.totalorder %s32, %s35
    %p44 = scmp.eq.s32.totalorder %s13, 7
    %p45 = por %p43, %p44
    %p46 = scmp.ne.s32.totalorder %s35, %s36
    %p47 = scmp.eq.s32.totalorder %s13, 0
    %p48 = por %p46, %p47
    %p49 = scmp.ne.s32.totalorder %s35, %s36
    %p50 = scmp.eq.s32.totalorder %s14, 7
    %p51 = por %p49, %p50
    %p53 = scmp.ne.s32.totalorder %s36, %s52
    %p54 = scmp.eq.s32.totalorder %s14, 0
    %p55 = por %p53, %p54
    %s56 = ssub.s32 %s15, %s27
    %p57 = scmp.eq.s32.totalorder %s56, 0
    %s59 = sadd.s32 %s58, 1
    %s60 = scalar_select %p57, %s58, %s59
    %p63 = pneg %p57
    %p64 = scmp.eq.s32.totalorder %s8, 7
    %p65 = por %p63, %p64
    %p66 = scmp.ne.s32.totalorder %s58, %s61
    %p67 = scmp.eq.s32.totalorder %s8, 0
    %p68 = por %p66, %p67
    %p69 = scmp.ne.s32.totalorder %s58, %s61
    %p70 = scmp.eq.s32.totalorder %s13, 7
    %p71 = por %p69, %p70
    %p72 = scmp.ne.s32.totalorder %s61, %s62
    %p73 = scmp.eq.s32.totalorder %s13, 0
    %p74 = por %p72, %p73
    %p75 = scmp.ne.s32.totalorder %s61, %s62
    %p76 = scmp.eq.s32.totalorder %s14, 7
    %p77 = por %p75, %p76
    %p79 = scmp.ne.s32.totalorder %s62, %s78
    %p80 = scmp.eq.s32.totalorder %s14, 0
    %p81 = por %p79, %p80
    %s82 = ssub.s32 %s15, %s27
    %s83 = ssub.s32 %s16, %s23
    %s84 = sor.u32 %s82, %s83
    %p85 = scmp.eq.s32.totalorder %s84, 0
    %s87 = sadd.s32 %s86, 1
    %s88 = scalar_select %p85, %s86, %s87
    %p91 = pneg %p85
    %p92 = scmp.eq.s32.totalorder %s8, 7
    %p93 = por %p91, %p92
    %p94 = scmp.ne.s32.totalorder %s86, %s89
    %p95 = scmp.eq.s32.totalorder %s8, 0
    %p96 = por %p94, %p95
    %p97 = scmp.ne.s32.totalorder %s86, %s89
    %p98 = scmp.eq.s32.totalorder %s13, 7
    %p99 = por %p97, %p98
    %p100 = scmp.ne.s32.totalorder %s89, %s90
    %p101 = scmp.eq.s32.totalorder %s13, 0
    %p102 = por %p100, %p101
    %p103 = scmp.ne.s32.totalorder %s89, %s90
    %p104 = scmp.eq.s32.totalorder %s14, 7
    %p105 = por %p103, %p104
    %p107 = scmp.ne.s32.totalorder %s90, %s106
    %p108 = scmp.eq.s32.totalorder %s14, 0
    %p109 = por %p107, %p108
    %p110 = scmp.le.s32.totalorder 1, %s8
    %p111 = scmp.lt.s32.totalorder %s8, 9
    %p112 = pnand %p110, %p111
    %p113 = pneg %p112
    // Predicated region
    $region9: #{generator_forward.17} parent=5 // pred_check
      _
    $region10: #{generator_forward.17} parent=5 // pred_check_branch
      %115 = sbr.rel (%p112) target = $region12
    $region11: #{generator_forward.17} parent=5 // pred_region
      %s116 = ssub.s32 %s8, 1
    $region12: #{generator_forward.17} parent=5 // pred_fallthru
      _
    %p117 = scmp.lt.s32.totalorder %s8, 8
    // Predicated region
    $region13: #{generator_forward.17} parent=5 // pred_check
      %p118 = pneg %p117
    $region14: #{generator_forward.17} parent=5 // pred_check_branch
      %120 = sbr.rel (%p118) target = $region16
    $region15: #{generator_forward.17} parent=5 // pred_region
      // Predicated region
      $region17: #{generator_forward.17} parent=15 // pred_check
        %p121 = pneg %p42
      $region18: #{generator_forward.17} parent=15 // pred_check_branch
        %123 = sbr.rel (%p121) target = $region20
      $region19: #{generator_forward.17} parent=15 // pred_region
        %s124 = smul.u32 128, %s16
        %p125 = scmp.lt.s32.totalorder %s15, 3
        %s126 = scalar_select %p125, %s15, 3
        %p127 = scmp.lt.s32.totalorder %s124, 255
        %s128 = scalar_select %p127, %s124, 255
        %s129 = smul.addr %s128, 2
        %s130 = smul.addr %s126, 512
        %s131 = sadd.s32 %s129, %s130
        %s132 = smul.addr %s131, 4
        %s133 = scalar_lea.vmem %s0, %s132
        %s134 = smul.u32 128, %s16
      $region20: #{generator_forward.17} parent=15 // pred_fallthru
        _
      // Predicated region
      $region21: #{generator_forward.17} parent=15 // pred_check
        %p135 = pneg %p68
      $region22: #{generator_forward.17} parent=15 // pred_check_branch
        %137 = sbr.rel (%p135) target = $region24
      $region23: #{generator_forward.17} parent=15 // pred_region
        %p138 = scmp.lt.s32.totalorder %s15, 3
        %s139 = scalar_select %p138, %s15, 3
        %s140 = smul.addr %s139, 32
        %s141 = smul.addr %s140, 4
        %s142 = scalar_lea.vmem %s1, %s141
      $region24: #{generator_forward.17} parent=15 // pred_fallthru
        _
    $region16: #{generator_forward.17} parent=5 // pred_fallthru
      _
    %p143 = scmp.le.s32.totalorder 1, %s8
    %p144 = scmp.lt.s32.totalorder %s8, 9
    %p145 = pnand %p143, %p144
    %p146 = pneg %p145
    // Predicated region
    $region25: #{generator_forward.17} parent=5 // pred_check
      _
    $region26: #{generator_forward.17} parent=5 // pred_check_branch
      %148 = sbr.rel (%p145) target = $region28
    $region27: #{generator_forward.17} parent=5 // pred_region
      %s149 = ssub.s32 %s8, 1
      %s150 = smul.u32 128, %s18
      %p151 = scmp.lt.s32.totalorder %s17, 3
      %s152 = scalar_select %p151, %s17, 3
      %p153 = scmp.lt.s32.totalorder %s150, 255
      %s154 = scalar_select %p153, %s150, 255
      %s155 = smul.addr %s154, 2
      %s156 = smul.addr %s152, 512
      %s157 = sadd.s32 %s155, %s156
      %s158 = smul.addr %s157, 4
      %s159 = scalar_lea.vmem %s0, %s158
      %p160 = pneg %p48
      %p161 = pneg %p45
      %p162 = scmp.lt.s32.totalorder %s17, 3
      %s163 = scalar_select %p162, %s17, 3
      %s164 = smul.addr %s163, 32
      %s165 = smul.addr %s164, 4
      %s166 = scalar_lea.vmem %s1, %s165
      %p167 = pneg %p74
      %p168 = pneg %p71
      %p169 = pneg %p102
      %p170 = pneg %p99
      %s171 = smul.u32 128, %s18
      %p172 = scmp.lt.s32.totalorder %s17, 3
      %s173 = scalar_select %p172, %s17, 3
      %p174 = scmp.lt.s32.totalorder %s171, 255
      %s175 = scalar_select %p174, %s171, 255
      %s176 = smul.addr %s173, 256
      %s177 = sadd.s32 %s175, %s176
      %s178 = smul.addr %s177, 8
      %s179 = scalar_lea.vmem %s2, %s178
      %s180 = smul.u32 128, %s18
      %p181 = scmp.lt.s32.totalorder %s17, 3
      %s182 = scalar_select %p181, %s17, 3
      %p183 = scmp.lt.s32.totalorder %s180, 255
      %s184 = scalar_select %p183, %s180, 255
      %s185 = smul.addr %s184, 2
      %s186 = smul.addr %s182, 512
      %s187 = sadd.s32 %s185, %s186
      %s188 = smul.addr %s187, 4
      %s189 = scalar_lea.vmem %s0, %s188
      %s190 = smul.u32 128, %s18
      %p191 = scmp.lt.s32.totalorder %s17, 3
      %s192 = scalar_select %p191, %s17, 3
      %s193 = smul.addr %s192, 32
      %s194 = smul.addr %s193, 4
      %s195 = scalar_lea.vmem %s1, %s194
      %s196 = smul.u32 128, %s18
      %p197 = scmp.lt.s32.totalorder %s17, 3
      %s198 = scalar_select %p197, %s17, 3
      %p199 = scmp.lt.s32.totalorder %s196, 255
      %s200 = scalar_select %p199, %s196, 255
      %s201 = smul.addr %s198, 256
      %s202 = sadd.s32 %s200, %s201
      %s203 = smul.addr %s202, 8
      %s204 = scalar_lea.vmem %s2, %s203
      %s205 = smul.u32 128, %s18
      %v206 = vld [vmem:[%s189] sm:$0xff]
      %v207 = vld [vmem:[%s189 + $0x8] sm:$0xff]
      %v208 = vld [vmem:[%s189 + $0x10] sm:$0xff]
      %v209 = vld [vmem:[%s189 + $0x18] sm:$0xff]
      %v210 = vld [vmem:[%s189 + $0x20] sm:$0xff]
      %v211 = vld [vmem:[%s189 + $0x28] sm:$0xff]
      %v212 = vld [vmem:[%s189 + $0x30] sm:$0xff]
      %v213 = vld [vmem:[%s189 + $0x38] sm:$0xff]
      %v214 = vld [vmem:[%s189 + $0x40] sm:$0xff]
      %v215 = vld [vmem:[%s189 + $0x48] sm:$0xff]
      %v216 = vld [vmem:[%s189 + $0x50] sm:$0xff]
      %v217 = vld [vmem:[%s189 + $0x58] sm:$0xff]
      %v218 = vld [vmem:[%s189 + $0x60] sm:$0xff]
      %v219 = vld [vmem:[%s189 + $0x68] sm:$0xff]
      %v220 = vld [vmem:[%s189 + $0x70] sm:$0xff]
      %v221 = vld [vmem:[%s189 + $0x78] sm:$0xff]
      %v222 = vld [vmem:[%s189 + $0x80] sm:$0xff]
      %v223 = vld [vmem:[%s189 + $0x88] sm:$0xff]
      %v224 = vld [vmem:[%s189 + $0x90] sm:$0xff]
      %v225 = vld [vmem:[%s189 + $0x98] sm:$0xff]
      %v226 = vld [vmem:[%s189 + $0xa0] sm:$0xff]
      %v227 = vld [vmem:[%s189 + $0xa8] sm:$0xff]
      %v228 = vld [vmem:[%s189 + $0xb0] sm:$0xff]
      %v229 = vld [vmem:[%s189 + $0xb8] sm:$0xff]
      %v230 = vld [vmem:[%s189 + $0xc0] sm:$0xff]
      %v231 = vld [vmem:[%s189 + $0xc8] sm:$0xff]
      %v232 = vld [vmem:[%s189 + $0xd0] sm:$0xff]
      %v233 = vld [vmem:[%s189 + $0xd8] sm:$0xff]
      %v234 = vld [vmem:[%s189 + $0xe0] sm:$0xff]
      %v235 = vld [vmem:[%s189 + $0xe8] sm:$0xff]
      %v236 = vld [vmem:[%s189 + $0xf0] sm:$0xff]
      %v237 = vld [vmem:[%s189 + $0xf8] sm:$0xff]
      %v238 = vld [vmem:[%s189 + $0x100] sm:$0xff]
      %v239 = vld [vmem:[%s189 + $0x108] sm:$0xff]
      %v240 = vld [vmem:[%s189 + $0x110] sm:$0xff]
      %v241 = vld [vmem:[%s189 + $0x118] sm:$0xff]
      %v242 = vld [vmem:[%s189 + $0x120] sm:$0xff]
      %v243 = vld [vmem:[%s189 + $0x128] sm:$0xff]
      %v244 = vld [vmem:[%s189 + $0x130] sm:$0xff]
      %v245 = vld [vmem:[%s189 + $0x138] sm:$0xff]
      %v246 = vld [vmem:[%s189 + $0x140] sm:$0xff]
      %v247 = vld [vmem:[%s189 + $0x148] sm:$0xff]
      %v248 = vld [vmem:[%s189 + $0x150] sm:$0xff]
      %v249 = vld [vmem:[%s189 + $0x158] sm:$0xff]
      %v250 = vld [vmem:[%s189 + $0x160] sm:$0xff]
      %v251 = vld [vmem:[%s189 + $0x168] sm:$0xff]
      %v252 = vld [vmem:[%s189 + $0x170] sm:$0xff]
      %v253 = vld [vmem:[%s189 + $0x178] sm:$0xff]
      %v254 = vld [vmem:[%s189 + $0x180] sm:$0xff]
      %v255 = vld [vmem:[%s189 + $0x188] sm:$0xff]
      %v256 = vld [vmem:[%s189 + $0x190] sm:$0xff]
      %v257 = vld [vmem:[%s189 + $0x198] sm:$0xff]
      %v258 = vld [vmem:[%s189 + $0x1a0] sm:$0xff]
      %v259 = vld [vmem:[%s189 + $0x1a8] sm:$0xff]
      %v260 = vld [vmem:[%s189 + $0x1b0] sm:$0xff]
      %v261 = vld [vmem:[%s189 + $0x1b8] sm:$0xff]
      %v262 = vld [vmem:[%s189 + $0x1c0] sm:$0xff]
      %v263 = vld [vmem:[%s189 + $0x1c8] sm:$0xff]
      %v264 = vld [vmem:[%s189 + $0x1d0] sm:$0xff]
      %v265 = vld [vmem:[%s189 + $0x1d8] sm:$0xff]
      %v266 = vld [vmem:[%s189 + $0x1e0] sm:$0xff]
      %v267 = vld [vmem:[%s189 + $0x1e8] sm:$0xff]
      %v268 = vld [vmem:[%s189 + $0x1f0] sm:$0xff]
      %v269 = vld [vmem:[%s189 + $0x1f8] sm:$0xff]
      %v270 = vld [vmem:[%s189 + $0x200] sm:$0xff]
      %v271 = vld [vmem:[%s189 + $0x208] sm:$0xff]
      %v272 = vld [vmem:[%s189 + $0x210] sm:$0xff]
      %v273 = vld [vmem:[%s189 + $0x218] sm:$0xff]
      %v274 = vld [vmem:[%s189 + $0x220] sm:$0xff]
      %v275 = vld [vmem:[%s189 + $0x228] sm:$0xff]
      %v276 = vld [vmem:[%s189 + $0x230] sm:$0xff]
      %v277 = vld [vmem:[%s189 + $0x238] sm:$0xff]
      %v278 = vld [vmem:[%s189 + $0x240] sm:$0xff]
      %v279 = vld [vmem:[%s189 + $0x248] sm:$0xff]
      %v280 = vld [vmem:[%s189 + $0x250] sm:$0xff]
      %v281 = vld [vmem:[%s189 + $0x258] sm:$0xff]
      %v282 = vld [vmem:[%s189 + $0x260] sm:$0xff]
      %v283 = vld [vmem:[%s189 + $0x268] sm:$0xff]
      %v284 = vld [vmem:[%s189 + $0x270] sm:$0xff]
      %v285 = vld [vmem:[%s189 + $0x278] sm:$0xff]
      %v286 = vld [vmem:[%s189 + $0x280] sm:$0xff]
      %v287 = vld [vmem:[%s189 + $0x288] sm:$0xff]
      %v288 = vld [vmem:[%s189 + $0x290] sm:$0xff]
      %v289 = vld [vmem:[%s189 + $0x298] sm:$0xff]
      %v290 = vld [vmem:[%s189 + $0x2a0] sm:$0xff]
      %v291 = vld [vmem:[%s189 + $0x2a8] sm:$0xff]
      %v292 = vld [vmem:[%s189 + $0x2b0] sm:$0xff]
      %v293 = vld [vmem:[%s189 + $0x2b8] sm:$0xff]
      %v294 = vld [vmem:[%s189 + $0x2c0] sm:$0xff]
      %v295 = vld [vmem:[%s189 + $0x2c8] sm:$0xff]
      %v296 = vld [vmem:[%s189 + $0x2d0] sm:$0xff]
      %v297 = vld [vmem:[%s189 + $0x2d8] sm:$0xff]
      %v298 = vld [vmem:[%s189 + $0x2e0] sm:$0xff]
      %v299 = vld [vmem:[%s189 + $0x2e8] sm:$0xff]
      %v300 = vld [vmem:[%s189 + $0x2f0] sm:$0xff]
      %v301 = vld [vmem:[%s189 + $0x2f8] sm:$0xff]
      %v302 = vld [vmem:[%s189 + $0x300] sm:$0xff]
      %v303 = vld [vmem:[%s189 + $0x308] sm:$0xff]
      %v304 = vld [vmem:[%s189 + $0x310] sm:$0xff]
      %v305 = vld [vmem:[%s189 + $0x318] sm:$0xff]
      %v306 = vld [vmem:[%s189 + $0x320] sm:$0xff]
      %v307 = vld [vmem:[%s189 + $0x328] sm:$0xff]
      %v308 = vld [vmem:[%s189 + $0x330] sm:$0xff]
      %v309 = vld [vmem:[%s189 + $0x338] sm:$0xff]
      %v310 = vld [vmem:[%s189 + $0x340] sm:$0xff]
      %v311 = vld [vmem:[%s189 + $0x348] sm:$0xff]
      %v312 = vld [vmem:[%s189 + $0x350] sm:$0xff]
      %v313 = vld [vmem:[%s189 + $0x358] sm:$0xff]
      %v314 = vld [vmem:[%s189 + $0x360] sm:$0xff]
      %v315 = vld [vmem:[%s189 + $0x368] sm:$0xff]
      %v316 = vld [vmem:[%s189 + $0x370] sm:$0xff]
      %v317 = vld [vmem:[%s189 + $0x378] sm:$0xff]
      %v318 = vld [vmem:[%s189 + $0x380] sm:$0xff]
      %v319 = vld [vmem:[%s189 + $0x388] sm:$0xff]
      %v320 = vld [vmem:[%s189 + $0x390] sm:$0xff]
      %v321 = vld [vmem:[%s189 + $0x398] sm:$0xff]
      %v322 = vld [vmem:[%s189 + $0x3a0] sm:$0xff]
      %v323 = vld [vmem:[%s189 + $0x3a8] sm:$0xff]
      %v324 = vld [vmem:[%s189 + $0x3b0] sm:$0xff]
      %v325 = vld [vmem:[%s189 + $0x3b8] sm:$0xff]
      %v326 = vld [vmem:[%s189 + $0x3c0] sm:$0xff]
      %v327 = vld [vmem:[%s189 + $0x3c8] sm:$0xff]
      %v328 = vld [vmem:[%s189 + $0x3d0] sm:$0xff]
      %v329 = vld [vmem:[%s189 + $0x3d8] sm:$0xff]
      %v330 = vld [vmem:[%s189 + $0x3e0] sm:$0xff]
      %v331 = vld [vmem:[%s189 + $0x3e8] sm:$0xff]
      %v332 = vld [vmem:[%s189 + $0x3f0] sm:$0xff]
      %v333 = vld [vmem:[%s189 + $0x3f8] sm:$0xff]
      %v334 = vld [vmem:[%s195] sm:$0xf]
      %v335 = vld [vmem:[%s195 + $0x4] sm:$0xf]
      %v336 = vld [vmem:[%s195 + $0x8] sm:$0xf]
      %v337 = vld [vmem:[%s195 + $0xc] sm:$0xf]
      %v338 = vld [vmem:[%s195 + $0x10] sm:$0xf]
      %v339 = vld [vmem:[%s195 + $0x14] sm:$0xf]
      %v340 = vld [vmem:[%s195 + $0x18] sm:$0xf]
      %v341 = vld [vmem:[%s195 + $0x1c] sm:$0xf]
      %v342 = vld [vmem:[%s195 + $0x20] sm:$0xf]
      %v343 = vld [vmem:[%s195 + $0x24] sm:$0xf]
      %v344 = vld [vmem:[%s195 + $0x28] sm:$0xf]
      %v345 = vld [vmem:[%s195 + $0x2c] sm:$0xf]
      %v346 = vld [vmem:[%s195 + $0x30] sm:$0xf]
      %v347 = vld [vmem:[%s195 + $0x34] sm:$0xf]
      %v348 = vld [vmem:[%s195 + $0x38] sm:$0xf]
      %v349 = vld [vmem:[%s195 + $0x3c] sm:$0xf]
      %v350 = vld [vmem:[%s195 + $0x40] sm:$0xf]
      %v351 = vld [vmem:[%s195 + $0x44] sm:$0xf]
      %v352 = vld [vmem:[%s195 + $0x48] sm:$0xf]
      %v353 = vld [vmem:[%s195 + $0x4c] sm:$0xf]
      %v354 = vld [vmem:[%s195 + $0x50] sm:$0xf]
      %v355 = vld [vmem:[%s195 + $0x54] sm:$0xf]
      %v356 = vld [vmem:[%s195 + $0x58] sm:$0xf]
      %v357 = vld [vmem:[%s195 + $0x5c] sm:$0xf]
      %v358 = vld [vmem:[%s195 + $0x60] sm:$0xf]
      %v359 = vld [vmem:[%s195 + $0x64] sm:$0xf]
      %v360 = vld [vmem:[%s195 + $0x68] sm:$0xf]
      %v361 = vld [vmem:[%s195 + $0x6c] sm:$0xf]
      %v362 = vld [vmem:[%s195 + $0x70] sm:$0xf]
      %v363 = vld [vmem:[%s195 + $0x74] sm:$0xf]
      %v364 = vld [vmem:[%s195 + $0x78] sm:$0xf]
      %v365 = vld [vmem:[%s195 + $0x7c] sm:$0xf]
      %v494 = vunpack.c.l.b16 %v206
      %v495 = vunpack.c.h.b16 %v206
      %v496 = vunpack.c.l.b16 %v207
      %v497 = vunpack.c.h.b16 %v207
      %v498 = vunpack.c.l.b16 %v208
      %v499 = vunpack.c.h.b16 %v208
      %v500 = vunpack.c.l.b16 %v209
      %v501 = vunpack.c.h.b16 %v209
      %v502 = vunpack.c.l.b16 %v210
      %v503 = vunpack.c.h.b16 %v210
      %v504 = vunpack.c.l.b16 %v211
      %v505 = vunpack.c.h.b16 %v211
      %v506 = vunpack.c.l.b16 %v212
      %v507 = vunpack.c.h.b16 %v212
      %v508 = vunpack.c.l.b16 %v213
      %v509 = vunpack.c.h.b16 %v213
      %v510 = vunpack.c.l.b16 %v214
      %v511 = vunpack.c.h.b16 %v214
      %v512 = vunpack.c.l.b16 %v215
      %v513 = vunpack.c.h.b16 %v215
      %v514 = vunpack.c.l.b16 %v216
      %v515 = vunpack.c.h.b16 %v216
      %v516 = vunpack.c.l.b16 %v217
      %v517 = vunpack.c.h.b16 %v217
      %v518 = vunpack.c.l.b16 %v218
      %v519 = vunpack.c.h.b16 %v218
      %v520 = vunpack.c.l.b16 %v219
      %v521 = vunpack.c.h.b16 %v219
      %v522 = vunpack.c.l.b16 %v220
      %v523 = vunpack.c.h.b16 %v220
      %v524 = vunpack.c.l.b16 %v221
      %v525 = vunpack.c.h.b16 %v221
      %v526 = vunpack.c.l.b16 %v222
      %v527 = vunpack.c.h.b16 %v222
      %v528 = vunpack.c.l.b16 %v223
      %v529 = vunpack.c.h.b16 %v223
      %v530 = vunpack.c.l.b16 %v224
      %v531 = vunpack.c.h.b16 %v224
      %v532 = vunpack.c.l.b16 %v225
      %v533 = vunpack.c.h.b16 %v225
      %v534 = vunpack.c.l.b16 %v226
      %v535 = vunpack.c.h.b16 %v226
      %v536 = vunpack.c.l.b16 %v227
      %v537 = vunpack.c.h.b16 %v227
      %v538 = vunpack.c.l.b16 %v228
      %v539 = vunpack.c.h.b16 %v228
      %v540 = vunpack.c.l.b16 %v229
      %v541 = vunpack.c.h.b16 %v229
      %v542 = vunpack.c.l.b16 %v230
      %v543 = vunpack.c.h.b16 %v230
      %v544 = vunpack.c.l.b16 %v231
      %v545 = vunpack.c.h.b16 %v231
      %v546 = vunpack.c.l.b16 %v232
      %v547 = vunpack.c.h.b16 %v232
      %v548 = vunpack.c.l.b16 %v233
      %v549 = vunpack.c.h.b16 %v233
      %v550 = vunpack.c.l.b16 %v234
      %v551 = vunpack.c.h.b16 %v234
      %v552 = vunpack.c.l.b16 %v235
      %v553 = vunpack.c.h.b16 %v235
      %v554 = vunpack.c.l.b16 %v236
      %v555 = vunpack.c.h.b16 %v236
      %v556 = vunpack.c.l.b16 %v237
      %v557 = vunpack.c.h.b16 %v237
      %v558 = vunpack.c.l.b16 %v238
      %v559 = vunpack.c.h.b16 %v238
      %v560 = vunpack.c.l.b16 %v239
      %v561 = vunpack.c.h.b16 %v239
      %v562 = vunpack.c.l.b16 %v240
      %v563 = vunpack.c.h.b16 %v240
      %v564 = vunpack.c.l.b16 %v241
      %v565 = vunpack.c.h.b16 %v241
      %v566 = vunpack.c.l.b16 %v242
      %v567 = vunpack.c.h.b16 %v242
      %v568 = vunpack.c.l.b16 %v243
      %v569 = vunpack.c.h.b16 %v243
      %v570 = vunpack.c.l.b16 %v244
      %v571 = vunpack.c.h.b16 %v244
      %v572 = vunpack.c.l.b16 %v245
      %v573 = vunpack.c.h.b16 %v245
      %v574 = vunpack.c.l.b16 %v246
      %v575 = vunpack.c.h.b16 %v246
      %v576 = vunpack.c.l.b16 %v247
      %v577 = vunpack.c.h.b16 %v247
      %v578 = vunpack.c.l.b16 %v248
      %v579 = vunpack.c.h.b16 %v248
      %v580 = vunpack.c.l.b16 %v249
      %v581 = vunpack.c.h.b16 %v249
      %v582 = vunpack.c.l.b16 %v250
      %v583 = vunpack.c.h.b16 %v250
      %v584 = vunpack.c.l.b16 %v251
      %v585 = vunpack.c.h.b16 %v251
      %v586 = vunpack.c.l.b16 %v252
      %v587 = vunpack.c.h.b16 %v252
      %v588 = vunpack.c.l.b16 %v253
      %v589 = vunpack.c.h.b16 %v253
      %v590 = vunpack.c.l.b16 %v254
      %v591 = vunpack.c.h.b16 %v254
      %v592 = vunpack.c.l.b16 %v255
      %v593 = vunpack.c.h.b16 %v255
      %v594 = vunpack.c.l.b16 %v256
      %v595 = vunpack.c.h.b16 %v256
      %v596 = vunpack.c.l.b16 %v257
      %v597 = vunpack.c.h.b16 %v257
      %v598 = vunpack.c.l.b16 %v258
      %v599 = vunpack.c.h.b16 %v258
      %v600 = vunpack.c.l.b16 %v259
      %v601 = vunpack.c.h.b16 %v259
      %v602 = vunpack.c.l.b16 %v260
      %v603 = vunpack.c.h.b16 %v260
      %v604 = vunpack.c.l.b16 %v261
      %v605 = vunpack.c.h.b16 %v261
      %v606 = vunpack.c.l.b16 %v262
      %v607 = vunpack.c.h.b16 %v262
      %v608 = vunpack.c.l.b16 %v263
      %v609 = vunpack.c.h.b16 %v263
      %v610 = vunpack.c.l.b16 %v264
      %v611 = vunpack.c.h.b16 %v264
      %v612 = vunpack.c.l.b16 %v265
      %v613 = vunpack.c.h.b16 %v265
      %v614 = vunpack.c.l.b16 %v266
      %v615 = vunpack.c.h.b16 %v266
      %v616 = vunpack.c.l.b16 %v267
      %v617 = vunpack.c.h.b16 %v267
      %v618 = vunpack.c.l.b16 %v268
      %v619 = vunpack.c.h.b16 %v268
      %v620 = vunpack.c.l.b16 %v269
      %v621 = vunpack.c.h.b16 %v269
      %v622 = vunpack.c.l.b16 %v270
      %v623 = vunpack.c.h.b16 %v270
      %v624 = vunpack.c.l.b16 %v271
      %v625 = vunpack.c.h.b16 %v271
      %v626 = vunpack.c.l.b16 %v272
      %v627 = vunpack.c.h.b16 %v272
      %v628 = vunpack.c.l.b16 %v273
      %v629 = vunpack.c.h.b16 %v273
      %v630 = vunpack.c.l.b16 %v274
      %v631 = vunpack.c.h.b16 %v274
      %v632 = vunpack.c.l.b16 %v275
      %v633 = vunpack.c.h.b16 %v275
      %v634 = vunpack.c.l.b16 %v276
      %v635 = vunpack.c.h.b16 %v276
      %v636 = vunpack.c.l.b16 %v277
      %v637 = vunpack.c.h.b16 %v277
      %v638 = vunpack.c.l.b16 %v278
      %v639 = vunpack.c.h.b16 %v278
      %v640 = vunpack.c.l.b16 %v279
      %v641 = vunpack.c.h.b16 %v279
      %v642 = vunpack.c.l.b16 %v280
      %v643 = vunpack.c.h.b16 %v280
      %v644 = vunpack.c.l.b16 %v281
      %v645 = vunpack.c.h.b16 %v281
      %v646 = vunpack.c.l.b16 %v282
      %v647 = vunpack.c.h.b16 %v282
      %v648 = vunpack.c.l.b16 %v283
      %v649 = vunpack.c.h.b16 %v283
      %v650 = vunpack.c.l.b16 %v284
      %v651 = vunpack.c.h.b16 %v284
      %v652 = vunpack.c.l.b16 %v285
      %v653 = vunpack.c.h.b16 %v285
      %v654 = vunpack.c.l.b16 %v286
      %v655 = vunpack.c.h.b16 %v286
      %v656 = vunpack.c.l.b16 %v287
      %v657 = vunpack.c.h.b16 %v287
      %v658 = vunpack.c.l.b16 %v288
      %v659 = vunpack.c.h.b16 %v288
      %v660 = vunpack.c.l.b16 %v289
      %v661 = vunpack.c.h.b16 %v289
      %v662 = vunpack.c.l.b16 %v290
      %v663 = vunpack.c.h.b16 %v290
      %v664 = vunpack.c.l.b16 %v291
      %v665 = vunpack.c.h.b16 %v291
      %v666 = vunpack.c.l.b16 %v292
      %v667 = vunpack.c.h.b16 %v292
      %v668 = vunpack.c.l.b16 %v293
      %v669 = vunpack.c.h.b16 %v293
      %v670 = vunpack.c.l.b16 %v294
      %v671 = vunpack.c.h.b16 %v294
      %v672 = vunpack.c.l.b16 %v295
      %v673 = vunpack.c.h.b16 %v295
      %v674 = vunpack.c.l.b16 %v296
      %v675 = vunpack.c.h.b16 %v296
      %v676 = vunpack.c.l.b16 %v297
      %v677 = vunpack.c.h.b16 %v297
      %v678 = vunpack.c.l.b16 %v298
      %v679 = vunpack.c.h.b16 %v298
      %v680 = vunpack.c.l.b16 %v299
      %v681 = vunpack.c.h.b16 %v299
      %v682 = vunpack.c.l.b16 %v300
      %v683 = vunpack.c.h.b16 %v300
      %v684 = vunpack.c.l.b16 %v301
      %v685 = vunpack.c.h.b16 %v301
      %v686 = vunpack.c.l.b16 %v302
      %v687 = vunpack.c.h.b16 %v302
      %v688 = vunpack.c.l.b16 %v303
      %v689 = vunpack.c.h.b16 %v303
      %v690 = vunpack.c.l.b16 %v304
      %v691 = vunpack.c.h.b16 %v304
      %v692 = vunpack.c.l.b16 %v305
      %v693 = vunpack.c.h.b16 %v305
      %v694 = vunpack.c.l.b16 %v306
      %v695 = vunpack.c.h.b16 %v306
      %v696 = vunpack.c.l.b16 %v307
      %v697 = vunpack.c.h.b16 %v307
      %v698 = vunpack.c.l.b16 %v308
      %v699 = vunpack.c.h.b16 %v308
      %v700 = vunpack.c.l.b16 %v309
      %v701 = vunpack.c.h.b16 %v309
      %v702 = vunpack.c.l.b16 %v310
      %v703 = vunpack.c.h.b16 %v310
      %v704 = vunpack.c.l.b16 %v311
      %v705 = vunpack.c.h.b16 %v311
      %v706 = vunpack.c.l.b16 %v312
      %v707 = vunpack.c.h.b16 %v312
      %v708 = vunpack.c.l.b16 %v313
      %v709 = vunpack.c.h.b16 %v313
      %v710 = vunpack.c.l.b16 %v314
      %v711 = vunpack.c.h.b16 %v314
      %v712 = vunpack.c.l.b16 %v315
      %v713 = vunpack.c.h.b16 %v315
      %v714 = vunpack.c.l.b16 %v316
      %v715 = vunpack.c.h.b16 %v316
      %v716 = vunpack.c.l.b16 %v317
      %v717 = vunpack.c.h.b16 %v317
      %v718 = vunpack.c.l.b16 %v318
      %v719 = vunpack.c.h.b16 %v318
      %v720 = vunpack.c.l.b16 %v319
      %v721 = vunpack.c.h.b16 %v319
      %v722 = vunpack.c.l.b16 %v320
      %v723 = vunpack.c.h.b16 %v320
      %v724 = vunpack.c.l.b16 %v321
      %v725 = vunpack.c.h.b16 %v321
      %v726 = vunpack.c.l.b16 %v322
      %v727 = vunpack.c.h.b16 %v322
      %v728 = vunpack.c.l.b16 %v323
      %v729 = vunpack.c.h.b16 %v323
      %v730 = vunpack.c.l.b16 %v324
      %v731 = vunpack.c.h.b16 %v324
      %v732 = vunpack.c.l.b16 %v325
      %v733 = vunpack.c.h.b16 %v325
      %v734 = vunpack.c.l.b16 %v326
      %v735 = vunpack.c.h.b16 %v326
      %v736 = vunpack.c.l.b16 %v327
      %v737 = vunpack.c.h.b16 %v327
      %v738 = vunpack.c.l.b16 %v328
      %v739 = vunpack.c.h.b16 %v328
      %v740 = vunpack.c.l.b16 %v329
      %v741 = vunpack.c.h.b16 %v329
      %v742 = vunpack.c.l.b16 %v330
      %v743 = vunpack.c.h.b16 %v330
      %v744 = vunpack.c.l.b16 %v331
      %v745 = vunpack.c.h.b16 %v331
      %v746 = vunpack.c.l.b16 %v332
      %v747 = vunpack.c.h.b16 %v332
      %v748 = vunpack.c.l.b16 %v333
      %v749 = vunpack.c.h.b16 %v333
      %v750 = vpack.c.b16 %v496, %v494
      %v751 = vpack.c.b16 %v497, %v495
      %v752 = vpack.c.b16 %v500, %v498
      %v753 = vpack.c.b16 %v501, %v499
      %v754 = vpack.c.b16 %v504, %v502
      %v755 = vpack.c.b16 %v505, %v503
      %v756 = vpack.c.b16 %v508, %v506
      %v757 = vpack.c.b16 %v509, %v507
      %v758 = vpack.c.b16 %v512, %v510
      %v759 = vpack.c.b16 %v513, %v511
      %v760 = vpack.c.b16 %v516, %v514
      %v761 = vpack.c.b16 %v517, %v515
      %v762 = vpack.c.b16 %v520, %v518
      %v763 = vpack.c.b16 %v521, %v519
      %v764 = vpack.c.b16 %v524, %v522
      %v765 = vpack.c.b16 %v525, %v523
      %v766 = vpack.c.b16 %v528, %v526
      %v767 = vpack.c.b16 %v529, %v527
      %v768 = vpack.c.b16 %v532, %v530
      %v769 = vpack.c.b16 %v533, %v531
      %v770 = vpack.c.b16 %v536, %v534
      %v771 = vpack.c.b16 %v537, %v535
      %v772 = vpack.c.b16 %v540, %v538
      %v773 = vpack.c.b16 %v541, %v539
      %v774 = vpack.c.b16 %v544, %v542
      %v775 = vpack.c.b16 %v545, %v543
      %v776 = vpack.c.b16 %v548, %v546
      %v777 = vpack.c.b16 %v549, %v547
      %v778 = vpack.c.b16 %v552, %v550
      %v779 = vpack.c.b16 %v553, %v551
      %v780 = vpack.c.b16 %v556, %v554
      %v781 = vpack.c.b16 %v557, %v555
      %v782 = vpack.c.b16 %v560, %v558
      %v783 = vpack.c.b16 %v561, %v559
      %v784 = vpack.c.b16 %v564, %v562
      %v785 = vpack.c.b16 %v565, %v563
      %v786 = vpack.c.b16 %v568, %v566
      %v787 = vpack.c.b16 %v569, %v567
      %v788 = vpack.c.b16 %v572, %v570
      %v789 = vpack.c.b16 %v573, %v571
      %v790 = vpack.c.b16 %v576, %v574
      %v791 = vpack.c.b16 %v577, %v575
      %v792 = vpack.c.b16 %v580, %v578
      %v793 = vpack.c.b16 %v581, %v579
      %v794 = vpack.c.b16 %v584, %v582
      %v795 = vpack.c.b16 %v585, %v583
      %v796 = vpack.c.b16 %v588, %v586
      %v797 = vpack.c.b16 %v589, %v587
      %v798 = vpack.c.b16 %v592, %v590
      %v799 = vpack.c.b16 %v593, %v591
      %v800 = vpack.c.b16 %v596, %v594
      %v801 = vpack.c.b16 %v597, %v595
      %v802 = vpack.c.b16 %v600, %v598
      %v803 = vpack.c.b16 %v601, %v599
      %v804 = vpack.c.b16 %v604, %v602
      %v805 = vpack.c.b16 %v605, %v603
      %v806 = vpack.c.b16 %v608, %v606
      %v807 = vpack.c.b16 %v609, %v607
      %v808 = vpack.c.b16 %v612, %v610
      %v809 = vpack.c.b16 %v613, %v611
      %v810 = vpack.c.b16 %v616, %v614
      %v811 = vpack.c.b16 %v617, %v615
      %v812 = vpack.c.b16 %v620, %v618
      %v813 = vpack.c.b16 %v621, %v619
      %v814 = vpack.c.b16 %v624, %v622
      %v815 = vpack.c.b16 %v625, %v623
      %v816 = vpack.c.b16 %v628, %v626
      %v817 = vpack.c.b16 %v629, %v627
      %v818 = vpack.c.b16 %v632, %v630
      %v819 = vpack.c.b16 %v633, %v631
      %v820 = vpack.c.b16 %v636, %v634
      %v821 = vpack.c.b16 %v637, %v635
      %v822 = vpack.c.b16 %v640, %v638
      %v823 = vpack.c.b16 %v641, %v639
      %v824 = vpack.c.b16 %v644, %v642
      %v825 = vpack.c.b16 %v645, %v643
      %v826 = vpack.c.b16 %v648, %v646
      %v827 = vpack.c.b16 %v649, %v647
      %v828 = vpack.c.b16 %v652, %v650
      %v829 = vpack.c.b16 %v653, %v651
      %v830 = vpack.c.b16 %v656, %v654
      %v831 = vpack.c.b16 %v657, %v655
      %v832 = vpack.c.b16 %v660, %v658
      %v833 = vpack.c.b16 %v661, %v659
      %v834 = vpack.c.b16 %v664, %v662
      %v835 = vpack.c.b16 %v665, %v663
      %v836 = vpack.c.b16 %v668, %v666
      %v837 = vpack.c.b16 %v669, %v667
      %v838 = vpack.c.b16 %v672, %v670
      %v839 = vpack.c.b16 %v673, %v671
      %v840 = vpack.c.b16 %v676, %v674
      %v841 = vpack.c.b16 %v677, %v675
      %v842 = vpack.c.b16 %v680, %v678
      %v843 = vpack.c.b16 %v681, %v679
      %v844 = vpack.c.b16 %v684, %v682
      %v845 = vpack.c.b16 %v685, %v683
      %v846 = vpack.c.b16 %v688, %v686
      %v847 = vpack.c.b16 %v689, %v687
      %v848 = vpack.c.b16 %v692, %v690
      %v849 = vpack.c.b16 %v693, %v691
      %v850 = vpack.c.b16 %v696, %v694
      %v851 = vpack.c.b16 %v697, %v695
      %v852 = vpack.c.b16 %v700, %v698
      %v853 = vpack.c.b16 %v701, %v699
      %v854 = vpack.c.b16 %v704, %v702
      %v855 = vpack.c.b16 %v705, %v703
      %v856 = vpack.c.b16 %v708, %v706
      %v857 = vpack.c.b16 %v709, %v707
      %v858 = vpack.c.b16 %v712, %v710
      %v859 = vpack.c.b16 %v713, %v711
      %v860 = vpack.c.b16 %v716, %v714
      %v861 = vpack.c.b16 %v717, %v715
      %v862 = vpack.c.b16 %v720, %v718
      %v863 = vpack.c.b16 %v721, %v719
      %v864 = vpack.c.b16 %v724, %v722
      %v865 = vpack.c.b16 %v725, %v723
      %v866 = vpack.c.b16 %v728, %v726
      %v867 = vpack.c.b16 %v729, %v727
      %v868 = vpack.c.b16 %v732, %v730
      %v869 = vpack.c.b16 %v733, %v731
      %v870 = vpack.c.b16 %v736, %v734
      %v871 = vpack.c.b16 %v737, %v735
      %v872 = vpack.c.b16 %v740, %v738
      %v873 = vpack.c.b16 %v741, %v739
      %v874 = vpack.c.b16 %v744, %v742
      %v875 = vpack.c.b16 %v745, %v743
      %v876 = vpack.c.b16 %v748, %v746
      %v877 = vpack.c.b16 %v749, %v747
      %v1038 = vunpack.c.l.b16 %v334
      %v1039 = vunpack.c.l.b16 %v335
      %v1040 = vunpack.c.l.b16 %v336
      %v1041 = vunpack.c.l.b16 %v337
      %v1042 = vunpack.c.l.b16 %v338
      %v1043 = vunpack.c.l.b16 %v339
      %v1044 = vunpack.c.l.b16 %v340
      %v1045 = vunpack.c.l.b16 %v341
      %v1046 = vunpack.c.l.b16 %v342
      %v1047 = vunpack.c.l.b16 %v343
      %v1048 = vunpack.c.l.b16 %v344
      %v1049 = vunpack.c.l.b16 %v345
      %v1050 = vunpack.c.l.b16 %v346
      %v1051 = vunpack.c.l.b16 %v347
      %v1052 = vunpack.c.l.b16 %v348
      %v1053 = vunpack.c.l.b16 %v349
      %v1054 = vunpack.c.l.b16 %v350
      %v1055 = vunpack.c.l.b16 %v351
      %v1056 = vunpack.c.l.b16 %v352
      %v1057 = vunpack.c.l.b16 %v353
      %v1058 = vunpack.c.l.b16 %v354
      %v1059 = vunpack.c.l.b16 %v355
      %v1060 = vunpack.c.l.b16 %v356
      %v1061 = vunpack.c.l.b16 %v357
      %v1062 = vunpack.c.l.b16 %v358
      %v1063 = vunpack.c.l.b16 %v359
      %v1064 = vunpack.c.l.b16 %v360
      %v1065 = vunpack.c.l.b16 %v361
      %v1066 = vunpack.c.l.b16 %v362
      %v1067 = vunpack.c.l.b16 %v363
      %v1068 = vunpack.c.l.b16 %v364
      %v1069 = vunpack.c.l.b16 %v365
      %v1070 = vpack.c.b16 %v1039, %v1038
      %v1071 = vpack.c.b16 %v1041, %v1040
      %v1072 = vpack.c.b16 %v1043, %v1042
      %v1073 = vpack.c.b16 %v1045, %v1044
      %v1074 = vpack.c.b16 %v1047, %v1046
      %v1075 = vpack.c.b16 %v1049, %v1048
      %v1076 = vpack.c.b16 %v1051, %v1050
      %v1077 = vpack.c.b16 %v1053, %v1052
      %v1078 = vpack.c.b16 %v1055, %v1054
      %v1079 = vpack.c.b16 %v1057, %v1056
      %v1080 = vpack.c.b16 %v1059, %v1058
      %v1081 = vpack.c.b16 %v1061, %v1060
      %v1082 = vpack.c.b16 %v1063, %v1062
      %v1083 = vpack.c.b16 %v1065, %v1064
      %v1084 = vpack.c.b16 %v1067, %v1066
      %v1085 = vpack.c.b16 %v1069, %v1068
      %1102 = vmatpush.bf16.msra.mxu0 %v1077
      %1103 = vmatpush.bf16.msra.mxu0 %v1076
      %1104 = vmatpush.bf16.msra.mxu0 %v1075
      %1105 = vmatpush.bf16.msra.mxu0 %v1074
      %1106 = vmatpush.bf16.msra.mxu0 %v1073
      %1107 = vmatpush.bf16.msra.mxu0 %v1072
      %1108 = vmatpush.bf16.msra.mxu0 %v1071
      %1109 = vmatpush.bf16.msra.mxu0 %v1070
      %1110 = vmatmul.bf16.gmra.mxu0 %v750
      %v1111 = vpop.f32.mrf.mxu0
      %v1112 = vadd.f32 0.0, %v1111
      %v1113 = vpop.f32.mrf.mxu0
      %v1114 = vadd.f32 0.0, %v1113
      %1115 = vmatmul.bf16.gmra.mxu0 %v752
      %v1116 = vpop.f32.mrf.mxu0
      %v1117 = vadd.f32 0.0, %v1116
      %v1118 = vpop.f32.mrf.mxu0
      %v1119 = vadd.f32 0.0, %v1118
      %1120 = vmatmul.bf16.gmra.mxu0 %v754
      %v1121 = vpop.f32.mrf.mxu0
      %v1122 = vadd.f32 0.0, %v1121
      %v1123 = vpop.f32.mrf.mxu0
      %v1124 = vadd.f32 0.0, %v1123
      %1125 = vmatmul.bf16.gmra.mxu0 %v756
      %v1126 = vpop.f32.mrf.mxu0
      %v1127 = vadd.f32 0.0, %v1126
      %v1128 = vpop.f32.mrf.mxu0
      %v1129 = vadd.f32 0.0, %v1128
      %1130 = vmatmul.bf16.gmra.mxu0 %v758
      %v1131 = vpop.f32.mrf.mxu0
      %v1132 = vadd.f32 0.0, %v1131
      %v1133 = vpop.f32.mrf.mxu0
      %v1134 = vadd.f32 0.0, %v1133
      %1135 = vmatmul.bf16.gmra.mxu0 %v760
      %v1136 = vpop.f32.mrf.mxu0
      %v1137 = vadd.f32 0.0, %v1136
      %v1138 = vpop.f32.mrf.mxu0
      %v1139 = vadd.f32 0.0, %v1138
      %1140 = vmatmul.bf16.gmra.mxu0 %v762
      %v1141 = vpop.f32.mrf.mxu0
      %v1142 = vadd.f32 0.0, %v1141
      %v1143 = vpop.f32.mrf.mxu0
      %v1144 = vadd.f32 0.0, %v1143
      %1145 = vmatmul.bf16.gmra.mxu0 %v764
      %v1146 = vpop.f32.mrf.mxu0
      %v1147 = vadd.f32 0.0, %v1146
      %v1148 = vpop.f32.mrf.mxu0
      %v1149 = vadd.f32 0.0, %v1148
      %1150 = vmatmul.bf16.gmra.mxu0 %v766
      %v1151 = vpop.f32.mrf.mxu0
      %v1152 = vadd.f32 0.0, %v1151
      %v1153 = vpop.f32.mrf.mxu0
      %v1154 = vadd.f32 0.0, %v1153
      %1155 = vmatmul.bf16.gmra.mxu0 %v768
      %v1156 = vpop.f32.mrf.mxu0
      %v1157 = vadd.f32 0.0, %v1156
      %v1158 = vpop.f32.mrf.mxu0
      %v1159 = vadd.f32 0.0, %v1158
      %1160 = vmatmul.bf16.gmra.mxu0 %v770
      %v1161 = vpop.f32.mrf.mxu0
      %v1162 = vadd.f32 0.0, %v1161
      %v1163 = vpop.f32.mrf.mxu0
      %v1164 = vadd.f32 0.0, %v1163
      %1165 = vmatmul.bf16.gmra.mxu0 %v772
      %v1166 = vpop.f32.mrf.mxu0
      %v1167 = vadd.f32 0.0, %v1166
      %v1168 = vpop.f32.mrf.mxu0
      %v1169 = vadd.f32 0.0, %v1168
      %1170 = vmatmul.bf16.gmra.mxu0 %v774
      %v1171 = vpop.f32.mrf.mxu0
      %v1172 = vadd.f32 0.0, %v1171
      %v1173 = vpop.f32.mrf.mxu0
      %v1174 = vadd.f32 0.0, %v1173
      %1175 = vmatmul.bf16.gmra.mxu0 %v776
      %v1176 = vpop.f32.mrf.mxu0
      %v1177 = vadd.f32 0.0, %v1176
      %v1178 = vpop.f32.mrf.mxu0
      %v1179 = vadd.f32 0.0, %v1178
      %1180 = vmatmul.bf16.gmra.mxu0 %v778
      %v1181 = vpop.f32.mrf.mxu0
      %v1182 = vadd.f32 0.0, %v1181
      %v1183 = vpop.f32.mrf.mxu0
      %v1184 = vadd.f32 0.0, %v1183
      %1185 = vmatmul.bf16.gmra.mxu0 %v780
      %v1186 = vpop.f32.mrf.mxu0
      %v1187 = vadd.f32 0.0, %v1186
      %v1188 = vpop.f32.mrf.mxu0
      %v1189 = vadd.f32 0.0, %v1188
      %1190 = vmatmul.bf16.gmra.mxu0 %v782
      %v1191 = vpop.f32.mrf.mxu0
      %v1192 = vadd.f32 0.0, %v1191
      %v1193 = vpop.f32.mrf.mxu0
      %v1194 = vadd.f32 0.0, %v1193
      %1195 = vmatmul.bf16.gmra.mxu0 %v784
      %v1196 = vpop.f32.mrf.mxu0
      %v1197 = vadd.f32 0.0, %v1196
      %v1198 = vpop.f32.mrf.mxu0
      %v1199 = vadd.f32 0.0, %v1198
      %1200 = vmatmul.bf16.gmra.mxu0 %v786
      %v1201 = vpop.f32.mrf.mxu0
      %v1202 = vadd.f32 0.0, %v1201
      %v1203 = vpop.f32.mrf.mxu0
      %v1204 = vadd.f32 0.0, %v1203
      %1205 = vmatmul.bf16.gmra.mxu0 %v788
      %v1206 = vpop.f32.mrf.mxu0
      %v1207 = vadd.f32 0.0, %v1206
      %v1208 = vpop.f32.mrf.mxu0
      %v1209 = vadd.f32 0.0, %v1208
      %1210 = vmatmul.bf16.gmra.mxu0 %v790
      %v1211 = vpop.f32.mrf.mxu0
      %v1212 = vadd.f32 0.0, %v1211
      %v1213 = vpop.f32.mrf.mxu0
      %v1214 = vadd.f32 0.0, %v1213
      %1215 = vmatmul.bf16.gmra.mxu0 %v792
      %v1216 = vpop.f32.mrf.mxu0
      %v1217 = vadd.f32 0.0, %v1216
      %v1218 = vpop.f32.mrf.mxu0
      %v1219 = vadd.f32 0.0, %v1218
      %1220 = vmatmul.bf16.gmra.mxu0 %v794
      %v1221 = vpop.f32.mrf.mxu0
      %v1222 = vadd.f32 0.0, %v1221
      %v1223 = vpop.f32.mrf.mxu0
      %v1224 = vadd.f32 0.0, %v1223
      %1225 = vmatmul.bf16.gmra.mxu0 %v796
      %v1226 = vpop.f32.mrf.mxu0
      %v1227 = vadd.f32 0.0, %v1226
      %v1228 = vpop.f32.mrf.mxu0
      %v1229 = vadd.f32 0.0, %v1228
      %1230 = vmatmul.bf16.gmra.mxu0 %v798
      %v1231 = vpop.f32.mrf.mxu0
      %v1232 = vadd.f32 0.0, %v1231
      %v1233 = vpop.f32.mrf.mxu0
      %v1234 = vadd.f32 0.0, %v1233
      %1235 = vmatmul.bf16.gmra.mxu0 %v800
      %v1236 = vpop.f32.mrf.mxu0
      %v1237 = vadd.f32 0.0, %v1236
      %v1238 = vpop.f32.mrf.mxu0
      %v1239 = vadd.f32 0.0, %v1238
      %1240 = vmatmul.bf16.gmra.mxu0 %v802
      %v1241 = vpop.f32.mrf.mxu0
      %v1242 = vadd.f32 0.0, %v1241
      %v1243 = vpop.f32.mrf.mxu0
      %v1244 = vadd.f32 0.0, %v1243
      %1245 = vmatmul.bf16.gmra.mxu0 %v804
      %v1246 = vpop.f32.mrf.mxu0
      %v1247 = vadd.f32 0.0, %v1246
      %v1248 = vpop.f32.mrf.mxu0
      %v1249 = vadd.f32 0.0, %v1248
      %1250 = vmatmul.bf16.gmra.mxu0 %v806
      %v1251 = vpop.f32.mrf.mxu0
      %v1252 = vadd.f32 0.0, %v1251
      %v1253 = vpop.f32.mrf.mxu0
      %v1254 = vadd.f32 0.0, %v1253
      %1255 = vmatmul.bf16.gmra.mxu0 %v808
      %v1256 = vpop.f32.mrf.mxu0
      %v1257 = vadd.f32 0.0, %v1256
      %v1258 = vpop.f32.mrf.mxu0
      %v1259 = vadd.f32 0.0, %v1258
      %1260 = vmatmul.bf16.gmra.mxu0 %v810
      %v1261 = vpop.f32.mrf.mxu0
      %v1262 = vadd.f32 0.0, %v1261
      %v1263 = vpop.f32.mrf.mxu0
      %v1264 = vadd.f32 0.0, %v1263
      %1265 = vmatmul.bf16.gmra.mxu0 %v812
      %v1266 = vpop.f32.mrf.mxu0
      %v1267 = vadd.f32 0.0, %v1266
      %v1268 = vpop.f32.mrf.mxu0
      %v1269 = vadd.f32 0.0, %v1268
      %1270 = vmatmul.bf16.gmra.mxu0 %v814
      %v1271 = vpop.f32.mrf.mxu0
      %v1272 = vadd.f32 0.0, %v1271
      %v1273 = vpop.f32.mrf.mxu0
      %v1274 = vadd.f32 0.0, %v1273
      %1275 = vmatmul.bf16.gmra.mxu0 %v816
      %v1276 = vpop.f32.mrf.mxu0
      %v1277 = vadd.f32 0.0, %v1276
      %v1278 = vpop.f32.mrf.mxu0
      %v1279 = vadd.f32 0.0, %v1278
      %1280 = vmatmul.bf16.gmra.mxu0 %v818
      %v1281 = vpop.f32.mrf.mxu0
      %v1282 = vadd.f32 0.0, %v1281
      %v1283 = vpop.f32.mrf.mxu0
      %v1284 = vadd.f32 0.0, %v1283
      %1285 = vmatmul.bf16.gmra.mxu0 %v820
      %v1286 = vpop.f32.mrf.mxu0
      %v1287 = vadd.f32 0.0, %v1286
      %v1288 = vpop.f32.mrf.mxu0
      %v1289 = vadd.f32 0.0, %v1288
      %1290 = vmatmul.bf16.gmra.mxu0 %v822
      %v1291 = vpop.f32.mrf.mxu0
      %v1292 = vadd.f32 0.0, %v1291
      %v1293 = vpop.f32.mrf.mxu0
      %v1294 = vadd.f32 0.0, %v1293
      %1295 = vmatmul.bf16.gmra.mxu0 %v824
      %v1296 = vpop.f32.mrf.mxu0
      %v1297 = vadd.f32 0.0, %v1296
      %v1298 = vpop.f32.mrf.mxu0
      %v1299 = vadd.f32 0.0, %v1298
      %1300 = vmatmul.bf16.gmra.mxu0 %v826
      %v1301 = vpop.f32.mrf.mxu0
      %v1302 = vadd.f32 0.0, %v1301
      %v1303 = vpop.f32.mrf.mxu0
      %v1304 = vadd.f32 0.0, %v1303
      %1305 = vmatmul.bf16.gmra.mxu0 %v828
      %v1306 = vpop.f32.mrf.mxu0
      %v1307 = vadd.f32 0.0, %v1306
      %v1308 = vpop.f32.mrf.mxu0
      %v1309 = vadd.f32 0.0, %v1308
      %1310 = vmatmul.bf16.gmra.mxu0 %v830
      %v1311 = vpop.f32.mrf.mxu0
      %v1312 = vadd.f32 0.0, %v1311
      %v1313 = vpop.f32.mrf.mxu0
      %v1314 = vadd.f32 0.0, %v1313
      %1315 = vmatmul.bf16.gmra.mxu0 %v832
      %v1316 = vpop.f32.mrf.mxu0
      %v1317 = vadd.f32 0.0, %v1316
      %v1318 = vpop.f32.mrf.mxu0
      %v1319 = vadd.f32 0.0, %v1318
      %1320 = vmatmul.bf16.gmra.mxu0 %v834
      %v1321 = vpop.f32.mrf.mxu0
      %v1322 = vadd.f32 0.0, %v1321
      %v1323 = vpop.f32.mrf.mxu0
      %v1324 = vadd.f32 0.0, %v1323
      %1325 = vmatmul.bf16.gmra.mxu0 %v836
      %v1326 = vpop.f32.mrf.mxu0
      %v1327 = vadd.f32 0.0, %v1326
      %v1328 = vpop.f32.mrf.mxu0
      %v1329 = vadd.f32 0.0, %v1328
      %1330 = vmatmul.bf16.gmra.mxu0 %v838
      %v1331 = vpop.f32.mrf.mxu0
      %v1332 = vadd.f32 0.0, %v1331
      %v1333 = vpop.f32.mrf.mxu0
      %v1334 = vadd.f32 0.0, %v1333
      %1335 = vmatmul.bf16.gmra.mxu0 %v840
      %v1336 = vpop.f32.mrf.mxu0
      %v1337 = vadd.f32 0.0, %v1336
      %v1338 = vpop.f32.mrf.mxu0
      %v1339 = vadd.f32 0.0, %v1338
      %1340 = vmatmul.bf16.gmra.mxu0 %v842
      %v1341 = vpop.f32.mrf.mxu0
      %v1342 = vadd.f32 0.0, %v1341
      %v1343 = vpop.f32.mrf.mxu0
      %v1344 = vadd.f32 0.0, %v1343
      %1345 = vmatmul.bf16.gmra.mxu0 %v844
      %v1346 = vpop.f32.mrf.mxu0
      %v1347 = vadd.f32 0.0, %v1346
      %v1348 = vpop.f32.mrf.mxu0
      %v1349 = vadd.f32 0.0, %v1348
      %1350 = vmatmul.bf16.gmra.mxu0 %v846
      %v1351 = vpop.f32.mrf.mxu0
      %v1352 = vadd.f32 0.0, %v1351
      %v1353 = vpop.f32.mrf.mxu0
      %v1354 = vadd.f32 0.0, %v1353
      %1355 = vmatmul.bf16.gmra.mxu0 %v848
      %v1356 = vpop.f32.mrf.mxu0
      %v1357 = vadd.f32 0.0, %v1356
      %v1358 = vpop.f32.mrf.mxu0
      %v1359 = vadd.f32 0.0, %v1358
      %1360 = vmatmul.bf16.gmra.mxu0 %v850
      %v1361 = vpop.f32.mrf.mxu0
      %v1362 = vadd.f32 0.0, %v1361
      %v1363 = vpop.f32.mrf.mxu0
      %v1364 = vadd.f32 0.0, %v1363
      %1365 = vmatmul.bf16.gmra.mxu0 %v852
      %v1366 = vpop.f32.mrf.mxu0
      %v1367 = vadd.f32 0.0, %v1366
      %v1368 = vpop.f32.mrf.mxu0
      %v1369 = vadd.f32 0.0, %v1368
      %1370 = vmatmul.bf16.gmra.mxu0 %v854
      %v1371 = vpop.f32.mrf.mxu0
      %v1372 = vadd.f32 0.0, %v1371
      %v1373 = vpop.f32.mrf.mxu0
      %v1374 = vadd.f32 0.0, %v1373
      %1375 = vmatmul.bf16.gmra.mxu0 %v856
      %v1376 = vpop.f32.mrf.mxu0
      %v1377 = vadd.f32 0.0, %v1376
      %v1378 = vpop.f32.mrf.mxu0
      %v1379 = vadd.f32 0.0, %v1378
      %1380 = vmatmul.bf16.gmra.mxu0 %v858
      %v1381 = vpop.f32.mrf.mxu0
      %v1382 = vadd.f32 0.0, %v1381
      %v1383 = vpop.f32.mrf.mxu0
      %v1384 = vadd.f32 0.0, %v1383
      %1385 = vmatmul.bf16.gmra.mxu0 %v860
      %v1386 = vpop.f32.mrf.mxu0
      %v1387 = vadd.f32 0.0, %v1386
      %v1388 = vpop.f32.mrf.mxu0
      %v1389 = vadd.f32 0.0, %v1388
      %1390 = vmatmul.bf16.gmra.mxu0 %v862
      %v1391 = vpop.f32.mrf.mxu0
      %v1392 = vadd.f32 0.0, %v1391
      %v1393 = vpop.f32.mrf.mxu0
      %v1394 = vadd.f32 0.0, %v1393
      %1395 = vmatmul.bf16.gmra.mxu0 %v864
      %v1396 = vpop.f32.mrf.mxu0
      %v1397 = vadd.f32 0.0, %v1396
      %v1398 = vpop.f32.mrf.mxu0
      %v1399 = vadd.f32 0.0, %v1398
      %1400 = vmatmul.bf16.gmra.mxu0 %v866
      %v1401 = vpop.f32.mrf.mxu0
      %v1402 = vadd.f32 0.0, %v1401
      %v1403 = vpop.f32.mrf.mxu0
      %v1404 = vadd.f32 0.0, %v1403
      %1405 = vmatmul.bf16.gmra.mxu0 %v868
      %v1406 = vpop.f32.mrf.mxu0
      %v1407 = vadd.f32 0.0, %v1406
      %v1408 = vpop.f32.mrf.mxu0
      %v1409 = vadd.f32 0.0, %v1408
      %1410 = vmatmul.bf16.gmra.mxu0 %v870
      %v1411 = vpop.f32.mrf.mxu0
      %v1412 = vadd.f32 0.0, %v1411
      %v1413 = vpop.f32.mrf.mxu0
      %v1414 = vadd.f32 0.0, %v1413
      %1415 = vmatmul.bf16.gmra.mxu0 %v872
      %v1416 = vpop.f32.mrf.mxu0
      %v1417 = vadd.f32 0.0, %v1416
      %v1418 = vpop.f32.mrf.mxu0
      %v1419 = vadd.f32 0.0, %v1418
      %1420 = vmatmul.bf16.gmra.mxu0 %v874
      %v1421 = vpop.f32.mrf.mxu0
      %v1422 = vadd.f32 0.0, %v1421
      %v1423 = vpop.f32.mrf.mxu0
      %v1424 = vadd.f32 0.0, %v1423
      %1425 = vmatmul.bf16.gmra.mxu0 %v876
      %v1426 = vpop.f32.mrf.mxu0
      %v1427 = vadd.f32 0.0, %v1426
      %v1428 = vpop.f32.mrf.mxu0
      %v1429 = vadd.f32 0.0, %v1428
      %1430 = vdwg.mxu0
      %1431 = vmatpush.bf16.msra.mxu0 %v1085
      %1432 = vmatpush.bf16.msra.mxu0 %v1084
      %1433 = vmatpush.bf16.msra.mxu0 %v1083
      %1434 = vmatpush.bf16.msra.mxu0 %v1082
      %1435 = vmatpush.bf16.msra.mxu0 %v1081
      %1436 = vmatpush.bf16.msra.mxu0 %v1080
      %1437 = vmatpush.bf16.msra.mxu0 %v1079
      %1438 = vmatpush.bf16.msra.mxu0 %v1078
      %1439 = vmatmul.bf16.gmra.mxu0 %v751
      %v1440 = vpop.f32.mrf.mxu0
      %v1441 = vadd.f32 %v1112, %v1440
      %v1442 = vpop.f32.mrf.mxu0
      %v1443 = vadd.f32 %v1114, %v1442
      %1444 = vmatmul.bf16.gmra.mxu0 %v753
      %v1445 = vpop.f32.mrf.mxu0
      %v1446 = vadd.f32 %v1117, %v1445
      %v1447 = vpop.f32.mrf.mxu0
      %v1448 = vadd.f32 %v1119, %v1447
      %1449 = vmatmul.bf16.gmra.mxu0 %v755
      %v1450 = vpop.f32.mrf.mxu0
      %v1451 = vadd.f32 %v1122, %v1450
      %v1452 = vpop.f32.mrf.mxu0
      %v1453 = vadd.f32 %v1124, %v1452
      %1454 = vmatmul.bf16.gmra.mxu0 %v757
      %v1455 = vpop.f32.mrf.mxu0
      %v1456 = vadd.f32 %v1127, %v1455
      %v1457 = vpop.f32.mrf.mxu0
      %v1458 = vadd.f32 %v1129, %v1457
      %1459 = vmatmul.bf16.gmra.mxu0 %v759
      %v1460 = vpop.f32.mrf.mxu0
      %v1461 = vadd.f32 %v1132, %v1460
      %v1462 = vpop.f32.mrf.mxu0
      %v1463 = vadd.f32 %v1134, %v1462
      %1464 = vmatmul.bf16.gmra.mxu0 %v761
      %v1465 = vpop.f32.mrf.mxu0
      %v1466 = vadd.f32 %v1137, %v1465
      %v1467 = vpop.f32.mrf.mxu0
      %v1468 = vadd.f32 %v1139, %v1467
      %1469 = vmatmul.bf16.gmra.mxu0 %v763
      %v1470 = vpop.f32.mrf.mxu0
      %v1471 = vadd.f32 %v1142, %v1470
      %v1472 = vpop.f32.mrf.mxu0
      %v1473 = vadd.f32 %v1144, %v1472
      %1474 = vmatmul.bf16.gmra.mxu0 %v765
      %v1475 = vpop.f32.mrf.mxu0
      %v1476 = vadd.f32 %v1147, %v1475
      %v1477 = vpop.f32.mrf.mxu0
      %v1478 = vadd.f32 %v1149, %v1477
      %1479 = vmatmul.bf16.gmra.mxu0 %v767
      %v1480 = vpop.f32.mrf.mxu0
      %v1481 = vadd.f32 %v1152, %v1480
      %v1482 = vpop.f32.mrf.mxu0
      %v1483 = vadd.f32 %v1154, %v1482
      %1484 = vmatmul.bf16.gmra.mxu0 %v769
      %v1485 = vpop.f32.mrf.mxu0
      %v1486 = vadd.f32 %v1157, %v1485
      %v1487 = vpop.f32.mrf.mxu0
      %v1488 = vadd.f32 %v1159, %v1487
      %1489 = vmatmul.bf16.gmra.mxu0 %v771
      %v1490 = vpop.f32.mrf.mxu0
      %v1491 = vadd.f32 %v1162, %v1490
      %v1492 = vpop.f32.mrf.mxu0
      %v1493 = vadd.f32 %v1164, %v1492
      %1494 = vmatmul.bf16.gmra.mxu0 %v773
      %v1495 = vpop.f32.mrf.mxu0
      %v1496 = vadd.f32 %v1167, %v1495
      %v1497 = vpop.f32.mrf.mxu0
      %v1498 = vadd.f32 %v1169, %v1497
      %1499 = vmatmul.bf16.gmra.mxu0 %v775
      %v1500 = vpop.f32.mrf.mxu0
      %v1501 = vadd.f32 %v1172, %v1500
      %v1502 = vpop.f32.mrf.mxu0
      %v1503 = vadd.f32 %v1174, %v1502
      %1504 = vmatmul.bf16.gmra.mxu0 %v777
      %v1505 = vpop.f32.mrf.mxu0
      %v1506 = vadd.f32 %v1177, %v1505
      %v1507 = vpop.f32.mrf.mxu0
      %v1508 = vadd.f32 %v1179, %v1507
      %1509 = vmatmul.bf16.gmra.mxu0 %v779
      %v1510 = vpop.f32.mrf.mxu0
      %v1511 = vadd.f32 %v1182, %v1510
      %v1512 = vpop.f32.mrf.mxu0
      %v1513 = vadd.f32 %v1184, %v1512
      %1514 = vmatmul.bf16.gmra.mxu0 %v781
      %v1515 = vpop.f32.mrf.mxu0
      %v1516 = vadd.f32 %v1187, %v1515
      %v1517 = vpop.f32.mrf.mxu0
      %v1518 = vadd.f32 %v1189, %v1517
      %1519 = vmatmul.bf16.gmra.mxu0 %v783
      %v1520 = vpop.f32.mrf.mxu0
      %v1521 = vadd.f32 %v1192, %v1520
      %v1522 = vpop.f32.mrf.mxu0
      %v1523 = vadd.f32 %v1194, %v1522
      %1524 = vmatmul.bf16.gmra.mxu0 %v785
      %v1525 = vpop.f32.mrf.mxu0
      %v1526 = vadd.f32 %v1197, %v1525
      %v1527 = vpop.f32.mrf.mxu0
      %v1528 = vadd.f32 %v1199, %v1527
      %1529 = vmatmul.bf16.gmra.mxu0 %v787
      %v1530 = vpop.f32.mrf.mxu0
      %v1531 = vadd.f32 %v1202, %v1530
      %v1532 = vpop.f32.mrf.mxu0
      %v1533 = vadd.f32 %v1204, %v1532
      %1534 = vmatmul.bf16.gmra.mxu0 %v789
      %v1535 = vpop.f32.mrf.mxu0
      %v1536 = vadd.f32 %v1207, %v1535
      %v1537 = vpop.f32.mrf.mxu0
      %v1538 = vadd.f32 %v1209, %v1537
      %1539 = vmatmul.bf16.gmra.mxu0 %v791
      %v1540 = vpop.f32.mrf.mxu0
      %v1541 = vadd.f32 %v1212, %v1540
      %v1542 = vpop.f32.mrf.mxu0
      %v1543 = vadd.f32 %v1214, %v1542
      %1544 = vmatmul.bf16.gmra.mxu0 %v793
      %v1545 = vpop.f32.mrf.mxu0
      %v1546 = vadd.f32 %v1217, %v1545
      %v1547 = vpop.f32.mrf.mxu0
      %v1548 = vadd.f32 %v1219, %v1547
      %1549 = vmatmul.bf16.gmra.mxu0 %v795
      %v1550 = vpop.f32.mrf.mxu0
      %v1551 = vadd.f32 %v1222, %v1550
      %v1552 = vpop.f32.mrf.mxu0
      %v1553 = vadd.f32 %v1224, %v1552
      %1554 = vmatmul.bf16.gmra.mxu0 %v797
      %v1555 = vpop.f32.mrf.mxu0
      %v1556 = vadd.f32 %v1227, %v1555
      %v1557 = vpop.f32.mrf.mxu0
      %v1558 = vadd.f32 %v1229, %v1557
      %1559 = vmatmul.bf16.gmra.mxu0 %v799
      %v1560 = vpop.f32.mrf.mxu0
      %v1561 = vadd.f32 %v1232, %v1560
      %v1562 = vpop.f32.mrf.mxu0
      %v1563 = vadd.f32 %v1234, %v1562
      %1564 = vmatmul.bf16.gmra.mxu0 %v801
      %v1565 = vpop.f32.mrf.mxu0
      %v1566 = vadd.f32 %v1237, %v1565
      %v1567 = vpop.f32.mrf.mxu0
      %v1568 = vadd.f32 %v1239, %v1567
      %1569 = vmatmul.bf16.gmra.mxu0 %v803
      %v1570 = vpop.f32.mrf.mxu0
      %v1571 = vadd.f32 %v1242, %v1570
      %v1572 = vpop.f32.mrf.mxu0
      %v1573 = vadd.f32 %v1244, %v1572
      %1574 = vmatmul.bf16.gmra.mxu0 %v805
      %v1575 = vpop.f32.mrf.mxu0
      %v1576 = vadd.f32 %v1247, %v1575
      %v1577 = vpop.f32.mrf.mxu0
      %v1578 = vadd.f32 %v1249, %v1577
      %1579 = vmatmul.bf16.gmra.mxu0 %v807
      %v1580 = vpop.f32.mrf.mxu0
      %v1581 = vadd.f32 %v1252, %v1580
      %v1582 = vpop.f32.mrf.mxu0
      %v1583 = vadd.f32 %v1254, %v1582
      %1584 = vmatmul.bf16.gmra.mxu0 %v809
      %v1585 = vpop.f32.mrf.mxu0
      %v1586 = vadd.f32 %v1257, %v1585
      %v1587 = vpop.f32.mrf.mxu0
      %v1588 = vadd.f32 %v1259, %v1587
      %1589 = vmatmul.bf16.gmra.mxu0 %v811
      %v1590 = vpop.f32.mrf.mxu0
      %v1591 = vadd.f32 %v1262, %v1590
      %v1592 = vpop.f32.mrf.mxu0
      %v1593 = vadd.f32 %v1264, %v1592
      %1594 = vmatmul.bf16.gmra.mxu0 %v813
      %v1595 = vpop.f32.mrf.mxu0
      %v1596 = vadd.f32 %v1267, %v1595
      %v1597 = vpop.f32.mrf.mxu0
      %v1598 = vadd.f32 %v1269, %v1597
      %1599 = vmatmul.bf16.gmra.mxu0 %v815
      %v1600 = vpop.f32.mrf.mxu0
      %v1601 = vadd.f32 %v1272, %v1600
      %v1602 = vpop.f32.mrf.mxu0
      %v1603 = vadd.f32 %v1274, %v1602
      %1604 = vmatmul.bf16.gmra.mxu0 %v817
      %v1605 = vpop.f32.mrf.mxu0
      %v1606 = vadd.f32 %v1277, %v1605
      %v1607 = vpop.f32.mrf.mxu0
      %v1608 = vadd.f32 %v1279, %v1607
      %1609 = vmatmul.bf16.gmra.mxu0 %v819
      %v1610 = vpop.f32.mrf.mxu0
      %v1611 = vadd.f32 %v1282, %v1610
      %v1612 = vpop.f32.mrf.mxu0
      %v1613 = vadd.f32 %v1284, %v1612
      %1614 = vmatmul.bf16.gmra.mxu0 %v821
      %v1615 = vpop.f32.mrf.mxu0
      %v1616 = vadd.f32 %v1287, %v1615
      %v1617 = vpop.f32.mrf.mxu0
      %v1618 = vadd.f32 %v1289, %v1617
      %1619 = vmatmul.bf16.gmra.mxu0 %v823
      %v1620 = vpop.f32.mrf.mxu0
      %v1621 = vadd.f32 %v1292, %v1620
      %v1622 = vpop.f32.mrf.mxu0
      %v1623 = vadd.f32 %v1294, %v1622
      %1624 = vmatmul.bf16.gmra.mxu0 %v825
      %v1625 = vpop.f32.mrf.mxu0
      %v1626 = vadd.f32 %v1297, %v1625
      %v1627 = vpop.f32.mrf.mxu0
      %v1628 = vadd.f32 %v1299, %v1627
      %1629 = vmatmul.bf16.gmra.mxu0 %v827
      %v1630 = vpop.f32.mrf.mxu0
      %v1631 = vadd.f32 %v1302, %v1630
      %v1632 = vpop.f32.mrf.mxu0
      %v1633 = vadd.f32 %v1304, %v1632
      %1634 = vmatmul.bf16.gmra.mxu0 %v829
      %v1635 = vpop.f32.mrf.mxu0
      %v1636 = vadd.f32 %v1307, %v1635
      %v1637 = vpop.f32.mrf.mxu0
      %v1638 = vadd.f32 %v1309, %v1637
      %1639 = vmatmul.bf16.gmra.mxu0 %v831
      %v1640 = vpop.f32.mrf.mxu0
      %v1641 = vadd.f32 %v1312, %v1640
      %v1642 = vpop.f32.mrf.mxu0
      %v1643 = vadd.f32 %v1314, %v1642
      %1644 = vmatmul.bf16.gmra.mxu0 %v833
      %v1645 = vpop.f32.mrf.mxu0
      %v1646 = vadd.f32 %v1317, %v1645
      %v1647 = vpop.f32.mrf.mxu0
      %v1648 = vadd.f32 %v1319, %v1647
      %1649 = vmatmul.bf16.gmra.mxu0 %v835
      %v1650 = vpop.f32.mrf.mxu0
      %v1651 = vadd.f32 %v1322, %v1650
      %v1652 = vpop.f32.mrf.mxu0
      %v1653 = vadd.f32 %v1324, %v1652
      %1654 = vmatmul.bf16.gmra.mxu0 %v837
      %v1655 = vpop.f32.mrf.mxu0
      %v1656 = vadd.f32 %v1327, %v1655
      %v1657 = vpop.f32.mrf.mxu0
      %v1658 = vadd.f32 %v1329, %v1657
      %1659 = vmatmul.bf16.gmra.mxu0 %v839
      %v1660 = vpop.f32.mrf.mxu0
      %v1661 = vadd.f32 %v1332, %v1660
      %v1662 = vpop.f32.mrf.mxu0
      %v1663 = vadd.f32 %v1334, %v1662
      %1664 = vmatmul.bf16.gmra.mxu0 %v841
      %v1665 = vpop.f32.mrf.mxu0
      %v1666 = vadd.f32 %v1337, %v1665
      %v1667 = vpop.f32.mrf.mxu0
      %v1668 = vadd.f32 %v1339, %v1667
      %1669 = vmatmul.bf16.gmra.mxu0 %v843
      %v1670 = vpop.f32.mrf.mxu0
      %v1671 = vadd.f32 %v1342, %v1670
      %v1672 = vpop.f32.mrf.mxu0
      %v1673 = vadd.f32 %v1344, %v1672
      %1674 = vmatmul.bf16.gmra.mxu0 %v845
      %v1675 = vpop.f32.mrf.mxu0
      %v1676 = vadd.f32 %v1347, %v1675
      %v1677 = vpop.f32.mrf.mxu0
      %v1678 = vadd.f32 %v1349, %v1677
      %1679 = vmatmul.bf16.gmra.mxu0 %v847
      %v1680 = vpop.f32.mrf.mxu0
      %v1681 = vadd.f32 %v1352, %v1680
      %v1682 = vpop.f32.mrf.mxu0
      %v1683 = vadd.f32 %v1354, %v1682
      %1684 = vmatmul.bf16.gmra.mxu0 %v849
      %v1685 = vpop.f32.mrf.mxu0
      %v1686 = vadd.f32 %v1357, %v1685
      %v1687 = vpop.f32.mrf.mxu0
      %v1688 = vadd.f32 %v1359, %v1687
      %1689 = vmatmul.bf16.gmra.mxu0 %v851
      %v1690 = vpop.f32.mrf.mxu0
      %v1691 = vadd.f32 %v1362, %v1690
      %v1692 = vpop.f32.mrf.mxu0
      %v1693 = vadd.f32 %v1364, %v1692
      %1694 = vmatmul.bf16.gmra.mxu0 %v853
      %v1695 = vpop.f32.mrf.mxu0
      %v1696 = vadd.f32 %v1367, %v1695
      %v1697 = vpop.f32.mrf.mxu0
      %v1698 = vadd.f32 %v1369, %v1697
      %1699 = vmatmul.bf16.gmra.mxu0 %v855
      %v1700 = vpop.f32.mrf.mxu0
      %v1701 = vadd.f32 %v1372, %v1700
      %v1702 = vpop.f32.mrf.mxu0
      %v1703 = vadd.f32 %v1374, %v1702
      %1704 = vmatmul.bf16.gmra.mxu0 %v857
      %v1705 = vpop.f32.mrf.mxu0
      %v1706 = vadd.f32 %v1377, %v1705
      %v1707 = vpop.f32.mrf.mxu0
      %v1708 = vadd.f32 %v1379, %v1707
      %1709 = vmatmul.bf16.gmra.mxu0 %v859
      %v1710 = vpop.f32.mrf.mxu0
      %v1711 = vadd.f32 %v1382, %v1710
      %v1712 = vpop.f32.mrf.mxu0
      %v1713 = vadd.f32 %v1384, %v1712
      %1714 = vmatmul.bf16.gmra.mxu0 %v861
      %v1715 = vpop.f32.mrf.mxu0
      %v1716 = vadd.f32 %v1387, %v1715
      %v1717 = vpop.f32.mrf.mxu0
      %v1718 = vadd.f32 %v1389, %v1717
      %1719 = vmatmul.bf16.gmra.mxu0 %v863
      %v1720 = vpop.f32.mrf.mxu0
      %v1721 = vadd.f32 %v1392, %v1720
      %v1722 = vpop.f32.mrf.mxu0
      %v1723 = vadd.f32 %v1394, %v1722
      %1724 = vmatmul.bf16.gmra.mxu0 %v865
      %v1725 = vpop.f32.mrf.mxu0
      %v1726 = vadd.f32 %v1397, %v1725
      %v1727 = vpop.f32.mrf.mxu0
      %v1728 = vadd.f32 %v1399, %v1727
      %1729 = vmatmul.bf16.gmra.mxu0 %v867
      %v1730 = vpop.f32.mrf.mxu0
      %v1731 = vadd.f32 %v1402, %v1730
      %v1732 = vpop.f32.mrf.mxu0
      %v1733 = vadd.f32 %v1404, %v1732
      %1734 = vmatmul.bf16.gmra.mxu0 %v869
      %v1735 = vpop.f32.mrf.mxu0
      %v1736 = vadd.f32 %v1407, %v1735
      %v1737 = vpop.f32.mrf.mxu0
      %v1738 = vadd.f32 %v1409, %v1737
      %1739 = vmatmul.bf16.gmra.mxu0 %v871
      %v1740 = vpop.f32.mrf.mxu0
      %v1741 = vadd.f32 %v1412, %v1740
      %v1742 = vpop.f32.mrf.mxu0
      %v1743 = vadd.f32 %v1414, %v1742
      %1744 = vmatmul.bf16.gmra.mxu0 %v873
      %v1745 = vpop.f32.mrf.mxu0
      %v1746 = vadd.f32 %v1417, %v1745
      %v1747 = vpop.f32.mrf.mxu0
      %v1748 = vadd.f32 %v1419, %v1747
      %1749 = vmatmul.bf16.gmra.mxu0 %v875
      %v1750 = vpop.f32.mrf.mxu0
      %v1751 = vadd.f32 %v1422, %v1750
      %v1752 = vpop.f32.mrf.mxu0
      %v1753 = vadd.f32 %v1424, %v1752
      %1754 = vmatmul.bf16.gmra.mxu0 %v877
      %v1755 = vpop.f32.mrf.mxu0
      %v1756 = vadd.f32 %v1427, %v1755
      %v1757 = vpop.f32.mrf.mxu0
      %v1758 = vadd.f32 %v1429, %v1757
      %1759 = vdwg.mxu0
      %v1760 = vtanh.pop %v1441
      %v1761 = vtanh.pop %v1443
      %v1762 = vtanh.pop %v1446
      %v1763 = vtanh.pop %v1448
      %v1764 = vtanh.pop %v1451
      %v1765 = vtanh.pop %v1453
      %v1766 = vtanh.pop %v1456
      %v1767 = vtanh.pop %v1458
      %v1768 = vtanh.pop %v1461
      %v1769 = vtanh.pop %v1463
      %v1770 = vtanh.pop %v1466
      %v1771 = vtanh.pop %v1468
      %v1772 = vtanh.pop %v1471
      %v1773 = vtanh.pop %v1473
      %v1774 = vtanh.pop %v1476
      %v1775 = vtanh.pop %v1478
      %v1776 = vtanh.pop %v1481
      %v1777 = vtanh.pop %v1483
      %v1778 = vtanh.pop %v1486
      %v1779 = vtanh.pop %v1488
      %v1780 = vtanh.pop %v1491
      %v1781 = vtanh.pop %v1493
      %v1782 = vtanh.pop %v1496
      %v1783 = vtanh.pop %v1498
      %v1784 = vtanh.pop %v1501
      %v1785 = vtanh.pop %v1503
      %v1786 = vtanh.pop %v1506
      %v1787 = vtanh.pop %v1508
      %v1788 = vtanh.pop %v1511
      %v1789 = vtanh.pop %v1513
      %v1790 = vtanh.pop %v1516
      %v1791 = vtanh.pop %v1518
      %v1792 = vtanh.pop %v1521
      %v1793 = vtanh.pop %v1523
      %v1794 = vtanh.pop %v1526
      %v1795 = vtanh.pop %v1528
      %v1796 = vtanh.pop %v1531
      %v1797 = vtanh.pop %v1533
      %v1798 = vtanh.pop %v1536
      %v1799 = vtanh.pop %v1538
      %v1800 = vtanh.pop %v1541
      %v1801 = vtanh.pop %v1543
      %v1802 = vtanh.pop %v1546
      %v1803 = vtanh.pop %v1548
      %v1804 = vtanh.pop %v1551
      %v1805 = vtanh.pop %v1553
      %v1806 = vtanh.pop %v1556
      %v1807 = vtanh.pop %v1558
      %v1808 = vtanh.pop %v1561
      %v1809 = vtanh.pop %v1563
      %v1810 = vtanh.pop %v1566
      %v1811 = vtanh.pop %v1568
      %v1812 = vtanh.pop %v1571
      %v1813 = vtanh.pop %v1573
      %v1814 = vtanh.pop %v1576
      %v1815 = vtanh.pop %v1578
      %v1816 = vtanh.pop %v1581
      %v1817 = vtanh.pop %v1583
      %v1818 = vtanh.pop %v1586
      %v1819 = vtanh.pop %v1588
      %v1820 = vtanh.pop %v1591
      %v1821 = vtanh.pop %v1593
      %v1822 = vtanh.pop %v1596
      %v1823 = vtanh.pop %v1598
      %v1824 = vtanh.pop %v1601
      %v1825 = vtanh.pop %v1603
      %v1826 = vtanh.pop %v1606
      %v1827 = vtanh.pop %v1608
      %v1828 = vtanh.pop %v1611
      %v1829 = vtanh.pop %v1613
      %v1830 = vtanh.pop %v1616
      %v1831 = vtanh.pop %v1618
      %v1832 = vtanh.pop %v1621
      %v1833 = vtanh.pop %v1623
      %v1834 = vtanh.pop %v1626
      %v1835 = vtanh.pop %v1628
      %v1836 = vtanh.pop %v1631
      %v1837 = vtanh.pop %v1633
      %v1838 = vtanh.pop %v1636
      %v1839 = vtanh.pop %v1638
      %v1840 = vtanh.pop %v1641
      %v1841 = vtanh.pop %v1643
      %v1842 = vtanh.pop %v1646
      %v1843 = vtanh.pop %v1648
      %v1844 = vtanh.pop %v1651
      %v1845 = vtanh.pop %v1653
      %v1846 = vtanh.pop %v1656
      %v1847 = vtanh.pop %v1658
      %v1848 = vtanh.pop %v1661
      %v1849 = vtanh.pop %v1663
      %v1850 = vtanh.pop %v1666
      %v1851 = vtanh.pop %v1668
      %v1852 = vtanh.pop %v1671
      %v1853 = vtanh.pop %v1673
      %v1854 = vtanh.pop %v1676
      %v1855 = vtanh.pop %v1678
      %v1856 = vtanh.pop %v1681
      %v1857 = vtanh.pop %v1683
      %v1858 = vtanh.pop %v1686
      %v1859 = vtanh.pop %v1688
      %v1860 = vtanh.pop %v1691
      %v1861 = vtanh.pop %v1693
      %v1862 = vtanh.pop %v1696
      %v1863 = vtanh.pop %v1698
      %v1864 = vtanh.pop %v1701
      %v1865 = vtanh.pop %v1703
      %v1866 = vtanh.pop %v1706
      %v1867 = vtanh.pop %v1708
      %v1868 = vtanh.pop %v1711
      %v1869 = vtanh.pop %v1713
      %v1870 = vtanh.pop %v1716
      %v1871 = vtanh.pop %v1718
      %v1872 = vtanh.pop %v1721
      %v1873 = vtanh.pop %v1723
      %v1874 = vtanh.pop %v1726
      %v1875 = vtanh.pop %v1728
      %v1876 = vtanh.pop %v1731
      %v1877 = vtanh.pop %v1733
      %v1878 = vtanh.pop %v1736
      %v1879 = vtanh.pop %v1738
      %v1880 = vtanh.pop %v1741
      %v1881 = vtanh.pop %v1743
      %v1882 = vtanh.pop %v1746
      %v1883 = vtanh.pop %v1748
      %v1884 = vtanh.pop %v1751
      %v1885 = vtanh.pop %v1753
      %v1886 = vtanh.pop %v1756
      %v1887 = vtanh.pop %v1758
      %vm1888 = vcmask 23552
      %1889 = vst.msk [vmem:[%s204] sm:$0xff] %vm1888, %v1760
      %1890 = vst.msk [vmem:[%s204 + $0x8] sm:$0xff] %vm1888, %v1761
      %1891 = vst.msk [vmem:[%s204 + $0x10] sm:$0xff] %vm1888, %v1762
      %1892 = vst.msk [vmem:[%s204 + $0x18] sm:$0xff] %vm1888, %v1763
      %1893 = vst.msk [vmem:[%s204 + $0x20] sm:$0xff] %vm1888, %v1764
      %1894 = vst.msk [vmem:[%s204 + $0x28] sm:$0xff] %vm1888, %v1765
      %1895 = vst.msk [vmem:[%s204 + $0x30] sm:$0xff] %vm1888, %v1766
      %1896 = vst.msk [vmem:[%s204 + $0x38] sm:$0xff] %vm1888, %v1767
      %1897 = vst.msk [vmem:[%s204 + $0x40] sm:$0xff] %vm1888, %v1768
      %1898 = vst.msk [vmem:[%s204 + $0x48] sm:$0xff] %vm1888, %v1769
      %1899 = vst.msk [vmem:[%s204 + $0x50] sm:$0xff] %vm1888, %v1770
      %1900 = vst.msk [vmem:[%s204 + $0x58] sm:$0xff] %vm1888, %v1771
      %1901 = vst.msk [vmem:[%s204 + $0x60] sm:$0xff] %vm1888, %v1772
      %1902 = vst.msk [vmem:[%s204 + $0x68] sm:$0xff] %vm1888, %v1773
      %1903 = vst.msk [vmem:[%s204 + $0x70] sm:$0xff] %vm1888, %v1774
      %1904 = vst.msk [vmem:[%s204 + $0x78] sm:$0xff] %vm1888, %v1775
      %1905 = vst.msk [vmem:[%s204 + $0x80] sm:$0xff] %vm1888, %v1776
      %1906 = vst.msk [vmem:[%s204 + $0x88] sm:$0xff] %vm1888, %v1777
      %1907 = vst.msk [vmem:[%s204 + $0x90] sm:$0xff] %vm1888, %v1778
      %1908 = vst.msk [vmem:[%s204 + $0x98] sm:$0xff] %vm1888, %v1779
      %1909 = vst.msk [vmem:[%s204 + $0xa0] sm:$0xff] %vm1888, %v1780
      %1910 = vst.msk [vmem:[%s204 + $0xa8] sm:$0xff] %vm1888, %v1781
      %1911 = vst.msk [vmem:[%s204 + $0xb0] sm:$0xff] %vm1888, %v1782
      %1912 = vst.msk [vmem:[%s204 + $0xb8] sm:$0xff] %vm1888, %v1783
      %1913 = vst.msk [vmem:[%s204 + $0xc0] sm:$0xff] %vm1888, %v1784
      %1914 = vst.msk [vmem:[%s204 + $0xc8] sm:$0xff] %vm1888, %v1785
      %1915 = vst.msk [vmem:[%s204 + $0xd0] sm:$0xff] %vm1888, %v1786
      %1916 = vst.msk [vmem:[%s204 + $0xd8] sm:$0xff] %vm1888, %v1787
      %1917 = vst.msk [vmem:[%s204 + $0xe0] sm:$0xff] %vm1888, %v1788
      %1918 = vst.msk [vmem:[%s204 + $0xe8] sm:$0xff] %vm1888, %v1789
      %1919 = vst.msk [vmem:[%s204 + $0xf0] sm:$0xff] %vm1888, %v1790
      %1920 = vst.msk [vmem:[%s204 + $0xf8] sm:$0xff] %vm1888, %v1791
      %1921 = vst.msk [vmem:[%s204 + $0x100] sm:$0xff] %vm1888, %v1792
      %1922 = vst.msk [vmem:[%s204 + $0x108] sm:$0xff] %vm1888, %v1793
      %1923 = vst.msk [vmem:[%s204 + $0x110] sm:$0xff] %vm1888, %v1794
      %1924 = vst.msk [vmem:[%s204 + $0x118] sm:$0xff] %vm1888, %v1795
      %1925 = vst.msk [vmem:[%s204 + $0x120] sm:$0xff] %vm1888, %v1796
      %1926 = vst.msk [vmem:[%s204 + $0x128] sm:$0xff] %vm1888, %v1797
      %1927 = vst.msk [vmem:[%s204 + $0x130] sm:$0xff] %vm1888, %v1798
      %1928 = vst.msk [vmem:[%s204 + $0x138] sm:$0xff] %vm1888, %v1799
      %1929 = vst.msk [vmem:[%s204 + $0x140] sm:$0xff] %vm1888, %v1800
      %1930 = vst.msk [vmem:[%s204 + $0x148] sm:$0xff] %vm1888, %v1801
      %1931 = vst.msk [vmem:[%s204 + $0x150] sm:$0xff] %vm1888, %v1802
      %1932 = vst.msk [vmem:[%s204 + $0x158] sm:$0xff] %vm1888, %v1803
      %1933 = vst.msk [vmem:[%s204 + $0x160] sm:$0xff] %vm1888, %v1804
      %1934 = vst.msk [vmem:[%s204 + $0x168] sm:$0xff] %vm1888, %v1805
      %1935 = vst.msk [vmem:[%s204 + $0x170] sm:$0xff] %vm1888, %v1806
      %1936 = vst.msk [vmem:[%s204 + $0x178] sm:$0xff] %vm1888, %v1807
      %1937 = vst.msk [vmem:[%s204 + $0x180] sm:$0xff] %vm1888, %v1808
      %1938 = vst.msk [vmem:[%s204 + $0x188] sm:$0xff] %vm1888, %v1809
      %1939 = vst.msk [vmem:[%s204 + $0x190] sm:$0xff] %vm1888, %v1810
      %1940 = vst.msk [vmem:[%s204 + $0x198] sm:$0xff] %vm1888, %v1811
      %1941 = vst.msk [vmem:[%s204 + $0x1a0] sm:$0xff] %vm1888, %v1812
      %1942 = vst.msk [vmem:[%s204 + $0x1a8] sm:$0xff] %vm1888, %v1813
      %1943 = vst.msk [vmem:[%s204 + $0x1b0] sm:$0xff] %vm1888, %v1814
      %1944 = vst.msk [vmem:[%s204 + $0x1b8] sm:$0xff] %vm1888, %v1815
      %1945 = vst.msk [vmem:[%s204 + $0x1c0] sm:$0xff] %vm1888, %v1816
      %1946 = vst.msk [vmem:[%s204 + $0x1c8] sm:$0xff] %vm1888, %v1817
      %1947 = vst.msk [vmem:[%s204 + $0x1d0] sm:$0xff] %vm1888, %v1818
      %1948 = vst.msk [vmem:[%s204 + $0x1d8] sm:$0xff] %vm1888, %v1819
      %1949 = vst.msk [vmem:[%s204 + $0x1e0] sm:$0xff] %vm1888, %v1820
      %1950 = vst.msk [vmem:[%s204 + $0x1e8] sm:$0xff] %vm1888, %v1821
      %1951 = vst.msk [vmem:[%s204 + $0x1f0] sm:$0xff] %vm1888, %v1822
      %1952 = vst.msk [vmem:[%s204 + $0x1f8] sm:$0xff] %vm1888, %v1823
      %1953 = vst.msk [vmem:[%s204 + $0x200] sm:$0xff] %vm1888, %v1824
      %1954 = vst.msk [vmem:[%s204 + $0x208] sm:$0xff] %vm1888, %v1825
      %1955 = vst.msk [vmem:[%s204 + $0x210] sm:$0xff] %vm1888, %v1826
      %1956 = vst.msk [vmem:[%s204 + $0x218] sm:$0xff] %vm1888, %v1827
      %1957 = vst.msk [vmem:[%s204 + $0x220] sm:$0xff] %vm1888, %v1828
      %1958 = vst.msk [vmem:[%s204 + $0x228] sm:$0xff] %vm1888, %v1829
      %1959 = vst.msk [vmem:[%s204 + $0x230] sm:$0xff] %vm1888, %v1830
      %1960 = vst.msk [vmem:[%s204 + $0x238] sm:$0xff] %vm1888, %v1831
      %1961 = vst.msk [vmem:[%s204 + $0x240] sm:$0xff] %vm1888, %v1832
      %1962 = vst.msk [vmem:[%s204 + $0x248] sm:$0xff] %vm1888, %v1833
      %1963 = vst.msk [vmem:[%s204 + $0x250] sm:$0xff] %vm1888, %v1834
      %1964 = vst.msk [vmem:[%s204 + $0x258] sm:$0xff] %vm1888, %v1835
      %1965 = vst.msk [vmem:[%s204 + $0x260] sm:$0xff] %vm1888, %v1836
      %1966 = vst.msk [vmem:[%s204 + $0x268] sm:$0xff] %vm1888, %v1837
      %1967 = vst.msk [vmem:[%s204 + $0x270] sm:$0xff] %vm1888, %v1838
      %1968 = vst.msk [vmem:[%s204 + $0x278] sm:$0xff] %vm1888, %v1839
      %1969 = vst.msk [vmem:[%s204 + $0x280] sm:$0xff] %vm1888, %v1840
      %1970 = vst.msk [vmem:[%s204 + $0x288] sm:$0xff] %vm1888, %v1841
      %1971 = vst.msk [vmem:[%s204 + $0x290] sm:$0xff] %vm1888, %v1842
      %1972 = vst.msk [vmem:[%s204 + $0x298] sm:$0xff] %vm1888, %v1843
      %1973 = vst.msk [vmem:[%s204 + $0x2a0] sm:$0xff] %vm1888, %v1844
      %1974 = vst.msk [vmem:[%s204 + $0x2a8] sm:$0xff] %vm1888, %v1845
      %1975 = vst.msk [vmem:[%s204 + $0x2b0] sm:$0xff] %vm1888, %v1846
      %1976 = vst.msk [vmem:[%s204 + $0x2b8] sm:$0xff] %vm1888, %v1847
      %1977 = vst.msk [vmem:[%s204 + $0x2c0] sm:$0xff] %vm1888, %v1848
      %1978 = vst.msk [vmem:[%s204 + $0x2c8] sm:$0xff] %vm1888, %v1849
      %1979 = vst.msk [vmem:[%s204 + $0x2d0] sm:$0xff] %vm1888, %v1850
      %1980 = vst.msk [vmem:[%s204 + $0x2d8] sm:$0xff] %vm1888, %v1851
      %1981 = vst.msk [vmem:[%s204 + $0x2e0] sm:$0xff] %vm1888, %v1852
      %1982 = vst.msk [vmem:[%s204 + $0x2e8] sm:$0xff] %vm1888, %v1853
      %1983 = vst.msk [vmem:[%s204 + $0x2f0] sm:$0xff] %vm1888, %v1854
      %1984 = vst.msk [vmem:[%s204 + $0x2f8] sm:$0xff] %vm1888, %v1855
      %1985 = vst.msk [vmem:[%s204 + $0x300] sm:$0xff] %vm1888, %v1856
      %1986 = vst.msk [vmem:[%s204 + $0x308] sm:$0xff] %vm1888, %v1857
      %1987 = vst.msk [vmem:[%s204 + $0x310] sm:$0xff] %vm1888, %v1858
      %1988 = vst.msk [vmem:[%s204 + $0x318] sm:$0xff] %vm1888, %v1859
      %1989 = vst.msk [vmem:[%s204 + $0x320] sm:$0xff] %vm1888, %v1860
      %1990 = vst.msk [vmem:[%s204 + $0x328] sm:$0xff] %vm1888, %v1861
      %1991 = vst.msk [vmem:[%s204 + $0x330] sm:$0xff] %vm1888, %v1862
      %1992 = vst.msk [vmem:[%s204 + $0x338] sm:$0xff] %vm1888, %v1863
      %1993 = vst.msk [vmem:[%s204 + $0x340] sm:$0xff] %vm1888, %v1864
      %1994 = vst.msk [vmem:[%s204 + $0x348] sm:$0xff] %vm1888, %v1865
      %1995 = vst.msk [vmem:[%s204 + $0x350] sm:$0xff] %vm1888, %v1866
      %1996 = vst.msk [vmem:[%s204 + $0x358] sm:$0xff] %vm1888, %v1867
      %1997 = vst.msk [vmem:[%s204 + $0x360] sm:$0xff] %vm1888, %v1868
      %1998 = vst.msk [vmem:[%s204 + $0x368] sm:$0xff] %vm1888, %v1869
      %1999 = vst.msk [vmem:[%s204 + $0x370] sm:$0xff] %vm1888, %v1870
      %2000 = vst.msk [vmem:[%s204 + $0x378] sm:$0xff] %vm1888, %v1871
      %2001 = vst.msk [vmem:[%s204 + $0x380] sm:$0xff] %vm1888, %v1872
      %2002 = vst.msk [vmem:[%s204 + $0x388] sm:$0xff] %vm1888, %v1873
      %2003 = vst.msk [vmem:[%s204 + $0x390] sm:$0xff] %vm1888, %v1874
      %2004 = vst.msk [vmem:[%s204 + $0x398] sm:$0xff] %vm1888, %v1875
      %2005 = vst.msk [vmem:[%s204 + $0x3a0] sm:$0xff] %vm1888, %v1876
      %2006 = vst.msk [vmem:[%s204 + $0x3a8] sm:$0xff] %vm1888, %v1877
      %2007 = vst.msk [vmem:[%s204 + $0x3b0] sm:$0xff] %vm1888, %v1878
      %2008 = vst.msk [vmem:[%s204 + $0x3b8] sm:$0xff] %vm1888, %v1879
      %2009 = vst.msk [vmem:[%s204 + $0x3c0] sm:$0xff] %vm1888, %v1880
      %2010 = vst.msk [vmem:[%s204 + $0x3c8] sm:$0xff] %vm1888, %v1881
      %2011 = vst.msk [vmem:[%s204 + $0x3d0] sm:$0xff] %vm1888, %v1882
      %2012 = vst.msk [vmem:[%s204 + $0x3d8] sm:$0xff] %vm1888, %v1883
      %2013 = vst.msk [vmem:[%s204 + $0x3e0] sm:$0xff] %vm1888, %v1884
      %2014 = vst.msk [vmem:[%s204 + $0x3e8] sm:$0xff] %vm1888, %v1885
      %2015 = vst.msk [vmem:[%s204 + $0x3f0] sm:$0xff] %vm1888, %v1886
      %2016 = vst.msk [vmem:[%s204 + $0x3f8] sm:$0xff] %vm1888, %v1887
      %s2017 = smul.u32 128, %s18
      %p2018 = scmp.lt.s32.totalorder %s17, 3
      %s2019 = scalar_select %p2018, %s17, 3
      %p2020 = scmp.lt.s32.totalorder %s2017, 255
      %s2021 = scalar_select %p2020, %s2017, 255
      %s2022 = smul.addr %s2019, 256
      %s2023 = sadd.s32 %s2021, %s2022
      %s2024 = smul.addr %s2023, 8
      %s2025 = scalar_lea.vmem %s2, %s2024
      // Predicated region
      $region29: #{generator_forward.17} parent=27 // pred_check
        %p2026 = pneg %p99
      $region30: #{generator_forward.17} parent=27 // pred_check_branch
        %2028 = sbr.rel (%p2026) target = $region32
      $region31: #{generator_forward.17} parent=27 // pred_region
        %s2029 = smul.u32 128, %s18
      $region32: #{generator_forward.17} parent=27 // pred_fallthru
        _
    $region28: #{generator_forward.17} parent=5 // pred_fallthru
      _
    %p2030 = scmp.le.s32.totalorder 2, %s8
    // Predicated region
    $region33: #{generator_forward.17} parent=5 // pred_check
      %p2031 = pneg %p2030
    $region34: #{generator_forward.17} parent=5 // pred_check_branch
      %2033 = sbr.rel (%p2031) target = $region36
    $region35: #{generator_forward.17} parent=5 // pred_region
      %s2034 = ssub.s32 %s8, 2
      // Predicated region
      $region37: #{generator_forward.17} parent=35 // pred_check
        %p2035 = pneg %p105
      $region38: #{generator_forward.17} parent=35 // pred_check_branch
        %2037 = sbr.rel (%p2035) target = $region40
      $region39: #{generator_forward.17} parent=35 // pred_region
        %s2038 = smul.u32 128, %s20
        %p2039 = scmp.lt.s32.totalorder %s19, 3
        %s2040 = scalar_select %p2039, %s19, 3
        %p2041 = scmp.lt.s32.totalorder %s2038, 255
        %s2042 = scalar_select %p2041, %s2038, 255
        %s2043 = smul.addr %s2040, 256
        %s2044 = sadd.s32 %s2042, %s2043
        %s2045 = smul.addr %s2044, 8
        %s2046 = scalar_lea.vmem %s2, %s2045
      $region40: #{generator_forward.17} parent=35 // pred_fallthru
        _
    $region36: #{generator_forward.17} parent=5 // pred_fallthru
      _
  $region6: #{generator_forward.17} parent=0 // loop_footer
    %s12 = sadd.s32 1, %s8
  $region7: #{generator_forward.17} parent=0 // loop_footer_branch
    %7 = sbr.rel target = $region3
  $region8: #{generator_forward.17} parent=0 // loop_exit
    _

</llo_original>
